<compile_context>
chip_gen: v7x
topology: tpu7x:2x2x1
jax: 0.10.0
libtpu: 0.0.40
codegen_flags: <defaults>
</compile_context>

<pallas_src>
import functools

import jax
import jax.numpy as jnp
from jax.experimental import pallas as pl
from jax.experimental.pallas import tpu as pltpu


_VMEM_LIMIT = 32 * 1024 * 1024  # raise above v5e's 16 MiB scoped default


def _round_up(x, m):
    return (x + m - 1) // m * m


def _pad2d(a, rows, cols):
    r, c = a.shape
    if rows == r and cols == c:
        return a
    return jnp.pad(a, ((0, rows - r), (0, cols - c)))


# --------------------------------------------------------------------------
# Pallas kernels
# --------------------------------------------------------------------------
def _mm_bias_act_kernel(p_ref, w_ref, b_ref, o_ref, *, act):
    # p_ref: (TILE_M, Kp) bf16, w_ref: (Kp, Cp) bf16, b_ref: (1, Cp) f32
    y = jnp.dot(p_ref[...], w_ref[...], preferred_element_type=jnp.float32)
    y = y + b_ref[...]
    if act == "lrelu":
        y = jnp.where(y > 0, y, 0.2 * y)
    elif act == "sigmoid":
        y = jax.nn.sigmoid(y)
    o_ref[...] = y.astype(o_ref.dtype)


def _mm_bias_bn_act_kernel(p_ref, w_ref, b_ref, o_ref, *, act):
    # Single block over all M rows: training-mode BatchNorm2d batch statistics
    # are computed over the full (N, H, W) row axis, exactly as PyTorch does.
    y = jnp.dot(p_ref[...], w_ref[...], preferred_element_type=jnp.float32)
    y = y + b_ref[...]
    mean = jnp.mean(y, axis=0, keepdims=True)
    var = jnp.mean((y - mean) ** 2, axis=0, keepdims=True)       # biased var
    y = (y - mean) * jax.lax.rsqrt(var + 1e-5)
    if act == "lrelu":
        y = jnp.where(y > 0, y, 0.2 * y)
    elif act == "sigmoid":
        y = jax.nn.sigmoid(y)
    o_ref[...] = y.astype(o_ref.dtype)


# --------------------------------------------------------------------------
# Layer wrapper: pad to lane-dense shapes, cast to bf16, launch pallas_call
# --------------------------------------------------------------------------
def conv_layer_pallas(patches, w_mat, bias, *, use_bn, act, out_dtype):
    M, K = patches.shape
    _, cout = w_mat.shape
    K_pad = _round_up(K, 128)                       # lane-dense K
    C_pad = max(_round_up(cout, 128), 128)          # lane-dense output stores

    w_p = _pad2d(w_mat, K_pad, C_pad).astype(jnp.bfloat16)
    b_p = jnp.pad(bias, (0, C_pad - cout)).reshape(1, C_pad).astype(jnp.float32)

    if use_bn:
        # Keep all M rows in one block (no M padding!) so batch stats are exact.
        p_p = _pad2d(patches, M, K_pad).astype(jnp.bfloat16)
        kernel = functools.partial(_mm_bias_bn_act_kernel, act=act)
        out = pl.pallas_call(
            kernel,
            out_shape=jax.ShapeDtypeStruct((M, C_pad), out_dtype),
            grid=(1,),
            in_specs=[
                pl.BlockSpec((M, K_pad), lambda i: (0, 0)),
                pl.BlockSpec((K_pad, C_pad), lambda i: (0, 0)),
                pl.BlockSpec((1, C_pad), lambda i: (0, 0)),
            ],
            out_specs=pl.BlockSpec((M, C_pad), lambda i: (0, 0)),
            compiler_params=pltpu.CompilerParams(
                dimension_semantics=("arbitrary",),
                vmem_limit_bytes=_VMEM_LIMIT),
        )(p_p, w_p, b_p)
    else:
        # No BN -> zero pad rows are harmless; tile M for pipelining / megacore.
        tile_m = min(512, _round_up(M, 8))
        M_pad = _round_up(M, tile_m)
        p_p = _pad2d(patches, M_pad, K_pad).astype(jnp.bfloat16)
        kernel = functools.partial(_mm_bias_act_kernel, act=act)
        out = pl.pallas_call(
            kernel,
            out_shape=jax.ShapeDtypeStruct((M_pad, C_pad), out_dtype),
            grid=(M_pad // tile_m,),
            in_specs=[
                pl.BlockSpec((tile_m, K_pad), lambda i: (i, 0)),
                pl.BlockSpec((K_pad, C_pad), lambda i: (0, 0)),
                pl.BlockSpec((1, C_pad), lambda i: (0, 0)),
            ],
            out_specs=pl.BlockSpec((tile_m, C_pad), lambda i: (i, 0)),
            compiler_params=pltpu.CompilerParams(
                dimension_semantics=("parallel",),
                vmem_limit_bytes=_VMEM_LIMIT),
        )(p_p, w_p, b_p)

    return out[:M, :cout]


# --------------------------------------------------------------------------
# Glue: im2col patch extraction (plain JAX) matching PyTorch Conv2d semantics
# --------------------------------------------------------------------------
def im2col(x_nhwc, k, stride, pad):
    x = jnp.pad(x_nhwc, ((0, 0), (pad, pad), (pad, pad), (0, 0)))
    n, hp, wp, c = x.shape
    ho = (hp - k) // stride + 1
    wo = (wp - k) // stride + 1
    cols = []
    for kh in range(k):
        for kw in range(k):
            cols.append(
                x[:, kh:kh + stride * (ho - 1) + 1:stride,
                     kw:kw + stride * (wo - 1) + 1:stride, :]
            )
    patches = jnp.stack(cols, axis=3)          # (N, Ho, Wo, KH*KW, C)
    return patches.reshape(n * ho * wo, k * k * c), n, ho, wo


# --------------------------------------------------------------------------
# Parameters (deterministic, mimics weight_init(0.0, 0.02); biases zero)
# --------------------------------------------------------------------------
def init_params(key, in_dim=6, d=16):
    chans = [(in_dim, d), (d, 2 * d), (2 * d, 4 * d),
             (4 * d, 8 * d), (8 * d, 16 * d), (16 * d, 1)]
    params = {}
    for i, (cin, cout) in enumerate(chans, start=1):
        key, sub = jax.random.split(key)
        w = 0.02 * jax.random.normal(sub, (cout, cin, 4, 4), jnp.float32)
        b = jnp.zeros((cout,), jnp.float32)
        params[f"conv{i}"] = (w, b)
    return params


# --------------------------------------------------------------------------
# Forward pass (matches Discriminator.forward)
# --------------------------------------------------------------------------
LAYER_CFG = [
    ("conv1", 2, False, "lrelu"),
    ("conv2", 2, True, "lrelu"),
    ("conv3", 2, True, "lrelu"),
    ("conv4", 2, True, "lrelu"),
    ("conv5", 1, True, "lrelu"),
    ("conv6", 1, False, "sigmoid"),
]


def discriminator_forward(params, inp_nchw, label_nchw):
    x = jnp.concatenate([inp_nchw, label_nchw], axis=1)   # (N, 6, H, W) NCHW
    x = jnp.transpose(x, (0, 2, 3, 1)).astype(jnp.bfloat16)  # NHWC, bf16 stream
    for name, stride, use_bn, act in LAYER_CFG:
        w, b = params[name]                                # w: (Cout, Cin, 4, 4)
        cout, cin, k, _ = w.shape
        patches, n, ho, wo = im2col(x, k, stride, pad=1)
        # (Cout, Cin, KH, KW) -> (KH, KW, Cin, Cout) -> (KH*KW*Cin, Cout)
        w_mat = jnp.transpose(w, (2, 3, 1, 0)).reshape(k * k * cin, cout)
        out_dtype = jnp.float32 if name == "conv6" else jnp.bfloat16
        y = conv_layer_pallas(patches, w_mat, b, use_bn=use_bn, act=act,
                              out_dtype=out_dtype)
        x = y.reshape(n, ho, wo, cout)
    return jnp.transpose(x, (0, 3, 1, 2))                  # back to NCHW


if __name__ == "__main__":
    key = jax.random.PRNGKey(0)
    kp, ki, kl = jax.random.split(key, 3)

    # Small shapes: batch=2, 3-channel image + 3-channel label (in_dim=6), 64x64
    # spatial so the four stride-2 convs + two k=4 s=1 convs remain valid
    # (64 -> 32 -> 16 -> 8 -> 4 -> 3 -> 2).
    params = init_params(kp, in_dim=6, d=16)
    inp = jax.random.normal(ki, (2, 3, 64, 64), jnp.float32)
    label = jax.random.normal(kl, (2, 3, 64, 64), jnp.float32)

    forward = jax.jit(discriminator_forward)
    out = forward(params, inp, label)
    out = jax.block_until_ready(out)
    assert out.shape == (2, 1, 2, 2), out.shape
    assert bool(jnp.all((out >= 0.0) & (out <= 1.0)))
    print("KERNEL_OK")
</pallas_src>

<mosaic_0001>
module attributes {stable_mosaic.version = 11 : i64} {
  func.func @_mm_bias_act_kernel(%arg0: i32, %arg1: memref<512x128xbf16, #tpu.memory_space<vmem>>, %arg2: memref<128x128xbf16, #tpu.memory_space<vmem>>, %arg3: memref<1x128xf32, #tpu.memory_space<vmem>>, %arg4: memref<512x128xbf16, #tpu.memory_space<vmem>>) attributes {dimension_semantics = [#tpu.dimension_semantics<parallel>], iteration_bounds = array<i64: 4>, scalar_prefetch = 0 : i64, scratch_operands = 0 : i64, tpu.core_type = #tpu.core_type<tc>, window_params = [{transform_indices = @transform_0, window_bounds = array<i64: 512, 128>}, {pipeline_mode = #tpu.pipeline_mode<synchronous>, transform_indices = @transform_1, window_bounds = array<i64: 128, 128>}, {pipeline_mode = #tpu.pipeline_mode<synchronous>, transform_indices = @transform_2, window_bounds = array<i64: 1, 128>}, {transform_indices = @transform_3, window_bounds = array<i64: 512, 128>}]} {
    %c0 = arith.constant 0 : index
    %c0_0 = arith.constant 0 : index
    %0 = vector.load %arg1[%c0, %c0_0] : memref<512x128xbf16, #tpu.memory_space<vmem>>, vector<512x128xbf16>
    %c0_1 = arith.constant 0 : index
    %c0_2 = arith.constant 0 : index
    %1 = vector.load %arg2[%c0_1, %c0_2] : memref<128x128xbf16, #tpu.memory_space<vmem>>, vector<128x128xbf16>
    %cst = arith.constant dense<0.000000e+00> : vector<512x128xf32>
    %2 = tpu.matmul %0, %1, %cst {dimension_numbers = #tpu.dot_dimension_numbers<[1], [0], [0], [1], [0, 0, 1, 1], [], []>} : vector<512x128xbf16>, vector<128x128xbf16>, vector<512x128xf32> -> vector<512x128xf32>
    %c0_3 = arith.constant 0 : index
    %c0_4 = arith.constant 0 : index
    %3 = vector.load %arg3[%c0_3, %c0_4] : memref<1x128xf32, #tpu.memory_space<vmem>>, vector<1x128xf32>
    %4 = vector.broadcast %3 : vector<1x128xf32> to vector<512x128xf32>
    %5 = arith.addf %2, %4 : vector<512x128xf32>
    %cst_5 = arith.constant 0.000000e+00 : f32
    %6 = vector.broadcast %cst_5 : f32 to vector<512x128xf32>
    %7 = arith.cmpf ogt, %5, %6 : vector<512x128xf32>
    %cst_6 = arith.constant 2.000000e-01 : f32
    %8 = vector.broadcast %cst_6 : f32 to vector<512x128xf32>
    %9 = arith.mulf %8, %5 : vector<512x128xf32>
    %10 = arith.select %7, %5, %9 : vector<512x128xi1>, vector<512x128xf32>
    %11 = arith.truncf %10 : vector<512x128xf32> to vector<512x128xbf16>
    %c0_7 = arith.constant 0 : index
    %c0_8 = arith.constant 0 : index
    %12 = vector.load %arg4[%c0_7, %c0_8] : memref<512x128xbf16, #tpu.memory_space<vmem>>, vector<512x128xbf16>
    tpu.vector_store %arg4[%c0_7, %c0_8], %11 {strides = array<i32>} : memref<512x128xbf16, #tpu.memory_space<vmem>>, vector<512x128xbf16>,
    return
  }
  func.func @transform_0(%arg0: i32) -> (i32, i32) {
    %c0_i32 = arith.constant 0 : i32
    %c0_i32_0 = arith.constant 0 : i32
    return %arg0, %c0_i32 : i32, i32
  }
  func.func @transform_1(%arg0: i32) -> (i32, i32) {
    %c0_i32 = arith.constant 0 : i32
    %c0_i32_0 = arith.constant 0 : i32
    %c0_i32_1 = arith.constant 0 : i32
    return %c0_i32, %c0_i32_0 : i32, i32
  }
  func.func @transform_2(%arg0: i32) -> (i32, i32) {
    %c0_i32 = arith.constant 0 : i32
    %c0_i32_0 = arith.constant 0 : i32
    %c0_i32_1 = arith.constant 0 : i32
    return %c0_i32, %c0_i32_0 : i32, i32
  }
  func.func @transform_3(%arg0: i32) -> (i32, i32) {
    %c0_i32 = arith.constant 0 : i32
    %c0_i32_0 = arith.constant 0 : i32
    return %arg0, %c0_i32 : i32, i32
  }
}

module attributes {stable_mosaic.version = 11 : i64} {
  func.func @_mm_bias_bn_act_kernel(%arg0: i32, %arg1: memref<512x256xbf16, #tpu.memory_space<vmem>>, %arg2: memref<256x128xbf16, #tpu.memory_space<vmem>>, %arg3: memref<1x128xf32, #tpu.memory_space<vmem>>, %arg4: memref<512x128xbf16, #tpu.memory_space<vmem>>) attributes {dimension_semantics = [#tpu.dimension_semantics<arbitrary>], iteration_bounds = array<i64: 1>, scalar_prefetch = 0 : i64, scratch_operands = 0 : i64, tpu.core_type = #tpu.core_type<tc>, window_params = [{pipeline_mode = #tpu.pipeline_mode<synchronous>, transform_indices = @transform_0, window_bounds = array<i64: 512, 256>}, {pipeline_mode = #tpu.pipeline_mode<synchronous>, transform_indices = @transform_1, window_bounds = array<i64: 256, 128>}, {pipeline_mode = #tpu.pipeline_mode<synchronous>, transform_indices = @transform_2, window_bounds = array<i64: 1, 128>}, {pipeline_mode = #tpu.pipeline_mode<synchronous>, transform_indices = @transform_3, window_bounds = array<i64: 512, 128>}]} {
    %c0 = arith.constant 0 : index
    %c0_0 = arith.constant 0 : index
    %0 = vector.load %arg1[%c0, %c0_0] : memref<512x256xbf16, #tpu.memory_space<vmem>>, vector<512x256xbf16>
    %c0_1 = arith.constant 0 : index
    %c0_2 = arith.constant 0 : index
    %1 = vector.load %arg2[%c0_1, %c0_2] : memref<256x128xbf16, #tpu.memory_space<vmem>>, vector<256x128xbf16>
    %cst = arith.constant dense<0.000000e+00> : vector<512x128xf32>
    %2 = tpu.matmul %0, %1, %cst {dimension_numbers = #tpu.dot_dimension_numbers<[1], [0], [0], [1], [0, 0, 1, 1], [], []>} : vector<512x256xbf16>, vector<256x128xbf16>, vector<512x128xf32> -> vector<512x128xf32>
    %c0_3 = arith.constant 0 : index
    %c0_4 = arith.constant 0 : index
    %3 = vector.load %arg3[%c0_3, %c0_4] : memref<1x128xf32, #tpu.memory_space<vmem>>, vector<1x128xf32>
    %4 = vector.broadcast %3 : vector<1x128xf32> to vector<512x128xf32>
    %5 = arith.addf %2, %4 : vector<512x128xf32>
    %cst_5 = arith.constant dense<0.000000e+00> : vector<128xf32>
    %6 = vector.multi_reduction <add>, %5, %cst_5 [0] : vector<512x128xf32> to vector<128xf32>
    %7 = vector.shape_cast %6 : vector<128xf32> to vector<1x128xf32>
    %cst_6 = arith.constant 5.120000e+02 : f32
    %8 = vector.broadcast %cst_6 : f32 to vector<1x128xf32>
    %9 = arith.divf %7, %8 : vector<1x128xf32>
    %10 = vector.broadcast %9 : vector<1x128xf32> to vector<512x128xf32>
    %11 = arith.subf %5, %10 : vector<512x128xf32>
    %12 = arith.mulf %11, %11 : vector<512x128xf32>
    %cst_7 = arith.constant dense<0.000000e+00> : vector<128xf32>
    %13 = vector.multi_reduction <add>, %12, %cst_7 [0] : vector<512x128xf32> to vector<128xf32>
    %14 = vector.shape_cast %13 : vector<128xf32> to vector<1x128xf32>
    %cst_8 = arith.constant 5.120000e+02 : f32
    %15 = vector.broadcast %cst_8 : f32 to vector<1x128xf32>
    %16 = arith.divf %14, %15 : vector<1x128xf32>
    %17 = vector.broadcast %9 : vector<1x128xf32> to vector<512x128xf32>
    %18 = arith.subf %5, %17 : vector<512x128xf32>
    %cst_9 = arith.constant 9.99999974E-6 : f32
    %19 = vector.broadcast %cst_9 : f32 to vector<1x128xf32>
    %20 = arith.addf %16, %19 : vector<1x128xf32>
    %21 = math.rsqrt %20 : vector<1x128xf32>
    %22 = vector.broadcast %21 : vector<1x128xf32> to vector<512x128xf32>
    %23 = arith.mulf %18, %22 : vector<512x128xf32>
    %cst_10 = arith.constant 0.000000e+00 : f32
    %24 = vector.broadcast %cst_10 : f32 to vector<512x128xf32>
    %25 = arith.cmpf ogt, %23, %24 : vector<512x128xf32>
    %cst_11 = arith.constant 2.000000e-01 : f32
    %26 = vector.broadcast %cst_11 : f32 to vector<512x128xf32>
    %27 = arith.mulf %26, %23 : vector<512x128xf32>
    %28 = arith.select %25, %23, %27 : vector<512x128xi1>, vector<512x128xf32>
    %29 = arith.truncf %28 : vector<512x128xf32> to vector<512x128xbf16>
    %c0_12 = arith.constant 0 : index
    %c0_13 = arith.constant 0 : index
    %30 = vector.load %arg4[%c0_12, %c0_13] : memref<512x128xbf16, #tpu.memory_space<vmem>>, vector<512x128xbf16>
    tpu.vector_store %arg4[%c0_12, %c0_13], %29 {strides = array<i32>} : memref<512x128xbf16, #tpu.memory_space<vmem>>, vector<512x128xbf16>,
    return
  }
  func.func @transform_0(%arg0: i32) -> (i32, i32) {
    %c0_i32 = arith.constant 0 : i32
    %c0_i32_0 = arith.constant 0 : i32
    %c0_i32_1 = arith.constant 0 : i32
    return %c0_i32, %c0_i32_0 : i32, i32
  }
  func.func @transform_1(%arg0: i32) -> (i32, i32) {
    %c0_i32 = arith.constant 0 : i32
    %c0_i32_0 = arith.constant 0 : i32
    %c0_i32_1 = arith.constant 0 : i32
    return %c0_i32, %c0_i32_0 : i32, i32
  }
  func.func @transform_2(%arg0: i32) -> (i32, i32) {
    %c0_i32 = arith.constant 0 : i32
    %c0_i32_0 = arith.constant 0 : i32
    %c0_i32_1 = arith.constant 0 : i32
    return %c0_i32, %c0_i32_0 : i32, i32
  }
  func.func @transform_3(%arg0: i32) -> (i32, i32) {
    %c0_i32 = arith.constant 0 : i32
    %c0_i32_0 = arith.constant 0 : i32
    %c0_i32_1 = arith.constant 0 : i32
    return %c0_i32, %c0_i32_0 : i32, i32
  }
}

module attributes {stable_mosaic.version = 11 : i64} {
  func.func @_mm_bias_bn_act_kernel(%arg0: i32, %arg1: memref<128x512xbf16, #tpu.memory_space<vmem>>, %arg2: memref<512x128xbf16, #tpu.memory_space<vmem>>, %arg3: memref<1x128xf32, #tpu.memory_space<vmem>>, %arg4: memref<128x128xbf16, #tpu.memory_space<vmem>>) attributes {dimension_semantics = [#tpu.dimension_semantics<arbitrary>], iteration_bounds = array<i64: 1>, scalar_prefetch = 0 : i64, scratch_operands = 0 : i64, tpu.core_type = #tpu.core_type<tc>, window_params = [{pipeline_mode = #tpu.pipeline_mode<synchronous>, transform_indices = @transform_0, window_bounds = array<i64: 128, 512>}, {pipeline_mode = #tpu.pipeline_mode<synchronous>, transform_indices = @transform_1, window_bounds = array<i64: 512, 128>}, {pipeline_mode = #tpu.pipeline_mode<synchronous>, transform_indices = @transform_2, window_bounds = array<i64: 1, 128>}, {pipeline_mode = #tpu.pipeline_mode<synchronous>, transform_indices = @transform_3, window_bounds = array<i64: 128, 128>}]} {
    %c0 = arith.constant 0 : index
    %c0_0 = arith.constant 0 : index
    %0 = vector.load %arg1[%c0, %c0_0] : memref<128x512xbf16, #tpu.memory_space<vmem>>, vector<128x512xbf16>
    %c0_1 = arith.constant 0 : index
    %c0_2 = arith.constant 0 : index
    %1 = vector.load %arg2[%c0_1, %c0_2] : memref<512x128xbf16, #tpu.memory_space<vmem>>, vector<512x128xbf16>
    %cst = arith.constant dense<0.000000e+00> : vector<128x128xf32>
    %2 = tpu.matmul %0, %1, %cst {dimension_numbers = #tpu.dot_dimension_numbers<[1], [0], [0], [1], [0, 0, 1, 1], [], []>} : vector<128x512xbf16>, vector<512x128xbf16>, vector<128x128xf32> -> vector<128x128xf32>
    %c0_3 = arith.constant 0 : index
    %c0_4 = arith.constant 0 : index
    %3 = vector.load %arg3[%c0_3, %c0_4] : memref<1x128xf32, #tpu.memory_space<vmem>>, vector<1x128xf32>
    %4 = vector.broadcast %3 : vector<1x128xf32> to vector<128x128xf32>
    %5 = arith.addf %2, %4 : vector<128x128xf32>
    %cst_5 = arith.constant dense<0.000000e+00> : vector<128xf32>
    %6 = vector.multi_reduction <add>, %5, %cst_5 [0] : vector<128x128xf32> to vector<128xf32>
    %7 = vector.shape_cast %6 : vector<128xf32> to vector<1x128xf32>
    %cst_6 = arith.constant 1.280000e+02 : f32
    %8 = vector.broadcast %cst_6 : f32 to vector<1x128xf32>
    %9 = arith.divf %7, %8 : vector<1x128xf32>
    %10 = vector.broadcast %9 : vector<1x128xf32> to vector<128x128xf32>
    %11 = arith.subf %5, %10 : vector<128x128xf32>
    %12 = arith.mulf %11, %11 : vector<128x128xf32>
    %cst_7 = arith.constant dense<0.000000e+00> : vector<128xf32>
    %13 = vector.multi_reduction <add>, %12, %cst_7 [0] : vector<128x128xf32> to vector<128xf32>
    %14 = vector.shape_cast %13 : vector<128xf32> to vector<1x128xf32>
    %cst_8 = arith.constant 1.280000e+02 : f32
    %15 = vector.broadcast %cst_8 : f32 to vector<1x128xf32>
    %16 = arith.divf %14, %15 : vector<1x128xf32>
    %17 = vector.broadcast %9 : vector<1x128xf32> to vector<128x128xf32>
    %18 = arith.subf %5, %17 : vector<128x128xf32>
    %cst_9 = arith.constant 9.99999974E-6 : f32
    %19 = vector.broadcast %cst_9 : f32 to vector<1x128xf32>
    %20 = arith.addf %16, %19 : vector<1x128xf32>
    %21 = math.rsqrt %20 : vector<1x128xf32>
    %22 = vector.broadcast %21 : vector<1x128xf32> to vector<128x128xf32>
    %23 = arith.mulf %18, %22 : vector<128x128xf32>
    %cst_10 = arith.constant 0.000000e+00 : f32
    %24 = vector.broadcast %cst_10 : f32 to vector<128x128xf32>
    %25 = arith.cmpf ogt, %23, %24 : vector<128x128xf32>
    %cst_11 = arith.constant 2.000000e-01 : f32
    %26 = vector.broadcast %cst_11 : f32 to vector<128x128xf32>
    %27 = arith.mulf %26, %23 : vector<128x128xf32>
    %28 = arith.select %25, %23, %27 : vector<128x128xi1>, vector<128x128xf32>
    %29 = arith.truncf %28 : vector<128x128xf32> to vector<128x128xbf16>
    %c0_12 = arith.constant 0 : index
    %c0_13 = arith.constant 0 : index
    %30 = vector.load %arg4[%c0_12, %c0_13] : memref<128x128xbf16, #tpu.memory_space<vmem>>, vector<128x128xbf16>
    tpu.vector_store %arg4[%c0_12, %c0_13], %29 {strides = array<i32>} : memref<128x128xbf16, #tpu.memory_space<vmem>>, vector<128x128xbf16>,
    return
  }
  func.func @transform_0(%arg0: i32) -> (i32, i32) {
    %c0_i32 = arith.constant 0 : i32
    %c0_i32_0 = arith.constant 0 : i32
    %c0_i32_1 = arith.constant 0 : i32
    return %c0_i32, %c0_i32_0 : i32, i32
  }
  func.func @transform_1(%arg0: i32) -> (i32, i32) {
    %c0_i32 = arith.constant 0 : i32
    %c0_i32_0 = arith.constant 0 : i32
    %c0_i32_1 = arith.constant 0 : i32
    return %c0_i32, %c0_i32_0 : i32, i32
  }
  func.func @transform_2(%arg0: i32) -> (i32, i32) {
    %c0_i32 = arith.constant 0 : i32
    %c0_i32_0 = arith.constant 0 : i32
    %c0_i32_1 = arith.constant 0 : i32
    return %c0_i32, %c0_i32_0 : i32, i32
  }
  func.func @transform_3(%arg0: i32) -> (i32, i32) {
    %c0_i32 = arith.constant 0 : i32
    %c0_i32_0 = arith.constant 0 : i32
    %c0_i32_1 = arith.constant 0 : i32
    return %c0_i32, %c0_i32_0 : i32, i32
  }
}

module attributes {stable_mosaic.version = 11 : i64} {
  func.func @_mm_bias_bn_act_kernel(%arg0: i32, %arg1: memref<32x1024xbf16, #tpu.memory_space<vmem>>, %arg2: memref<1024x128xbf16, #tpu.memory_space<vmem>>, %arg3: memref<1x128xf32, #tpu.memory_space<vmem>>, %arg4: memref<32x128xbf16, #tpu.memory_space<vmem>>) attributes {dimension_semantics = [#tpu.dimension_semantics<arbitrary>], iteration_bounds = array<i64: 1>, scalar_prefetch = 0 : i64, scratch_operands = 0 : i64, tpu.core_type = #tpu.core_type<tc>, window_params = [{pipeline_mode = #tpu.pipeline_mode<synchronous>, transform_indices = @transform_0, window_bounds = array<i64: 32, 1024>}, {pipeline_mode = #tpu.pipeline_mode<synchronous>, transform_indices = @transform_1, window_bounds = array<i64: 1024, 128>}, {pipeline_mode = #tpu.pipeline_mode<synchronous>, transform_indices = @transform_2, window_bounds = array<i64: 1, 128>}, {pipeline_mode = #tpu.pipeline_mode<synchronous>, transform_indices = @transform_3, window_bounds = array<i64: 32, 128>}]} {
    %c0 = arith.constant 0 : index
    %c0_0 = arith.constant 0 : index
    %0 = vector.load %arg1[%c0, %c0_0] : memref<32x1024xbf16, #tpu.memory_space<vmem>>, vector<32x1024xbf16>
    %c0_1 = arith.constant 0 : index
    %c0_2 = arith.constant 0 : index
    %1 = vector.load %arg2[%c0_1, %c0_2] : memref<1024x128xbf16, #tpu.memory_space<vmem>>, vector<1024x128xbf16>
    %cst = arith.constant dense<0.000000e+00> : vector<32x128xf32>
    %2 = tpu.matmul %0, %1, %cst {dimension_numbers = #tpu.dot_dimension_numbers<[1], [0], [0], [1], [0, 0, 1, 1], [], []>} : vector<32x1024xbf16>, vector<1024x128xbf16>, vector<32x128xf32> -> vector<32x128xf32>
    %c0_3 = arith.constant 0 : index
    %c0_4 = arith.constant 0 : index
    %3 = vector.load %arg3[%c0_3, %c0_4] : memref<1x128xf32, #tpu.memory_space<vmem>>, vector<1x128xf32>
    %4 = vector.broadcast %3 : vector<1x128xf32> to vector<32x128xf32>
    %5 = arith.addf %2, %4 : vector<32x128xf32>
    %cst_5 = arith.constant dense<0.000000e+00> : vector<128xf32>
    %6 = vector.multi_reduction <add>, %5, %cst_5 [0] : vector<32x128xf32> to vector<128xf32>
    %7 = vector.shape_cast %6 : vector<128xf32> to vector<1x128xf32>
    %cst_6 = arith.constant 3.200000e+01 : f32
    %8 = vector.broadcast %cst_6 : f32 to vector<1x128xf32>
    %9 = arith.divf %7, %8 : vector<1x128xf32>
    %10 = vector.broadcast %9 : vector<1x128xf32> to vector<32x128xf32>
    %11 = arith.subf %5, %10 : vector<32x128xf32>
    %12 = arith.mulf %11, %11 : vector<32x128xf32>
    %cst_7 = arith.constant dense<0.000000e+00> : vector<128xf32>
    %13 = vector.multi_reduction <add>, %12, %cst_7 [0] : vector<32x128xf32> to vector<128xf32>
    %14 = vector.shape_cast %13 : vector<128xf32> to vector<1x128xf32>
    %cst_8 = arith.constant 3.200000e+01 : f32
    %15 = vector.broadcast %cst_8 : f32 to vector<1x128xf32>
    %16 = arith.divf %14, %15 : vector<1x128xf32>
    %17 = vector.broadcast %9 : vector<1x128xf32> to vector<32x128xf32>
    %18 = arith.subf %5, %17 : vector<32x128xf32>
    %cst_9 = arith.constant 9.99999974E-6 : f32
    %19 = vector.broadcast %cst_9 : f32 to vector<1x128xf32>
    %20 = arith.addf %16, %19 : vector<1x128xf32>
    %21 = math.rsqrt %20 : vector<1x128xf32>
    %22 = vector.broadcast %21 : vector<1x128xf32> to vector<32x128xf32>
    %23 = arith.mulf %18, %22 : vector<32x128xf32>
    %cst_10 = arith.constant 0.000000e+00 : f32
    %24 = vector.broadcast %cst_10 : f32 to vector<32x128xf32>
    %25 = arith.cmpf ogt, %23, %24 : vector<32x128xf32>
    %cst_11 = arith.constant 2.000000e-01 : f32
    %26 = vector.broadcast %cst_11 : f32 to vector<32x128xf32>
    %27 = arith.mulf %26, %23 : vector<32x128xf32>
    %28 = arith.select %25, %23, %27 : vector<32x128xi1>, vector<32x128xf32>
    %29 = arith.truncf %28 : vector<32x128xf32> to vector<32x128xbf16>
    %c0_12 = arith.constant 0 : index
    %c0_13 = arith.constant 0 : index
    %30 = vector.load %arg4[%c0_12, %c0_13] : memref<32x128xbf16, #tpu.memory_space<vmem>>, vector<32x128xbf16>
    tpu.vector_store %arg4[%c0_12, %c0_13], %29 {strides = array<i32>} : memref<32x128xbf16, #tpu.memory_space<vmem>>, vector<32x128xbf16>,
    return
  }
  func.func @transform_0(%arg0: i32) -> (i32, i32) {
    %c0_i32 = arith.constant 0 : i32
    %c0_i32_0 = arith.constant 0 : i32
    %c0_i32_1 = arith.constant 0 : i32
    return %c0_i32, %c0_i32_0 : i32, i32
  }
  func.func @transform_1(%arg0: i32) -> (i32, i32) {
    %c0_i32 = arith.constant 0 : i32
    %c0_i32_0 = arith.constant 0 : i32
    %c0_i32_1 = arith.constant 0 : i32
    return %c0_i32, %c0_i32_0 : i32, i32
  }
  func.func @transform_2(%arg0: i32) -> (i32, i32) {
    %c0_i32 = arith.constant 0 : i32
    %c0_i32_0 = arith.constant 0 : i32
    %c0_i32_1 = arith.constant 0 : i32
    return %c0_i32, %c0_i32_0 : i32, i32
  }
  func.func @transform_3(%arg0: i32) -> (i32, i32) {
    %c0_i32 = arith.constant 0 : i32
    %c0_i32_0 = arith.constant 0 : i32
    %c0_i32_1 = arith.constant 0 : i32
    return %c0_i32, %c0_i32_0 : i32, i32
  }
}

module attributes {stable_mosaic.version = 11 : i64} {
  func.func @_mm_bias_bn_act_kernel(%arg0: i32, %arg1: memref<18x2048xbf16, #tpu.memory_space<vmem>>, %arg2: memref<2048x256xbf16, #tpu.memory_space<vmem>>, %arg3: memref<1x256xf32, #tpu.memory_space<vmem>>, %arg4: memref<18x256xbf16, #tpu.memory_space<vmem>>) attributes {dimension_semantics = [#tpu.dimension_semantics<arbitrary>], iteration_bounds = array<i64: 1>, scalar_prefetch = 0 : i64, scratch_operands = 0 : i64, tpu.core_type = #tpu.core_type<tc>, window_params = [{pipeline_mode = #tpu.pipeline_mode<synchronous>, transform_indices = @transform_0, window_bounds = array<i64: 18, 2048>}, {pipeline_mode = #tpu.pipeline_mode<synchronous>, transform_indices = @transform_1, window_bounds = array<i64: 2048, 256>}, {pipeline_mode = #tpu.pipeline_mode<synchronous>, transform_indices = @transform_2, window_bounds = array<i64: 1, 256>}, {pipeline_mode = #tpu.pipeline_mode<synchronous>, transform_indices = @transform_3, window_bounds = array<i64: 18, 256>}]} {
    %c0 = arith.constant 0 : index
    %c0_0 = arith.constant 0 : index
    %0 = vector.load %arg1[%c0, %c0_0] : memref<18x2048xbf16, #tpu.memory_space<vmem>>, vector<18x2048xbf16>
    %c0_1 = arith.constant 0 : index
    %c0_2 = arith.constant 0 : index
    %1 = vector.load %arg2[%c0_1, %c0_2] : memref<2048x256xbf16, #tpu.memory_space<vmem>>, vector<2048x256xbf16>
    %cst = arith.constant dense<0.000000e+00> : vector<18x256xf32>
    %2 = tpu.matmul %0, %1, %cst {dimension_numbers = #tpu.dot_dimension_numbers<[1], [0], [0], [1], [0, 0, 1, 1], [], []>} : vector<18x2048xbf16>, vector<2048x256xbf16>, vector<18x256xf32> -> vector<18x256xf32>
    %c0_3 = arith.constant 0 : index
    %c0_4 = arith.constant 0 : index
    %3 = vector.load %arg3[%c0_3, %c0_4] : memref<1x256xf32, #tpu.memory_space<vmem>>, vector<1x256xf32>
    %4 = vector.broadcast %3 : vector<1x256xf32> to vector<18x256xf32>
    %5 = arith.addf %2, %4 : vector<18x256xf32>
    %cst_5 = arith.constant dense<0.000000e+00> : vector<256xf32>
    %6 = vector.multi_reduction <add>, %5, %cst_5 [0] : vector<18x256xf32> to vector<256xf32>
    %7 = vector.shape_cast %6 : vector<256xf32> to vector<1x256xf32>
    %cst_6 = arith.constant 1.800000e+01 : f32
    %8 = vector.broadcast %cst_6 : f32 to vector<1x256xf32>
    %9 = arith.divf %7, %8 : vector<1x256xf32>
    %10 = vector.broadcast %9 : vector<1x256xf32> to vector<18x256xf32>
    %11 = arith.subf %5, %10 : vector<18x256xf32>
    %12 = arith.mulf %11, %11 : vector<18x256xf32>
    %cst_7 = arith.constant dense<0.000000e+00> : vector<256xf32>
    %13 = vector.multi_reduction <add>, %12, %cst_7 [0] : vector<18x256xf32> to vector<256xf32>
    %14 = vector.shape_cast %13 : vector<256xf32> to vector<1x256xf32>
    %cst_8 = arith.constant 1.800000e+01 : f32
    %15 = vector.broadcast %cst_8 : f32 to vector<1x256xf32>
    %16 = arith.divf %14, %15 : vector<1x256xf32>
    %17 = vector.broadcast %9 : vector<1x256xf32> to vector<18x256xf32>
    %18 = arith.subf %5, %17 : vector<18x256xf32>
    %cst_9 = arith.constant 9.99999974E-6 : f32
    %19 = vector.broadcast %cst_9 : f32 to vector<1x256xf32>
    %20 = arith.addf %16, %19 : vector<1x256xf32>
    %21 = math.rsqrt %20 : vector<1x256xf32>
    %22 = vector.broadcast %21 : vector<1x256xf32> to vector<18x256xf32>
    %23 = arith.mulf %18, %22 : vector<18x256xf32>
    %cst_10 = arith.constant 0.000000e+00 : f32
    %24 = vector.broadcast %cst_10 : f32 to vector<18x256xf32>
    %25 = arith.cmpf ogt, %23, %24 : vector<18x256xf32>
    %cst_11 = arith.constant 2.000000e-01 : f32
    %26 = vector.broadcast %cst_11 : f32 to vector<18x256xf32>
    %27 = arith.mulf %26, %23 : vector<18x256xf32>
    %28 = arith.select %25, %23, %27 : vector<18x256xi1>, vector<18x256xf32>
    %29 = arith.truncf %28 : vector<18x256xf32> to vector<18x256xbf16>
    %c0_12 = arith.constant 0 : index
    %c0_13 = arith.constant 0 : index
    %30 = vector.load %arg4[%c0_12, %c0_13] : memref<18x256xbf16, #tpu.memory_space<vmem>>, vector<18x256xbf16>
    tpu.vector_store %arg4[%c0_12, %c0_13], %29 {strides = array<i32>} : memref<18x256xbf16, #tpu.memory_space<vmem>>, vector<18x256xbf16>,
    return
  }
  func.func @transform_0(%arg0: i32) -> (i32, i32) {
    %c0_i32 = arith.constant 0 : i32
    %c0_i32_0 = arith.constant 0 : i32
    %c0_i32_1 = arith.constant 0 : i32
    return %c0_i32, %c0_i32_0 : i32, i32
  }
  func.func @transform_1(%arg0: i32) -> (i32, i32) {
    %c0_i32 = arith.constant 0 : i32
    %c0_i32_0 = arith.constant 0 : i32
    %c0_i32_1 = arith.constant 0 : i32
    return %c0_i32, %c0_i32_0 : i32, i32
  }
  func.func @transform_2(%arg0: i32) -> (i32, i32) {
    %c0_i32 = arith.constant 0 : i32
    %c0_i32_0 = arith.constant 0 : i32
    %c0_i32_1 = arith.constant 0 : i32
    return %c0_i32, %c0_i32_0 : i32, i32
  }
  func.func @transform_3(%arg0: i32) -> (i32, i32) {
    %c0_i32 = arith.constant 0 : i32
    %c0_i32_0 = arith.constant 0 : i32
    %c0_i32_1 = arith.constant 0 : i32
    return %c0_i32, %c0_i32_0 : i32, i32
  }
}

module attributes {stable_mosaic.version = 11 : i64} {
  func.func @_mm_bias_act_kernel(%arg0: i32, %arg1: memref<8x4096xbf16, #tpu.memory_space<vmem>>, %arg2: memref<4096x128xbf16, #tpu.memory_space<vmem>>, %arg3: memref<1x128xf32, #tpu.memory_space<vmem>>, %arg4: memref<8x128xf32, #tpu.memory_space<vmem>>) attributes {dimension_semantics = [#tpu.dimension_semantics<parallel>], iteration_bounds = array<i64: 1>, scalar_prefetch = 0 : i64, scratch_operands = 0 : i64, tpu.core_type = #tpu.core_type<tc>, window_params = [{transform_indices = @transform_0, window_bounds = array<i64: 8, 4096>}, {pipeline_mode = #tpu.pipeline_mode<synchronous>, transform_indices = @transform_1, window_bounds = array<i64: 4096, 128>}, {pipeline_mode = #tpu.pipeline_mode<synchronous>, transform_indices = @transform_2, window_bounds = array<i64: 1, 128>}, {transform_indices = @transform_3, window_bounds = array<i64: 8, 128>}]} {
    %c0 = arith.constant 0 : index
    %c0_0 = arith.constant 0 : index
    %0 = vector.load %arg1[%c0, %c0_0] : memref<8x4096xbf16, #tpu.memory_space<vmem>>, vector<8x4096xbf16>
    %c0_1 = arith.constant 0 : index
    %c0_2 = arith.constant 0 : index
    %1 = vector.load %arg2[%c0_1, %c0_2] : memref<4096x128xbf16, #tpu.memory_space<vmem>>, vector<4096x128xbf16>
    %cst = arith.constant dense<0.000000e+00> : vector<8x128xf32>
    %2 = tpu.matmul %0, %1, %cst {dimension_numbers = #tpu.dot_dimension_numbers<[1], [0], [0], [1], [0, 0, 1, 1], [], []>} : vector<8x4096xbf16>, vector<4096x128xbf16>, vector<8x128xf32> -> vector<8x128xf32>
    %c0_3 = arith.constant 0 : index
    %c0_4 = arith.constant 0 : index
    %3 = vector.load %arg3[%c0_3, %c0_4] : memref<1x128xf32, #tpu.memory_space<vmem>>, vector<1x128xf32>
    %4 = vector.broadcast %3 : vector<1x128xf32> to vector<8x128xf32>
    %5 = arith.addf %2, %4 : vector<8x128xf32>
    %6 = arith.negf %5 : vector<8x128xf32>
    %7 = math.exp %6 : vector<8x128xf32>
    %cst_5 = arith.constant 1.000000e+00 : f32
    %8 = vector.broadcast %cst_5 : f32 to vector<8x128xf32>
    %9 = arith.addf %8, %7 : vector<8x128xf32>
    %10 = arith.divf %8, %9 : vector<8x128xf32>
    %c0_6 = arith.constant 0 : index
    %c0_7 = arith.constant 0 : index
    %11 = vector.load %arg4[%c0_6, %c0_7] : memref<8x128xf32, #tpu.memory_space<vmem>>, vector<8x128xf32>
    tpu.vector_store %arg4[%c0_6, %c0_7], %10 {strides = array<i32>} : memref<8x128xf32, #tpu.memory_space<vmem>>, vector<8x128xf32>,
    return
  }
  func.func @transform_0(%arg0: i32) -> (i32, i32) {
    %c0_i32 = arith.constant 0 : i32
    %c0_i32_0 = arith.constant 0 : i32
    return %arg0, %c0_i32 : i32, i32
  }
  func.func @transform_1(%arg0: i32) -> (i32, i32) {
    %c0_i32 = arith.constant 0 : i32
    %c0_i32_0 = arith.constant 0 : i32
    %c0_i32_1 = arith.constant 0 : i32
    return %c0_i32, %c0_i32_0 : i32, i32
  }
  func.func @transform_2(%arg0: i32) -> (i32, i32) {
    %c0_i32 = arith.constant 0 : i32
    %c0_i32_0 = arith.constant 0 : i32
    %c0_i32_1 = arith.constant 0 : i32
    return %c0_i32, %c0_i32_0 : i32, i32
  }
  func.func @transform_3(%arg0: i32) -> (i32, i32) {
    %c0_i32 = arith.constant 0 : i32
    %c0_i32_0 = arith.constant 0 : i32
    return %arg0, %c0_i32 : i32, i32
  }
}

</mosaic_0001>

<llo_original>
// kernel: discriminator_forward.6
$region0: #{discriminator_forward.6}
  #allocation0 [shape = 'u32[]', space=smem, size = 0x4, offset = 0x4, fixed_abs, tag = 'smem constant byte address 0x4 - core index']
  #allocation1 [shape = 'u32[144,128]{1,0:T(1,128)}', space=vmem, size = 0x12000, scoped, tag = 'internal scratch']
  %s0 = inlined_call_operand.vmem [shape: bf16[2048,128], index: 0, kind: input, shape index: {}]
  %s1 = inlined_call_operand.vmem [shape: bf16[128,128], index: 1, kind: input, shape index: {}]
  %s2 = inlined_call_operand.vmem [shape: f32[1,128], index: 2, kind: input, shape index: {}]
  %s3 = inlined_call_operand.vmem [shape: bf16[2048,128], index: 3, kind: output, shape index: {}]
  %s4 = sld [smem:[#allocation0]]
  $region45: #{discriminator_forward.6} parent=0
    _
  %s6 = ssub.s32 1, %s4
  %s7 = scalar_select 0, %s6, %s4
  loop: start=0, step=1, limit=6
  $region2: #{discriminator_forward.6} parent=0 // loop_pre_header
    _
  $region3: #{discriminator_forward.6} parent=0 // loop_header
    %s9 = sphi 0, %s13
    %p10 = scmp.ge.s32.totalorder %s9, 6
    %s19 = sphi 0, %s21
    %s22 = sphi 0, %s19
    %s23 = sphi 0, %s22
    %s39 = sphi 0, %s23
    %s43 = sphi 0, %s43
    %s45 = sphi 0, %s43
    %s46 = sphi 0, %s45
    %s60 = sphi 0, %s46
    %s64 = sphi 0, %s64
    %s66 = sphi 0, %s64
    %s67 = sphi 0, %s66
    %s81 = sphi 0, %s67
    %s87 = sphi 0, %s89
    %s90 = sphi 0, %s87
    %s91 = sphi 0, %s90
    %s107 = sphi 0, %s91
  $region4: #{discriminator_forward.6} parent=0 // loop_header_branch
    %12 = sbr.rel (%p10) target = $region8
  $region5: #{discriminator_forward.6} parent=0 // loop_body
    %s14 = ssub.s32 %s9, 1
    %s15 = ssub.s32 %s9, 2
    %s16 = sadd.s32 %s9, 1
    %s17 = ssub.s32 %s9, %s16
    %p18 = scmp.eq.s32.totalorder %s17, 0
    %s20 = sadd.s32 %s19, 1
    %s21 = scalar_select %p18, %s19, %s20
    %p24 = pneg %p18
    %p25 = scmp.eq.s32.totalorder %s9, 3
    %p26 = por %p24, %p25
    %p27 = scmp.ne.s32.totalorder %s19, %s22
    %p28 = scmp.eq.s32.totalorder %s9, 0
    %p29 = por %p27, %p28
    %p30 = scmp.ne.s32.totalorder %s19, %s22
    %p31 = scmp.eq.s32.totalorder %s14, 3
    %p32 = por %p30, %p31
    %p33 = scmp.ne.s32.totalorder %s22, %s23
    %p34 = scmp.eq.s32.totalorder %s14, 0
    %p35 = por %p33, %p34
    %p36 = scmp.ne.s32.totalorder %s22, %s23
    %p37 = scmp.eq.s32.totalorder %s15, 3
    %p38 = por %p36, %p37
    %p40 = scmp.ne.s32.totalorder %s23, %s39
    %p41 = scmp.eq.s32.totalorder %s15, 0
    %p42 = por %p40, %p41
    %s44 = sadd.s32 %s43, 1
    %p47 = scmp.eq.s32.totalorder %s9, 3
    %p48 = scmp.ne.s32.totalorder %s43, %s45
    %p49 = scmp.eq.s32.totalorder %s9, 0
    %p50 = por %p48, %p49
    %p51 = scmp.ne.s32.totalorder %s43, %s45
    %p52 = scmp.eq.s32.totalorder %s14, 3
    %p53 = por %p51, %p52
    %p54 = scmp.ne.s32.totalorder %s45, %s46
    %p55 = scmp.eq.s32.totalorder %s14, 0
    %p56 = por %p54, %p55
    %p57 = scmp.ne.s32.totalorder %s45, %s46
    %p58 = scmp.eq.s32.totalorder %s15, 3
    %p59 = por %p57, %p58
    %p61 = scmp.ne.s32.totalorder %s46, %s60
    %p62 = scmp.eq.s32.totalorder %s15, 0
    %p63 = por %p61, %p62
    %s65 = sadd.s32 %s64, 1
    %p68 = scmp.eq.s32.totalorder %s9, 3
    %p69 = scmp.ne.s32.totalorder %s64, %s66
    %p70 = scmp.eq.s32.totalorder %s9, 0
    %p71 = por %p69, %p70
    %p72 = scmp.ne.s32.totalorder %s64, %s66
    %p73 = scmp.eq.s32.totalorder %s14, 3
    %p74 = por %p72, %p73
    %p75 = scmp.ne.s32.totalorder %s66, %s67
    %p76 = scmp.eq.s32.totalorder %s14, 0
    %p77 = por %p75, %p76
    %p78 = scmp.ne.s32.totalorder %s66, %s67
    %p79 = scmp.eq.s32.totalorder %s15, 3
    %p80 = por %p78, %p79
    %p82 = scmp.ne.s32.totalorder %s67, %s81
    %p83 = scmp.eq.s32.totalorder %s15, 0
    %p84 = por %p82, %p83
    %s85 = ssub.s32 %s9, %s16
    %p86 = scmp.eq.s32.totalorder %s85, 0
    %s88 = sadd.s32 %s87, 1
    %s89 = scalar_select %p86, %s87, %s88
    %p92 = pneg %p86
    %p93 = scmp.eq.s32.totalorder %s9, 3
    %p94 = por %p92, %p93
    %p95 = scmp.ne.s32.totalorder %s87, %s90
    %p96 = scmp.eq.s32.totalorder %s9, 0
    %p97 = por %p95, %p96
    %p98 = scmp.ne.s32.totalorder %s87, %s90
    %p99 = scmp.eq.s32.totalorder %s14, 3
    %p100 = por %p98, %p99
    %p101 = scmp.ne.s32.totalorder %s90, %s91
    %p102 = scmp.eq.s32.totalorder %s14, 0
    %p103 = por %p101, %p102
    %p104 = scmp.ne.s32.totalorder %s90, %s91
    %p105 = scmp.eq.s32.totalorder %s15, 3
    %p106 = por %p104, %p105
    %p108 = scmp.ne.s32.totalorder %s91, %s107
    %p109 = scmp.eq.s32.totalorder %s15, 0
    %p110 = por %p108, %p109
    %p111 = scmp.le.s32.totalorder 1, %s9
    %p112 = scmp.lt.s32.totalorder %s9, 5
    %p113 = pnand %p111, %p112
    %p114 = pneg %p113
    // Predicated region
    $region9: #{discriminator_forward.6} parent=5 // pred_check
      _
    $region10: #{discriminator_forward.6} parent=5 // pred_check_branch
      %116 = sbr.rel (%p113) target = $region12
    $region11: #{discriminator_forward.6} parent=5 // pred_region
      %s117 = ssub.s32 %s9, 1
      // Predicated region
      $region13: #{discriminator_forward.6} parent=11 // pred_check
        %p118 = pneg %p56
      $region14: #{discriminator_forward.6} parent=11 // pred_check_branch
        %120 = sbr.rel (%p118) target = $region16
      $region15: #{discriminator_forward.6} parent=11 // pred_region
        _
      $region16: #{discriminator_forward.6} parent=11 // pred_fallthru
        _
      // Predicated region
      $region17: #{discriminator_forward.6} parent=11 // pred_check
        %p121 = pneg %p77
      $region18: #{discriminator_forward.6} parent=11 // pred_check_branch
        %123 = sbr.rel (%p121) target = $region20
      $region19: #{discriminator_forward.6} parent=11 // pred_region
        _
      $region20: #{discriminator_forward.6} parent=11 // pred_fallthru
        _
    $region12: #{discriminator_forward.6} parent=5 // pred_fallthru
      _
    %p124 = scmp.lt.s32.totalorder %s9, 4
    // Predicated region
    $region21: #{discriminator_forward.6} parent=5 // pred_check
      %p125 = pneg %p124
    $region22: #{discriminator_forward.6} parent=5 // pred_check_branch
      %127 = sbr.rel (%p125) target = $region24
    $region23: #{discriminator_forward.6} parent=5 // pred_region
      // Predicated region
      $region25: #{discriminator_forward.6} parent=23 // pred_check
        %p128 = pneg %p29
      $region26: #{discriminator_forward.6} parent=23 // pred_check_branch
        %130 = sbr.rel (%p128) target = $region28
      $region27: #{discriminator_forward.6} parent=23 // pred_region
        %s131 = smul.u32 64, %s9
        %p132 = scmp.lt.s32.totalorder %s131, 255
        %s133 = scalar_select %p132, %s131, 255
        %s134 = smul.addr %s133, 4
        %s135 = scalar_lea.vmem %s0, %s134
        %s136 = smul.u32 64, %s9
      $region28: #{discriminator_forward.6} parent=23 // pred_fallthru
        _
    $region24: #{discriminator_forward.6} parent=5 // pred_fallthru
      _
    %p137 = scmp.le.s32.totalorder 1, %s9
    %p138 = scmp.lt.s32.totalorder %s9, 5
    %p139 = pnand %p137, %p138
    %p140 = pneg %p139
    // Predicated region
    $region29: #{discriminator_forward.6} parent=5 // pred_check
      _
    $region30: #{discriminator_forward.6} parent=5 // pred_check_branch
      %142 = sbr.rel (%p139) target = $region32
    $region31: #{discriminator_forward.6} parent=5 // pred_region
      %s143 = ssub.s32 %s9, 1
      %s144 = smul.u32 64, %s14
      %p145 = scmp.lt.s32.totalorder %s144, 255
      %s146 = scalar_select %p145, %s144, 255
      %s147 = smul.addr %s146, 4
      %s148 = scalar_lea.vmem %s0, %s147
      %p149 = pneg %p35
      %p150 = pneg %p32
      %p151 = pneg %p56
      %p152 = pneg %p53
      %p153 = pneg %p77
      %p154 = pneg %p74
      %p155 = pneg %p103
      %p156 = pneg %p100
      %s157 = smul.u32 64, %s14
      %p158 = scmp.lt.s32.totalorder %s157, 255
      %s159 = scalar_select %p158, %s157, 255
      %s160 = smul.addr %s159, 4
      %s161 = scalar_lea.vmem %s3, %s160
      %s162 = smul.u32 64, %s14
      %p163 = scmp.lt.s32.totalorder %s162, 255
      %s164 = scalar_select %p163, %s162, 255
      %s165 = smul.addr %s164, 4
      %s166 = scalar_lea.vmem %s0, %s165
      %s167 = smul.u32 64, %s14
      %s168 = smul.u32 64, %s14
      %p169 = scmp.lt.s32.totalorder %s168, 255
      %s170 = scalar_select %p169, %s168, 255
      %s171 = smul.addr %s170, 4
      %s172 = scalar_lea.vmem %s3, %s171
      %s173 = smul.u32 64, %s14
      %v175 = vld [vmem:[%s166] sm:$0xf]
      %v176 = vld [vmem:[%s166 + $0x4] sm:$0xf]
      %v177 = vld [vmem:[%s166 + $0x8] sm:$0xf]
      %v178 = vld [vmem:[%s166 + $0xc] sm:$0xf]
      %v179 = vld [vmem:[%s166 + $0x10] sm:$0xf]
      %v180 = vld [vmem:[%s166 + $0x14] sm:$0xf]
      %v181 = vld [vmem:[%s166 + $0x18] sm:$0xf]
      %v182 = vld [vmem:[%s166 + $0x1c] sm:$0xf]
      %v183 = vld [vmem:[%s166 + $0x20] sm:$0xf]
      %v184 = vld [vmem:[%s166 + $0x24] sm:$0xf]
      %v185 = vld [vmem:[%s166 + $0x28] sm:$0xf]
      %v186 = vld [vmem:[%s166 + $0x2c] sm:$0xf]
      %v187 = vld [vmem:[%s166 + $0x30] sm:$0xf]
      %v188 = vld [vmem:[%s166 + $0x34] sm:$0xf]
      %v189 = vld [vmem:[%s166 + $0x38] sm:$0xf]
      %v190 = vld [vmem:[%s166 + $0x3c] sm:$0xf]
      %v191 = vld [vmem:[%s166 + $0x40] sm:$0xf]
      %v192 = vld [vmem:[%s166 + $0x44] sm:$0xf]
      %v193 = vld [vmem:[%s166 + $0x48] sm:$0xf]
      %v194 = vld [vmem:[%s166 + $0x4c] sm:$0xf]
      %v195 = vld [vmem:[%s166 + $0x50] sm:$0xf]
      %v196 = vld [vmem:[%s166 + $0x54] sm:$0xf]
      %v197 = vld [vmem:[%s166 + $0x58] sm:$0xf]
      %v198 = vld [vmem:[%s166 + $0x5c] sm:$0xf]
      %v199 = vld [vmem:[%s166 + $0x60] sm:$0xf]
      %v200 = vld [vmem:[%s166 + $0x64] sm:$0xf]
      %v201 = vld [vmem:[%s166 + $0x68] sm:$0xf]
      %v202 = vld [vmem:[%s166 + $0x6c] sm:$0xf]
      %v203 = vld [vmem:[%s166 + $0x70] sm:$0xf]
      %v204 = vld [vmem:[%s166 + $0x74] sm:$0xf]
      %v205 = vld [vmem:[%s166 + $0x78] sm:$0xf]
      %v206 = vld [vmem:[%s166 + $0x7c] sm:$0xf]
      %v207 = vld [vmem:[%s166 + $0x80] sm:$0xf]
      %v208 = vld [vmem:[%s166 + $0x84] sm:$0xf]
      %v209 = vld [vmem:[%s166 + $0x88] sm:$0xf]
      %v210 = vld [vmem:[%s166 + $0x8c] sm:$0xf]
      %v211 = vld [vmem:[%s166 + $0x90] sm:$0xf]
      %v212 = vld [vmem:[%s166 + $0x94] sm:$0xf]
      %v213 = vld [vmem:[%s166 + $0x98] sm:$0xf]
      %v214 = vld [vmem:[%s166 + $0x9c] sm:$0xf]
      %v215 = vld [vmem:[%s166 + $0xa0] sm:$0xf]
      %v216 = vld [vmem:[%s166 + $0xa4] sm:$0xf]
      %v217 = vld [vmem:[%s166 + $0xa8] sm:$0xf]
      %v218 = vld [vmem:[%s166 + $0xac] sm:$0xf]
      %v219 = vld [vmem:[%s166 + $0xb0] sm:$0xf]
      %v220 = vld [vmem:[%s166 + $0xb4] sm:$0xf]
      %v221 = vld [vmem:[%s166 + $0xb8] sm:$0xf]
      %v222 = vld [vmem:[%s166 + $0xbc] sm:$0xf]
      %v223 = vld [vmem:[%s166 + $0xc0] sm:$0xf]
      %v224 = vld [vmem:[%s166 + $0xc4] sm:$0xf]
      %v225 = vld [vmem:[%s166 + $0xc8] sm:$0xf]
      %v226 = vld [vmem:[%s166 + $0xcc] sm:$0xf]
      %v227 = vld [vmem:[%s166 + $0xd0] sm:$0xf]
      %v228 = vld [vmem:[%s166 + $0xd4] sm:$0xf]
      %v229 = vld [vmem:[%s166 + $0xd8] sm:$0xf]
      %v230 = vld [vmem:[%s166 + $0xdc] sm:$0xf]
      %v231 = vld [vmem:[%s166 + $0xe0] sm:$0xf]
      %v232 = vld [vmem:[%s166 + $0xe4] sm:$0xf]
      %v233 = vld [vmem:[%s166 + $0xe8] sm:$0xf]
      %v234 = vld [vmem:[%s166 + $0xec] sm:$0xf]
      %v235 = vld [vmem:[%s166 + $0xf0] sm:$0xf]
      %v236 = vld [vmem:[%s166 + $0xf4] sm:$0xf]
      %v237 = vld [vmem:[%s166 + $0xf8] sm:$0xf]
      %v238 = vld [vmem:[%s166 + $0xfc] sm:$0xf]
      %v239 = vld [vmem:[%s1] sm:$0xf]
      %v240 = vld [vmem:[%s1 + $0x4] sm:$0xf]
      %v241 = vld [vmem:[%s1 + $0x8] sm:$0xf]
      %v242 = vld [vmem:[%s1 + $0xc] sm:$0xf]
      %v243 = vld [vmem:[%s1 + $0x10] sm:$0xf]
      %v244 = vld [vmem:[%s1 + $0x14] sm:$0xf]
      %v245 = vld [vmem:[%s1 + $0x18] sm:$0xf]
      %v246 = vld [vmem:[%s1 + $0x1c] sm:$0xf]
      %v247 = vld [vmem:[%s1 + $0x20] sm:$0xf]
      %v248 = vld [vmem:[%s1 + $0x24] sm:$0xf]
      %v249 = vld [vmem:[%s1 + $0x28] sm:$0xf]
      %v250 = vld [vmem:[%s1 + $0x2c] sm:$0xf]
      %v251 = vld [vmem:[%s1 + $0x30] sm:$0xf]
      %v252 = vld [vmem:[%s1 + $0x34] sm:$0xf]
      %v253 = vld [vmem:[%s1 + $0x38] sm:$0xf]
      %v254 = vld [vmem:[%s1 + $0x3c] sm:$0xf]
      %v255 = vld [vmem:[%s2] sm:$0x1]
      %v257 = vlaneseq
      %v258 = vshrl.u32 %v257, 7
      %v259 = vsub.s32 0, %v258
      %v260 = vrot.slane %v255, %v259
      %v326 = vunpack.c.l.b16 %v175
      %v327 = vunpack.c.l.b16 %v176
      %v328 = vunpack.c.l.b16 %v177
      %v329 = vunpack.c.l.b16 %v178
      %v330 = vunpack.c.l.b16 %v179
      %v331 = vunpack.c.l.b16 %v180
      %v332 = vunpack.c.l.b16 %v181
      %v333 = vunpack.c.l.b16 %v182
      %v334 = vunpack.c.l.b16 %v183
      %v335 = vunpack.c.l.b16 %v184
      %v336 = vunpack.c.l.b16 %v185
      %v337 = vunpack.c.l.b16 %v186
      %v338 = vunpack.c.l.b16 %v187
      %v339 = vunpack.c.l.b16 %v188
      %v340 = vunpack.c.l.b16 %v189
      %v341 = vunpack.c.l.b16 %v190
      %v342 = vunpack.c.l.b16 %v191
      %v343 = vunpack.c.l.b16 %v192
      %v344 = vunpack.c.l.b16 %v193
      %v345 = vunpack.c.l.b16 %v194
      %v346 = vunpack.c.l.b16 %v195
      %v347 = vunpack.c.l.b16 %v196
      %v348 = vunpack.c.l.b16 %v197
      %v349 = vunpack.c.l.b16 %v198
      %v350 = vunpack.c.l.b16 %v199
      %v351 = vunpack.c.l.b16 %v200
      %v352 = vunpack.c.l.b16 %v201
      %v353 = vunpack.c.l.b16 %v202
      %v354 = vunpack.c.l.b16 %v203
      %v355 = vunpack.c.l.b16 %v204
      %v356 = vunpack.c.l.b16 %v205
      %v357 = vunpack.c.l.b16 %v206
      %v358 = vunpack.c.l.b16 %v207
      %v359 = vunpack.c.l.b16 %v208
      %v360 = vunpack.c.l.b16 %v209
      %v361 = vunpack.c.l.b16 %v210
      %v362 = vunpack.c.l.b16 %v211
      %v363 = vunpack.c.l.b16 %v212
      %v364 = vunpack.c.l.b16 %v213
      %v365 = vunpack.c.l.b16 %v214
      %v366 = vunpack.c.l.b16 %v215
      %v367 = vunpack.c.l.b16 %v216
      %v368 = vunpack.c.l.b16 %v217
      %v369 = vunpack.c.l.b16 %v218
      %v370 = vunpack.c.l.b16 %v219
      %v371 = vunpack.c.l.b16 %v220
      %v372 = vunpack.c.l.b16 %v221
      %v373 = vunpack.c.l.b16 %v222
      %v374 = vunpack.c.l.b16 %v223
      %v375 = vunpack.c.l.b16 %v224
      %v376 = vunpack.c.l.b16 %v225
      %v377 = vunpack.c.l.b16 %v226
      %v378 = vunpack.c.l.b16 %v227
      %v379 = vunpack.c.l.b16 %v228
      %v380 = vunpack.c.l.b16 %v229
      %v381 = vunpack.c.l.b16 %v230
      %v382 = vunpack.c.l.b16 %v231
      %v383 = vunpack.c.l.b16 %v232
      %v384 = vunpack.c.l.b16 %v233
      %v385 = vunpack.c.l.b16 %v234
      %v386 = vunpack.c.l.b16 %v235
      %v387 = vunpack.c.l.b16 %v236
      %v388 = vunpack.c.l.b16 %v237
      %v389 = vunpack.c.l.b16 %v238
      %v390 = vpack.c.b16 %v327, %v326
      %v391 = vpack.c.b16 %v329, %v328
      %v392 = vpack.c.b16 %v331, %v330
      %v393 = vpack.c.b16 %v333, %v332
      %v394 = vpack.c.b16 %v335, %v334
      %v395 = vpack.c.b16 %v337, %v336
      %v396 = vpack.c.b16 %v339, %v338
      %v397 = vpack.c.b16 %v341, %v340
      %v398 = vpack.c.b16 %v343, %v342
      %v399 = vpack.c.b16 %v345, %v344
      %v400 = vpack.c.b16 %v347, %v346
      %v401 = vpack.c.b16 %v349, %v348
      %v402 = vpack.c.b16 %v351, %v350
      %v403 = vpack.c.b16 %v353, %v352
      %v404 = vpack.c.b16 %v355, %v354
      %v405 = vpack.c.b16 %v357, %v356
      %v406 = vpack.c.b16 %v359, %v358
      %v407 = vpack.c.b16 %v361, %v360
      %v408 = vpack.c.b16 %v363, %v362
      %v409 = vpack.c.b16 %v365, %v364
      %v410 = vpack.c.b16 %v367, %v366
      %v411 = vpack.c.b16 %v369, %v368
      %v412 = vpack.c.b16 %v371, %v370
      %v413 = vpack.c.b16 %v373, %v372
      %v414 = vpack.c.b16 %v375, %v374
      %v415 = vpack.c.b16 %v377, %v376
      %v416 = vpack.c.b16 %v379, %v378
      %v417 = vpack.c.b16 %v381, %v380
      %v418 = vpack.c.b16 %v383, %v382
      %v419 = vpack.c.b16 %v385, %v384
      %v420 = vpack.c.b16 %v387, %v386
      %v421 = vpack.c.b16 %v389, %v388
      %v470 = vunpack.c.l.b16 %v239
      %v471 = vunpack.c.l.b16 %v240
      %v472 = vunpack.c.l.b16 %v241
      %v473 = vunpack.c.l.b16 %v242
      %v474 = vunpack.c.l.b16 %v243
      %v475 = vunpack.c.l.b16 %v244
      %v476 = vunpack.c.l.b16 %v245
      %v477 = vunpack.c.l.b16 %v246
      %v478 = vunpack.c.l.b16 %v247
      %v479 = vunpack.c.l.b16 %v248
      %v480 = vunpack.c.l.b16 %v249
      %v481 = vunpack.c.l.b16 %v250
      %v482 = vunpack.c.l.b16 %v251
      %v483 = vunpack.c.l.b16 %v252
      %v484 = vunpack.c.l.b16 %v253
      %v485 = vunpack.c.l.b16 %v254
      %v486 = vpack.c.b16 %v471, %v470
      %v487 = vpack.c.b16 %v473, %v472
      %v488 = vpack.c.b16 %v475, %v474
      %v489 = vpack.c.b16 %v477, %v476
      %v490 = vpack.c.b16 %v479, %v478
      %v491 = vpack.c.b16 %v481, %v480
      %v492 = vpack.c.b16 %v483, %v482
      %v493 = vpack.c.b16 %v485, %v484
      %502 = vmatprep.subr.bf16.mxu0 0
      %503 = vmatpush1.bf16.msra.mxu0 %v486
      %504 = vmatprep.subr.bf16.mxu0 0
      %505 = vmatpush1.bf16.msra.mxu0 %v487
      %506 = vmatprep.subr.bf16.mxu0 0
      %507 = vmatpush1.bf16.msra.mxu0 %v488
      %508 = vmatprep.subr.bf16.mxu0 0
      %509 = vmatpush1.bf16.msra.mxu0 %v489
      %510 = vmatprep.subr.bf16.mxu0 0
      %511 = vmatpush1.bf16.msra.mxu0 %v490
      %512 = vmatprep.subr.bf16.mxu0 0
      %513 = vmatpush1.bf16.msra.mxu0 %v491
      %514 = vmatprep.subr.bf16.mxu0 0
      %515 = vmatpush1.bf16.msra.mxu0 %v492
      %516 = vmatprep.subr.bf16.mxu0 0
      %517 = vmatpush1.bf16.msra.mxu0 %v493
      %518 = vmatprep.subr.bf16.mxu0 0
      %519 = vmatpush1.bf16.msra.mxu0 0
      %520 = vmatprep.subr.bf16.mxu0 0
      %521 = vmatpush1.bf16.msra.mxu0 0
      %522 = vmatprep.subr.bf16.mxu0 0
      %523 = vmatpush1.bf16.msra.mxu0 0
      %524 = vmatprep.subr.bf16.mxu0 0
      %525 = vmatpush1.bf16.msra.mxu0 0
      %526 = vmatprep.subr.bf16.mxu0 0
      %527 = vmatpush1.bf16.msra.mxu0 0
      %528 = vmatprep.subr.bf16.mxu0 0
      %529 = vmatpush1.bf16.msra.mxu0 0
      %530 = vmatprep.subr.bf16.mxu0 0
      %531 = vmatpush1.bf16.msra.mxu0 0
      %532 = vmatprep.subr.bf16.mxu0 0
      %533 = vmatpush1.bf16.msra.mxu0 0
      %534 = vmatprep.mubr.bf16.mxu0 0
      %535 = vmatmul.mubr.bf16.gmra.mrb[0].mxu0 %v390
      %v536 = vpop.f32.mrb[0].mxu0
      %v537 = vadd.f32 %v260, %v536
      %v538 = vpop.f32.mrb[0].mxu0
      %v539 = vpop.f32.mrb[0].mxu0
      %v540 = vadd.f32 %v260, %v539
      %v541 = vpop.f32.mrb[0].mxu0
      %542 = vmatprep.mubr.bf16.mxu0 0
      %543 = vmatmul.mubr.bf16.gmra.mrb[0].mxu0 %v391
      %v544 = vpop.f32.mrb[0].mxu0
      %v545 = vadd.f32 %v260, %v544
      %v546 = vpop.f32.mrb[0].mxu0
      %v547 = vpop.f32.mrb[0].mxu0
      %v548 = vadd.f32 %v260, %v547
      %v549 = vpop.f32.mrb[0].mxu0
      %550 = vmatprep.mubr.bf16.mxu0 0
      %551 = vmatmul.mubr.bf16.gmra.mrb[0].mxu0 %v392
      %v552 = vpop.f32.mrb[0].mxu0
      %v553 = vadd.f32 %v260, %v552
      %v554 = vpop.f32.mrb[0].mxu0
      %v555 = vpop.f32.mrb[0].mxu0
      %v556 = vadd.f32 %v260, %v555
      %v557 = vpop.f32.mrb[0].mxu0
      %558 = vmatprep.mubr.bf16.mxu0 0
      %559 = vmatmul.mubr.bf16.gmra.mrb[0].mxu0 %v393
      %v560 = vpop.f32.mrb[0].mxu0
      %v561 = vadd.f32 %v260, %v560
      %v562 = vpop.f32.mrb[0].mxu0
      %v563 = vpop.f32.mrb[0].mxu0
      %v564 = vadd.f32 %v260, %v563
      %v565 = vpop.f32.mrb[0].mxu0
      %566 = vmatprep.mubr.bf16.mxu0 0
      %567 = vmatmul.mubr.bf16.gmra.mrb[0].mxu0 %v394
      %v568 = vpop.f32.mrb[0].mxu0
      %v569 = vadd.f32 %v260, %v568
      %v570 = vpop.f32.mrb[0].mxu0
      %v571 = vpop.f32.mrb[0].mxu0
      %v572 = vadd.f32 %v260, %v571
      %v573 = vpop.f32.mrb[0].mxu0
      %574 = vmatprep.mubr.bf16.mxu0 0
      %575 = vmatmul.mubr.bf16.gmra.mrb[0].mxu0 %v395
      %v576 = vpop.f32.mrb[0].mxu0
      %v577 = vadd.f32 %v260, %v576
      %v578 = vpop.f32.mrb[0].mxu0
      %v579 = vpop.f32.mrb[0].mxu0
      %v580 = vadd.f32 %v260, %v579
      %v581 = vpop.f32.mrb[0].mxu0
      %582 = vmatprep.mubr.bf16.mxu0 0
      %583 = vmatmul.mubr.bf16.gmra.mrb[0].mxu0 %v396
      %v584 = vpop.f32.mrb[0].mxu0
      %v585 = vadd.f32 %v260, %v584
      %v586 = vpop.f32.mrb[0].mxu0
      %v587 = vpop.f32.mrb[0].mxu0
      %v588 = vadd.f32 %v260, %v587
      %v589 = vpop.f32.mrb[0].mxu0
      %590 = vmatprep.mubr.bf16.mxu0 0
      %591 = vmatmul.mubr.bf16.gmra.mrb[0].mxu0 %v397
      %v592 = vpop.f32.mrb[0].mxu0
      %v593 = vadd.f32 %v260, %v592
      %v594 = vpop.f32.mrb[0].mxu0
      %v595 = vpop.f32.mrb[0].mxu0
      %v596 = vadd.f32 %v260, %v595
      %v597 = vpop.f32.mrb[0].mxu0
      %598 = vmatprep.mubr.bf16.mxu0 0
      %599 = vmatmul.mubr.bf16.gmra.mrb[0].mxu0 %v398
      %v600 = vpop.f32.mrb[0].mxu0
      %v601 = vadd.f32 %v260, %v600
      %v602 = vpop.f32.mrb[0].mxu0
      %v603 = vpop.f32.mrb[0].mxu0
      %v604 = vadd.f32 %v260, %v603
      %v605 = vpop.f32.mrb[0].mxu0
      %606 = vmatprep.mubr.bf16.mxu0 0
      %607 = vmatmul.mubr.bf16.gmra.mrb[0].mxu0 %v399
      %v608 = vpop.f32.mrb[0].mxu0
      %v609 = vadd.f32 %v260, %v608
      %v610 = vpop.f32.mrb[0].mxu0
      %v611 = vpop.f32.mrb[0].mxu0
      %v612 = vadd.f32 %v260, %v611
      %v613 = vpop.f32.mrb[0].mxu0
      %614 = vmatprep.mubr.bf16.mxu0 0
      %615 = vmatmul.mubr.bf16.gmra.mrb[0].mxu0 %v400
      %v616 = vpop.f32.mrb[0].mxu0
      %v617 = vadd.f32 %v260, %v616
      %v618 = vpop.f32.mrb[0].mxu0
      %v619 = vpop.f32.mrb[0].mxu0
      %v620 = vadd.f32 %v260, %v619
      %v621 = vpop.f32.mrb[0].mxu0
      %622 = vmatprep.mubr.bf16.mxu0 0
      %623 = vmatmul.mubr.bf16.gmra.mrb[0].mxu0 %v401
      %v624 = vpop.f32.mrb[0].mxu0
      %v625 = vadd.f32 %v260, %v624
      %v626 = vpop.f32.mrb[0].mxu0
      %v627 = vpop.f32.mrb[0].mxu0
      %v628 = vadd.f32 %v260, %v627
      %v629 = vpop.f32.mrb[0].mxu0
      %630 = vmatprep.mubr.bf16.mxu0 0
      %631 = vmatmul.mubr.bf16.gmra.mrb[0].mxu0 %v402
      %v632 = vpop.f32.mrb[0].mxu0
      %v633 = vadd.f32 %v260, %v632
      %v634 = vpop.f32.mrb[0].mxu0
      %v635 = vpop.f32.mrb[0].mxu0
      %v636 = vadd.f32 %v260, %v635
      %v637 = vpop.f32.mrb[0].mxu0
      %638 = vmatprep.mubr.bf16.mxu0 0
      %639 = vmatmul.mubr.bf16.gmra.mrb[0].mxu0 %v403
      %v640 = vpop.f32.mrb[0].mxu0
      %v641 = vadd.f32 %v260, %v640
      %v642 = vpop.f32.mrb[0].mxu0
      %v643 = vpop.f32.mrb[0].mxu0
      %v644 = vadd.f32 %v260, %v643
      %v645 = vpop.f32.mrb[0].mxu0
      %646 = vmatprep.mubr.bf16.mxu0 0
      %647 = vmatmul.mubr.bf16.gmra.mrb[0].mxu0 %v404
      %v648 = vpop.f32.mrb[0].mxu0
      %v649 = vadd.f32 %v260, %v648
      %v650 = vpop.f32.mrb[0].mxu0
      %v651 = vpop.f32.mrb[0].mxu0
      %v652 = vadd.f32 %v260, %v651
      %v653 = vpop.f32.mrb[0].mxu0
      %654 = vmatprep.mubr.bf16.mxu0 0
      %655 = vmatmul.mubr.bf16.gmra.mrb[0].mxu0 %v405
      %v656 = vpop.f32.mrb[0].mxu0
      %v657 = vadd.f32 %v260, %v656
      %v658 = vpop.f32.mrb[0].mxu0
      %v659 = vpop.f32.mrb[0].mxu0
      %v660 = vadd.f32 %v260, %v659
      %v661 = vpop.f32.mrb[0].mxu0
      %662 = vmatprep.mubr.bf16.mxu0 0
      %663 = vmatmul.mubr.bf16.gmra.mrb[0].mxu0 %v406
      %v664 = vpop.f32.mrb[0].mxu0
      %v665 = vadd.f32 %v260, %v664
      %v666 = vpop.f32.mrb[0].mxu0
      %v667 = vpop.f32.mrb[0].mxu0
      %v668 = vadd.f32 %v260, %v667
      %v669 = vpop.f32.mrb[0].mxu0
      %670 = vmatprep.mubr.bf16.mxu0 0
      %671 = vmatmul.mubr.bf16.gmra.mrb[0].mxu0 %v407
      %v672 = vpop.f32.mrb[0].mxu0
      %v673 = vadd.f32 %v260, %v672
      %v674 = vpop.f32.mrb[0].mxu0
      %v675 = vpop.f32.mrb[0].mxu0
      %v676 = vadd.f32 %v260, %v675
      %v677 = vpop.f32.mrb[0].mxu0
      %678 = vmatprep.mubr.bf16.mxu0 0
      %679 = vmatmul.mubr.bf16.gmra.mrb[0].mxu0 %v408
      %v680 = vpop.f32.mrb[0].mxu0
      %v681 = vadd.f32 %v260, %v680
      %v682 = vpop.f32.mrb[0].mxu0
      %v683 = vpop.f32.mrb[0].mxu0
      %v684 = vadd.f32 %v260, %v683
      %v685 = vpop.f32.mrb[0].mxu0
      %686 = vmatprep.mubr.bf16.mxu0 0
      %687 = vmatmul.mubr.bf16.gmra.mrb[0].mxu0 %v409
      %v688 = vpop.f32.mrb[0].mxu0
      %v689 = vadd.f32 %v260, %v688
      %v690 = vpop.f32.mrb[0].mxu0
      %v691 = vpop.f32.mrb[0].mxu0
      %v692 = vadd.f32 %v260, %v691
      %v693 = vpop.f32.mrb[0].mxu0
      %694 = vmatprep.mubr.bf16.mxu0 0
      %695 = vmatmul.mubr.bf16.gmra.mrb[0].mxu0 %v410
      %v696 = vpop.f32.mrb[0].mxu0
      %v697 = vadd.f32 %v260, %v696
      %v698 = vpop.f32.mrb[0].mxu0
      %v699 = vpop.f32.mrb[0].mxu0
      %v700 = vadd.f32 %v260, %v699
      %v701 = vpop.f32.mrb[0].mxu0
      %702 = vmatprep.mubr.bf16.mxu0 0
      %703 = vmatmul.mubr.bf16.gmra.mrb[0].mxu0 %v411
      %v704 = vpop.f32.mrb[0].mxu0
      %v705 = vadd.f32 %v260, %v704
      %v706 = vpop.f32.mrb[0].mxu0
      %v707 = vpop.f32.mrb[0].mxu0
      %v708 = vadd.f32 %v260, %v707
      %v709 = vpop.f32.mrb[0].mxu0
      %710 = vmatprep.mubr.bf16.mxu0 0
      %711 = vmatmul.mubr.bf16.gmra.mrb[0].mxu0 %v412
      %v712 = vpop.f32.mrb[0].mxu0
      %v713 = vadd.f32 %v260, %v712
      %v714 = vpop.f32.mrb[0].mxu0
      %v715 = vpop.f32.mrb[0].mxu0
      %v716 = vadd.f32 %v260, %v715
      %v717 = vpop.f32.mrb[0].mxu0
      %718 = vmatprep.mubr.bf16.mxu0 0
      %719 = vmatmul.mubr.bf16.gmra.mrb[0].mxu0 %v413
      %v720 = vpop.f32.mrb[0].mxu0
      %v721 = vadd.f32 %v260, %v720
      %v722 = vpop.f32.mrb[0].mxu0
      %v723 = vpop.f32.mrb[0].mxu0
      %v724 = vadd.f32 %v260, %v723
      %v725 = vpop.f32.mrb[0].mxu0
      %726 = vmatprep.mubr.bf16.mxu0 0
      %727 = vmatmul.mubr.bf16.gmra.mrb[0].mxu0 %v414
      %v728 = vpop.f32.mrb[0].mxu0
      %v729 = vadd.f32 %v260, %v728
      %v730 = vpop.f32.mrb[0].mxu0
      %v731 = vpop.f32.mrb[0].mxu0
      %v732 = vadd.f32 %v260, %v731
      %v733 = vpop.f32.mrb[0].mxu0
      %734 = vmatprep.mubr.bf16.mxu0 0
      %735 = vmatmul.mubr.bf16.gmra.mrb[0].mxu0 %v415
      %v736 = vpop.f32.mrb[0].mxu0
      %v737 = vadd.f32 %v260, %v736
      %v738 = vpop.f32.mrb[0].mxu0
      %v739 = vpop.f32.mrb[0].mxu0
      %v740 = vadd.f32 %v260, %v739
      %v741 = vpop.f32.mrb[0].mxu0
      %742 = vmatprep.mubr.bf16.mxu0 0
      %743 = vmatmul.mubr.bf16.gmra.mrb[0].mxu0 %v416
      %v744 = vpop.f32.mrb[0].mxu0
      %v745 = vadd.f32 %v260, %v744
      %v746 = vpop.f32.mrb[0].mxu0
      %v747 = vpop.f32.mrb[0].mxu0
      %v748 = vadd.f32 %v260, %v747
      %v749 = vpop.f32.mrb[0].mxu0
      %750 = vmatprep.mubr.bf16.mxu0 0
      %751 = vmatmul.mubr.bf16.gmra.mrb[0].mxu0 %v417
      %v752 = vpop.f32.mrb[0].mxu0
      %v753 = vadd.f32 %v260, %v752
      %v754 = vpop.f32.mrb[0].mxu0
      %v755 = vpop.f32.mrb[0].mxu0
      %v756 = vadd.f32 %v260, %v755
      %v757 = vpop.f32.mrb[0].mxu0
      %758 = vmatprep.mubr.bf16.mxu0 0
      %759 = vmatmul.mubr.bf16.gmra.mrb[0].mxu0 %v418
      %v760 = vpop.f32.mrb[0].mxu0
      %v761 = vadd.f32 %v260, %v760
      %v762 = vpop.f32.mrb[0].mxu0
      %v763 = vpop.f32.mrb[0].mxu0
      %v764 = vadd.f32 %v260, %v763
      %v765 = vpop.f32.mrb[0].mxu0
      %766 = vmatprep.mubr.bf16.mxu0 0
      %767 = vmatmul.mubr.bf16.gmra.mrb[0].mxu0 %v419
      %v768 = vpop.f32.mrb[0].mxu0
      %v769 = vadd.f32 %v260, %v768
      %v770 = vpop.f32.mrb[0].mxu0
      %v771 = vpop.f32.mrb[0].mxu0
      %v772 = vadd.f32 %v260, %v771
      %v773 = vpop.f32.mrb[0].mxu0
      %774 = vmatprep.mubr.bf16.mxu0 0
      %775 = vmatmul.mubr.bf16.gmra.mrb[0].mxu0 %v420
      %v776 = vpop.f32.mrb[0].mxu0
      %v777 = vadd.f32 %v260, %v776
      %v778 = vpop.f32.mrb[0].mxu0
      %v779 = vpop.f32.mrb[0].mxu0
      %v780 = vadd.f32 %v260, %v779
      %v781 = vpop.f32.mrb[0].mxu0
      %782 = vmatprep.mubr.bf16.mxu0 0
      %783 = vmatmul.mubr.bf16.gmra.mrb[0].mxu0 %v421
      %v784 = vpop.f32.mrb[0].mxu0
      %v785 = vadd.f32 %v260, %v784
      %v786 = vpop.f32.mrb[0].mxu0
      %v787 = vpop.f32.mrb[0].mxu0
      %v788 = vadd.f32 %v260, %v787
      %v789 = vpop.f32.mrb[0].mxu0
      %790 = vdwg.mxu0
      %vm791 = vcmp.gt.f32.partialorder %v537, 0.0
      %vm792 = vcmp.gt.f32.partialorder %v540, 0.0
      %vm793 = vcmp.gt.f32.partialorder %v545, 0.0
      %vm794 = vcmp.gt.f32.partialorder %v548, 0.0
      %vm795 = vcmp.gt.f32.partialorder %v553, 0.0
      %vm796 = vcmp.gt.f32.partialorder %v556, 0.0
      %vm797 = vcmp.gt.f32.partialorder %v561, 0.0
      %vm798 = vcmp.gt.f32.partialorder %v564, 0.0
      %vm799 = vcmp.gt.f32.partialorder %v569, 0.0
      %vm800 = vcmp.gt.f32.partialorder %v572, 0.0
      %vm801 = vcmp.gt.f32.partialorder %v577, 0.0
      %vm802 = vcmp.gt.f32.partialorder %v580, 0.0
      %vm803 = vcmp.gt.f32.partialorder %v585, 0.0
      %vm804 = vcmp.gt.f32.partialorder %v588, 0.0
      %vm805 = vcmp.gt.f32.partialorder %v593, 0.0
      %vm806 = vcmp.gt.f32.partialorder %v596, 0.0
      %vm807 = vcmp.gt.f32.partialorder %v601, 0.0
      %vm808 = vcmp.gt.f32.partialorder %v604, 0.0
      %vm809 = vcmp.gt.f32.partialorder %v609, 0.0
      %vm810 = vcmp.gt.f32.partialorder %v612, 0.0
      %vm811 = vcmp.gt.f32.partialorder %v617, 0.0
      %vm812 = vcmp.gt.f32.partialorder %v620, 0.0
      %vm813 = vcmp.gt.f32.partialorder %v625, 0.0
      %vm814 = vcmp.gt.f32.partialorder %v628, 0.0
      %vm815 = vcmp.gt.f32.partialorder %v633, 0.0
      %vm816 = vcmp.gt.f32.partialorder %v636, 0.0
      %vm817 = vcmp.gt.f32.partialorder %v641, 0.0
      %vm818 = vcmp.gt.f32.partialorder %v644, 0.0
      %vm819 = vcmp.gt.f32.partialorder %v649, 0.0
      %vm820 = vcmp.gt.f32.partialorder %v652, 0.0
      %vm821 = vcmp.gt.f32.partialorder %v657, 0.0
      %vm822 = vcmp.gt.f32.partialorder %v660, 0.0
      %vm823 = vcmp.gt.f32.partialorder %v665, 0.0
      %vm824 = vcmp.gt.f32.partialorder %v668, 0.0
      %vm825 = vcmp.gt.f32.partialorder %v673, 0.0
      %vm826 = vcmp.gt.f32.partialorder %v676, 0.0
      %vm827 = vcmp.gt.f32.partialorder %v681, 0.0
      %vm828 = vcmp.gt.f32.partialorder %v684, 0.0
      %vm829 = vcmp.gt.f32.partialorder %v689, 0.0
      %vm830 = vcmp.gt.f32.partialorder %v692, 0.0
      %vm831 = vcmp.gt.f32.partialorder %v697, 0.0
      %vm832 = vcmp.gt.f32.partialorder %v700, 0.0
      %vm833 = vcmp.gt.f32.partialorder %v705, 0.0
      %vm834 = vcmp.gt.f32.partialorder %v708, 0.0
      %vm835 = vcmp.gt.f32.partialorder %v713, 0.0
      %vm836 = vcmp.gt.f32.partialorder %v716, 0.0
      %vm837 = vcmp.gt.f32.partialorder %v721, 0.0
      %vm838 = vcmp.gt.f32.partialorder %v724, 0.0
      %vm839 = vcmp.gt.f32.partialorder %v729, 0.0
      %vm840 = vcmp.gt.f32.partialorder %v732, 0.0
      %vm841 = vcmp.gt.f32.partialorder %v737, 0.0
      %vm842 = vcmp.gt.f32.partialorder %v740, 0.0
      %vm843 = vcmp.gt.f32.partialorder %v745, 0.0
      %vm844 = vcmp.gt.f32.partialorder %v748, 0.0
      %vm845 = vcmp.gt.f32.partialorder %v753, 0.0
      %vm846 = vcmp.gt.f32.partialorder %v756, 0.0
      %vm847 = vcmp.gt.f32.partialorder %v761, 0.0
      %vm848 = vcmp.gt.f32.partialorder %v764, 0.0
      %vm849 = vcmp.gt.f32.partialorder %v769, 0.0
      %vm850 = vcmp.gt.f32.partialorder %v772, 0.0
      %vm851 = vcmp.gt.f32.partialorder %v777, 0.0
      %vm852 = vcmp.gt.f32.partialorder %v780, 0.0
      %vm853 = vcmp.gt.f32.partialorder %v785, 0.0
      %vm854 = vcmp.gt.f32.partialorder %v788, 0.0
      %v855 = vmul.f32 %v537, 0.2
      %v856 = vmul.f32 %v540, 0.2
      %v857 = vmul.f32 %v545, 0.2
      %v858 = vmul.f32 %v548, 0.2
      %v859 = vmul.f32 %v553, 0.2
      %v860 = vmul.f32 %v556, 0.2
      %v861 = vmul.f32 %v561, 0.2
      %v862 = vmul.f32 %v564, 0.2
      %v863 = vmul.f32 %v569, 0.2
      %v864 = vmul.f32 %v572, 0.2
      %v865 = vmul.f32 %v577, 0.2
      %v866 = vmul.f32 %v580, 0.2
      %v867 = vmul.f32 %v585, 0.2
      %v868 = vmul.f32 %v588, 0.2
      %v869 = vmul.f32 %v593, 0.2
      %v870 = vmul.f32 %v596, 0.2
      %v871 = vmul.f32 %v601, 0.2
      %v872 = vmul.f32 %v604, 0.2
      %v873 = vmul.f32 %v609, 0.2
      %v874 = vmul.f32 %v612, 0.2
      %v875 = vmul.f32 %v617, 0.2
      %v876 = vmul.f32 %v620, 0.2
      %v877 = vmul.f32 %v625, 0.2
      %v878 = vmul.f32 %v628, 0.2
      %v879 = vmul.f32 %v633, 0.2
      %v880 = vmul.f32 %v636, 0.2
      %v881 = vmul.f32 %v641, 0.2
      %v882 = vmul.f32 %v644, 0.2
      %v883 = vmul.f32 %v649, 0.2
      %v884 = vmul.f32 %v652, 0.2
      %v885 = vmul.f32 %v657, 0.2
      %v886 = vmul.f32 %v660, 0.2
      %v887 = vmul.f32 %v665, 0.2
      %v888 = vmul.f32 %v668, 0.2
      %v889 = vmul.f32 %v673, 0.2
      %v890 = vmul.f32 %v676, 0.2
      %v891 = vmul.f32 %v681, 0.2
      %v892 = vmul.f32 %v684, 0.2
      %v893 = vmul.f32 %v689, 0.2
      %v894 = vmul.f32 %v692, 0.2
      %v895 = vmul.f32 %v697, 0.2
      %v896 = vmul.f32 %v700, 0.2
      %v897 = vmul.f32 %v705, 0.2
      %v898 = vmul.f32 %v708, 0.2
      %v899 = vmul.f32 %v713, 0.2
      %v900 = vmul.f32 %v716, 0.2
      %v901 = vmul.f32 %v721, 0.2
      %v902 = vmul.f32 %v724, 0.2
      %v903 = vmul.f32 %v729, 0.2
      %v904 = vmul.f32 %v732, 0.2
      %v905 = vmul.f32 %v737, 0.2
      %v906 = vmul.f32 %v740, 0.2
      %v907 = vmul.f32 %v745, 0.2
      %v908 = vmul.f32 %v748, 0.2
      %v909 = vmul.f32 %v753, 0.2
      %v910 = vmul.f32 %v756, 0.2
      %v911 = vmul.f32 %v761, 0.2
      %v912 = vmul.f32 %v764, 0.2
      %v913 = vmul.f32 %v769, 0.2
      %v914 = vmul.f32 %v772, 0.2
      %v915 = vmul.f32 %v777, 0.2
      %v916 = vmul.f32 %v780, 0.2
      %v917 = vmul.f32 %v785, 0.2
      %v918 = vmul.f32 %v788, 0.2
      %v919 = vsel %vm791, %v537, %v855
      %v920 = vsel %vm792, %v540, %v856
      %v921 = vsel %vm793, %v545, %v857
      %v922 = vsel %vm794, %v548, %v858
      %v923 = vsel %vm795, %v553, %v859
      %v924 = vsel %vm796, %v556, %v860
      %v925 = vsel %vm797, %v561, %v861
      %v926 = vsel %vm798, %v564, %v862
      %v927 = vsel %vm799, %v569, %v863
      %v928 = vsel %vm800, %v572, %v864
      %v929 = vsel %vm801, %v577, %v865
      %v930 = vsel %vm802, %v580, %v866
      %v931 = vsel %vm803, %v585, %v867
      %v932 = vsel %vm804, %v588, %v868
      %v933 = vsel %vm805, %v593, %v869
      %v934 = vsel %vm806, %v596, %v870
      %v935 = vsel %vm807, %v601, %v871
      %v936 = vsel %vm808, %v604, %v872
      %v937 = vsel %vm809, %v609, %v873
      %v938 = vsel %vm810, %v612, %v874
      %v939 = vsel %vm811, %v617, %v875
      %v940 = vsel %vm812, %v620, %v876
      %v941 = vsel %vm813, %v625, %v877
      %v942 = vsel %vm814, %v628, %v878
      %v943 = vsel %vm815, %v633, %v879
      %v944 = vsel %vm816, %v636, %v880
      %v945 = vsel %vm817, %v641, %v881
      %v946 = vsel %vm818, %v644, %v882
      %v947 = vsel %vm819, %v649, %v883
      %v948 = vsel %vm820, %v652, %v884
      %v949 = vsel %vm821, %v657, %v885
      %v950 = vsel %vm822, %v660, %v886
      %v951 = vsel %vm823, %v665, %v887
      %v952 = vsel %vm824, %v668, %v888
      %v953 = vsel %vm825, %v673, %v889
      %v954 = vsel %vm826, %v676, %v890
      %v955 = vsel %vm827, %v681, %v891
      %v956 = vsel %vm828, %v684, %v892
      %v957 = vsel %vm829, %v689, %v893
      %v958 = vsel %vm830, %v692, %v894
      %v959 = vsel %vm831, %v697, %v895
      %v960 = vsel %vm832, %v700, %v896
      %v961 = vsel %vm833, %v705, %v897
      %v962 = vsel %vm834, %v708, %v898
      %v963 = vsel %vm835, %v713, %v899
      %v964 = vsel %vm836, %v716, %v900
      %v965 = vsel %vm837, %v721, %v901
      %v966 = vsel %vm838, %v724, %v902
      %v967 = vsel %vm839, %v729, %v903
      %v968 = vsel %vm840, %v732, %v904
      %v969 = vsel %vm841, %v737, %v905
      %v970 = vsel %vm842, %v740, %v906
      %v971 = vsel %vm843, %v745, %v907
      %v972 = vsel %vm844, %v748, %v908
      %v973 = vsel %vm845, %v753, %v909
      %v974 = vsel %vm846, %v756, %v910
      %v975 = vsel %vm847, %v761, %v911
      %v976 = vsel %vm848, %v764, %v912
      %v977 = vsel %vm849, %v769, %v913
      %v978 = vsel %vm850, %v772, %v914
      %v979 = vsel %vm851, %v777, %v915
      %v980 = vsel %vm852, %v780, %v916
      %v981 = vsel %vm853, %v785, %v917
      %v982 = vsel %vm854, %v788, %v918
      %v983 = vpack.c.bf16 %v920, %v919
      %v984 = vpack.c.bf16 %v922, %v921
      %v985 = vpack.c.bf16 %v924, %v923
      %v986 = vpack.c.bf16 %v926, %v925
      %v987 = vpack.c.bf16 %v928, %v927
      %v988 = vpack.c.bf16 %v930, %v929
      %v989 = vpack.c.bf16 %v932, %v931
      %v990 = vpack.c.bf16 %v934, %v933
      %v991 = vpack.c.bf16 %v936, %v935
      %v992 = vpack.c.bf16 %v938, %v937
      %v993 = vpack.c.bf16 %v940, %v939
      %v994 = vpack.c.bf16 %v942, %v941
      %v995 = vpack.c.bf16 %v944, %v943
      %v996 = vpack.c.bf16 %v946, %v945
      %v997 = vpack.c.bf16 %v948, %v947
      %v998 = vpack.c.bf16 %v950, %v949
      %v999 = vpack.c.bf16 %v952, %v951
      %v1000 = vpack.c.bf16 %v954, %v953
      %v1001 = vpack.c.bf16 %v956, %v955
      %v1002 = vpack.c.bf16 %v958, %v957
      %v1003 = vpack.c.bf16 %v960, %v959
      %v1004 = vpack.c.bf16 %v962, %v961
      %v1005 = vpack.c.bf16 %v964, %v963
      %v1006 = vpack.c.bf16 %v966, %v965
      %v1007 = vpack.c.bf16 %v968, %v967
      %v1008 = vpack.c.bf16 %v970, %v969
      %v1009 = vpack.c.bf16 %v972, %v971
      %v1010 = vpack.c.bf16 %v974, %v973
      %v1011 = vpack.c.bf16 %v976, %v975
      %v1012 = vpack.c.bf16 %v978, %v977
      %v1013 = vpack.c.bf16 %v980, %v979
      %v1014 = vpack.c.bf16 %v982, %v981
      %v1047 = vunpack.c.l.b16 %v983
      %v1048 = vunpack.c.h.b16 %v983
      %v1049 = vunpack.c.l.b16 %v984
      %v1050 = vunpack.c.h.b16 %v984
      %v1051 = vunpack.c.l.b16 %v985
      %v1052 = vunpack.c.h.b16 %v985
      %v1053 = vunpack.c.l.b16 %v986
      %v1054 = vunpack.c.h.b16 %v986
      %v1055 = vunpack.c.l.b16 %v987
      %v1056 = vunpack.c.h.b16 %v987
      %v1057 = vunpack.c.l.b16 %v988
      %v1058 = vunpack.c.h.b16 %v988
      %v1059 = vunpack.c.l.b16 %v989
      %v1060 = vunpack.c.h.b16 %v989
      %v1061 = vunpack.c.l.b16 %v990
      %v1062 = vunpack.c.h.b16 %v990
      %v1063 = vunpack.c.l.b16 %v991
      %v1064 = vunpack.c.h.b16 %v991
      %v1065 = vunpack.c.l.b16 %v992
      %v1066 = vunpack.c.h.b16 %v992
      %v1067 = vunpack.c.l.b16 %v993
      %v1068 = vunpack.c.h.b16 %v993
      %v1069 = vunpack.c.l.b16 %v994
      %v1070 = vunpack.c.h.b16 %v994
      %v1071 = vunpack.c.l.b16 %v995
      %v1072 = vunpack.c.h.b16 %v995
      %v1073 = vunpack.c.l.b16 %v996
      %v1074 = vunpack.c.h.b16 %v996
      %v1075 = vunpack.c.l.b16 %v997
      %v1076 = vunpack.c.h.b16 %v997
      %v1077 = vunpack.c.l.b16 %v998
      %v1078 = vunpack.c.h.b16 %v998
      %v1079 = vunpack.c.l.b16 %v999
      %v1080 = vunpack.c.h.b16 %v999
      %v1081 = vunpack.c.l.b16 %v1000
      %v1082 = vunpack.c.h.b16 %v1000
      %v1083 = vunpack.c.l.b16 %v1001
      %v1084 = vunpack.c.h.b16 %v1001
      %v1085 = vunpack.c.l.b16 %v1002
      %v1086 = vunpack.c.h.b16 %v1002
      %v1087 = vunpack.c.l.b16 %v1003
      %v1088 = vunpack.c.h.b16 %v1003
      %v1089 = vunpack.c.l.b16 %v1004
      %v1090 = vunpack.c.h.b16 %v1004
      %v1091 = vunpack.c.l.b16 %v1005
      %v1092 = vunpack.c.h.b16 %v1005
      %v1093 = vunpack.c.l.b16 %v1006
      %v1094 = vunpack.c.h.b16 %v1006
      %v1095 = vunpack.c.l.b16 %v1007
      %v1096 = vunpack.c.h.b16 %v1007
      %v1097 = vunpack.c.l.b16 %v1008
      %v1098 = vunpack.c.h.b16 %v1008
      %v1099 = vunpack.c.l.b16 %v1009
      %v1100 = vunpack.c.h.b16 %v1009
      %v1101 = vunpack.c.l.b16 %v1010
      %v1102 = vunpack.c.h.b16 %v1010
      %v1103 = vunpack.c.l.b16 %v1011
      %v1104 = vunpack.c.h.b16 %v1011
      %v1105 = vunpack.c.l.b16 %v1012
      %v1106 = vunpack.c.h.b16 %v1012
      %v1107 = vunpack.c.l.b16 %v1013
      %v1108 = vunpack.c.h.b16 %v1013
      %v1109 = vunpack.c.l.b16 %v1014
      %v1110 = vunpack.c.h.b16 %v1014
      %v1111 = vpack.c.b16 %v1047, %v1047
      %v1112 = vpack.c.b16 %v1048, %v1048
      %v1113 = vpack.c.b16 %v1049, %v1049
      %v1114 = vpack.c.b16 %v1050, %v1050
      %v1115 = vpack.c.b16 %v1051, %v1051
      %v1116 = vpack.c.b16 %v1052, %v1052
      %v1117 = vpack.c.b16 %v1053, %v1053
      %v1118 = vpack.c.b16 %v1054, %v1054
      %v1119 = vpack.c.b16 %v1055, %v1055
      %v1120 = vpack.c.b16 %v1056, %v1056
      %v1121 = vpack.c.b16 %v1057, %v1057
      %v1122 = vpack.c.b16 %v1058, %v1058
      %v1123 = vpack.c.b16 %v1059, %v1059
      %v1124 = vpack.c.b16 %v1060, %v1060
      %v1125 = vpack.c.b16 %v1061, %v1061
      %v1126 = vpack.c.b16 %v1062, %v1062
      %v1127 = vpack.c.b16 %v1063, %v1063
      %v1128 = vpack.c.b16 %v1064, %v1064
      %v1129 = vpack.c.b16 %v1065, %v1065
      %v1130 = vpack.c.b16 %v1066, %v1066
      %v1131 = vpack.c.b16 %v1067, %v1067
      %v1132 = vpack.c.b16 %v1068, %v1068
      %v1133 = vpack.c.b16 %v1069, %v1069
      %v1134 = vpack.c.b16 %v1070, %v1070
      %v1135 = vpack.c.b16 %v1071, %v1071
      %v1136 = vpack.c.b16 %v1072, %v1072
      %v1137 = vpack.c.b16 %v1073, %v1073
      %v1138 = vpack.c.b16 %v1074, %v1074
      %v1139 = vpack.c.b16 %v1075, %v1075
      %v1140 = vpack.c.b16 %v1076, %v1076
      %v1141 = vpack.c.b16 %v1077, %v1077
      %v1142 = vpack.c.b16 %v1078, %v1078
      %v1143 = vpack.c.b16 %v1079, %v1079
      %v1144 = vpack.c.b16 %v1080, %v1080
      %v1145 = vpack.c.b16 %v1081, %v1081
      %v1146 = vpack.c.b16 %v1082, %v1082
      %v1147 = vpack.c.b16 %v1083, %v1083
      %v1148 = vpack.c.b16 %v1084, %v1084
      %v1149 = vpack.c.b16 %v1085, %v1085
      %v1150 = vpack.c.b16 %v1086, %v1086
      %v1151 = vpack.c.b16 %v1087, %v1087
      %v1152 = vpack.c.b16 %v1088, %v1088
      %v1153 = vpack.c.b16 %v1089, %v1089
      %v1154 = vpack.c.b16 %v1090, %v1090
      %v1155 = vpack.c.b16 %v1091, %v1091
      %v1156 = vpack.c.b16 %v1092, %v1092
      %v1157 = vpack.c.b16 %v1093, %v1093
      %v1158 = vpack.c.b16 %v1094, %v1094
      %v1159 = vpack.c.b16 %v1095, %v1095
      %v1160 = vpack.c.b16 %v1096, %v1096
      %v1161 = vpack.c.b16 %v1097, %v1097
      %v1162 = vpack.c.b16 %v1098, %v1098
      %v1163 = vpack.c.b16 %v1099, %v1099
      %v1164 = vpack.c.b16 %v1100, %v1100
      %v1165 = vpack.c.b16 %v1101, %v1101
      %v1166 = vpack.c.b16 %v1102, %v1102
      %v1167 = vpack.c.b16 %v1103, %v1103
      %v1168 = vpack.c.b16 %v1104, %v1104
      %v1169 = vpack.c.b16 %v1105, %v1105
      %v1170 = vpack.c.b16 %v1106, %v1106
      %v1171 = vpack.c.b16 %v1107, %v1107
      %v1172 = vpack.c.b16 %v1108, %v1108
      %v1173 = vpack.c.b16 %v1109, %v1109
      %v1174 = vpack.c.b16 %v1110, %v1110
      %1239 = vst [vmem:[%s172] sm:$0xf] %v1111
      %1240 = vst [vmem:[%s172 + $0x4] sm:$0xf] %v1112
      %1241 = vst [vmem:[%s172 + $0x8] sm:$0xf] %v1113
      %1242 = vst [vmem:[%s172 + $0xc] sm:$0xf] %v1114
      %1243 = vst [vmem:[%s172 + $0x10] sm:$0xf] %v1115
      %1244 = vst [vmem:[%s172 + $0x14] sm:$0xf] %v1116
      %1245 = vst [vmem:[%s172 + $0x18] sm:$0xf] %v1117
      %1246 = vst [vmem:[%s172 + $0x1c] sm:$0xf] %v1118
      %1247 = vst [vmem:[%s172 + $0x20] sm:$0xf] %v1119
      %1248 = vst [vmem:[%s172 + $0x24] sm:$0xf] %v1120
      %1249 = vst [vmem:[%s172 + $0x28] sm:$0xf] %v1121
      %1250 = vst [vmem:[%s172 + $0x2c] sm:$0xf] %v1122
      %1251 = vst [vmem:[%s172 + $0x30] sm:$0xf] %v1123
      %1252 = vst [vmem:[%s172 + $0x34] sm:$0xf] %v1124
      %1253 = vst [vmem:[%s172 + $0x38] sm:$0xf] %v1125
      %1254 = vst [vmem:[%s172 + $0x3c] sm:$0xf] %v1126
      %1255 = vst [vmem:[%s172 + $0x40] sm:$0xf] %v1127
      %1256 = vst [vmem:[%s172 + $0x44] sm:$0xf] %v1128
      %1257 = vst [vmem:[%s172 + $0x48] sm:$0xf] %v1129
      %1258 = vst [vmem:[%s172 + $0x4c] sm:$0xf] %v1130
      %1259 = vst [vmem:[%s172 + $0x50] sm:$0xf] %v1131
      %1260 = vst [vmem:[%s172 + $0x54] sm:$0xf] %v1132
      %1261 = vst [vmem:[%s172 + $0x58] sm:$0xf] %v1133
      %1262 = vst [vmem:[%s172 + $0x5c] sm:$0xf] %v1134
      %1263 = vst [vmem:[%s172 + $0x60] sm:$0xf] %v1135
      %1264 = vst [vmem:[%s172 + $0x64] sm:$0xf] %v1136
      %1265 = vst [vmem:[%s172 + $0x68] sm:$0xf] %v1137
      %1266 = vst [vmem:[%s172 + $0x6c] sm:$0xf] %v1138
      %1267 = vst [vmem:[%s172 + $0x70] sm:$0xf] %v1139
      %1268 = vst [vmem:[%s172 + $0x74] sm:$0xf] %v1140
      %1269 = vst [vmem:[%s172 + $0x78] sm:$0xf] %v1141
      %1270 = vst [vmem:[%s172 + $0x7c] sm:$0xf] %v1142
      %1271 = vst [vmem:[%s172 + $0x80] sm:$0xf] %v1143
      %1272 = vst [vmem:[%s172 + $0x84] sm:$0xf] %v1144
      %1273 = vst [vmem:[%s172 + $0x88] sm:$0xf] %v1145
      %1274 = vst [vmem:[%s172 + $0x8c] sm:$0xf] %v1146
      %1275 = vst [vmem:[%s172 + $0x90] sm:$0xf] %v1147
      %1276 = vst [vmem:[%s172 + $0x94] sm:$0xf] %v1148
      %1277 = vst [vmem:[%s172 + $0x98] sm:$0xf] %v1149
      %1278 = vst [vmem:[%s172 + $0x9c] sm:$0xf] %v1150
      %1279 = vst [vmem:[%s172 + $0xa0] sm:$0xf] %v1151
      %1280 = vst [vmem:[%s172 + $0xa4] sm:$0xf] %v1152
      %1281 = vst [vmem:[%s172 + $0xa8] sm:$0xf] %v1153
      %1282 = vst [vmem:[%s172 + $0xac] sm:$0xf] %v1154
      %1283 = vst [vmem:[%s172 + $0xb0] sm:$0xf] %v1155
      %1284 = vst [vmem:[%s172 + $0xb4] sm:$0xf] %v1156
      %1285 = vst [vmem:[%s172 + $0xb8] sm:$0xf] %v1157
      %1286 = vst [vmem:[%s172 + $0xbc] sm:$0xf] %v1158
      %1287 = vst [vmem:[%s172 + $0xc0] sm:$0xf] %v1159
      %1288 = vst [vmem:[%s172 + $0xc4] sm:$0xf] %v1160
      %1289 = vst [vmem:[%s172 + $0xc8] sm:$0xf] %v1161
      %1290 = vst [vmem:[%s172 + $0xcc] sm:$0xf] %v1162
      %1291 = vst [vmem:[%s172 + $0xd0] sm:$0xf] %v1163
      %1292 = vst [vmem:[%s172 + $0xd4] sm:$0xf] %v1164
      %1293 = vst [vmem:[%s172 + $0xd8] sm:$0xf] %v1165
      %1294 = vst [vmem:[%s172 + $0xdc] sm:$0xf] %v1166
      %1295 = vst [vmem:[%s172 + $0xe0] sm:$0xf] %v1167
      %1296 = vst [vmem:[%s172 + $0xe4] sm:$0xf] %v1168
      %1297 = vst [vmem:[%s172 + $0xe8] sm:$0xf] %v1169
      %1298 = vst [vmem:[%s172 + $0xec] sm:$0xf] %v1170
      %1299 = vst [vmem:[%s172 + $0xf0] sm:$0xf] %v1171
      %1300 = vst [vmem:[%s172 + $0xf4] sm:$0xf] %v1172
      %1301 = vst [vmem:[%s172 + $0xf8] sm:$0xf] %v1173
      %1302 = vst [vmem:[%s172 + $0xfc] sm:$0xf] %v1174
      %s1303 = smul.u32 64, %s14
      %p1304 = scmp.lt.s32.totalorder %s1303, 255
      %s1305 = scalar_select %p1304, %s1303, 255
      %s1306 = smul.addr %s1305, 4
      %s1307 = scalar_lea.vmem %s3, %s1306
      // Predicated region
      $region33: #{discriminator_forward.6} parent=31 // pred_check
        %p1308 = pneg %p100
      $region34: #{discriminator_forward.6} parent=31 // pred_check_branch
        %1310 = sbr.rel (%p1308) target = $region36
      $region35: #{discriminator_forward.6} parent=31 // pred_region
        %s1311 = smul.u32 64, %s14
      $region36: #{discriminator_forward.6} parent=31 // pred_fallthru
        _
    $region32: #{discriminator_forward.6} parent=5 // pred_fallthru
      _
    %p1312 = scmp.le.s32.totalorder 2, %s9
    // Predicated region
    $region37: #{discriminator_forward.6} parent=5 // pred_check
      %p1313 = pneg %p1312
    $region38: #{discriminator_forward.6} parent=5 // pred_check_branch
      %1315 = sbr.rel (%p1313) target = $region40
    $region39: #{discriminator_forward.6} parent=5 // pred_region
      %s1316 = ssub.s32 %s9, 2
      // Predicated region
      $region41: #{discriminator_forward.6} parent=39 // pred_check
        %p1317 = pneg %p106
      $region42: #{discriminator_forward.6} parent=39 // pred_check_branch
        %1319 = sbr.rel (%p1317) target = $region44
      $region43: #{discriminator_forward.6} parent=39 // pred_region
        %s1320 = smul.u32 64, %s15
        %p1321 = scmp.lt.s32.totalorder %s1320, 255
        %s1322 = scalar_select %p1321, %s1320, 255
        %s1323 = smul.addr %s1322, 4
        %s1324 = scalar_lea.vmem %s3, %s1323
      $region44: #{discriminator_forward.6} parent=39 // pred_fallthru
        _
    $region40: #{discriminator_forward.6} parent=5 // pred_fallthru
      _
  $region6: #{discriminator_forward.6} parent=0 // loop_footer
    %s13 = sadd.s32 1, %s9
  $region7: #{discriminator_forward.6} parent=0 // loop_footer_branch
    %8 = sbr.rel target = $region3
  $region8: #{discriminator_forward.6} parent=0 // loop_exit
    _

// kernel: discriminator_forward.7
$region0: #{discriminator_forward.7}
  #allocation0 [shape = 'u32[]', space=smem, size = 0x4, offset = 0x4, fixed_abs, tag = 'smem constant byte address 0x4 - core index']
  #allocation1 [shape = 'u32[144,128]{1,0:T(1,128)}', space=vmem, size = 0x12000, scoped, tag = 'internal scratch']
  %s0 = inlined_call_operand.vmem [shape: bf16[512,256], index: 0, kind: input, shape index: {}]
  %s1 = inlined_call_operand.vmem [shape: bf16[256,128], index: 1, kind: input, shape index: {}]
  %s2 = inlined_call_operand.vmem [shape: f32[1,128], index: 2, kind: input, shape index: {}]
  %s3 = inlined_call_operand.vmem [shape: bf16[512,128], index: 3, kind: output, shape index: {}]
  %s4 = sld [smem:[#allocation0]]
  $region22: #{discriminator_forward.7} parent=0
    _
  %s6 = ssub.s32 1, %s4
  %s7 = scalar_select 0, %s6, %s4
  // Predicated region
  $region2: #{discriminator_forward.7} parent=0 // pred_check
    _
  $region3: #{discriminator_forward.7} parent=0 // pred_check_branch
    %9 = sbr.rel (0) target = $region5
  $region4: #{discriminator_forward.7} parent=0 // pred_region
    _
  $region5: #{discriminator_forward.7} parent=0 // pred_fallthru
    _
  // Predicated region
  $region6: #{discriminator_forward.7} parent=0 // pred_check
    _
  $region7: #{discriminator_forward.7} parent=0 // pred_check_branch
    %11 = sbr.rel (0) target = $region9
  $region8: #{discriminator_forward.7} parent=0 // pred_region
    _
  $region9: #{discriminator_forward.7} parent=0 // pred_fallthru
    _
  // Predicated region
  $region10: #{discriminator_forward.7} parent=0 // pred_check
    _
  $region11: #{discriminator_forward.7} parent=0 // pred_check_branch
    %13 = sbr.rel (0) target = $region13
  $region12: #{discriminator_forward.7} parent=0 // pred_region
    _
  $region13: #{discriminator_forward.7} parent=0 // pred_fallthru
    _
  %v15 = vld [vmem:[%s0] sm:$0xff]
  %v16 = vld [vmem:[%s0 + $0x8] sm:$0xff]
  %v17 = vld [vmem:[%s0 + $0x10] sm:$0xff]
  %v18 = vld [vmem:[%s0 + $0x18] sm:$0xff]
  %v19 = vld [vmem:[%s0 + $0x20] sm:$0xff]
  %v20 = vld [vmem:[%s0 + $0x28] sm:$0xff]
  %v21 = vld [vmem:[%s0 + $0x30] sm:$0xff]
  %v22 = vld [vmem:[%s0 + $0x38] sm:$0xff]
  %v23 = vld [vmem:[%s0 + $0x40] sm:$0xff]
  %v24 = vld [vmem:[%s0 + $0x48] sm:$0xff]
  %v25 = vld [vmem:[%s0 + $0x50] sm:$0xff]
  %v26 = vld [vmem:[%s0 + $0x58] sm:$0xff]
  %v27 = vld [vmem:[%s0 + $0x60] sm:$0xff]
  %v28 = vld [vmem:[%s0 + $0x68] sm:$0xff]
  %v29 = vld [vmem:[%s0 + $0x70] sm:$0xff]
  %v30 = vld [vmem:[%s0 + $0x78] sm:$0xff]
  %v31 = vld [vmem:[%s0 + $0x80] sm:$0xff]
  %v32 = vld [vmem:[%s0 + $0x88] sm:$0xff]
  %v33 = vld [vmem:[%s0 + $0x90] sm:$0xff]
  %v34 = vld [vmem:[%s0 + $0x98] sm:$0xff]
  %v35 = vld [vmem:[%s0 + $0xa0] sm:$0xff]
  %v36 = vld [vmem:[%s0 + $0xa8] sm:$0xff]
  %v37 = vld [vmem:[%s0 + $0xb0] sm:$0xff]
  %v38 = vld [vmem:[%s0 + $0xb8] sm:$0xff]
  %v39 = vld [vmem:[%s0 + $0xc0] sm:$0xff]
  %v40 = vld [vmem:[%s0 + $0xc8] sm:$0xff]
  %v41 = vld [vmem:[%s0 + $0xd0] sm:$0xff]
  %v42 = vld [vmem:[%s0 + $0xd8] sm:$0xff]
  %v43 = vld [vmem:[%s0 + $0xe0] sm:$0xff]
  %v44 = vld [vmem:[%s0 + $0xe8] sm:$0xff]
  %v45 = vld [vmem:[%s0 + $0xf0] sm:$0xff]
  %v46 = vld [vmem:[%s0 + $0xf8] sm:$0xff]
  %v47 = vld [vmem:[%s0 + $0x100] sm:$0xff]
  %v48 = vld [vmem:[%s0 + $0x108] sm:$0xff]
  %v49 = vld [vmem:[%s0 + $0x110] sm:$0xff]
  %v50 = vld [vmem:[%s0 + $0x118] sm:$0xff]
  %v51 = vld [vmem:[%s0 + $0x120] sm:$0xff]
  %v52 = vld [vmem:[%s0 + $0x128] sm:$0xff]
  %v53 = vld [vmem:[%s0 + $0x130] sm:$0xff]
  %v54 = vld [vmem:[%s0 + $0x138] sm:$0xff]
  %v55 = vld [vmem:[%s0 + $0x140] sm:$0xff]
  %v56 = vld [vmem:[%s0 + $0x148] sm:$0xff]
  %v57 = vld [vmem:[%s0 + $0x150] sm:$0xff]
  %v58 = vld [vmem:[%s0 + $0x158] sm:$0xff]
  %v59 = vld [vmem:[%s0 + $0x160] sm:$0xff]
  %v60 = vld [vmem:[%s0 + $0x168] sm:$0xff]
  %v61 = vld [vmem:[%s0 + $0x170] sm:$0xff]
  %v62 = vld [vmem:[%s0 + $0x178] sm:$0xff]
  %v63 = vld [vmem:[%s0 + $0x180] sm:$0xff]
  %v64 = vld [vmem:[%s0 + $0x188] sm:$0xff]
  %v65 = vld [vmem:[%s0 + $0x190] sm:$0xff]
  %v66 = vld [vmem:[%s0 + $0x198] sm:$0xff]
  %v67 = vld [vmem:[%s0 + $0x1a0] sm:$0xff]
  %v68 = vld [vmem:[%s0 + $0x1a8] sm:$0xff]
  %v69 = vld [vmem:[%s0 + $0x1b0] sm:$0xff]
  %v70 = vld [vmem:[%s0 + $0x1b8] sm:$0xff]
  %v71 = vld [vmem:[%s0 + $0x1c0] sm:$0xff]
  %v72 = vld [vmem:[%s0 + $0x1c8] sm:$0xff]
  %v73 = vld [vmem:[%s0 + $0x1d0] sm:$0xff]
  %v74 = vld [vmem:[%s0 + $0x1d8] sm:$0xff]
  %v75 = vld [vmem:[%s0 + $0x1e0] sm:$0xff]
  %v76 = vld [vmem:[%s0 + $0x1e8] sm:$0xff]
  %v77 = vld [vmem:[%s0 + $0x1f0] sm:$0xff]
  %v78 = vld [vmem:[%s0 + $0x1f8] sm:$0xff]
  %v79 = vld [vmem:[%s1] sm:$0xf]
  %v80 = vld [vmem:[%s1 + $0x4] sm:$0xf]
  %v81 = vld [vmem:[%s1 + $0x8] sm:$0xf]
  %v82 = vld [vmem:[%s1 + $0xc] sm:$0xf]
  %v83 = vld [vmem:[%s1 + $0x10] sm:$0xf]
  %v84 = vld [vmem:[%s1 + $0x14] sm:$0xf]
  %v85 = vld [vmem:[%s1 + $0x18] sm:$0xf]
  %v86 = vld [vmem:[%s1 + $0x1c] sm:$0xf]
  %v87 = vld [vmem:[%s1 + $0x20] sm:$0xf]
  %v88 = vld [vmem:[%s1 + $0x24] sm:$0xf]
  %v89 = vld [vmem:[%s1 + $0x28] sm:$0xf]
  %v90 = vld [vmem:[%s1 + $0x2c] sm:$0xf]
  %v91 = vld [vmem:[%s1 + $0x30] sm:$0xf]
  %v92 = vld [vmem:[%s1 + $0x34] sm:$0xf]
  %v93 = vld [vmem:[%s1 + $0x38] sm:$0xf]
  %v94 = vld [vmem:[%s1 + $0x3c] sm:$0xf]
  %v95 = vld [vmem:[%s1 + $0x40] sm:$0xf]
  %v96 = vld [vmem:[%s1 + $0x44] sm:$0xf]
  %v97 = vld [vmem:[%s1 + $0x48] sm:$0xf]
  %v98 = vld [vmem:[%s1 + $0x4c] sm:$0xf]
  %v99 = vld [vmem:[%s1 + $0x50] sm:$0xf]
  %v100 = vld [vmem:[%s1 + $0x54] sm:$0xf]
  %v101 = vld [vmem:[%s1 + $0x58] sm:$0xf]
  %v102 = vld [vmem:[%s1 + $0x5c] sm:$0xf]
  %v103 = vld [vmem:[%s1 + $0x60] sm:$0xf]
  %v104 = vld [vmem:[%s1 + $0x64] sm:$0xf]
  %v105 = vld [vmem:[%s1 + $0x68] sm:$0xf]
  %v106 = vld [vmem:[%s1 + $0x6c] sm:$0xf]
  %v107 = vld [vmem:[%s1 + $0x70] sm:$0xf]
  %v108 = vld [vmem:[%s1 + $0x74] sm:$0xf]
  %v109 = vld [vmem:[%s1 + $0x78] sm:$0xf]
  %v110 = vld [vmem:[%s1 + $0x7c] sm:$0xf]
  %v111 = vld [vmem:[%s2] sm:$0x1]
  %v113 = vlaneseq
  %v114 = vshrl.u32 %v113, 7
  %v115 = vsub.s32 0, %v114
  %v116 = vrot.slane %v111, %v115
  %v182 = vunpack.c.l.b16 %v15
  %v183 = vunpack.c.h.b16 %v15
  %v184 = vunpack.c.l.b16 %v16
  %v185 = vunpack.c.h.b16 %v16
  %v186 = vunpack.c.l.b16 %v17
  %v187 = vunpack.c.h.b16 %v17
  %v188 = vunpack.c.l.b16 %v18
  %v189 = vunpack.c.h.b16 %v18
  %v190 = vunpack.c.l.b16 %v19
  %v191 = vunpack.c.h.b16 %v19
  %v192 = vunpack.c.l.b16 %v20
  %v193 = vunpack.c.h.b16 %v20
  %v194 = vunpack.c.l.b16 %v21
  %v195 = vunpack.c.h.b16 %v21
  %v196 = vunpack.c.l.b16 %v22
  %v197 = vunpack.c.h.b16 %v22
  %v198 = vunpack.c.l.b16 %v23
  %v199 = vunpack.c.h.b16 %v23
  %v200 = vunpack.c.l.b16 %v24
  %v201 = vunpack.c.h.b16 %v24
  %v202 = vunpack.c.l.b16 %v25
  %v203 = vunpack.c.h.b16 %v25
  %v204 = vunpack.c.l.b16 %v26
  %v205 = vunpack.c.h.b16 %v26
  %v206 = vunpack.c.l.b16 %v27
  %v207 = vunpack.c.h.b16 %v27
  %v208 = vunpack.c.l.b16 %v28
  %v209 = vunpack.c.h.b16 %v28
  %v210 = vunpack.c.l.b16 %v29
  %v211 = vunpack.c.h.b16 %v29
  %v212 = vunpack.c.l.b16 %v30
  %v213 = vunpack.c.h.b16 %v30
  %v214 = vunpack.c.l.b16 %v31
  %v215 = vunpack.c.h.b16 %v31
  %v216 = vunpack.c.l.b16 %v32
  %v217 = vunpack.c.h.b16 %v32
  %v218 = vunpack.c.l.b16 %v33
  %v219 = vunpack.c.h.b16 %v33
  %v220 = vunpack.c.l.b16 %v34
  %v221 = vunpack.c.h.b16 %v34
  %v222 = vunpack.c.l.b16 %v35
  %v223 = vunpack.c.h.b16 %v35
  %v224 = vunpack.c.l.b16 %v36
  %v225 = vunpack.c.h.b16 %v36
  %v226 = vunpack.c.l.b16 %v37
  %v227 = vunpack.c.h.b16 %v37
  %v228 = vunpack.c.l.b16 %v38
  %v229 = vunpack.c.h.b16 %v38
  %v230 = vunpack.c.l.b16 %v39
  %v231 = vunpack.c.h.b16 %v39
  %v232 = vunpack.c.l.b16 %v40
  %v233 = vunpack.c.h.b16 %v40
  %v234 = vunpack.c.l.b16 %v41
  %v235 = vunpack.c.h.b16 %v41
  %v236 = vunpack.c.l.b16 %v42
  %v237 = vunpack.c.h.b16 %v42
  %v238 = vunpack.c.l.b16 %v43
  %v239 = vunpack.c.h.b16 %v43
  %v240 = vunpack.c.l.b16 %v44
  %v241 = vunpack.c.h.b16 %v44
  %v242 = vunpack.c.l.b16 %v45
  %v243 = vunpack.c.h.b16 %v45
  %v244 = vunpack.c.l.b16 %v46
  %v245 = vunpack.c.h.b16 %v46
  %v246 = vunpack.c.l.b16 %v47
  %v247 = vunpack.c.h.b16 %v47
  %v248 = vunpack.c.l.b16 %v48
  %v249 = vunpack.c.h.b16 %v48
  %v250 = vunpack.c.l.b16 %v49
  %v251 = vunpack.c.h.b16 %v49
  %v252 = vunpack.c.l.b16 %v50
  %v253 = vunpack.c.h.b16 %v50
  %v254 = vunpack.c.l.b16 %v51
  %v255 = vunpack.c.h.b16 %v51
  %v256 = vunpack.c.l.b16 %v52
  %v257 = vunpack.c.h.b16 %v52
  %v258 = vunpack.c.l.b16 %v53
  %v259 = vunpack.c.h.b16 %v53
  %v260 = vunpack.c.l.b16 %v54
  %v261 = vunpack.c.h.b16 %v54
  %v262 = vunpack.c.l.b16 %v55
  %v263 = vunpack.c.h.b16 %v55
  %v264 = vunpack.c.l.b16 %v56
  %v265 = vunpack.c.h.b16 %v56
  %v266 = vunpack.c.l.b16 %v57
  %v267 = vunpack.c.h.b16 %v57
  %v268 = vunpack.c.l.b16 %v58
  %v269 = vunpack.c.h.b16 %v58
  %v270 = vunpack.c.l.b16 %v59
  %v271 = vunpack.c.h.b16 %v59
  %v272 = vunpack.c.l.b16 %v60
  %v273 = vunpack.c.h.b16 %v60
  %v274 = vunpack.c.l.b16 %v61
  %v275 = vunpack.c.h.b16 %v61
  %v276 = vunpack.c.l.b16 %v62
  %v277 = vunpack.c.h.b16 %v62
  %v278 = vunpack.c.l.b16 %v63
  %v279 = vunpack.c.h.b16 %v63
  %v280 = vunpack.c.l.b16 %v64
  %v281 = vunpack.c.h.b16 %v64
  %v282 = vunpack.c.l.b16 %v65
  %v283 = vunpack.c.h.b16 %v65
  %v284 = vunpack.c.l.b16 %v66
  %v285 = vunpack.c.h.b16 %v66
  %v286 = vunpack.c.l.b16 %v67
  %v287 = vunpack.c.h.b16 %v67
  %v288 = vunpack.c.l.b16 %v68
  %v289 = vunpack.c.h.b16 %v68
  %v290 = vunpack.c.l.b16 %v69
  %v291 = vunpack.c.h.b16 %v69
  %v292 = vunpack.c.l.b16 %v70
  %v293 = vunpack.c.h.b16 %v70
  %v294 = vunpack.c.l.b16 %v71
  %v295 = vunpack.c.h.b16 %v71
  %v296 = vunpack.c.l.b16 %v72
  %v297 = vunpack.c.h.b16 %v72
  %v298 = vunpack.c.l.b16 %v73
  %v299 = vunpack.c.h.b16 %v73
  %v300 = vunpack.c.l.b16 %v74
  %v301 = vunpack.c.h.b16 %v74
  %v302 = vunpack.c.l.b16 %v75
  %v303 = vunpack.c.h.b16 %v75
  %v304 = vunpack.c.l.b16 %v76
  %v305 = vunpack.c.h.b16 %v76
  %v306 = vunpack.c.l.b16 %v77
  %v307 = vunpack.c.h.b16 %v77
  %v308 = vunpack.c.l.b16 %v78
  %v309 = vunpack.c.h.b16 %v78
  %v310 = vpack.c.b16 %v184, %v182
  %v311 = vpack.c.b16 %v185, %v183
  %v312 = vpack.c.b16 %v188, %v186
  %v313 = vpack.c.b16 %v189, %v187
  %v314 = vpack.c.b16 %v192, %v190
  %v315 = vpack.c.b16 %v193, %v191
  %v316 = vpack.c.b16 %v196, %v194
  %v317 = vpack.c.b16 %v197, %v195
  %v318 = vpack.c.b16 %v200, %v198
  %v319 = vpack.c.b16 %v201, %v199
  %v320 = vpack.c.b16 %v204, %v202
  %v321 = vpack.c.b16 %v205, %v203
  %v322 = vpack.c.b16 %v208, %v206
  %v323 = vpack.c.b16 %v209, %v207
  %v324 = vpack.c.b16 %v212, %v210
  %v325 = vpack.c.b16 %v213, %v211
  %v326 = vpack.c.b16 %v216, %v214
  %v327 = vpack.c.b16 %v217, %v215
  %v328 = vpack.c.b16 %v220, %v218
  %v329 = vpack.c.b16 %v221, %v219
  %v330 = vpack.c.b16 %v224, %v222
  %v331 = vpack.c.b16 %v225, %v223
  %v332 = vpack.c.b16 %v228, %v226
  %v333 = vpack.c.b16 %v229, %v227
  %v334 = vpack.c.b16 %v232, %v230
  %v335 = vpack.c.b16 %v233, %v231
  %v336 = vpack.c.b16 %v236, %v234
  %v337 = vpack.c.b16 %v237, %v235
  %v338 = vpack.c.b16 %v240, %v238
  %v339 = vpack.c.b16 %v241, %v239
  %v340 = vpack.c.b16 %v244, %v242
  %v341 = vpack.c.b16 %v245, %v243
  %v342 = vpack.c.b16 %v248, %v246
  %v343 = vpack.c.b16 %v249, %v247
  %v344 = vpack.c.b16 %v252, %v250
  %v345 = vpack.c.b16 %v253, %v251
  %v346 = vpack.c.b16 %v256, %v254
  %v347 = vpack.c.b16 %v257, %v255
  %v348 = vpack.c.b16 %v260, %v258
  %v349 = vpack.c.b16 %v261, %v259
  %v350 = vpack.c.b16 %v264, %v262
  %v351 = vpack.c.b16 %v265, %v263
  %v352 = vpack.c.b16 %v268, %v266
  %v353 = vpack.c.b16 %v269, %v267
  %v354 = vpack.c.b16 %v272, %v270
  %v355 = vpack.c.b16 %v273, %v271
  %v356 = vpack.c.b16 %v276, %v274
  %v357 = vpack.c.b16 %v277, %v275
  %v358 = vpack.c.b16 %v280, %v278
  %v359 = vpack.c.b16 %v281, %v279
  %v360 = vpack.c.b16 %v284, %v282
  %v361 = vpack.c.b16 %v285, %v283
  %v362 = vpack.c.b16 %v288, %v286
  %v363 = vpack.c.b16 %v289, %v287
  %v364 = vpack.c.b16 %v292, %v290
  %v365 = vpack.c.b16 %v293, %v291
  %v366 = vpack.c.b16 %v296, %v294
  %v367 = vpack.c.b16 %v297, %v295
  %v368 = vpack.c.b16 %v300, %v298
  %v369 = vpack.c.b16 %v301, %v299
  %v370 = vpack.c.b16 %v304, %v302
  %v371 = vpack.c.b16 %v305, %v303
  %v372 = vpack.c.b16 %v308, %v306
  %v373 = vpack.c.b16 %v309, %v307
  %v470 = vunpack.c.l.b16 %v79
  %v471 = vunpack.c.l.b16 %v80
  %v472 = vunpack.c.l.b16 %v81
  %v473 = vunpack.c.l.b16 %v82
  %v474 = vunpack.c.l.b16 %v83
  %v475 = vunpack.c.l.b16 %v84
  %v476 = vunpack.c.l.b16 %v85
  %v477 = vunpack.c.l.b16 %v86
  %v478 = vunpack.c.l.b16 %v87
  %v479 = vunpack.c.l.b16 %v88
  %v480 = vunpack.c.l.b16 %v89
  %v481 = vunpack.c.l.b16 %v90
  %v482 = vunpack.c.l.b16 %v91
  %v483 = vunpack.c.l.b16 %v92
  %v484 = vunpack.c.l.b16 %v93
  %v485 = vunpack.c.l.b16 %v94
  %v486 = vunpack.c.l.b16 %v95
  %v487 = vunpack.c.l.b16 %v96
  %v488 = vunpack.c.l.b16 %v97
  %v489 = vunpack.c.l.b16 %v98
  %v490 = vunpack.c.l.b16 %v99
  %v491 = vunpack.c.l.b16 %v100
  %v492 = vunpack.c.l.b16 %v101
  %v493 = vunpack.c.l.b16 %v102
  %v494 = vunpack.c.l.b16 %v103
  %v495 = vunpack.c.l.b16 %v104
  %v496 = vunpack.c.l.b16 %v105
  %v497 = vunpack.c.l.b16 %v106
  %v498 = vunpack.c.l.b16 %v107
  %v499 = vunpack.c.l.b16 %v108
  %v500 = vunpack.c.l.b16 %v109
  %v501 = vunpack.c.l.b16 %v110
  %v502 = vpack.c.b16 %v471, %v470
  %v503 = vpack.c.b16 %v473, %v472
  %v504 = vpack.c.b16 %v475, %v474
  %v505 = vpack.c.b16 %v477, %v476
  %v506 = vpack.c.b16 %v479, %v478
  %v507 = vpack.c.b16 %v481, %v480
  %v508 = vpack.c.b16 %v483, %v482
  %v509 = vpack.c.b16 %v485, %v484
  %v510 = vpack.c.b16 %v487, %v486
  %v511 = vpack.c.b16 %v489, %v488
  %v512 = vpack.c.b16 %v491, %v490
  %v513 = vpack.c.b16 %v493, %v492
  %v514 = vpack.c.b16 %v495, %v494
  %v515 = vpack.c.b16 %v497, %v496
  %v516 = vpack.c.b16 %v499, %v498
  %v517 = vpack.c.b16 %v501, %v500
  %534 = vmatprep.subr.bf16.mxu0 0
  %535 = vmatpush1.bf16.msra.mxu0 %v502
  %536 = vmatprep.subr.bf16.mxu0 0
  %537 = vmatpush1.bf16.msra.mxu0 %v503
  %538 = vmatprep.subr.bf16.mxu0 0
  %539 = vmatpush1.bf16.msra.mxu0 %v504
  %540 = vmatprep.subr.bf16.mxu0 0
  %541 = vmatpush1.bf16.msra.mxu0 %v505
  %542 = vmatprep.subr.bf16.mxu0 0
  %543 = vmatpush1.bf16.msra.mxu0 %v506
  %544 = vmatprep.subr.bf16.mxu0 0
  %545 = vmatpush1.bf16.msra.mxu0 %v507
  %546 = vmatprep.subr.bf16.mxu0 0
  %547 = vmatpush1.bf16.msra.mxu0 %v508
  %548 = vmatprep.subr.bf16.mxu0 0
  %549 = vmatpush1.bf16.msra.mxu0 %v509
  %550 = vmatprep.subr.bf16.mxu0 0
  %551 = vmatpush1.bf16.msra.mxu0 %v510
  %552 = vmatprep.subr.bf16.mxu0 0
  %553 = vmatpush1.bf16.msra.mxu0 %v511
  %554 = vmatprep.subr.bf16.mxu0 0
  %555 = vmatpush1.bf16.msra.mxu0 %v512
  %556 = vmatprep.subr.bf16.mxu0 0
  %557 = vmatpush1.bf16.msra.mxu0 %v513
  %558 = vmatprep.subr.bf16.mxu0 0
  %559 = vmatpush1.bf16.msra.mxu0 %v514
  %560 = vmatprep.subr.bf16.mxu0 0
  %561 = vmatpush1.bf16.msra.mxu0 %v515
  %562 = vmatprep.subr.bf16.mxu0 0
  %563 = vmatpush1.bf16.msra.mxu0 %v516
  %564 = vmatprep.subr.bf16.mxu0 0
  %565 = vmatpush1.bf16.msra.mxu0 %v517
  %566 = vmatprep.mubr.bf16.mxu0 %v311
  %567 = vmatmul.mubr.bf16.gmra.mrb[0].mxu0 %v310
  %v568 = vpop.f32.mrb[0].mxu0
  %v569 = vadd.f32 %v116, %v568
  %v570 = vpop.f32.mrb[0].mxu0
  %v571 = vpop.f32.mrb[0].mxu0
  %v572 = vadd.f32 %v116, %v571
  %v573 = vpop.f32.mrb[0].mxu0
  %574 = vmatprep.mubr.bf16.mxu0 %v313
  %575 = vmatmul.mubr.bf16.gmra.mrb[0].mxu0 %v312
  %v576 = vpop.f32.mrb[0].mxu0
  %v577 = vadd.f32 %v116, %v576
  %v578 = vpop.f32.mrb[0].mxu0
  %v579 = vpop.f32.mrb[0].mxu0
  %v580 = vadd.f32 %v116, %v579
  %v581 = vpop.f32.mrb[0].mxu0
  %582 = vmatprep.mubr.bf16.mxu0 %v315
  %583 = vmatmul.mubr.bf16.gmra.mrb[0].mxu0 %v314
  %v584 = vpop.f32.mrb[0].mxu0
  %v585 = vadd.f32 %v116, %v584
  %v586 = vpop.f32.mrb[0].mxu0
  %v587 = vpop.f32.mrb[0].mxu0
  %v588 = vadd.f32 %v116, %v587
  %v589 = vpop.f32.mrb[0].mxu0
  %590 = vmatprep.mubr.bf16.mxu0 %v317
  %591 = vmatmul.mubr.bf16.gmra.mrb[0].mxu0 %v316
  %v592 = vpop.f32.mrb[0].mxu0
  %v593 = vadd.f32 %v116, %v592
  %v594 = vpop.f32.mrb[0].mxu0
  %v595 = vpop.f32.mrb[0].mxu0
  %v596 = vadd.f32 %v116, %v595
  %v597 = vpop.f32.mrb[0].mxu0
  %598 = vmatprep.mubr.bf16.mxu0 %v319
  %599 = vmatmul.mubr.bf16.gmra.mrb[0].mxu0 %v318
  %v600 = vpop.f32.mrb[0].mxu0
  %v601 = vadd.f32 %v116, %v600
  %v602 = vpop.f32.mrb[0].mxu0
  %v603 = vpop.f32.mrb[0].mxu0
  %v604 = vadd.f32 %v116, %v603
  %v605 = vpop.f32.mrb[0].mxu0
  %606 = vmatprep.mubr.bf16.mxu0 %v321
  %607 = vmatmul.mubr.bf16.gmra.mrb[0].mxu0 %v320
  %v608 = vpop.f32.mrb[0].mxu0
  %v609 = vadd.f32 %v116, %v608
  %v610 = vpop.f32.mrb[0].mxu0
  %v611 = vpop.f32.mrb[0].mxu0
  %v612 = vadd.f32 %v116, %v611
  %v613 = vpop.f32.mrb[0].mxu0
  %614 = vmatprep.mubr.bf16.mxu0 %v323
  %615 = vmatmul.mubr.bf16.gmra.mrb[0].mxu0 %v322
  %v616 = vpop.f32.mrb[0].mxu0
  %v617 = vadd.f32 %v116, %v616
  %v618 = vpop.f32.mrb[0].mxu0
  %v619 = vpop.f32.mrb[0].mxu0
  %v620 = vadd.f32 %v116, %v619
  %v621 = vpop.f32.mrb[0].mxu0
  %622 = vmatprep.mubr.bf16.mxu0 %v325
  %623 = vmatmul.mubr.bf16.gmra.mrb[0].mxu0 %v324
  %v624 = vpop.f32.mrb[0].mxu0
  %v625 = vadd.f32 %v116, %v624
  %v626 = vpop.f32.mrb[0].mxu0
  %v627 = vpop.f32.mrb[0].mxu0
  %v628 = vadd.f32 %v116, %v627
  %v629 = vpop.f32.mrb[0].mxu0
  %630 = vmatprep.mubr.bf16.mxu0 %v327
  %631 = vmatmul.mubr.bf16.gmra.mrb[0].mxu0 %v326
  %v632 = vpop.f32.mrb[0].mxu0
  %v633 = vadd.f32 %v116, %v632
  %v634 = vpop.f32.mrb[0].mxu0
  %v635 = vpop.f32.mrb[0].mxu0
  %v636 = vadd.f32 %v116, %v635
  %v637 = vpop.f32.mrb[0].mxu0
  %638 = vmatprep.mubr.bf16.mxu0 %v329
  %639 = vmatmul.mubr.bf16.gmra.mrb[0].mxu0 %v328
  %v640 = vpop.f32.mrb[0].mxu0
  %v641 = vadd.f32 %v116, %v640
  %v642 = vpop.f32.mrb[0].mxu0
  %v643 = vpop.f32.mrb[0].mxu0
  %v644 = vadd.f32 %v116, %v643
  %v645 = vpop.f32.mrb[0].mxu0
  %646 = vmatprep.mubr.bf16.mxu0 %v331
  %647 = vmatmul.mubr.bf16.gmra.mrb[0].mxu0 %v330
  %v648 = vpop.f32.mrb[0].mxu0
  %v649 = vadd.f32 %v116, %v648
  %v650 = vpop.f32.mrb[0].mxu0
  %v651 = vpop.f32.mrb[0].mxu0
  %v652 = vadd.f32 %v116, %v651
  %v653 = vpop.f32.mrb[0].mxu0
  %654 = vmatprep.mubr.bf16.mxu0 %v333
  %655 = vmatmul.mubr.bf16.gmra.mrb[0].mxu0 %v332
  %v656 = vpop.f32.mrb[0].mxu0
  %v657 = vadd.f32 %v116, %v656
  %v658 = vpop.f32.mrb[0].mxu0
  %v659 = vpop.f32.mrb[0].mxu0
  %v660 = vadd.f32 %v116, %v659
  %v661 = vpop.f32.mrb[0].mxu0
  %662 = vmatprep.mubr.bf16.mxu0 %v335
  %663 = vmatmul.mubr.bf16.gmra.mrb[0].mxu0 %v334
  %v664 = vpop.f32.mrb[0].mxu0
  %v665 = vadd.f32 %v116, %v664
  %v666 = vpop.f32.mrb[0].mxu0
  %v667 = vpop.f32.mrb[0].mxu0
  %v668 = vadd.f32 %v116, %v667
  %v669 = vpop.f32.mrb[0].mxu0
  %670 = vmatprep.mubr.bf16.mxu0 %v337
  %671 = vmatmul.mubr.bf16.gmra.mrb[0].mxu0 %v336
  %v672 = vpop.f32.mrb[0].mxu0
  %v673 = vadd.f32 %v116, %v672
  %v674 = vpop.f32.mrb[0].mxu0
  %v675 = vpop.f32.mrb[0].mxu0
  %v676 = vadd.f32 %v116, %v675
  %v677 = vpop.f32.mrb[0].mxu0
  %678 = vmatprep.mubr.bf16.mxu0 %v339
  %679 = vmatmul.mubr.bf16.gmra.mrb[0].mxu0 %v338
  %v680 = vpop.f32.mrb[0].mxu0
  %v681 = vadd.f32 %v116, %v680
  %v682 = vpop.f32.mrb[0].mxu0
  %v683 = vpop.f32.mrb[0].mxu0
  %v684 = vadd.f32 %v116, %v683
  %v685 = vpop.f32.mrb[0].mxu0
  %686 = vmatprep.mubr.bf16.mxu0 %v341
  %687 = vmatmul.mubr.bf16.gmra.mrb[0].mxu0 %v340
  %v688 = vpop.f32.mrb[0].mxu0
  %v689 = vadd.f32 %v116, %v688
  %v690 = vpop.f32.mrb[0].mxu0
  %v691 = vpop.f32.mrb[0].mxu0
  %v692 = vadd.f32 %v116, %v691
  %v693 = vpop.f32.mrb[0].mxu0
  %694 = vmatprep.mubr.bf16.mxu0 %v343
  %695 = vmatmul.mubr.bf16.gmra.mrb[0].mxu0 %v342
  %v696 = vpop.f32.mrb[0].mxu0
  %v697 = vadd.f32 %v116, %v696
  %v698 = vpop.f32.mrb[0].mxu0
  %v699 = vpop.f32.mrb[0].mxu0
  %v700 = vadd.f32 %v116, %v699
  %v701 = vpop.f32.mrb[0].mxu0
  %702 = vmatprep.mubr.bf16.mxu0 %v345
  %703 = vmatmul.mubr.bf16.gmra.mrb[0].mxu0 %v344
  %v704 = vpop.f32.mrb[0].mxu0
  %v705 = vadd.f32 %v116, %v704
  %v706 = vpop.f32.mrb[0].mxu0
  %v707 = vpop.f32.mrb[0].mxu0
  %v708 = vadd.f32 %v116, %v707
  %v709 = vpop.f32.mrb[0].mxu0
  %710 = vmatprep.mubr.bf16.mxu0 %v347
  %711 = vmatmul.mubr.bf16.gmra.mrb[0].mxu0 %v346
  %v712 = vpop.f32.mrb[0].mxu0
  %v713 = vadd.f32 %v116, %v712
  %v714 = vpop.f32.mrb[0].mxu0
  %v715 = vpop.f32.mrb[0].mxu0
  %v716 = vadd.f32 %v116, %v715
  %v717 = vpop.f32.mrb[0].mxu0
  %718 = vmatprep.mubr.bf16.mxu0 %v349
  %719 = vmatmul.mubr.bf16.gmra.mrb[0].mxu0 %v348
  %v720 = vpop.f32.mrb[0].mxu0
  %v721 = vadd.f32 %v116, %v720
  %v722 = vpop.f32.mrb[0].mxu0
  %v723 = vpop.f32.mrb[0].mxu0
  %v724 = vadd.f32 %v116, %v723
  %v725 = vpop.f32.mrb[0].mxu0
  %726 = vmatprep.mubr.bf16.mxu0 %v351
  %727 = vmatmul.mubr.bf16.gmra.mrb[0].mxu0 %v350
  %v728 = vpop.f32.mrb[0].mxu0
  %v729 = vadd.f32 %v116, %v728
  %v730 = vpop.f32.mrb[0].mxu0
  %v731 = vpop.f32.mrb[0].mxu0
  %v732 = vadd.f32 %v116, %v731
  %v733 = vpop.f32.mrb[0].mxu0
  %734 = vmatprep.mubr.bf16.mxu0 %v353
  %735 = vmatmul.mubr.bf16.gmra.mrb[0].mxu0 %v352
  %v736 = vpop.f32.mrb[0].mxu0
  %v737 = vadd.f32 %v116, %v736
  %v738 = vpop.f32.mrb[0].mxu0
  %v739 = vpop.f32.mrb[0].mxu0
  %v740 = vadd.f32 %v116, %v739
  %v741 = vpop.f32.mrb[0].mxu0
  %742 = vmatprep.mubr.bf16.mxu0 %v355
  %743 = vmatmul.mubr.bf16.gmra.mrb[0].mxu0 %v354
  %v744 = vpop.f32.mrb[0].mxu0
  %v745 = vadd.f32 %v116, %v744
  %v746 = vpop.f32.mrb[0].mxu0
  %v747 = vpop.f32.mrb[0].mxu0
  %v748 = vadd.f32 %v116, %v747
  %v749 = vpop.f32.mrb[0].mxu0
  %750 = vmatprep.mubr.bf16.mxu0 %v357
  %751 = vmatmul.mubr.bf16.gmra.mrb[0].mxu0 %v356
  %v752 = vpop.f32.mrb[0].mxu0
  %v753 = vadd.f32 %v116, %v752
  %v754 = vpop.f32.mrb[0].mxu0
  %v755 = vpop.f32.mrb[0].mxu0
  %v756 = vadd.f32 %v116, %v755
  %v757 = vpop.f32.mrb[0].mxu0
  %758 = vmatprep.mubr.bf16.mxu0 %v359
  %759 = vmatmul.mubr.bf16.gmra.mrb[0].mxu0 %v358
  %v760 = vpop.f32.mrb[0].mxu0
  %v761 = vadd.f32 %v116, %v760
  %v762 = vpop.f32.mrb[0].mxu0
  %v763 = vpop.f32.mrb[0].mxu0
  %v764 = vadd.f32 %v116, %v763
  %v765 = vpop.f32.mrb[0].mxu0
  %766 = vmatprep.mubr.bf16.mxu0 %v361
  %767 = vmatmul.mubr.bf16.gmra.mrb[0].mxu0 %v360
  %v768 = vpop.f32.mrb[0].mxu0
  %v769 = vadd.f32 %v116, %v768
  %v770 = vpop.f32.mrb[0].mxu0
  %v771 = vpop.f32.mrb[0].mxu0
  %v772 = vadd.f32 %v116, %v771
  %v773 = vpop.f32.mrb[0].mxu0
  %774 = vmatprep.mubr.bf16.mxu0 %v363
  %775 = vmatmul.mubr.bf16.gmra.mrb[0].mxu0 %v362
  %v776 = vpop.f32.mrb[0].mxu0
  %v777 = vadd.f32 %v116, %v776
  %v778 = vpop.f32.mrb[0].mxu0
  %v779 = vpop.f32.mrb[0].mxu0
  %v780 = vadd.f32 %v116, %v779
  %v781 = vpop.f32.mrb[0].mxu0
  %782 = vmatprep.mubr.bf16.mxu0 %v365
  %783 = vmatmul.mubr.bf16.gmra.mrb[0].mxu0 %v364
  %v784 = vpop.f32.mrb[0].mxu0
  %v785 = vadd.f32 %v116, %v784
  %v786 = vpop.f32.mrb[0].mxu0
  %v787 = vpop.f32.mrb[0].mxu0
  %v788 = vadd.f32 %v116, %v787
  %v789 = vpop.f32.mrb[0].mxu0
  %790 = vmatprep.mubr.bf16.mxu0 %v367
  %791 = vmatmul.mubr.bf16.gmra.mrb[0].mxu0 %v366
  %v792 = vpop.f32.mrb[0].mxu0
  %v793 = vadd.f32 %v116, %v792
  %v794 = vpop.f32.mrb[0].mxu0
  %v795 = vpop.f32.mrb[0].mxu0
  %v796 = vadd.f32 %v116, %v795
  %v797 = vpop.f32.mrb[0].mxu0
  %798 = vmatprep.mubr.bf16.mxu0 %v369
  %799 = vmatmul.mubr.bf16.gmra.mrb[0].mxu0 %v368
  %v800 = vpop.f32.mrb[0].mxu0
  %v801 = vadd.f32 %v116, %v800
  %v802 = vpop.f32.mrb[0].mxu0
  %v803 = vpop.f32.mrb[0].mxu0
  %v804 = vadd.f32 %v116, %v803
  %v805 = vpop.f32.mrb[0].mxu0
  %806 = vmatprep.mubr.bf16.mxu0 %v371
  %807 = vmatmul.mubr.bf16.gmra.mrb[0].mxu0 %v370
  %v808 = vpop.f32.mrb[0].mxu0
  %v809 = vadd.f32 %v116, %v808
  %v810 = vpop.f32.mrb[0].mxu0
  %v811 = vpop.f32.mrb[0].mxu0
  %v812 = vadd.f32 %v116, %v811
  %v813 = vpop.f32.mrb[0].mxu0
  %814 = vmatprep.mubr.bf16.mxu0 %v373
  %815 = vmatmul.mubr.bf16.gmra.mrb[0].mxu0 %v372
  %v816 = vpop.f32.mrb[0].mxu0
  %v817 = vadd.f32 %v116, %v816
  %v818 = vpop.f32.mrb[0].mxu0
  %v819 = vpop.f32.mrb[0].mxu0
  %v820 = vadd.f32 %v116, %v819
  %v821 = vpop.f32.mrb[0].mxu0
  %822 = vdwg.mxu0
  %v823 = vadd.f32 %v569, %v572
  %v824 = vadd.f32 %v823, %v577
  %v825 = vadd.f32 %v824, %v580
  %v826 = vadd.f32 %v825, %v585
  %v827 = vadd.f32 %v826, %v588
  %v828 = vadd.f32 %v827, %v593
  %v829 = vadd.f32 %v828, %v596
  %v830 = vadd.f32 %v829, %v601
  %v831 = vadd.f32 %v830, %v604
  %v832 = vadd.f32 %v831, %v609
  %v833 = vadd.f32 %v832, %v612
  %v834 = vadd.f32 %v833, %v617
  %v835 = vadd.f32 %v834, %v620
  %v836 = vadd.f32 %v835, %v625
  %v837 = vadd.f32 %v836, %v628
  %v838 = vadd.f32 %v837, %v633
  %v839 = vadd.f32 %v838, %v636
  %v840 = vadd.f32 %v839, %v641
  %v841 = vadd.f32 %v840, %v644
  %v842 = vadd.f32 %v841, %v649
  %v843 = vadd.f32 %v842, %v652
  %v844 = vadd.f32 %v843, %v657
  %v845 = vadd.f32 %v844, %v660
  %v846 = vadd.f32 %v845, %v665
  %v847 = vadd.f32 %v846, %v668
  %v848 = vadd.f32 %v847, %v673
  %v849 = vadd.f32 %v848, %v676
  %v850 = vadd.f32 %v849, %v681
  %v851 = vadd.f32 %v850, %v684
  %v852 = vadd.f32 %v851, %v689
  %v853 = vadd.f32 %v852, %v692
  %v854 = vadd.f32 %v853, %v697
  %v855 = vadd.f32 %v854, %v700
  %v856 = vadd.f32 %v855, %v705
  %v857 = vadd.f32 %v856, %v708
  %v858 = vadd.f32 %v857, %v713
  %v859 = vadd.f32 %v858, %v716
  %v860 = vadd.f32 %v859, %v721
  %v861 = vadd.f32 %v860, %v724
  %v862 = vadd.f32 %v861, %v729
  %v863 = vadd.f32 %v862, %v732
  %v864 = vadd.f32 %v863, %v737
  %v865 = vadd.f32 %v864, %v740
  %v866 = vadd.f32 %v865, %v745
  %v867 = vadd.f32 %v866, %v748
  %v868 = vadd.f32 %v867, %v753
  %v869 = vadd.f32 %v868, %v756
  %v870 = vadd.f32 %v869, %v761
  %v871 = vadd.f32 %v870, %v764
  %v872 = vadd.f32 %v871, %v769
  %v873 = vadd.f32 %v872, %v772
  %v874 = vadd.f32 %v873, %v777
  %v875 = vadd.f32 %v874, %v780
  %v876 = vadd.f32 %v875, %v785
  %v877 = vadd.f32 %v876, %v788
  %v878 = vadd.f32 %v877, %v793
  %v879 = vadd.f32 %v878, %v796
  %v880 = vadd.f32 %v879, %v801
  %v881 = vadd.f32 %v880, %v804
  %v882 = vadd.f32 %v881, %v809
  %v883 = vadd.f32 %v882, %v812
  %v884 = vadd.f32 %v883, %v817
  %v885 = vadd.f32 %v884, %v820
  %v886 = vrot.slane %v885, 4
  %v887 = vadd.f32 %v885, %v886
  %v888 = vrot.slane %v887, 2
  %v889 = vadd.f32 %v887, %v888
  %v890 = vrot.slane %v889, 1
  %v891 = vadd.f32 %v889, %v890
  %v892 = vrcp.pop 512.0
  %v893 = vmul.f32 %v891, %v892
  %v894 = vsub.f32 %v569, %v893
  %v895 = vsub.f32 %v572, %v893
  %v896 = vsub.f32 %v577, %v893
  %v897 = vsub.f32 %v580, %v893
  %v898 = vsub.f32 %v585, %v893
  %v899 = vsub.f32 %v588, %v893
  %v900 = vsub.f32 %v593, %v893
  %v901 = vsub.f32 %v596, %v893
  %v902 = vsub.f32 %v601, %v893
  %v903 = vsub.f32 %v604, %v893
  %v904 = vsub.f32 %v609, %v893
  %v905 = vsub.f32 %v612, %v893
  %v906 = vsub.f32 %v617, %v893
  %v907 = vsub.f32 %v620, %v893
  %v908 = vsub.f32 %v625, %v893
  %v909 = vsub.f32 %v628, %v893
  %v910 = vsub.f32 %v633, %v893
  %v911 = vsub.f32 %v636, %v893
  %v912 = vsub.f32 %v641, %v893
  %v913 = vsub.f32 %v644, %v893
  %v914 = vsub.f32 %v649, %v893
  %v915 = vsub.f32 %v652, %v893
  %v916 = vsub.f32 %v657, %v893
  %v917 = vsub.f32 %v660, %v893
  %v918 = vsub.f32 %v665, %v893
  %v919 = vsub.f32 %v668, %v893
  %v920 = vsub.f32 %v673, %v893
  %v921 = vsub.f32 %v676, %v893
  %v922 = vsub.f32 %v681, %v893
  %v923 = vsub.f32 %v684, %v893
  %v924 = vsub.f32 %v689, %v893
  %v925 = vsub.f32 %v692, %v893
  %v926 = vsub.f32 %v697, %v893
  %v927 = vsub.f32 %v700, %v893
  %v928 = vsub.f32 %v705, %v893
  %v929 = vsub.f32 %v708, %v893
  %v930 = vsub.f32 %v713, %v893
  %v931 = vsub.f32 %v716, %v893
  %v932 = vsub.f32 %v721, %v893
  %v933 = vsub.f32 %v724, %v893
  %v934 = vsub.f32 %v729, %v893
  %v935 = vsub.f32 %v732, %v893
  %v936 = vsub.f32 %v737, %v893
  %v937 = vsub.f32 %v740, %v893
  %v938 = vsub.f32 %v745, %v893
  %v939 = vsub.f32 %v748, %v893
  %v940 = vsub.f32 %v753, %v893
  %v941 = vsub.f32 %v756, %v893
  %v942 = vsub.f32 %v761, %v893
  %v943 = vsub.f32 %v764, %v893
  %v944 = vsub.f32 %v769, %v893
  %v945 = vsub.f32 %v772, %v893
  %v946 = vsub.f32 %v777, %v893
  %v947 = vsub.f32 %v780, %v893
  %v948 = vsub.f32 %v785, %v893
  %v949 = vsub.f32 %v788, %v893
  %v950 = vsub.f32 %v793, %v893
  %v951 = vsub.f32 %v796, %v893
  %v952 = vsub.f32 %v801, %v893
  %v953 = vsub.f32 %v804, %v893
  %v954 = vsub.f32 %v809, %v893
  %v955 = vsub.f32 %v812, %v893
  %v956 = vsub.f32 %v817, %v893
  %v957 = vsub.f32 %v820, %v893
  %v958 = vmul.f32 %v894, %v894
  %v959 = vmul.f32 %v895, %v895
  %v960 = vmul.f32 %v896, %v896
  %v961 = vmul.f32 %v897, %v897
  %v962 = vmul.f32 %v898, %v898
  %v963 = vmul.f32 %v899, %v899
  %v964 = vmul.f32 %v900, %v900
  %v965 = vmul.f32 %v901, %v901
  %v966 = vmul.f32 %v902, %v902
  %v967 = vmul.f32 %v903, %v903
  %v968 = vmul.f32 %v904, %v904
  %v969 = vmul.f32 %v905, %v905
  %v970 = vmul.f32 %v906, %v906
  %v971 = vmul.f32 %v907, %v907
  %v972 = vmul.f32 %v908, %v908
  %v973 = vmul.f32 %v909, %v909
  %v974 = vmul.f32 %v910, %v910
  %v975 = vmul.f32 %v911, %v911
  %v976 = vmul.f32 %v912, %v912
  %v977 = vmul.f32 %v913, %v913
  %v978 = vmul.f32 %v914, %v914
  %v979 = vmul.f32 %v915, %v915
  %v980 = vmul.f32 %v916, %v916
  %v981 = vmul.f32 %v917, %v917
  %v982 = vmul.f32 %v918, %v918
  %v983 = vmul.f32 %v919, %v919
  %v984 = vmul.f32 %v920, %v920
  %v985 = vmul.f32 %v921, %v921
  %v986 = vmul.f32 %v922, %v922
  %v987 = vmul.f32 %v923, %v923
  %v988 = vmul.f32 %v924, %v924
  %v989 = vmul.f32 %v925, %v925
  %v990 = vmul.f32 %v926, %v926
  %v991 = vmul.f32 %v927, %v927
  %v992 = vmul.f32 %v928, %v928
  %v993 = vmul.f32 %v929, %v929
  %v994 = vmul.f32 %v930, %v930
  %v995 = vmul.f32 %v931, %v931
  %v996 = vmul.f32 %v932, %v932
  %v997 = vmul.f32 %v933, %v933
  %v998 = vmul.f32 %v934, %v934
  %v999 = vmul.f32 %v935, %v935
  %v1000 = vmul.f32 %v936, %v936
  %v1001 = vmul.f32 %v937, %v937
  %v1002 = vmul.f32 %v938, %v938
  %v1003 = vmul.f32 %v939, %v939
  %v1004 = vmul.f32 %v940, %v940
  %v1005 = vmul.f32 %v941, %v941
  %v1006 = vmul.f32 %v942, %v942
  %v1007 = vmul.f32 %v943, %v943
  %v1008 = vmul.f32 %v944, %v944
  %v1009 = vmul.f32 %v945, %v945
  %v1010 = vmul.f32 %v946, %v946
  %v1011 = vmul.f32 %v947, %v947
  %v1012 = vmul.f32 %v948, %v948
  %v1013 = vmul.f32 %v949, %v949
  %v1014 = vmul.f32 %v950, %v950
  %v1015 = vmul.f32 %v951, %v951
  %v1016 = vmul.f32 %v952, %v952
  %v1017 = vmul.f32 %v953, %v953
  %v1018 = vmul.f32 %v954, %v954
  %v1019 = vmul.f32 %v955, %v955
  %v1020 = vmul.f32 %v956, %v956
  %v1021 = vmul.f32 %v957, %v957
  %v1022 = vadd.f32 %v958, %v959
  %v1023 = vadd.f32 %v1022, %v960
  %v1024 = vadd.f32 %v1023, %v961
  %v1025 = vadd.f32 %v1024, %v962
  %v1026 = vadd.f32 %v1025, %v963
  %v1027 = vadd.f32 %v1026, %v964
  %v1028 = vadd.f32 %v1027, %v965
  %v1029 = vadd.f32 %v1028, %v966
  %v1030 = vadd.f32 %v1029, %v967
  %v1031 = vadd.f32 %v1030, %v968
  %v1032 = vadd.f32 %v1031, %v969
  %v1033 = vadd.f32 %v1032, %v970
  %v1034 = vadd.f32 %v1033, %v971
  %v1035 = vadd.f32 %v1034, %v972
  %v1036 = vadd.f32 %v1035, %v973
  %v1037 = vadd.f32 %v1036, %v974
  %v1038 = vadd.f32 %v1037, %v975
  %v1039 = vadd.f32 %v1038, %v976
  %v1040 = vadd.f32 %v1039, %v977
  %v1041 = vadd.f32 %v1040, %v978
  %v1042 = vadd.f32 %v1041, %v979
  %v1043 = vadd.f32 %v1042, %v980
  %v1044 = vadd.f32 %v1043, %v981
  %v1045 = vadd.f32 %v1044, %v982
  %v1046 = vadd.f32 %v1045, %v983
  %v1047 = vadd.f32 %v1046, %v984
  %v1048 = vadd.f32 %v1047, %v985
  %v1049 = vadd.f32 %v1048, %v986
  %v1050 = vadd.f32 %v1049, %v987
  %v1051 = vadd.f32 %v1050, %v988
  %v1052 = vadd.f32 %v1051, %v989
  %v1053 = vadd.f32 %v1052, %v990
  %v1054 = vadd.f32 %v1053, %v991
  %v1055 = vadd.f32 %v1054, %v992
  %v1056 = vadd.f32 %v1055, %v993
  %v1057 = vadd.f32 %v1056, %v994
  %v1058 = vadd.f32 %v1057, %v995
  %v1059 = vadd.f32 %v1058, %v996
  %v1060 = vadd.f32 %v1059, %v997
  %v1061 = vadd.f32 %v1060, %v998
  %v1062 = vadd.f32 %v1061, %v999
  %v1063 = vadd.f32 %v1062, %v1000
  %v1064 = vadd.f32 %v1063, %v1001
  %v1065 = vadd.f32 %v1064, %v1002
  %v1066 = vadd.f32 %v1065, %v1003
  %v1067 = vadd.f32 %v1066, %v1004
  %v1068 = vadd.f32 %v1067, %v1005
  %v1069 = vadd.f32 %v1068, %v1006
  %v1070 = vadd.f32 %v1069, %v1007
  %v1071 = vadd.f32 %v1070, %v1008
  %v1072 = vadd.f32 %v1071, %v1009
  %v1073 = vadd.f32 %v1072, %v1010
  %v1074 = vadd.f32 %v1073, %v1011
  %v1075 = vadd.f32 %v1074, %v1012
  %v1076 = vadd.f32 %v1075, %v1013
  %v1077 = vadd.f32 %v1076, %v1014
  %v1078 = vadd.f32 %v1077, %v1015
  %v1079 = vadd.f32 %v1078, %v1016
  %v1080 = vadd.f32 %v1079, %v1017
  %v1081 = vadd.f32 %v1080, %v1018
  %v1082 = vadd.f32 %v1081, %v1019
  %v1083 = vadd.f32 %v1082, %v1020
  %v1084 = vadd.f32 %v1083, %v1021
  %v1085 = vrot.slane %v1084, 4
  %v1086 = vadd.f32 %v1084, %v1085
  %v1087 = vrot.slane %v1086, 2
  %v1088 = vadd.f32 %v1086, %v1087
  %v1089 = vrot.slane %v1088, 1
  %v1090 = vadd.f32 %v1088, %v1089
  %v1091 = vmul.f32 %v1090, %v892
  %v1092 = vadd.f32 %v1091, 1e-05
  %v1093 = vrsqrt.pop %v1092
  %v1094 = vmul.f32 %v894, %v1093
  %v1095 = vmul.f32 %v895, %v1093
  %v1096 = vmul.f32 %v896, %v1093
  %v1097 = vmul.f32 %v897, %v1093
  %v1098 = vmul.f32 %v898, %v1093
  %v1099 = vmul.f32 %v899, %v1093
  %v1100 = vmul.f32 %v900, %v1093
  %v1101 = vmul.f32 %v901, %v1093
  %v1102 = vmul.f32 %v902, %v1093
  %v1103 = vmul.f32 %v903, %v1093
  %v1104 = vmul.f32 %v904, %v1093
  %v1105 = vmul.f32 %v905, %v1093
  %v1106 = vmul.f32 %v906, %v1093
  %v1107 = vmul.f32 %v907, %v1093
  %v1108 = vmul.f32 %v908, %v1093
  %v1109 = vmul.f32 %v909, %v1093
  %v1110 = vmul.f32 %v910, %v1093
  %v1111 = vmul.f32 %v911, %v1093
  %v1112 = vmul.f32 %v912, %v1093
  %v1113 = vmul.f32 %v913, %v1093
  %v1114 = vmul.f32 %v914, %v1093
  %v1115 = vmul.f32 %v915, %v1093
  %v1116 = vmul.f32 %v916, %v1093
  %v1117 = vmul.f32 %v917, %v1093
  %v1118 = vmul.f32 %v918, %v1093
  %v1119 = vmul.f32 %v919, %v1093
  %v1120 = vmul.f32 %v920, %v1093
  %v1121 = vmul.f32 %v921, %v1093
  %v1122 = vmul.f32 %v922, %v1093
  %v1123 = vmul.f32 %v923, %v1093
  %v1124 = vmul.f32 %v924, %v1093
  %v1125 = vmul.f32 %v925, %v1093
  %v1126 = vmul.f32 %v926, %v1093
  %v1127 = vmul.f32 %v927, %v1093
  %v1128 = vmul.f32 %v928, %v1093
  %v1129 = vmul.f32 %v929, %v1093
  %v1130 = vmul.f32 %v930, %v1093
  %v1131 = vmul.f32 %v931, %v1093
  %v1132 = vmul.f32 %v932, %v1093
  %v1133 = vmul.f32 %v933, %v1093
  %v1134 = vmul.f32 %v934, %v1093
  %v1135 = vmul.f32 %v935, %v1093
  %v1136 = vmul.f32 %v936, %v1093
  %v1137 = vmul.f32 %v937, %v1093
  %v1138 = vmul.f32 %v938, %v1093
  %v1139 = vmul.f32 %v939, %v1093
  %v1140 = vmul.f32 %v940, %v1093
  %v1141 = vmul.f32 %v941, %v1093
  %v1142 = vmul.f32 %v942, %v1093
  %v1143 = vmul.f32 %v943, %v1093
  %v1144 = vmul.f32 %v944, %v1093
  %v1145 = vmul.f32 %v945, %v1093
  %v1146 = vmul.f32 %v946, %v1093
  %v1147 = vmul.f32 %v947, %v1093
  %v1148 = vmul.f32 %v948, %v1093
  %v1149 = vmul.f32 %v949, %v1093
  %v1150 = vmul.f32 %v950, %v1093
  %v1151 = vmul.f32 %v951, %v1093
  %v1152 = vmul.f32 %v952, %v1093
  %v1153 = vmul.f32 %v953, %v1093
  %v1154 = vmul.f32 %v954, %v1093
  %v1155 = vmul.f32 %v955, %v1093
  %v1156 = vmul.f32 %v956, %v1093
  %v1157 = vmul.f32 %v957, %v1093
  %vm1158 = vcmp.gt.f32.partialorder %v1094, 0.0
  %vm1159 = vcmp.gt.f32.partialorder %v1095, 0.0
  %vm1160 = vcmp.gt.f32.partialorder %v1096, 0.0
  %vm1161 = vcmp.gt.f32.partialorder %v1097, 0.0
  %vm1162 = vcmp.gt.f32.partialorder %v1098, 0.0
  %vm1163 = vcmp.gt.f32.partialorder %v1099, 0.0
  %vm1164 = vcmp.gt.f32.partialorder %v1100, 0.0
  %vm1165 = vcmp.gt.f32.partialorder %v1101, 0.0
  %vm1166 = vcmp.gt.f32.partialorder %v1102, 0.0
  %vm1167 = vcmp.gt.f32.partialorder %v1103, 0.0
  %vm1168 = vcmp.gt.f32.partialorder %v1104, 0.0
  %vm1169 = vcmp.gt.f32.partialorder %v1105, 0.0
  %vm1170 = vcmp.gt.f32.partialorder %v1106, 0.0
  %vm1171 = vcmp.gt.f32.partialorder %v1107, 0.0
  %vm1172 = vcmp.gt.f32.partialorder %v1108, 0.0
  %vm1173 = vcmp.gt.f32.partialorder %v1109, 0.0
  %vm1174 = vcmp.gt.f32.partialorder %v1110, 0.0
  %vm1175 = vcmp.gt.f32.partialorder %v1111, 0.0
  %vm1176 = vcmp.gt.f32.partialorder %v1112, 0.0
  %vm1177 = vcmp.gt.f32.partialorder %v1113, 0.0
  %vm1178 = vcmp.gt.f32.partialorder %v1114, 0.0
  %vm1179 = vcmp.gt.f32.partialorder %v1115, 0.0
  %vm1180 = vcmp.gt.f32.partialorder %v1116, 0.0
  %vm1181 = vcmp.gt.f32.partialorder %v1117, 0.0
  %vm1182 = vcmp.gt.f32.partialorder %v1118, 0.0
  %vm1183 = vcmp.gt.f32.partialorder %v1119, 0.0
  %vm1184 = vcmp.gt.f32.partialorder %v1120, 0.0
  %vm1185 = vcmp.gt.f32.partialorder %v1121, 0.0
  %vm1186 = vcmp.gt.f32.partialorder %v1122, 0.0
  %vm1187 = vcmp.gt.f32.partialorder %v1123, 0.0
  %vm1188 = vcmp.gt.f32.partialorder %v1124, 0.0
  %vm1189 = vcmp.gt.f32.partialorder %v1125, 0.0
  %vm1190 = vcmp.gt.f32.partialorder %v1126, 0.0
  %vm1191 = vcmp.gt.f32.partialorder %v1127, 0.0
  %vm1192 = vcmp.gt.f32.partialorder %v1128, 0.0
  %vm1193 = vcmp.gt.f32.partialorder %v1129, 0.0
  %vm1194 = vcmp.gt.f32.partialorder %v1130, 0.0
  %vm1195 = vcmp.gt.f32.partialorder %v1131, 0.0
  %vm1196 = vcmp.gt.f32.partialorder %v1132, 0.0
  %vm1197 = vcmp.gt.f32.partialorder %v1133, 0.0
  %vm1198 = vcmp.gt.f32.partialorder %v1134, 0.0
  %vm1199 = vcmp.gt.f32.partialorder %v1135, 0.0
  %vm1200 = vcmp.gt.f32.partialorder %v1136, 0.0
  %vm1201 = vcmp.gt.f32.partialorder %v1137, 0.0
  %vm1202 = vcmp.gt.f32.partialorder %v1138, 0.0
  %vm1203 = vcmp.gt.f32.partialorder %v1139, 0.0
  %vm1204 = vcmp.gt.f32.partialorder %v1140, 0.0
  %vm1205 = vcmp.gt.f32.partialorder %v1141, 0.0
  %vm1206 = vcmp.gt.f32.partialorder %v1142, 0.0
  %vm1207 = vcmp.gt.f32.partialorder %v1143, 0.0
  %vm1208 = vcmp.gt.f32.partialorder %v1144, 0.0
  %vm1209 = vcmp.gt.f32.partialorder %v1145, 0.0
  %vm1210 = vcmp.gt.f32.partialorder %v1146, 0.0
  %vm1211 = vcmp.gt.f32.partialorder %v1147, 0.0
  %vm1212 = vcmp.gt.f32.partialorder %v1148, 0.0
  %vm1213 = vcmp.gt.f32.partialorder %v1149, 0.0
  %vm1214 = vcmp.gt.f32.partialorder %v1150, 0.0
  %vm1215 = vcmp.gt.f32.partialorder %v1151, 0.0
  %vm1216 = vcmp.gt.f32.partialorder %v1152, 0.0
  %vm1217 = vcmp.gt.f32.partialorder %v1153, 0.0
  %vm1218 = vcmp.gt.f32.partialorder %v1154, 0.0
  %vm1219 = vcmp.gt.f32.partialorder %v1155, 0.0
  %vm1220 = vcmp.gt.f32.partialorder %v1156, 0.0
  %vm1221 = vcmp.gt.f32.partialorder %v1157, 0.0
  %v1222 = vmul.f32 %v1094, 0.2
  %v1223 = vmul.f32 %v1095, 0.2
  %v1224 = vmul.f32 %v1096, 0.2
  %v1225 = vmul.f32 %v1097, 0.2
  %v1226 = vmul.f32 %v1098, 0.2
  %v1227 = vmul.f32 %v1099, 0.2
  %v1228 = vmul.f32 %v1100, 0.2
  %v1229 = vmul.f32 %v1101, 0.2
  %v1230 = vmul.f32 %v1102, 0.2
  %v1231 = vmul.f32 %v1103, 0.2
  %v1232 = vmul.f32 %v1104, 0.2
  %v1233 = vmul.f32 %v1105, 0.2
  %v1234 = vmul.f32 %v1106, 0.2
  %v1235 = vmul.f32 %v1107, 0.2
  %v1236 = vmul.f32 %v1108, 0.2
  %v1237 = vmul.f32 %v1109, 0.2
  %v1238 = vmul.f32 %v1110, 0.2
  %v1239 = vmul.f32 %v1111, 0.2
  %v1240 = vmul.f32 %v1112, 0.2
  %v1241 = vmul.f32 %v1113, 0.2
  %v1242 = vmul.f32 %v1114, 0.2
  %v1243 = vmul.f32 %v1115, 0.2
  %v1244 = vmul.f32 %v1116, 0.2
  %v1245 = vmul.f32 %v1117, 0.2
  %v1246 = vmul.f32 %v1118, 0.2
  %v1247 = vmul.f32 %v1119, 0.2
  %v1248 = vmul.f32 %v1120, 0.2
  %v1249 = vmul.f32 %v1121, 0.2
  %v1250 = vmul.f32 %v1122, 0.2
  %v1251 = vmul.f32 %v1123, 0.2
  %v1252 = vmul.f32 %v1124, 0.2
  %v1253 = vmul.f32 %v1125, 0.2
  %v1254 = vmul.f32 %v1126, 0.2
  %v1255 = vmul.f32 %v1127, 0.2
  %v1256 = vmul.f32 %v1128, 0.2
  %v1257 = vmul.f32 %v1129, 0.2
  %v1258 = vmul.f32 %v1130, 0.2
  %v1259 = vmul.f32 %v1131, 0.2
  %v1260 = vmul.f32 %v1132, 0.2
  %v1261 = vmul.f32 %v1133, 0.2
  %v1262 = vmul.f32 %v1134, 0.2
  %v1263 = vmul.f32 %v1135, 0.2
  %v1264 = vmul.f32 %v1136, 0.2
  %v1265 = vmul.f32 %v1137, 0.2
  %v1266 = vmul.f32 %v1138, 0.2
  %v1267 = vmul.f32 %v1139, 0.2
  %v1268 = vmul.f32 %v1140, 0.2
  %v1269 = vmul.f32 %v1141, 0.2
  %v1270 = vmul.f32 %v1142, 0.2
  %v1271 = vmul.f32 %v1143, 0.2
  %v1272 = vmul.f32 %v1144, 0.2
  %v1273 = vmul.f32 %v1145, 0.2
  %v1274 = vmul.f32 %v1146, 0.2
  %v1275 = vmul.f32 %v1147, 0.2
  %v1276 = vmul.f32 %v1148, 0.2
  %v1277 = vmul.f32 %v1149, 0.2
  %v1278 = vmul.f32 %v1150, 0.2
  %v1279 = vmul.f32 %v1151, 0.2
  %v1280 = vmul.f32 %v1152, 0.2
  %v1281 = vmul.f32 %v1153, 0.2
  %v1282 = vmul.f32 %v1154, 0.2
  %v1283 = vmul.f32 %v1155, 0.2
  %v1284 = vmul.f32 %v1156, 0.2
  %v1285 = vmul.f32 %v1157, 0.2
  %v1286 = vsel %vm1158, %v1094, %v1222
  %v1287 = vsel %vm1159, %v1095, %v1223
  %v1288 = vsel %vm1160, %v1096, %v1224
  %v1289 = vsel %vm1161, %v1097, %v1225
  %v1290 = vsel %vm1162, %v1098, %v1226
  %v1291 = vsel %vm1163, %v1099, %v1227
  %v1292 = vsel %vm1164, %v1100, %v1228
  %v1293 = vsel %vm1165, %v1101, %v1229
  %v1294 = vsel %vm1166, %v1102, %v1230
  %v1295 = vsel %vm1167, %v1103, %v1231
  %v1296 = vsel %vm1168, %v1104, %v1232
  %v1297 = vsel %vm1169, %v1105, %v1233
  %v1298 = vsel %vm1170, %v1106, %v1234
  %v1299 = vsel %vm1171, %v1107, %v1235
  %v1300 = vsel %vm1172, %v1108, %v1236
  %v1301 = vsel %vm1173, %v1109, %v1237
  %v1302 = vsel %vm1174, %v1110, %v1238
  %v1303 = vsel %vm1175, %v1111, %v1239
  %v1304 = vsel %vm1176, %v1112, %v1240
  %v1305 = vsel %vm1177, %v1113, %v1241
  %v1306 = vsel %vm1178, %v1114, %v1242
  %v1307 = vsel %vm1179, %v1115, %v1243
  %v1308 = vsel %vm1180, %v1116, %v1244
  %v1309 = vsel %vm1181, %v1117, %v1245
  %v1310 = vsel %vm1182, %v1118, %v1246
  %v1311 = vsel %vm1183, %v1119, %v1247
  %v1312 = vsel %vm1184, %v1120, %v1248
  %v1313 = vsel %vm1185, %v1121, %v1249
  %v1314 = vsel %vm1186, %v1122, %v1250
  %v1315 = vsel %vm1187, %v1123, %v1251
  %v1316 = vsel %vm1188, %v1124, %v1252
  %v1317 = vsel %vm1189, %v1125, %v1253
  %v1318 = vsel %vm1190, %v1126, %v1254
  %v1319 = vsel %vm1191, %v1127, %v1255
  %v1320 = vsel %vm1192, %v1128, %v1256
  %v1321 = vsel %vm1193, %v1129, %v1257
  %v1322 = vsel %vm1194, %v1130, %v1258
  %v1323 = vsel %vm1195, %v1131, %v1259
  %v1324 = vsel %vm1196, %v1132, %v1260
  %v1325 = vsel %vm1197, %v1133, %v1261
  %v1326 = vsel %vm1198, %v1134, %v1262
  %v1327 = vsel %vm1199, %v1135, %v1263
  %v1328 = vsel %vm1200, %v1136, %v1264
  %v1329 = vsel %vm1201, %v1137, %v1265
  %v1330 = vsel %vm1202, %v1138, %v1266
  %v1331 = vsel %vm1203, %v1139, %v1267
  %v1332 = vsel %vm1204, %v1140, %v1268
  %v1333 = vsel %vm1205, %v1141, %v1269
  %v1334 = vsel %vm1206, %v1142, %v1270
  %v1335 = vsel %vm1207, %v1143, %v1271
  %v1336 = vsel %vm1208, %v1144, %v1272
  %v1337 = vsel %vm1209, %v1145, %v1273
  %v1338 = vsel %vm1210, %v1146, %v1274
  %v1339 = vsel %vm1211, %v1147, %v1275
  %v1340 = vsel %vm1212, %v1148, %v1276
  %v1341 = vsel %vm1213, %v1149, %v1277
  %v1342 = vsel %vm1214, %v1150, %v1278
  %v1343 = vsel %vm1215, %v1151, %v1279
  %v1344 = vsel %vm1216, %v1152, %v1280
  %v1345 = vsel %vm1217, %v1153, %v1281
  %v1346 = vsel %vm1218, %v1154, %v1282
  %v1347 = vsel %vm1219, %v1155, %v1283
  %v1348 = vsel %vm1220, %v1156, %v1284
  %v1349 = vsel %vm1221, %v1157, %v1285
  %v1350 = vpack.c.bf16 %v1287, %v1286
  %v1351 = vpack.c.bf16 %v1289, %v1288
  %v1352 = vpack.c.bf16 %v1291, %v1290
  %v1353 = vpack.c.bf16 %v1293, %v1292
  %v1354 = vpack.c.bf16 %v1295, %v1294
  %v1355 = vpack.c.bf16 %v1297, %v1296
  %v1356 = vpack.c.bf16 %v1299, %v1298
  %v1357 = vpack.c.bf16 %v1301, %v1300
  %v1358 = vpack.c.bf16 %v1303, %v1302
  %v1359 = vpack.c.bf16 %v1305, %v1304
  %v1360 = vpack.c.bf16 %v1307, %v1306
  %v1361 = vpack.c.bf16 %v1309, %v1308
  %v1362 = vpack.c.bf16 %v1311, %v1310
  %v1363 = vpack.c.bf16 %v1313, %v1312
  %v1364 = vpack.c.bf16 %v1315, %v1314
  %v1365 = vpack.c.bf16 %v1317, %v1316
  %v1366 = vpack.c.bf16 %v1319, %v1318
  %v1367 = vpack.c.bf16 %v1321, %v1320
  %v1368 = vpack.c.bf16 %v1323, %v1322
  %v1369 = vpack.c.bf16 %v1325, %v1324
  %v1370 = vpack.c.bf16 %v1327, %v1326
  %v1371 = vpack.c.bf16 %v1329, %v1328
  %v1372 = vpack.c.bf16 %v1331, %v1330
  %v1373 = vpack.c.bf16 %v1333, %v1332
  %v1374 = vpack.c.bf16 %v1335, %v1334
  %v1375 = vpack.c.bf16 %v1337, %v1336
  %v1376 = vpack.c.bf16 %v1339, %v1338
  %v1377 = vpack.c.bf16 %v1341, %v1340
  %v1378 = vpack.c.bf16 %v1343, %v1342
  %v1379 = vpack.c.bf16 %v1345, %v1344
  %v1380 = vpack.c.bf16 %v1347, %v1346
  %v1381 = vpack.c.bf16 %v1349, %v1348
  %v1414 = vunpack.c.l.b16 %v1350
  %v1415 = vunpack.c.h.b16 %v1350
  %v1416 = vunpack.c.l.b16 %v1351
  %v1417 = vunpack.c.h.b16 %v1351
  %v1418 = vunpack.c.l.b16 %v1352
  %v1419 = vunpack.c.h.b16 %v1352
  %v1420 = vunpack.c.l.b16 %v1353
  %v1421 = vunpack.c.h.b16 %v1353
  %v1422 = vunpack.c.l.b16 %v1354
  %v1423 = vunpack.c.h.b16 %v1354
  %v1424 = vunpack.c.l.b16 %v1355
  %v1425 = vunpack.c.h.b16 %v1355
  %v1426 = vunpack.c.l.b16 %v1356
  %v1427 = vunpack.c.h.b16 %v1356
  %v1428 = vunpack.c.l.b16 %v1357
  %v1429 = vunpack.c.h.b16 %v1357
  %v1430 = vunpack.c.l.b16 %v1358
  %v1431 = vunpack.c.h.b16 %v1358
  %v1432 = vunpack.c.l.b16 %v1359
  %v1433 = vunpack.c.h.b16 %v1359
  %v1434 = vunpack.c.l.b16 %v1360
  %v1435 = vunpack.c.h.b16 %v1360
  %v1436 = vunpack.c.l.b16 %v1361
  %v1437 = vunpack.c.h.b16 %v1361
  %v1438 = vunpack.c.l.b16 %v1362
  %v1439 = vunpack.c.h.b16 %v1362
  %v1440 = vunpack.c.l.b16 %v1363
  %v1441 = vunpack.c.h.b16 %v1363
  %v1442 = vunpack.c.l.b16 %v1364
  %v1443 = vunpack.c.h.b16 %v1364
  %v1444 = vunpack.c.l.b16 %v1365
  %v1445 = vunpack.c.h.b16 %v1365
  %v1446 = vunpack.c.l.b16 %v1366
  %v1447 = vunpack.c.h.b16 %v1366
  %v1448 = vunpack.c.l.b16 %v1367
  %v1449 = vunpack.c.h.b16 %v1367
  %v1450 = vunpack.c.l.b16 %v1368
  %v1451 = vunpack.c.h.b16 %v1368
  %v1452 = vunpack.c.l.b16 %v1369
  %v1453 = vunpack.c.h.b16 %v1369
  %v1454 = vunpack.c.l.b16 %v1370
  %v1455 = vunpack.c.h.b16 %v1370
  %v1456 = vunpack.c.l.b16 %v1371
  %v1457 = vunpack.c.h.b16 %v1371
  %v1458 = vunpack.c.l.b16 %v1372
  %v1459 = vunpack.c.h.b16 %v1372
  %v1460 = vunpack.c.l.b16 %v1373
  %v1461 = vunpack.c.h.b16 %v1373
  %v1462 = vunpack.c.l.b16 %v1374
  %v1463 = vunpack.c.h.b16 %v1374
  %v1464 = vunpack.c.l.b16 %v1375
  %v1465 = vunpack.c.h.b16 %v1375
  %v1466 = vunpack.c.l.b16 %v1376
  %v1467 = vunpack.c.h.b16 %v1376
  %v1468 = vunpack.c.l.b16 %v1377
  %v1469 = vunpack.c.h.b16 %v1377
  %v1470 = vunpack.c.l.b16 %v1378
  %v1471 = vunpack.c.h.b16 %v1378
  %v1472 = vunpack.c.l.b16 %v1379
  %v1473 = vunpack.c.h.b16 %v1379
  %v1474 = vunpack.c.l.b16 %v1380
  %v1475 = vunpack.c.h.b16 %v1380
  %v1476 = vunpack.c.l.b16 %v1381
  %v1477 = vunpack.c.h.b16 %v1381
  %v1478 = vpack.c.b16 %v1414, %v1414
  %v1479 = vpack.c.b16 %v1415, %v1415
  %v1480 = vpack.c.b16 %v1416, %v1416
  %v1481 = vpack.c.b16 %v1417, %v1417
  %v1482 = vpack.c.b16 %v1418, %v1418
  %v1483 = vpack.c.b16 %v1419, %v1419
  %v1484 = vpack.c.b16 %v1420, %v1420
  %v1485 = vpack.c.b16 %v1421, %v1421
  %v1486 = vpack.c.b16 %v1422, %v1422
  %v1487 = vpack.c.b16 %v1423, %v1423
  %v1488 = vpack.c.b16 %v1424, %v1424
  %v1489 = vpack.c.b16 %v1425, %v1425
  %v1490 = vpack.c.b16 %v1426, %v1426
  %v1491 = vpack.c.b16 %v1427, %v1427
  %v1492 = vpack.c.b16 %v1428, %v1428
  %v1493 = vpack.c.b16 %v1429, %v1429
  %v1494 = vpack.c.b16 %v1430, %v1430
  %v1495 = vpack.c.b16 %v1431, %v1431
  %v1496 = vpack.c.b16 %v1432, %v1432
  %v1497 = vpack.c.b16 %v1433, %v1433
  %v1498 = vpack.c.b16 %v1434, %v1434
  %v1499 = vpack.c.b16 %v1435, %v1435
  %v1500 = vpack.c.b16 %v1436, %v1436
  %v1501 = vpack.c.b16 %v1437, %v1437
  %v1502 = vpack.c.b16 %v1438, %v1438
  %v1503 = vpack.c.b16 %v1439, %v1439
  %v1504 = vpack.c.b16 %v1440, %v1440
  %v1505 = vpack.c.b16 %v1441, %v1441
  %v1506 = vpack.c.b16 %v1442, %v1442
  %v1507 = vpack.c.b16 %v1443, %v1443
  %v1508 = vpack.c.b16 %v1444, %v1444
  %v1509 = vpack.c.b16 %v1445, %v1445
  %v1510 = vpack.c.b16 %v1446, %v1446
  %v1511 = vpack.c.b16 %v1447, %v1447
  %v1512 = vpack.c.b16 %v1448, %v1448
  %v1513 = vpack.c.b16 %v1449, %v1449
  %v1514 = vpack.c.b16 %v1450, %v1450
  %v1515 = vpack.c.b16 %v1451, %v1451
  %v1516 = vpack.c.b16 %v1452, %v1452
  %v1517 = vpack.c.b16 %v1453, %v1453
  %v1518 = vpack.c.b16 %v1454, %v1454
  %v1519 = vpack.c.b16 %v1455, %v1455
  %v1520 = vpack.c.b16 %v1456, %v1456
  %v1521 = vpack.c.b16 %v1457, %v1457
  %v1522 = vpack.c.b16 %v1458, %v1458
  %v1523 = vpack.c.b16 %v1459, %v1459
  %v1524 = vpack.c.b16 %v1460, %v1460
  %v1525 = vpack.c.b16 %v1461, %v1461
  %v1526 = vpack.c.b16 %v1462, %v1462
  %v1527 = vpack.c.b16 %v1463, %v1463
  %v1528 = vpack.c.b16 %v1464, %v1464
  %v1529 = vpack.c.b16 %v1465, %v1465
  %v1530 = vpack.c.b16 %v1466, %v1466
  %v1531 = vpack.c.b16 %v1467, %v1467
  %v1532 = vpack.c.b16 %v1468, %v1468
  %v1533 = vpack.c.b16 %v1469, %v1469
  %v1534 = vpack.c.b16 %v1470, %v1470
  %v1535 = vpack.c.b16 %v1471, %v1471
  %v1536 = vpack.c.b16 %v1472, %v1472
  %v1537 = vpack.c.b16 %v1473, %v1473
  %v1538 = vpack.c.b16 %v1474, %v1474
  %v1539 = vpack.c.b16 %v1475, %v1475
  %v1540 = vpack.c.b16 %v1476, %v1476
  %v1541 = vpack.c.b16 %v1477, %v1477
  %1606 = vst [vmem:[%s3] sm:$0xf] %v1478
  %1607 = vst [vmem:[%s3 + $0x4] sm:$0xf] %v1479
  %1608 = vst [vmem:[%s3 + $0x8] sm:$0xf] %v1480
  %1609 = vst [vmem:[%s3 + $0xc] sm:$0xf] %v1481
  %1610 = vst [vmem:[%s3 + $0x10] sm:$0xf] %v1482
  %1611 = vst [vmem:[%s3 + $0x14] sm:$0xf] %v1483
  %1612 = vst [vmem:[%s3 + $0x18] sm:$0xf] %v1484
  %1613 = vst [vmem:[%s3 + $0x1c] sm:$0xf] %v1485
  %1614 = vst [vmem:[%s3 + $0x20] sm:$0xf] %v1486
  %1615 = vst [vmem:[%s3 + $0x24] sm:$0xf] %v1487
  %1616 = vst [vmem:[%s3 + $0x28] sm:$0xf] %v1488
  %1617 = vst [vmem:[%s3 + $0x2c] sm:$0xf] %v1489
  %1618 = vst [vmem:[%s3 + $0x30] sm:$0xf] %v1490
  %1619 = vst [vmem:[%s3 + $0x34] sm:$0xf] %v1491
  %1620 = vst [vmem:[%s3 + $0x38] sm:$0xf] %v1492
  %1621 = vst [vmem:[%s3 + $0x3c] sm:$0xf] %v1493
  %1622 = vst [vmem:[%s3 + $0x40] sm:$0xf] %v1494
  %1623 = vst [vmem:[%s3 + $0x44] sm:$0xf] %v1495
  %1624 = vst [vmem:[%s3 + $0x48] sm:$0xf] %v1496
  %1625 = vst [vmem:[%s3 + $0x4c] sm:$0xf] %v1497
  %1626 = vst [vmem:[%s3 + $0x50] sm:$0xf] %v1498
  %1627 = vst [vmem:[%s3 + $0x54] sm:$0xf] %v1499
  %1628 = vst [vmem:[%s3 + $0x58] sm:$0xf] %v1500
  %1629 = vst [vmem:[%s3 + $0x5c] sm:$0xf] %v1501
  %1630 = vst [vmem:[%s3 + $0x60] sm:$0xf] %v1502
  %1631 = vst [vmem:[%s3 + $0x64] sm:$0xf] %v1503
  %1632 = vst [vmem:[%s3 + $0x68] sm:$0xf] %v1504
  %1633 = vst [vmem:[%s3 + $0x6c] sm:$0xf] %v1505
  %1634 = vst [vmem:[%s3 + $0x70] sm:$0xf] %v1506
  %1635 = vst [vmem:[%s3 + $0x74] sm:$0xf] %v1507
  %1636 = vst [vmem:[%s3 + $0x78] sm:$0xf] %v1508
  %1637 = vst [vmem:[%s3 + $0x7c] sm:$0xf] %v1509
  %1638 = vst [vmem:[%s3 + $0x80] sm:$0xf] %v1510
  %1639 = vst [vmem:[%s3 + $0x84] sm:$0xf] %v1511
  %1640 = vst [vmem:[%s3 + $0x88] sm:$0xf] %v1512
  %1641 = vst [vmem:[%s3 + $0x8c] sm:$0xf] %v1513
  %1642 = vst [vmem:[%s3 + $0x90] sm:$0xf] %v1514
  %1643 = vst [vmem:[%s3 + $0x94] sm:$0xf] %v1515
  %1644 = vst [vmem:[%s3 + $0x98] sm:$0xf] %v1516
  %1645 = vst [vmem:[%s3 + $0x9c] sm:$0xf] %v1517
  %1646 = vst [vmem:[%s3 + $0xa0] sm:$0xf] %v1518
  %1647 = vst [vmem:[%s3 + $0xa4] sm:$0xf] %v1519
  %1648 = vst [vmem:[%s3 + $0xa8] sm:$0xf] %v1520
  %1649 = vst [vmem:[%s3 + $0xac] sm:$0xf] %v1521
  %1650 = vst [vmem:[%s3 + $0xb0] sm:$0xf] %v1522
  %1651 = vst [vmem:[%s3 + $0xb4] sm:$0xf] %v1523
  %1652 = vst [vmem:[%s3 + $0xb8] sm:$0xf] %v1524
  %1653 = vst [vmem:[%s3 + $0xbc] sm:$0xf] %v1525
  %1654 = vst [vmem:[%s3 + $0xc0] sm:$0xf] %v1526
  %1655 = vst [vmem:[%s3 + $0xc4] sm:$0xf] %v1527
  %1656 = vst [vmem:[%s3 + $0xc8] sm:$0xf] %v1528
  %1657 = vst [vmem:[%s3 + $0xcc] sm:$0xf] %v1529
  %1658 = vst [vmem:[%s3 + $0xd0] sm:$0xf] %v1530
  %1659 = vst [vmem:[%s3 + $0xd4] sm:$0xf] %v1531
  %1660 = vst [vmem:[%s3 + $0xd8] sm:$0xf] %v1532
  %1661 = vst [vmem:[%s3 + $0xdc] sm:$0xf] %v1533
  %1662 = vst [vmem:[%s3 + $0xe0] sm:$0xf] %v1534
  %1663 = vst [vmem:[%s3 + $0xe4] sm:$0xf] %v1535
  %1664 = vst [vmem:[%s3 + $0xe8] sm:$0xf] %v1536
  %1665 = vst [vmem:[%s3 + $0xec] sm:$0xf] %v1537
  %1666 = vst [vmem:[%s3 + $0xf0] sm:$0xf] %v1538
  %1667 = vst [vmem:[%s3 + $0xf4] sm:$0xf] %v1539
  %1668 = vst [vmem:[%s3 + $0xf8] sm:$0xf] %v1540
  %1669 = vst [vmem:[%s3 + $0xfc] sm:$0xf] %v1541
  // Predicated region
  $region14: #{discriminator_forward.7} parent=0 // pred_check
    _
  $region15: #{discriminator_forward.7} parent=0 // pred_check_branch
    %1671 = sbr.rel (0) target = $region17
  $region16: #{discriminator_forward.7} parent=0 // pred_region
    _
  $region17: #{discriminator_forward.7} parent=0 // pred_fallthru
    _
  // Predicated region
  $region18: #{discriminator_forward.7} parent=0 // pred_check
    _
  $region19: #{discriminator_forward.7} parent=0 // pred_check_branch
    %1673 = sbr.rel (0) target = $region21
  $region20: #{discriminator_forward.7} parent=0 // pred_region
    _
  $region21: #{discriminator_forward.7} parent=0 // pred_fallthru
    _

// kernel: discriminator_forward.8
$region0: #{discriminator_forward.8}
  #allocation0 [shape = 'u32[]', space=smem, size = 0x4, offset = 0x4, fixed_abs, tag = 'smem constant byte address 0x4 - core index']
  #allocation1 [shape = 'u32[144,128]{1,0:T(1,128)}', space=vmem, size = 0x12000, scoped, tag = 'internal scratch']
  %s0 = inlined_call_operand.vmem [shape: bf16[128,512], index: 0, kind: input, shape index: {}]
  %s1 = inlined_call_operand.vmem [shape: bf16[512,128], index: 1, kind: input, shape index: {}]
  %s2 = inlined_call_operand.vmem [shape: f32[1,128], index: 2, kind: input, shape index: {}]
  %s3 = inlined_call_operand.vmem [shape: bf16[128,128], index: 3, kind: output, shape index: {}]
  %s4 = sld [smem:[#allocation0]]
  $region22: #{discriminator_forward.8} parent=0
    _
  %s6 = ssub.s32 1, %s4
  %s7 = scalar_select 0, %s6, %s4
  // Predicated region
  $region2: #{discriminator_forward.8} parent=0 // pred_check
    _
  $region3: #{discriminator_forward.8} parent=0 // pred_check_branch
    %9 = sbr.rel (0) target = $region5
  $region4: #{discriminator_forward.8} parent=0 // pred_region
    _
  $region5: #{discriminator_forward.8} parent=0 // pred_fallthru
    _
  // Predicated region
  $region6: #{discriminator_forward.8} parent=0 // pred_check
    _
  $region7: #{discriminator_forward.8} parent=0 // pred_check_branch
    %11 = sbr.rel (0) target = $region9
  $region8: #{discriminator_forward.8} parent=0 // pred_region
    _
  $region9: #{discriminator_forward.8} parent=0 // pred_fallthru
    _
  // Predicated region
  $region10: #{discriminator_forward.8} parent=0 // pred_check
    _
  $region11: #{discriminator_forward.8} parent=0 // pred_check_branch
    %13 = sbr.rel (0) target = $region13
  $region12: #{discriminator_forward.8} parent=0 // pred_region
    _
  $region13: #{discriminator_forward.8} parent=0 // pred_fallthru
    _
  %v15 = vld [vmem:[%s0] sm:$0xff]
  %v16 = vld [vmem:[%s0 + $0x8] sm:$0xff]
  %v17 = vld [vmem:[%s0 + $0x10] sm:$0xff]
  %v18 = vld [vmem:[%s0 + $0x18] sm:$0xff]
  %v19 = vld [vmem:[%s0 + $0x20] sm:$0xff]
  %v20 = vld [vmem:[%s0 + $0x28] sm:$0xff]
  %v21 = vld [vmem:[%s0 + $0x30] sm:$0xff]
  %v22 = vld [vmem:[%s0 + $0x38] sm:$0xff]
  %v23 = vld [vmem:[%s0 + $0x40] sm:$0xff]
  %v24 = vld [vmem:[%s0 + $0x48] sm:$0xff]
  %v25 = vld [vmem:[%s0 + $0x50] sm:$0xff]
  %v26 = vld [vmem:[%s0 + $0x58] sm:$0xff]
  %v27 = vld [vmem:[%s0 + $0x60] sm:$0xff]
  %v28 = vld [vmem:[%s0 + $0x68] sm:$0xff]
  %v29 = vld [vmem:[%s0 + $0x70] sm:$0xff]
  %v30 = vld [vmem:[%s0 + $0x78] sm:$0xff]
  %v31 = vld [vmem:[%s0 + $0x80] sm:$0xff]
  %v32 = vld [vmem:[%s0 + $0x88] sm:$0xff]
  %v33 = vld [vmem:[%s0 + $0x90] sm:$0xff]
  %v34 = vld [vmem:[%s0 + $0x98] sm:$0xff]
  %v35 = vld [vmem:[%s0 + $0xa0] sm:$0xff]
  %v36 = vld [vmem:[%s0 + $0xa8] sm:$0xff]
  %v37 = vld [vmem:[%s0 + $0xb0] sm:$0xff]
  %v38 = vld [vmem:[%s0 + $0xb8] sm:$0xff]
  %v39 = vld [vmem:[%s0 + $0xc0] sm:$0xff]
  %v40 = vld [vmem:[%s0 + $0xc8] sm:$0xff]
  %v41 = vld [vmem:[%s0 + $0xd0] sm:$0xff]
  %v42 = vld [vmem:[%s0 + $0xd8] sm:$0xff]
  %v43 = vld [vmem:[%s0 + $0xe0] sm:$0xff]
  %v44 = vld [vmem:[%s0 + $0xe8] sm:$0xff]
  %v45 = vld [vmem:[%s0 + $0xf0] sm:$0xff]
  %v46 = vld [vmem:[%s0 + $0xf8] sm:$0xff]
  %v47 = vld [vmem:[%s1] sm:$0xf]
  %v48 = vld [vmem:[%s1 + $0x4] sm:$0xf]
  %v49 = vld [vmem:[%s1 + $0x8] sm:$0xf]
  %v50 = vld [vmem:[%s1 + $0xc] sm:$0xf]
  %v51 = vld [vmem:[%s1 + $0x10] sm:$0xf]
  %v52 = vld [vmem:[%s1 + $0x14] sm:$0xf]
  %v53 = vld [vmem:[%s1 + $0x18] sm:$0xf]
  %v54 = vld [vmem:[%s1 + $0x1c] sm:$0xf]
  %v55 = vld [vmem:[%s1 + $0x20] sm:$0xf]
  %v56 = vld [vmem:[%s1 + $0x24] sm:$0xf]
  %v57 = vld [vmem:[%s1 + $0x28] sm:$0xf]
  %v58 = vld [vmem:[%s1 + $0x2c] sm:$0xf]
  %v59 = vld [vmem:[%s1 + $0x30] sm:$0xf]
  %v60 = vld [vmem:[%s1 + $0x34] sm:$0xf]
  %v61 = vld [vmem:[%s1 + $0x38] sm:$0xf]
  %v62 = vld [vmem:[%s1 + $0x3c] sm:$0xf]
  %v63 = vld [vmem:[%s1 + $0x40] sm:$0xf]
  %v64 = vld [vmem:[%s1 + $0x44] sm:$0xf]
  %v65 = vld [vmem:[%s1 + $0x48] sm:$0xf]
  %v66 = vld [vmem:[%s1 + $0x4c] sm:$0xf]
  %v67 = vld [vmem:[%s1 + $0x50] sm:$0xf]
  %v68 = vld [vmem:[%s1 + $0x54] sm:$0xf]
  %v69 = vld [vmem:[%s1 + $0x58] sm:$0xf]
  %v70 = vld [vmem:[%s1 + $0x5c] sm:$0xf]
  %v71 = vld [vmem:[%s1 + $0x60] sm:$0xf]
  %v72 = vld [vmem:[%s1 + $0x64] sm:$0xf]
  %v73 = vld [vmem:[%s1 + $0x68] sm:$0xf]
  %v74 = vld [vmem:[%s1 + $0x6c] sm:$0xf]
  %v75 = vld [vmem:[%s1 + $0x70] sm:$0xf]
  %v76 = vld [vmem:[%s1 + $0x74] sm:$0xf]
  %v77 = vld [vmem:[%s1 + $0x78] sm:$0xf]
  %v78 = vld [vmem:[%s1 + $0x7c] sm:$0xf]
  %v79 = vld [vmem:[%s1 + $0x80] sm:$0xf]
  %v80 = vld [vmem:[%s1 + $0x84] sm:$0xf]
  %v81 = vld [vmem:[%s1 + $0x88] sm:$0xf]
  %v82 = vld [vmem:[%s1 + $0x8c] sm:$0xf]
  %v83 = vld [vmem:[%s1 + $0x90] sm:$0xf]
  %v84 = vld [vmem:[%s1 + $0x94] sm:$0xf]
  %v85 = vld [vmem:[%s1 + $0x98] sm:$0xf]
  %v86 = vld [vmem:[%s1 + $0x9c] sm:$0xf]
  %v87 = vld [vmem:[%s1 + $0xa0] sm:$0xf]
  %v88 = vld [vmem:[%s1 + $0xa4] sm:$0xf]
  %v89 = vld [vmem:[%s1 + $0xa8] sm:$0xf]
  %v90 = vld [vmem:[%s1 + $0xac] sm:$0xf]
  %v91 = vld [vmem:[%s1 + $0xb0] sm:$0xf]
  %v92 = vld [vmem:[%s1 + $0xb4] sm:$0xf]
  %v93 = vld [vmem:[%s1 + $0xb8] sm:$0xf]
  %v94 = vld [vmem:[%s1 + $0xbc] sm:$0xf]
  %v95 = vld [vmem:[%s1 + $0xc0] sm:$0xf]
  %v96 = vld [vmem:[%s1 + $0xc4] sm:$0xf]
  %v97 = vld [vmem:[%s1 + $0xc8] sm:$0xf]
  %v98 = vld [vmem:[%s1 + $0xcc] sm:$0xf]
  %v99 = vld [vmem:[%s1 + $0xd0] sm:$0xf]
  %v100 = vld [vmem:[%s1 + $0xd4] sm:$0xf]
  %v101 = vld [vmem:[%s1 + $0xd8] sm:$0xf]
  %v102 = vld [vmem:[%s1 + $0xdc] sm:$0xf]
  %v103 = vld [vmem:[%s1 + $0xe0] sm:$0xf]
  %v104 = vld [vmem:[%s1 + $0xe4] sm:$0xf]
  %v105 = vld [vmem:[%s1 + $0xe8] sm:$0xf]
  %v106 = vld [vmem:[%s1 + $0xec] sm:$0xf]
  %v107 = vld [vmem:[%s1 + $0xf0] sm:$0xf]
  %v108 = vld [vmem:[%s1 + $0xf4] sm:$0xf]
  %v109 = vld [vmem:[%s1 + $0xf8] sm:$0xf]
  %v110 = vld [vmem:[%s1 + $0xfc] sm:$0xf]
  %v111 = vld [vmem:[%s2] sm:$0x1]
  %v113 = vlaneseq
  %v114 = vshrl.u32 %v113, 7
  %v115 = vsub.s32 0, %v114
  %v116 = vrot.slane %v111, %v115
  %v150 = vunpack.c.l.b16 %v15
  %v151 = vunpack.c.h.b16 %v15
  %v152 = vunpack.c.l.b16 %v16
  %v153 = vunpack.c.h.b16 %v16
  %v154 = vunpack.c.l.b16 %v17
  %v155 = vunpack.c.h.b16 %v17
  %v156 = vunpack.c.l.b16 %v18
  %v157 = vunpack.c.h.b16 %v18
  %v158 = vunpack.c.l.b16 %v19
  %v159 = vunpack.c.h.b16 %v19
  %v160 = vunpack.c.l.b16 %v20
  %v161 = vunpack.c.h.b16 %v20
  %v162 = vunpack.c.l.b16 %v21
  %v163 = vunpack.c.h.b16 %v21
  %v164 = vunpack.c.l.b16 %v22
  %v165 = vunpack.c.h.b16 %v22
  %v166 = vunpack.c.l.b16 %v23
  %v167 = vunpack.c.h.b16 %v23
  %v168 = vunpack.c.l.b16 %v24
  %v169 = vunpack.c.h.b16 %v24
  %v170 = vunpack.c.l.b16 %v25
  %v171 = vunpack.c.h.b16 %v25
  %v172 = vunpack.c.l.b16 %v26
  %v173 = vunpack.c.h.b16 %v26
  %v174 = vunpack.c.l.b16 %v27
  %v175 = vunpack.c.h.b16 %v27
  %v176 = vunpack.c.l.b16 %v28
  %v177 = vunpack.c.h.b16 %v28
  %v178 = vunpack.c.l.b16 %v29
  %v179 = vunpack.c.h.b16 %v29
  %v180 = vunpack.c.l.b16 %v30
  %v181 = vunpack.c.h.b16 %v30
  %v182 = vunpack.c.l.b16 %v31
  %v183 = vunpack.c.h.b16 %v31
  %v184 = vunpack.c.l.b16 %v32
  %v185 = vunpack.c.h.b16 %v32
  %v186 = vunpack.c.l.b16 %v33
  %v187 = vunpack.c.h.b16 %v33
  %v188 = vunpack.c.l.b16 %v34
  %v189 = vunpack.c.h.b16 %v34
  %v190 = vunpack.c.l.b16 %v35
  %v191 = vunpack.c.h.b16 %v35
  %v192 = vunpack.c.l.b16 %v36
  %v193 = vunpack.c.h.b16 %v36
  %v194 = vunpack.c.l.b16 %v37
  %v195 = vunpack.c.h.b16 %v37
  %v196 = vunpack.c.l.b16 %v38
  %v197 = vunpack.c.h.b16 %v38
  %v198 = vunpack.c.l.b16 %v39
  %v199 = vunpack.c.h.b16 %v39
  %v200 = vunpack.c.l.b16 %v40
  %v201 = vunpack.c.h.b16 %v40
  %v202 = vunpack.c.l.b16 %v41
  %v203 = vunpack.c.h.b16 %v41
  %v204 = vunpack.c.l.b16 %v42
  %v205 = vunpack.c.h.b16 %v42
  %v206 = vunpack.c.l.b16 %v43
  %v207 = vunpack.c.h.b16 %v43
  %v208 = vunpack.c.l.b16 %v44
  %v209 = vunpack.c.h.b16 %v44
  %v210 = vunpack.c.l.b16 %v45
  %v211 = vunpack.c.h.b16 %v45
  %v212 = vunpack.c.l.b16 %v46
  %v213 = vunpack.c.h.b16 %v46
  %v214 = vpack.c.b16 %v154, %v150
  %v215 = vpack.c.b16 %v155, %v151
  %v216 = vpack.c.b16 %v156, %v152
  %v217 = vpack.c.b16 %v157, %v153
  %v218 = vpack.c.b16 %v162, %v158
  %v219 = vpack.c.b16 %v163, %v159
  %v220 = vpack.c.b16 %v164, %v160
  %v221 = vpack.c.b16 %v165, %v161
  %v222 = vpack.c.b16 %v170, %v166
  %v223 = vpack.c.b16 %v171, %v167
  %v224 = vpack.c.b16 %v172, %v168
  %v225 = vpack.c.b16 %v173, %v169
  %v226 = vpack.c.b16 %v178, %v174
  %v227 = vpack.c.b16 %v179, %v175
  %v228 = vpack.c.b16 %v180, %v176
  %v229 = vpack.c.b16 %v181, %v177
  %v230 = vpack.c.b16 %v186, %v182
  %v231 = vpack.c.b16 %v187, %v183
  %v232 = vpack.c.b16 %v188, %v184
  %v233 = vpack.c.b16 %v189, %v185
  %v234 = vpack.c.b16 %v194, %v190
  %v235 = vpack.c.b16 %v195, %v191
  %v236 = vpack.c.b16 %v196, %v192
  %v237 = vpack.c.b16 %v197, %v193
  %v238 = vpack.c.b16 %v202, %v198
  %v239 = vpack.c.b16 %v203, %v199
  %v240 = vpack.c.b16 %v204, %v200
  %v241 = vpack.c.b16 %v205, %v201
  %v242 = vpack.c.b16 %v210, %v206
  %v243 = vpack.c.b16 %v211, %v207
  %v244 = vpack.c.b16 %v212, %v208
  %v245 = vpack.c.b16 %v213, %v209
  %v342 = vunpack.c.l.b16 %v47
  %v343 = vunpack.c.l.b16 %v48
  %v344 = vunpack.c.l.b16 %v49
  %v345 = vunpack.c.l.b16 %v50
  %v346 = vunpack.c.l.b16 %v51
  %v347 = vunpack.c.l.b16 %v52
  %v348 = vunpack.c.l.b16 %v53
  %v349 = vunpack.c.l.b16 %v54
  %v350 = vunpack.c.l.b16 %v55
  %v351 = vunpack.c.l.b16 %v56
  %v352 = vunpack.c.l.b16 %v57
  %v353 = vunpack.c.l.b16 %v58
  %v354 = vunpack.c.l.b16 %v59
  %v355 = vunpack.c.l.b16 %v60
  %v356 = vunpack.c.l.b16 %v61
  %v357 = vunpack.c.l.b16 %v62
  %v358 = vunpack.c.l.b16 %v63
  %v359 = vunpack.c.l.b16 %v64
  %v360 = vunpack.c.l.b16 %v65
  %v361 = vunpack.c.l.b16 %v66
  %v362 = vunpack.c.l.b16 %v67
  %v363 = vunpack.c.l.b16 %v68
  %v364 = vunpack.c.l.b16 %v69
  %v365 = vunpack.c.l.b16 %v70
  %v366 = vunpack.c.l.b16 %v71
  %v367 = vunpack.c.l.b16 %v72
  %v368 = vunpack.c.l.b16 %v73
  %v369 = vunpack.c.l.b16 %v74
  %v370 = vunpack.c.l.b16 %v75
  %v371 = vunpack.c.l.b16 %v76
  %v372 = vunpack.c.l.b16 %v77
  %v373 = vunpack.c.l.b16 %v78
  %v374 = vunpack.c.l.b16 %v79
  %v375 = vunpack.c.l.b16 %v80
  %v376 = vunpack.c.l.b16 %v81
  %v377 = vunpack.c.l.b16 %v82
  %v378 = vunpack.c.l.b16 %v83
  %v379 = vunpack.c.l.b16 %v84
  %v380 = vunpack.c.l.b16 %v85
  %v381 = vunpack.c.l.b16 %v86
  %v382 = vunpack.c.l.b16 %v87
  %v383 = vunpack.c.l.b16 %v88
  %v384 = vunpack.c.l.b16 %v89
  %v385 = vunpack.c.l.b16 %v90
  %v386 = vunpack.c.l.b16 %v91
  %v387 = vunpack.c.l.b16 %v92
  %v388 = vunpack.c.l.b16 %v93
  %v389 = vunpack.c.l.b16 %v94
  %v390 = vunpack.c.l.b16 %v95
  %v391 = vunpack.c.l.b16 %v96
  %v392 = vunpack.c.l.b16 %v97
  %v393 = vunpack.c.l.b16 %v98
  %v394 = vunpack.c.l.b16 %v99
  %v395 = vunpack.c.l.b16 %v100
  %v396 = vunpack.c.l.b16 %v101
  %v397 = vunpack.c.l.b16 %v102
  %v398 = vunpack.c.l.b16 %v103
  %v399 = vunpack.c.l.b16 %v104
  %v400 = vunpack.c.l.b16 %v105
  %v401 = vunpack.c.l.b16 %v106
  %v402 = vunpack.c.l.b16 %v107
  %v403 = vunpack.c.l.b16 %v108
  %v404 = vunpack.c.l.b16 %v109
  %v405 = vunpack.c.l.b16 %v110
  %v406 = vpack.c.b16 %v343, %v342
  %v407 = vpack.c.b16 %v345, %v344
  %v408 = vpack.c.b16 %v347, %v346
  %v409 = vpack.c.b16 %v349, %v348
  %v410 = vpack.c.b16 %v351, %v350
  %v411 = vpack.c.b16 %v353, %v352
  %v412 = vpack.c.b16 %v355, %v354
  %v413 = vpack.c.b16 %v357, %v356
  %v414 = vpack.c.b16 %v359, %v358
  %v415 = vpack.c.b16 %v361, %v360
  %v416 = vpack.c.b16 %v363, %v362
  %v417 = vpack.c.b16 %v365, %v364
  %v418 = vpack.c.b16 %v367, %v366
  %v419 = vpack.c.b16 %v369, %v368
  %v420 = vpack.c.b16 %v371, %v370
  %v421 = vpack.c.b16 %v373, %v372
  %v422 = vpack.c.b16 %v375, %v374
  %v423 = vpack.c.b16 %v377, %v376
  %v424 = vpack.c.b16 %v379, %v378
  %v425 = vpack.c.b16 %v381, %v380
  %v426 = vpack.c.b16 %v383, %v382
  %v427 = vpack.c.b16 %v385, %v384
  %v428 = vpack.c.b16 %v387, %v386
  %v429 = vpack.c.b16 %v389, %v388
  %v430 = vpack.c.b16 %v391, %v390
  %v431 = vpack.c.b16 %v393, %v392
  %v432 = vpack.c.b16 %v395, %v394
  %v433 = vpack.c.b16 %v397, %v396
  %v434 = vpack.c.b16 %v399, %v398
  %v435 = vpack.c.b16 %v401, %v400
  %v436 = vpack.c.b16 %v403, %v402
  %v437 = vpack.c.b16 %v405, %v404
  %470 = vmatprep.subr.bf16.mxu0 0
  %471 = vmatpush1.bf16.msra.mxu0 %v406
  %472 = vmatprep.subr.bf16.mxu0 0
  %473 = vmatpush1.bf16.msra.mxu0 %v407
  %474 = vmatprep.subr.bf16.mxu0 0
  %475 = vmatpush1.bf16.msra.mxu0 %v408
  %476 = vmatprep.subr.bf16.mxu0 0
  %477 = vmatpush1.bf16.msra.mxu0 %v409
  %478 = vmatprep.subr.bf16.mxu0 0
  %479 = vmatpush1.bf16.msra.mxu0 %v410
  %480 = vmatprep.subr.bf16.mxu0 0
  %481 = vmatpush1.bf16.msra.mxu0 %v411
  %482 = vmatprep.subr.bf16.mxu0 0
  %483 = vmatpush1.bf16.msra.mxu0 %v412
  %484 = vmatprep.subr.bf16.mxu0 0
  %485 = vmatpush1.bf16.msra.mxu0 %v413
  %486 = vmatprep.subr.bf16.mxu0 0
  %487 = vmatpush1.bf16.msra.mxu0 %v414
  %488 = vmatprep.subr.bf16.mxu0 0
  %489 = vmatpush1.bf16.msra.mxu0 %v415
  %490 = vmatprep.subr.bf16.mxu0 0
  %491 = vmatpush1.bf16.msra.mxu0 %v416
  %492 = vmatprep.subr.bf16.mxu0 0
  %493 = vmatpush1.bf16.msra.mxu0 %v417
  %494 = vmatprep.subr.bf16.mxu0 0
  %495 = vmatpush1.bf16.msra.mxu0 %v418
  %496 = vmatprep.subr.bf16.mxu0 0
  %497 = vmatpush1.bf16.msra.mxu0 %v419
  %498 = vmatprep.subr.bf16.mxu0 0
  %499 = vmatpush1.bf16.msra.mxu0 %v420
  %500 = vmatprep.subr.bf16.mxu0 0
  %501 = vmatpush1.bf16.msra.mxu0 %v421
  %502 = vmatprep.mubr.bf16.mxu0 %v215
  %503 = vmatmul.mubr.bf16.gmra.mrb[0].mxu0 %v214
  %v504 = vpop.f32.mrb[0].mxu0
  %v505 = vadd.f32 %v116, %v504
  %v506 = vpop.f32.mrb[0].mxu0
  %v507 = vpop.f32.mrb[0].mxu0
  %v508 = vadd.f32 %v116, %v507
  %v509 = vpop.f32.mrb[0].mxu0
  %510 = vmatprep.mubr.bf16.mxu0 %v219
  %511 = vmatmul.mubr.bf16.gmra.mrb[0].mxu0 %v218
  %v512 = vpop.f32.mrb[0].mxu0
  %v513 = vadd.f32 %v116, %v512
  %v514 = vpop.f32.mrb[0].mxu0
  %v515 = vpop.f32.mrb[0].mxu0
  %v516 = vadd.f32 %v116, %v515
  %v517 = vpop.f32.mrb[0].mxu0
  %518 = vmatprep.mubr.bf16.mxu0 %v223
  %519 = vmatmul.mubr.bf16.gmra.mrb[0].mxu0 %v222
  %v520 = vpop.f32.mrb[0].mxu0
  %v521 = vadd.f32 %v116, %v520
  %v522 = vpop.f32.mrb[0].mxu0
  %v523 = vpop.f32.mrb[0].mxu0
  %v524 = vadd.f32 %v116, %v523
  %v525 = vpop.f32.mrb[0].mxu0
  %526 = vmatprep.mubr.bf16.mxu0 %v227
  %527 = vmatmul.mubr.bf16.gmra.mrb[0].mxu0 %v226
  %v528 = vpop.f32.mrb[0].mxu0
  %v529 = vadd.f32 %v116, %v528
  %v530 = vpop.f32.mrb[0].mxu0
  %v531 = vpop.f32.mrb[0].mxu0
  %v532 = vadd.f32 %v116, %v531
  %v533 = vpop.f32.mrb[0].mxu0
  %534 = vmatprep.mubr.bf16.mxu0 %v231
  %535 = vmatmul.mubr.bf16.gmra.mrb[0].mxu0 %v230
  %v536 = vpop.f32.mrb[0].mxu0
  %v537 = vadd.f32 %v116, %v536
  %v538 = vpop.f32.mrb[0].mxu0
  %v539 = vpop.f32.mrb[0].mxu0
  %v540 = vadd.f32 %v116, %v539
  %v541 = vpop.f32.mrb[0].mxu0
  %542 = vmatprep.mubr.bf16.mxu0 %v235
  %543 = vmatmul.mubr.bf16.gmra.mrb[0].mxu0 %v234
  %v544 = vpop.f32.mrb[0].mxu0
  %v545 = vadd.f32 %v116, %v544
  %v546 = vpop.f32.mrb[0].mxu0
  %v547 = vpop.f32.mrb[0].mxu0
  %v548 = vadd.f32 %v116, %v547
  %v549 = vpop.f32.mrb[0].mxu0
  %550 = vmatprep.mubr.bf16.mxu0 %v239
  %551 = vmatmul.mubr.bf16.gmra.mrb[0].mxu0 %v238
  %v552 = vpop.f32.mrb[0].mxu0
  %v553 = vadd.f32 %v116, %v552
  %v554 = vpop.f32.mrb[0].mxu0
  %v555 = vpop.f32.mrb[0].mxu0
  %v556 = vadd.f32 %v116, %v555
  %v557 = vpop.f32.mrb[0].mxu0
  %558 = vmatprep.mubr.bf16.mxu0 %v243
  %559 = vmatmul.mubr.bf16.gmra.mrb[0].mxu0 %v242
  %v560 = vpop.f32.mrb[0].mxu0
  %v561 = vadd.f32 %v116, %v560
  %v562 = vpop.f32.mrb[0].mxu0
  %v563 = vpop.f32.mrb[0].mxu0
  %v564 = vadd.f32 %v116, %v563
  %v565 = vpop.f32.mrb[0].mxu0
  %566 = vdwg.mxu0
  %567 = vmatprep.subr.bf16.mxu0 0
  %568 = vmatpush1.bf16.msra.mxu0 %v422
  %569 = vmatprep.subr.bf16.mxu0 0
  %570 = vmatpush1.bf16.msra.mxu0 %v423
  %571 = vmatprep.subr.bf16.mxu0 0
  %572 = vmatpush1.bf16.msra.mxu0 %v424
  %573 = vmatprep.subr.bf16.mxu0 0
  %574 = vmatpush1.bf16.msra.mxu0 %v425
  %575 = vmatprep.subr.bf16.mxu0 0
  %576 = vmatpush1.bf16.msra.mxu0 %v426
  %577 = vmatprep.subr.bf16.mxu0 0
  %578 = vmatpush1.bf16.msra.mxu0 %v427
  %579 = vmatprep.subr.bf16.mxu0 0
  %580 = vmatpush1.bf16.msra.mxu0 %v428
  %581 = vmatprep.subr.bf16.mxu0 0
  %582 = vmatpush1.bf16.msra.mxu0 %v429
  %583 = vmatprep.subr.bf16.mxu0 0
  %584 = vmatpush1.bf16.msra.mxu0 %v430
  %585 = vmatprep.subr.bf16.mxu0 0
  %586 = vmatpush1.bf16.msra.mxu0 %v431
  %587 = vmatprep.subr.bf16.mxu0 0
  %588 = vmatpush1.bf16.msra.mxu0 %v432
  %589 = vmatprep.subr.bf16.mxu0 0
  %590 = vmatpush1.bf16.msra.mxu0 %v433
  %591 = vmatprep.subr.bf16.mxu0 0
  %592 = vmatpush1.bf16.msra.mxu0 %v434
  %593 = vmatprep.subr.bf16.mxu0 0
  %594 = vmatpush1.bf16.msra.mxu0 %v435
  %595 = vmatprep.subr.bf16.mxu0 0
  %596 = vmatpush1.bf16.msra.mxu0 %v436
  %597 = vmatprep.subr.bf16.mxu0 0
  %598 = vmatpush1.bf16.msra.mxu0 %v437
  %599 = vmatprep.mubr.bf16.mxu0 %v217
  %600 = vmatmul.mubr.bf16.gmra.mrb[0].mxu0 %v216
  %v601 = vpop.f32.mrb[0].mxu0
  %v602 = vadd.f32 %v505, %v601
  %v603 = vpop.f32.mrb[0].mxu0
  %v604 = vpop.f32.mrb[0].mxu0
  %v605 = vadd.f32 %v508, %v604
  %v606 = vpop.f32.mrb[0].mxu0
  %607 = vmatprep.mubr.bf16.mxu0 %v221
  %608 = vmatmul.mubr.bf16.gmra.mrb[0].mxu0 %v220
  %v609 = vpop.f32.mrb[0].mxu0
  %v610 = vadd.f32 %v513, %v609
  %v611 = vpop.f32.mrb[0].mxu0
  %v612 = vpop.f32.mrb[0].mxu0
  %v613 = vadd.f32 %v516, %v612
  %v614 = vpop.f32.mrb[0].mxu0
  %615 = vmatprep.mubr.bf16.mxu0 %v225
  %616 = vmatmul.mubr.bf16.gmra.mrb[0].mxu0 %v224
  %v617 = vpop.f32.mrb[0].mxu0
  %v618 = vadd.f32 %v521, %v617
  %v619 = vpop.f32.mrb[0].mxu0
  %v620 = vpop.f32.mrb[0].mxu0
  %v621 = vadd.f32 %v524, %v620
  %v622 = vpop.f32.mrb[0].mxu0
  %623 = vmatprep.mubr.bf16.mxu0 %v229
  %624 = vmatmul.mubr.bf16.gmra.mrb[0].mxu0 %v228
  %v625 = vpop.f32.mrb[0].mxu0
  %v626 = vadd.f32 %v529, %v625
  %v627 = vpop.f32.mrb[0].mxu0
  %v628 = vpop.f32.mrb[0].mxu0
  %v629 = vadd.f32 %v532, %v628
  %v630 = vpop.f32.mrb[0].mxu0
  %631 = vmatprep.mubr.bf16.mxu0 %v233
  %632 = vmatmul.mubr.bf16.gmra.mrb[0].mxu0 %v232
  %v633 = vpop.f32.mrb[0].mxu0
  %v634 = vadd.f32 %v537, %v633
  %v635 = vpop.f32.mrb[0].mxu0
  %v636 = vpop.f32.mrb[0].mxu0
  %v637 = vadd.f32 %v540, %v636
  %v638 = vpop.f32.mrb[0].mxu0
  %639 = vmatprep.mubr.bf16.mxu0 %v237
  %640 = vmatmul.mubr.bf16.gmra.mrb[0].mxu0 %v236
  %v641 = vpop.f32.mrb[0].mxu0
  %v642 = vadd.f32 %v545, %v641
  %v643 = vpop.f32.mrb[0].mxu0
  %v644 = vpop.f32.mrb[0].mxu0
  %v645 = vadd.f32 %v548, %v644
  %v646 = vpop.f32.mrb[0].mxu0
  %647 = vmatprep.mubr.bf16.mxu0 %v241
  %648 = vmatmul.mubr.bf16.gmra.mrb[0].mxu0 %v240
  %v649 = vpop.f32.mrb[0].mxu0
  %v650 = vadd.f32 %v553, %v649
  %v651 = vpop.f32.mrb[0].mxu0
  %v652 = vpop.f32.mrb[0].mxu0
  %v653 = vadd.f32 %v556, %v652
  %v654 = vpop.f32.mrb[0].mxu0
  %655 = vmatprep.mubr.bf16.mxu0 %v245
  %656 = vmatmul.mubr.bf16.gmra.mrb[0].mxu0 %v244
  %v657 = vpop.f32.mrb[0].mxu0
  %v658 = vadd.f32 %v561, %v657
  %v659 = vpop.f32.mrb[0].mxu0
  %v660 = vpop.f32.mrb[0].mxu0
  %v661 = vadd.f32 %v564, %v660
  %v662 = vpop.f32.mrb[0].mxu0
  %663 = vdwg.mxu0
  %v664 = vadd.f32 %v602, %v605
  %v665 = vadd.f32 %v664, %v610
  %v666 = vadd.f32 %v665, %v613
  %v667 = vadd.f32 %v666, %v618
  %v668 = vadd.f32 %v667, %v621
  %v669 = vadd.f32 %v668, %v626
  %v670 = vadd.f32 %v669, %v629
  %v671 = vadd.f32 %v670, %v634
  %v672 = vadd.f32 %v671, %v637
  %v673 = vadd.f32 %v672, %v642
  %v674 = vadd.f32 %v673, %v645
  %v675 = vadd.f32 %v674, %v650
  %v676 = vadd.f32 %v675, %v653
  %v677 = vadd.f32 %v676, %v658
  %v678 = vadd.f32 %v677, %v661
  %v679 = vrot.slane %v678, 4
  %v680 = vadd.f32 %v678, %v679
  %v681 = vrot.slane %v680, 2
  %v682 = vadd.f32 %v680, %v681
  %v683 = vrot.slane %v682, 1
  %v684 = vadd.f32 %v682, %v683
  %v685 = vrcp.pop 128.0
  %v686 = vmul.f32 %v684, %v685
  %v687 = vsub.f32 %v602, %v686
  %v688 = vsub.f32 %v605, %v686
  %v689 = vsub.f32 %v610, %v686
  %v690 = vsub.f32 %v613, %v686
  %v691 = vsub.f32 %v618, %v686
  %v692 = vsub.f32 %v621, %v686
  %v693 = vsub.f32 %v626, %v686
  %v694 = vsub.f32 %v629, %v686
  %v695 = vsub.f32 %v634, %v686
  %v696 = vsub.f32 %v637, %v686
  %v697 = vsub.f32 %v642, %v686
  %v698 = vsub.f32 %v645, %v686
  %v699 = vsub.f32 %v650, %v686
  %v700 = vsub.f32 %v653, %v686
  %v701 = vsub.f32 %v658, %v686
  %v702 = vsub.f32 %v661, %v686
  %v703 = vmul.f32 %v687, %v687
  %v704 = vmul.f32 %v688, %v688
  %v705 = vmul.f32 %v689, %v689
  %v706 = vmul.f32 %v690, %v690
  %v707 = vmul.f32 %v691, %v691
  %v708 = vmul.f32 %v692, %v692
  %v709 = vmul.f32 %v693, %v693
  %v710 = vmul.f32 %v694, %v694
  %v711 = vmul.f32 %v695, %v695
  %v712 = vmul.f32 %v696, %v696
  %v713 = vmul.f32 %v697, %v697
  %v714 = vmul.f32 %v698, %v698
  %v715 = vmul.f32 %v699, %v699
  %v716 = vmul.f32 %v700, %v700
  %v717 = vmul.f32 %v701, %v701
  %v718 = vmul.f32 %v702, %v702
  %v719 = vadd.f32 %v703, %v704
  %v720 = vadd.f32 %v719, %v705
  %v721 = vadd.f32 %v720, %v706
  %v722 = vadd.f32 %v721, %v707
  %v723 = vadd.f32 %v722, %v708
  %v724 = vadd.f32 %v723, %v709
  %v725 = vadd.f32 %v724, %v710
  %v726 = vadd.f32 %v725, %v711
  %v727 = vadd.f32 %v726, %v712
  %v728 = vadd.f32 %v727, %v713
  %v729 = vadd.f32 %v728, %v714
  %v730 = vadd.f32 %v729, %v715
  %v731 = vadd.f32 %v730, %v716
  %v732 = vadd.f32 %v731, %v717
  %v733 = vadd.f32 %v732, %v718
  %v734 = vrot.slane %v733, 4
  %v735 = vadd.f32 %v733, %v734
  %v736 = vrot.slane %v735, 2
  %v737 = vadd.f32 %v735, %v736
  %v738 = vrot.slane %v737, 1
  %v739 = vadd.f32 %v737, %v738
  %v740 = vmul.f32 %v739, %v685
  %v741 = vadd.f32 %v740, 1e-05
  %v742 = vrsqrt.pop %v741
  %v743 = vmul.f32 %v687, %v742
  %v744 = vmul.f32 %v688, %v742
  %v745 = vmul.f32 %v689, %v742
  %v746 = vmul.f32 %v690, %v742
  %v747 = vmul.f32 %v691, %v742
  %v748 = vmul.f32 %v692, %v742
  %v749 = vmul.f32 %v693, %v742
  %v750 = vmul.f32 %v694, %v742
  %v751 = vmul.f32 %v695, %v742
  %v752 = vmul.f32 %v696, %v742
  %v753 = vmul.f32 %v697, %v742
  %v754 = vmul.f32 %v698, %v742
  %v755 = vmul.f32 %v699, %v742
  %v756 = vmul.f32 %v700, %v742
  %v757 = vmul.f32 %v701, %v742
  %v758 = vmul.f32 %v702, %v742
  %vm759 = vcmp.gt.f32.partialorder %v743, 0.0
  %vm760 = vcmp.gt.f32.partialorder %v744, 0.0
  %vm761 = vcmp.gt.f32.partialorder %v745, 0.0
  %vm762 = vcmp.gt.f32.partialorder %v746, 0.0
  %vm763 = vcmp.gt.f32.partialorder %v747, 0.0
  %vm764 = vcmp.gt.f32.partialorder %v748, 0.0
  %vm765 = vcmp.gt.f32.partialorder %v749, 0.0
  %vm766 = vcmp.gt.f32.partialorder %v750, 0.0
  %vm767 = vcmp.gt.f32.partialorder %v751, 0.0
  %vm768 = vcmp.gt.f32.partialorder %v752, 0.0
  %vm769 = vcmp.gt.f32.partialorder %v753, 0.0
  %vm770 = vcmp.gt.f32.partialorder %v754, 0.0
  %vm771 = vcmp.gt.f32.partialorder %v755, 0.0
  %vm772 = vcmp.gt.f32.partialorder %v756, 0.0
  %vm773 = vcmp.gt.f32.partialorder %v757, 0.0
  %vm774 = vcmp.gt.f32.partialorder %v758, 0.0
  %v775 = vmul.f32 %v743, 0.2
  %v776 = vmul.f32 %v744, 0.2
  %v777 = vmul.f32 %v745, 0.2
  %v778 = vmul.f32 %v746, 0.2
  %v779 = vmul.f32 %v747, 0.2
  %v780 = vmul.f32 %v748, 0.2
  %v781 = vmul.f32 %v749, 0.2
  %v782 = vmul.f32 %v750, 0.2
  %v783 = vmul.f32 %v751, 0.2
  %v784 = vmul.f32 %v752, 0.2
  %v785 = vmul.f32 %v753, 0.2
  %v786 = vmul.f32 %v754, 0.2
  %v787 = vmul.f32 %v755, 0.2
  %v788 = vmul.f32 %v756, 0.2
  %v789 = vmul.f32 %v757, 0.2
  %v790 = vmul.f32 %v758, 0.2
  %v791 = vsel %vm759, %v743, %v775
  %v792 = vsel %vm760, %v744, %v776
  %v793 = vsel %vm761, %v745, %v777
  %v794 = vsel %vm762, %v746, %v778
  %v795 = vsel %vm763, %v747, %v779
  %v796 = vsel %vm764, %v748, %v780
  %v797 = vsel %vm765, %v749, %v781
  %v798 = vsel %vm766, %v750, %v782
  %v799 = vsel %vm767, %v751, %v783
  %v800 = vsel %vm768, %v752, %v784
  %v801 = vsel %vm769, %v753, %v785
  %v802 = vsel %vm770, %v754, %v786
  %v803 = vsel %vm771, %v755, %v787
  %v804 = vsel %vm772, %v756, %v788
  %v805 = vsel %vm773, %v757, %v789
  %v806 = vsel %vm774, %v758, %v790
  %v807 = vpack.c.bf16 %v792, %v791
  %v808 = vpack.c.bf16 %v794, %v793
  %v809 = vpack.c.bf16 %v796, %v795
  %v810 = vpack.c.bf16 %v798, %v797
  %v811 = vpack.c.bf16 %v800, %v799
  %v812 = vpack.c.bf16 %v802, %v801
  %v813 = vpack.c.bf16 %v804, %v803
  %v814 = vpack.c.bf16 %v806, %v805
  %v823 = vunpack.c.l.b16 %v807
  %v824 = vunpack.c.h.b16 %v807
  %v825 = vunpack.c.l.b16 %v808
  %v826 = vunpack.c.h.b16 %v808
  %v827 = vunpack.c.l.b16 %v809
  %v828 = vunpack.c.h.b16 %v809
  %v829 = vunpack.c.l.b16 %v810
  %v830 = vunpack.c.h.b16 %v810
  %v831 = vunpack.c.l.b16 %v811
  %v832 = vunpack.c.h.b16 %v811
  %v833 = vunpack.c.l.b16 %v812
  %v834 = vunpack.c.h.b16 %v812
  %v835 = vunpack.c.l.b16 %v813
  %v836 = vunpack.c.h.b16 %v813
  %v837 = vunpack.c.l.b16 %v814
  %v838 = vunpack.c.h.b16 %v814
  %v839 = vpack.c.b16 %v823, %v823
  %v840 = vpack.c.b16 %v824, %v824
  %v841 = vpack.c.b16 %v825, %v825
  %v842 = vpack.c.b16 %v826, %v826
  %v843 = vpack.c.b16 %v827, %v827
  %v844 = vpack.c.b16 %v828, %v828
  %v845 = vpack.c.b16 %v829, %v829
  %v846 = vpack.c.b16 %v830, %v830
  %v847 = vpack.c.b16 %v831, %v831
  %v848 = vpack.c.b16 %v832, %v832
  %v849 = vpack.c.b16 %v833, %v833
  %v850 = vpack.c.b16 %v834, %v834
  %v851 = vpack.c.b16 %v835, %v835
  %v852 = vpack.c.b16 %v836, %v836
  %v853 = vpack.c.b16 %v837, %v837
  %v854 = vpack.c.b16 %v838, %v838
  %871 = vst [vmem:[%s3] sm:$0xf] %v839
  %872 = vst [vmem:[%s3 + $0x4] sm:$0xf] %v840
  %873 = vst [vmem:[%s3 + $0x8] sm:$0xf] %v841
  %874 = vst [vmem:[%s3 + $0xc] sm:$0xf] %v842
  %875 = vst [vmem:[%s3 + $0x10] sm:$0xf] %v843
  %876 = vst [vmem:[%s3 + $0x14] sm:$0xf] %v844
  %877 = vst [vmem:[%s3 + $0x18] sm:$0xf] %v845
  %878 = vst [vmem:[%s3 + $0x1c] sm:$0xf] %v846
  %879 = vst [vmem:[%s3 + $0x20] sm:$0xf] %v847
  %880 = vst [vmem:[%s3 + $0x24] sm:$0xf] %v848
  %881 = vst [vmem:[%s3 + $0x28] sm:$0xf] %v849
  %882 = vst [vmem:[%s3 + $0x2c] sm:$0xf] %v850
  %883 = vst [vmem:[%s3 + $0x30] sm:$0xf] %v851
  %884 = vst [vmem:[%s3 + $0x34] sm:$0xf] %v852
  %885 = vst [vmem:[%s3 + $0x38] sm:$0xf] %v853
  %886 = vst [vmem:[%s3 + $0x3c] sm:$0xf] %v854
  // Predicated region
  $region14: #{discriminator_forward.8} parent=0 // pred_check
    _
  $region15: #{discriminator_forward.8} parent=0 // pred_check_branch
    %888 = sbr.rel (0) target = $region17
  $region16: #{discriminator_forward.8} parent=0 // pred_region
    _
  $region17: #{discriminator_forward.8} parent=0 // pred_fallthru
    _
  // Predicated region
  $region18: #{discriminator_forward.8} parent=0 // pred_check
    _
  $region19: #{discriminator_forward.8} parent=0 // pred_check_branch
    %890 = sbr.rel (0) target = $region21
  $region20: #{discriminator_forward.8} parent=0 // pred_region
    _
  $region21: #{discriminator_forward.8} parent=0 // pred_fallthru
    _

// kernel: discriminator_forward.9
$region0: #{discriminator_forward.9}
  #allocation0 [shape = 'u32[]', space=smem, size = 0x4, offset = 0x4, fixed_abs, tag = 'smem constant byte address 0x4 - core index']
  #allocation1 [shape = 'u32[144,128]{1,0:T(1,128)}', space=vmem, size = 0x12000, scoped, tag = 'internal scratch']
  %s0 = inlined_call_operand.vmem [shape: bf16[32,1024], index: 0, kind: input, shape index: {}]
  %s1 = inlined_call_operand.vmem [shape: bf16[1024,128], index: 1, kind: input, shape index: {}]
  %s2 = inlined_call_operand.vmem [shape: f32[1,128], index: 2, kind: input, shape index: {}]
  %s3 = inlined_call_operand.vmem [shape: bf16[32,128], index: 3, kind: output, shape index: {}]
  %s4 = sld [smem:[#allocation0]]
  $region22: #{discriminator_forward.9} parent=0
    _
  %s6 = ssub.s32 1, %s4
  %s7 = scalar_select 0, %s6, %s4
  // Predicated region
  $region2: #{discriminator_forward.9} parent=0 // pred_check
    _
  $region3: #{discriminator_forward.9} parent=0 // pred_check_branch
    %9 = sbr.rel (0) target = $region5
  $region4: #{discriminator_forward.9} parent=0 // pred_region
    _
  $region5: #{discriminator_forward.9} parent=0 // pred_fallthru
    _
  // Predicated region
  $region6: #{discriminator_forward.9} parent=0 // pred_check
    _
  $region7: #{discriminator_forward.9} parent=0 // pred_check_branch
    %11 = sbr.rel (0) target = $region9
  $region8: #{discriminator_forward.9} parent=0 // pred_region
    _
  $region9: #{discriminator_forward.9} parent=0 // pred_fallthru
    _
  // Predicated region
  $region10: #{discriminator_forward.9} parent=0 // pred_check
    _
  $region11: #{discriminator_forward.9} parent=0 // pred_check_branch
    %13 = sbr.rel (0) target = $region13
  $region12: #{discriminator_forward.9} parent=0 // pred_region
    _
  $region13: #{discriminator_forward.9} parent=0 // pred_fallthru
    _
  %v15 = vld [vmem:[%s0] sm:$0xff]
  %v16 = vld [vmem:[%s0 + $0x8] sm:$0xff]
  %v17 = vld [vmem:[%s0 + $0x10] sm:$0xff]
  %v18 = vld [vmem:[%s0 + $0x18] sm:$0xff]
  %v19 = vld [vmem:[%s0 + $0x20] sm:$0xff]
  %v20 = vld [vmem:[%s0 + $0x28] sm:$0xff]
  %v21 = vld [vmem:[%s0 + $0x30] sm:$0xff]
  %v22 = vld [vmem:[%s0 + $0x38] sm:$0xff]
  %v23 = vld [vmem:[%s0 + $0x40] sm:$0xff]
  %v24 = vld [vmem:[%s0 + $0x48] sm:$0xff]
  %v25 = vld [vmem:[%s0 + $0x50] sm:$0xff]
  %v26 = vld [vmem:[%s0 + $0x58] sm:$0xff]
  %v27 = vld [vmem:[%s0 + $0x60] sm:$0xff]
  %v28 = vld [vmem:[%s0 + $0x68] sm:$0xff]
  %v29 = vld [vmem:[%s0 + $0x70] sm:$0xff]
  %v30 = vld [vmem:[%s0 + $0x78] sm:$0xff]
  %v31 = vld [vmem:[%s1] sm:$0xf]
  %v32 = vld [vmem:[%s1 + $0x4] sm:$0xf]
  %v33 = vld [vmem:[%s1 + $0x8] sm:$0xf]
  %v34 = vld [vmem:[%s1 + $0xc] sm:$0xf]
  %v35 = vld [vmem:[%s1 + $0x10] sm:$0xf]
  %v36 = vld [vmem:[%s1 + $0x14] sm:$0xf]
  %v37 = vld [vmem:[%s1 + $0x18] sm:$0xf]
  %v38 = vld [vmem:[%s1 + $0x1c] sm:$0xf]
  %v39 = vld [vmem:[%s1 + $0x20] sm:$0xf]
  %v40 = vld [vmem:[%s1 + $0x24] sm:$0xf]
  %v41 = vld [vmem:[%s1 + $0x28] sm:$0xf]
  %v42 = vld [vmem:[%s1 + $0x2c] sm:$0xf]
  %v43 = vld [vmem:[%s1 + $0x30] sm:$0xf]
  %v44 = vld [vmem:[%s1 + $0x34] sm:$0xf]
  %v45 = vld [vmem:[%s1 + $0x38] sm:$0xf]
  %v46 = vld [vmem:[%s1 + $0x3c] sm:$0xf]
  %v47 = vld [vmem:[%s1 + $0x40] sm:$0xf]
  %v48 = vld [vmem:[%s1 + $0x44] sm:$0xf]
  %v49 = vld [vmem:[%s1 + $0x48] sm:$0xf]
  %v50 = vld [vmem:[%s1 + $0x4c] sm:$0xf]
  %v51 = vld [vmem:[%s1 + $0x50] sm:$0xf]
  %v52 = vld [vmem:[%s1 + $0x54] sm:$0xf]
  %v53 = vld [vmem:[%s1 + $0x58] sm:$0xf]
  %v54 = vld [vmem:[%s1 + $0x5c] sm:$0xf]
  %v55 = vld [vmem:[%s1 + $0x60] sm:$0xf]
  %v56 = vld [vmem:[%s1 + $0x64] sm:$0xf]
  %v57 = vld [vmem:[%s1 + $0x68] sm:$0xf]
  %v58 = vld [vmem:[%s1 + $0x6c] sm:$0xf]
  %v59 = vld [vmem:[%s1 + $0x70] sm:$0xf]
  %v60 = vld [vmem:[%s1 + $0x74] sm:$0xf]
  %v61 = vld [vmem:[%s1 + $0x78] sm:$0xf]
  %v62 = vld [vmem:[%s1 + $0x7c] sm:$0xf]
  %v63 = vld [vmem:[%s1 + $0x80] sm:$0xf]
  %v64 = vld [vmem:[%s1 + $0x84] sm:$0xf]
  %v65 = vld [vmem:[%s1 + $0x88] sm:$0xf]
  %v66 = vld [vmem:[%s1 + $0x8c] sm:$0xf]
  %v67 = vld [vmem:[%s1 + $0x90] sm:$0xf]
  %v68 = vld [vmem:[%s1 + $0x94] sm:$0xf]
  %v69 = vld [vmem:[%s1 + $0x98] sm:$0xf]
  %v70 = vld [vmem:[%s1 + $0x9c] sm:$0xf]
  %v71 = vld [vmem:[%s1 + $0xa0] sm:$0xf]
  %v72 = vld [vmem:[%s1 + $0xa4] sm:$0xf]
  %v73 = vld [vmem:[%s1 + $0xa8] sm:$0xf]
  %v74 = vld [vmem:[%s1 + $0xac] sm:$0xf]
  %v75 = vld [vmem:[%s1 + $0xb0] sm:$0xf]
  %v76 = vld [vmem:[%s1 + $0xb4] sm:$0xf]
  %v77 = vld [vmem:[%s1 + $0xb8] sm:$0xf]
  %v78 = vld [vmem:[%s1 + $0xbc] sm:$0xf]
  %v79 = vld [vmem:[%s1 + $0xc0] sm:$0xf]
  %v80 = vld [vmem:[%s1 + $0xc4] sm:$0xf]
  %v81 = vld [vmem:[%s1 + $0xc8] sm:$0xf]
  %v82 = vld [vmem:[%s1 + $0xcc] sm:$0xf]
  %v83 = vld [vmem:[%s1 + $0xd0] sm:$0xf]
  %v84 = vld [vmem:[%s1 + $0xd4] sm:$0xf]
  %v85 = vld [vmem:[%s1 + $0xd8] sm:$0xf]
  %v86 = vld [vmem:[%s1 + $0xdc] sm:$0xf]
  %v87 = vld [vmem:[%s1 + $0xe0] sm:$0xf]
  %v88 = vld [vmem:[%s1 + $0xe4] sm:$0xf]
  %v89 = vld [vmem:[%s1 + $0xe8] sm:$0xf]
  %v90 = vld [vmem:[%s1 + $0xec] sm:$0xf]
  %v91 = vld [vmem:[%s1 + $0xf0] sm:$0xf]
  %v92 = vld [vmem:[%s1 + $0xf4] sm:$0xf]
  %v93 = vld [vmem:[%s1 + $0xf8] sm:$0xf]
  %v94 = vld [vmem:[%s1 + $0xfc] sm:$0xf]
  %v95 = vld [vmem:[%s1 + $0x100] sm:$0xf]
  %v96 = vld [vmem:[%s1 + $0x104] sm:$0xf]
  %v97 = vld [vmem:[%s1 + $0x108] sm:$0xf]
  %v98 = vld [vmem:[%s1 + $0x10c] sm:$0xf]
  %v99 = vld [vmem:[%s1 + $0x110] sm:$0xf]
  %v100 = vld [vmem:[%s1 + $0x114] sm:$0xf]
  %v101 = vld [vmem:[%s1 + $0x118] sm:$0xf]
  %v102 = vld [vmem:[%s1 + $0x11c] sm:$0xf]
  %v103 = vld [vmem:[%s1 + $0x120] sm:$0xf]
  %v104 = vld [vmem:[%s1 + $0x124] sm:$0xf]
  %v105 = vld [vmem:[%s1 + $0x128] sm:$0xf]
  %v106 = vld [vmem:[%s1 + $0x12c] sm:$0xf]
  %v107 = vld [vmem:[%s1 + $0x130] sm:$0xf]
  %v108 = vld [vmem:[%s1 + $0x134] sm:$0xf]
  %v109 = vld [vmem:[%s1 + $0x138] sm:$0xf]
  %v110 = vld [vmem:[%s1 + $0x13c] sm:$0xf]
  %v111 = vld [vmem:[%s1 + $0x140] sm:$0xf]
  %v112 = vld [vmem:[%s1 + $0x144] sm:$0xf]
  %v113 = vld [vmem:[%s1 + $0x148] sm:$0xf]
  %v114 = vld [vmem:[%s1 + $0x14c] sm:$0xf]
  %v115 = vld [vmem:[%s1 + $0x150] sm:$0xf]
  %v116 = vld [vmem:[%s1 + $0x154] sm:$0xf]
  %v117 = vld [vmem:[%s1 + $0x158] sm:$0xf]
  %v118 = vld [vmem:[%s1 + $0x15c] sm:$0xf]
  %v119 = vld [vmem:[%s1 + $0x160] sm:$0xf]
  %v120 = vld [vmem:[%s1 + $0x164] sm:$0xf]
  %v121 = vld [vmem:[%s1 + $0x168] sm:$0xf]
  %v122 = vld [vmem:[%s1 + $0x16c] sm:$0xf]
  %v123 = vld [vmem:[%s1 + $0x170] sm:$0xf]
  %v124 = vld [vmem:[%s1 + $0x174] sm:$0xf]
  %v125 = vld [vmem:[%s1 + $0x178] sm:$0xf]
  %v126 = vld [vmem:[%s1 + $0x17c] sm:$0xf]
  %v127 = vld [vmem:[%s1 + $0x180] sm:$0xf]
  %v128 = vld [vmem:[%s1 + $0x184] sm:$0xf]
  %v129 = vld [vmem:[%s1 + $0x188] sm:$0xf]
  %v130 = vld [vmem:[%s1 + $0x18c] sm:$0xf]
  %v131 = vld [vmem:[%s1 + $0x190] sm:$0xf]
  %v132 = vld [vmem:[%s1 + $0x194] sm:$0xf]
  %v133 = vld [vmem:[%s1 + $0x198] sm:$0xf]
  %v134 = vld [vmem:[%s1 + $0x19c] sm:$0xf]
  %v135 = vld [vmem:[%s1 + $0x1a0] sm:$0xf]
  %v136 = vld [vmem:[%s1 + $0x1a4] sm:$0xf]
  %v137 = vld [vmem:[%s1 + $0x1a8] sm:$0xf]
  %v138 = vld [vmem:[%s1 + $0x1ac] sm:$0xf]
  %v139 = vld [vmem:[%s1 + $0x1b0] sm:$0xf]
  %v140 = vld [vmem:[%s1 + $0x1b4] sm:$0xf]
  %v141 = vld [vmem:[%s1 + $0x1b8] sm:$0xf]
  %v142 = vld [vmem:[%s1 + $0x1bc] sm:$0xf]
  %v143 = vld [vmem:[%s1 + $0x1c0] sm:$0xf]
  %v144 = vld [vmem:[%s1 + $0x1c4] sm:$0xf]
  %v145 = vld [vmem:[%s1 + $0x1c8] sm:$0xf]
  %v146 = vld [vmem:[%s1 + $0x1cc] sm:$0xf]
  %v147 = vld [vmem:[%s1 + $0x1d0] sm:$0xf]
  %v148 = vld [vmem:[%s1 + $0x1d4] sm:$0xf]
  %v149 = vld [vmem:[%s1 + $0x1d8] sm:$0xf]
  %v150 = vld [vmem:[%s1 + $0x1dc] sm:$0xf]
  %v151 = vld [vmem:[%s1 + $0x1e0] sm:$0xf]
  %v152 = vld [vmem:[%s1 + $0x1e4] sm:$0xf]
  %v153 = vld [vmem:[%s1 + $0x1e8] sm:$0xf]
  %v154 = vld [vmem:[%s1 + $0x1ec] sm:$0xf]
  %v155 = vld [vmem:[%s1 + $0x1f0] sm:$0xf]
  %v156 = vld [vmem:[%s1 + $0x1f4] sm:$0xf]
  %v157 = vld [vmem:[%s1 + $0x1f8] sm:$0xf]
  %v158 = vld [vmem:[%s1 + $0x1fc] sm:$0xf]
  %v159 = vld [vmem:[%s2] sm:$0x1]
  %v161 = vlaneseq
  %v162 = vshrl.u32 %v161, 7
  %v163 = vsub.s32 0, %v162
  %v164 = vrot.slane %v159, %v163
  %v182 = vunpack.c.l.b16 %v15
  %v183 = vunpack.c.h.b16 %v15
  %v184 = vunpack.c.l.b16 %v16
  %v185 = vunpack.c.h.b16 %v16
  %v186 = vunpack.c.l.b16 %v17
  %v187 = vunpack.c.h.b16 %v17
  %v188 = vunpack.c.l.b16 %v18
  %v189 = vunpack.c.h.b16 %v18
  %v190 = vunpack.c.l.b16 %v19
  %v191 = vunpack.c.h.b16 %v19
  %v192 = vunpack.c.l.b16 %v20
  %v193 = vunpack.c.h.b16 %v20
  %v194 = vunpack.c.l.b16 %v21
  %v195 = vunpack.c.h.b16 %v21
  %v196 = vunpack.c.l.b16 %v22
  %v197 = vunpack.c.h.b16 %v22
  %v198 = vunpack.c.l.b16 %v23
  %v199 = vunpack.c.h.b16 %v23
  %v200 = vunpack.c.l.b16 %v24
  %v201 = vunpack.c.h.b16 %v24
  %v202 = vunpack.c.l.b16 %v25
  %v203 = vunpack.c.h.b16 %v25
  %v204 = vunpack.c.l.b16 %v26
  %v205 = vunpack.c.h.b16 %v26
  %v206 = vunpack.c.l.b16 %v27
  %v207 = vunpack.c.h.b16 %v27
  %v208 = vunpack.c.l.b16 %v28
  %v209 = vunpack.c.h.b16 %v28
  %v210 = vunpack.c.l.b16 %v29
  %v211 = vunpack.c.h.b16 %v29
  %v212 = vunpack.c.l.b16 %v30
  %v213 = vunpack.c.h.b16 %v30
  %v214 = vpack.c.b16 %v190, %v182
  %v215 = vpack.c.b16 %v191, %v183
  %v216 = vpack.c.b16 %v192, %v184
  %v217 = vpack.c.b16 %v193, %v185
  %v218 = vpack.c.b16 %v194, %v186
  %v219 = vpack.c.b16 %v195, %v187
  %v220 = vpack.c.b16 %v196, %v188
  %v221 = vpack.c.b16 %v197, %v189
  %v222 = vpack.c.b16 %v206, %v198
  %v223 = vpack.c.b16 %v207, %v199
  %v224 = vpack.c.b16 %v208, %v200
  %v225 = vpack.c.b16 %v209, %v201
  %v226 = vpack.c.b16 %v210, %v202
  %v227 = vpack.c.b16 %v211, %v203
  %v228 = vpack.c.b16 %v212, %v204
  %v229 = vpack.c.b16 %v213, %v205
  %v374 = vunpack.c.l.b16 %v31
  %v375 = vunpack.c.l.b16 %v32
  %v376 = vunpack.c.l.b16 %v33
  %v377 = vunpack.c.l.b16 %v34
  %v378 = vunpack.c.l.b16 %v35
  %v379 = vunpack.c.l.b16 %v36
  %v380 = vunpack.c.l.b16 %v37
  %v381 = vunpack.c.l.b16 %v38
  %v382 = vunpack.c.l.b16 %v39
  %v383 = vunpack.c.l.b16 %v40
  %v384 = vunpack.c.l.b16 %v41
  %v385 = vunpack.c.l.b16 %v42
  %v386 = vunpack.c.l.b16 %v43
  %v387 = vunpack.c.l.b16 %v44
  %v388 = vunpack.c.l.b16 %v45
  %v389 = vunpack.c.l.b16 %v46
  %v390 = vunpack.c.l.b16 %v47
  %v391 = vunpack.c.l.b16 %v48
  %v392 = vunpack.c.l.b16 %v49
  %v393 = vunpack.c.l.b16 %v50
  %v394 = vunpack.c.l.b16 %v51
  %v395 = vunpack.c.l.b16 %v52
  %v396 = vunpack.c.l.b16 %v53
  %v397 = vunpack.c.l.b16 %v54
  %v398 = vunpack.c.l.b16 %v55
  %v399 = vunpack.c.l.b16 %v56
  %v400 = vunpack.c.l.b16 %v57
  %v401 = vunpack.c.l.b16 %v58
  %v402 = vunpack.c.l.b16 %v59
  %v403 = vunpack.c.l.b16 %v60
  %v404 = vunpack.c.l.b16 %v61
  %v405 = vunpack.c.l.b16 %v62
  %v406 = vunpack.c.l.b16 %v63
  %v407 = vunpack.c.l.b16 %v64
  %v408 = vunpack.c.l.b16 %v65
  %v409 = vunpack.c.l.b16 %v66
  %v410 = vunpack.c.l.b16 %v67
  %v411 = vunpack.c.l.b16 %v68
  %v412 = vunpack.c.l.b16 %v69
  %v413 = vunpack.c.l.b16 %v70
  %v414 = vunpack.c.l.b16 %v71
  %v415 = vunpack.c.l.b16 %v72
  %v416 = vunpack.c.l.b16 %v73
  %v417 = vunpack.c.l.b16 %v74
  %v418 = vunpack.c.l.b16 %v75
  %v419 = vunpack.c.l.b16 %v76
  %v420 = vunpack.c.l.b16 %v77
  %v421 = vunpack.c.l.b16 %v78
  %v422 = vunpack.c.l.b16 %v79
  %v423 = vunpack.c.l.b16 %v80
  %v424 = vunpack.c.l.b16 %v81
  %v425 = vunpack.c.l.b16 %v82
  %v426 = vunpack.c.l.b16 %v83
  %v427 = vunpack.c.l.b16 %v84
  %v428 = vunpack.c.l.b16 %v85
  %v429 = vunpack.c.l.b16 %v86
  %v430 = vunpack.c.l.b16 %v87
  %v431 = vunpack.c.l.b16 %v88
  %v432 = vunpack.c.l.b16 %v89
  %v433 = vunpack.c.l.b16 %v90
  %v434 = vunpack.c.l.b16 %v91
  %v435 = vunpack.c.l.b16 %v92
  %v436 = vunpack.c.l.b16 %v93
  %v437 = vunpack.c.l.b16 %v94
  %v438 = vunpack.c.l.b16 %v95
  %v439 = vunpack.c.l.b16 %v96
  %v440 = vunpack.c.l.b16 %v97
  %v441 = vunpack.c.l.b16 %v98
  %v442 = vunpack.c.l.b16 %v99
  %v443 = vunpack.c.l.b16 %v100
  %v444 = vunpack.c.l.b16 %v101
  %v445 = vunpack.c.l.b16 %v102
  %v446 = vunpack.c.l.b16 %v103
  %v447 = vunpack.c.l.b16 %v104
  %v448 = vunpack.c.l.b16 %v105
  %v449 = vunpack.c.l.b16 %v106
  %v450 = vunpack.c.l.b16 %v107
  %v451 = vunpack.c.l.b16 %v108
  %v452 = vunpack.c.l.b16 %v109
  %v453 = vunpack.c.l.b16 %v110
  %v454 = vunpack.c.l.b16 %v111
  %v455 = vunpack.c.l.b16 %v112
  %v456 = vunpack.c.l.b16 %v113
  %v457 = vunpack.c.l.b16 %v114
  %v458 = vunpack.c.l.b16 %v115
  %v459 = vunpack.c.l.b16 %v116
  %v460 = vunpack.c.l.b16 %v117
  %v461 = vunpack.c.l.b16 %v118
  %v462 = vunpack.c.l.b16 %v119
  %v463 = vunpack.c.l.b16 %v120
  %v464 = vunpack.c.l.b16 %v121
  %v465 = vunpack.c.l.b16 %v122
  %v466 = vunpack.c.l.b16 %v123
  %v467 = vunpack.c.l.b16 %v124
  %v468 = vunpack.c.l.b16 %v125
  %v469 = vunpack.c.l.b16 %v126
  %v470 = vunpack.c.l.b16 %v127
  %v471 = vunpack.c.l.b16 %v128
  %v472 = vunpack.c.l.b16 %v129
  %v473 = vunpack.c.l.b16 %v130
  %v474 = vunpack.c.l.b16 %v131
  %v475 = vunpack.c.l.b16 %v132
  %v476 = vunpack.c.l.b16 %v133
  %v477 = vunpack.c.l.b16 %v134
  %v478 = vunpack.c.l.b16 %v135
  %v479 = vunpack.c.l.b16 %v136
  %v480 = vunpack.c.l.b16 %v137
  %v481 = vunpack.c.l.b16 %v138
  %v482 = vunpack.c.l.b16 %v139
  %v483 = vunpack.c.l.b16 %v140
  %v484 = vunpack.c.l.b16 %v141
  %v485 = vunpack.c.l.b16 %v142
  %v486 = vunpack.c.l.b16 %v143
  %v487 = vunpack.c.l.b16 %v144
  %v488 = vunpack.c.l.b16 %v145
  %v489 = vunpack.c.l.b16 %v146
  %v490 = vunpack.c.l.b16 %v147
  %v491 = vunpack.c.l.b16 %v148
  %v492 = vunpack.c.l.b16 %v149
  %v493 = vunpack.c.l.b16 %v150
  %v494 = vunpack.c.l.b16 %v151
  %v495 = vunpack.c.l.b16 %v152
  %v496 = vunpack.c.l.b16 %v153
  %v497 = vunpack.c.l.b16 %v154
  %v498 = vunpack.c.l.b16 %v155
  %v499 = vunpack.c.l.b16 %v156
  %v500 = vunpack.c.l.b16 %v157
  %v501 = vunpack.c.l.b16 %v158
  %v502 = vpack.c.b16 %v375, %v374
  %v503 = vpack.c.b16 %v377, %v376
  %v504 = vpack.c.b16 %v379, %v378
  %v505 = vpack.c.b16 %v381, %v380
  %v506 = vpack.c.b16 %v383, %v382
  %v507 = vpack.c.b16 %v385, %v384
  %v508 = vpack.c.b16 %v387, %v386
  %v509 = vpack.c.b16 %v389, %v388
  %v510 = vpack.c.b16 %v391, %v390
  %v511 = vpack.c.b16 %v393, %v392
  %v512 = vpack.c.b16 %v395, %v394
  %v513 = vpack.c.b16 %v397, %v396
  %v514 = vpack.c.b16 %v399, %v398
  %v515 = vpack.c.b16 %v401, %v400
  %v516 = vpack.c.b16 %v403, %v402
  %v517 = vpack.c.b16 %v405, %v404
  %v518 = vpack.c.b16 %v407, %v406
  %v519 = vpack.c.b16 %v409, %v408
  %v520 = vpack.c.b16 %v411, %v410
  %v521 = vpack.c.b16 %v413, %v412
  %v522 = vpack.c.b16 %v415, %v414
  %v523 = vpack.c.b16 %v417, %v416
  %v524 = vpack.c.b16 %v419, %v418
  %v525 = vpack.c.b16 %v421, %v420
  %v526 = vpack.c.b16 %v423, %v422
  %v527 = vpack.c.b16 %v425, %v424
  %v528 = vpack.c.b16 %v427, %v426
  %v529 = vpack.c.b16 %v429, %v428
  %v530 = vpack.c.b16 %v431, %v430
  %v531 = vpack.c.b16 %v433, %v432
  %v532 = vpack.c.b16 %v435, %v434
  %v533 = vpack.c.b16 %v437, %v436
  %v534 = vpack.c.b16 %v439, %v438
  %v535 = vpack.c.b16 %v441, %v440
  %v536 = vpack.c.b16 %v443, %v442
  %v537 = vpack.c.b16 %v445, %v444
  %v538 = vpack.c.b16 %v447, %v446
  %v539 = vpack.c.b16 %v449, %v448
  %v540 = vpack.c.b16 %v451, %v450
  %v541 = vpack.c.b16 %v453, %v452
  %v542 = vpack.c.b16 %v455, %v454
  %v543 = vpack.c.b16 %v457, %v456
  %v544 = vpack.c.b16 %v459, %v458
  %v545 = vpack.c.b16 %v461, %v460
  %v546 = vpack.c.b16 %v463, %v462
  %v547 = vpack.c.b16 %v465, %v464
  %v548 = vpack.c.b16 %v467, %v466
  %v549 = vpack.c.b16 %v469, %v468
  %v550 = vpack.c.b16 %v471, %v470
  %v551 = vpack.c.b16 %v473, %v472
  %v552 = vpack.c.b16 %v475, %v474
  %v553 = vpack.c.b16 %v477, %v476
  %v554 = vpack.c.b16 %v479, %v478
  %v555 = vpack.c.b16 %v481, %v480
  %v556 = vpack.c.b16 %v483, %v482
  %v557 = vpack.c.b16 %v485, %v484
  %v558 = vpack.c.b16 %v487, %v486
  %v559 = vpack.c.b16 %v489, %v488
  %v560 = vpack.c.b16 %v491, %v490
  %v561 = vpack.c.b16 %v493, %v492
  %v562 = vpack.c.b16 %v495, %v494
  %v563 = vpack.c.b16 %v497, %v496
  %v564 = vpack.c.b16 %v499, %v498
  %v565 = vpack.c.b16 %v501, %v500
  %630 = vmatprep.subr.bf16.mxu0 0
  %631 = vmatpush1.bf16.msra.mxu0 %v502
  %632 = vmatprep.subr.bf16.mxu0 0
  %633 = vmatpush1.bf16.msra.mxu0 %v503
  %634 = vmatprep.subr.bf16.mxu0 0
  %635 = vmatpush1.bf16.msra.mxu0 %v504
  %636 = vmatprep.subr.bf16.mxu0 0
  %637 = vmatpush1.bf16.msra.mxu0 %v505
  %638 = vmatprep.subr.bf16.mxu0 0
  %639 = vmatpush1.bf16.msra.mxu0 %v506
  %640 = vmatprep.subr.bf16.mxu0 0
  %641 = vmatpush1.bf16.msra.mxu0 %v507
  %642 = vmatprep.subr.bf16.mxu0 0
  %643 = vmatpush1.bf16.msra.mxu0 %v508
  %644 = vmatprep.subr.bf16.mxu0 0
  %645 = vmatpush1.bf16.msra.mxu0 %v509
  %646 = vmatprep.subr.bf16.mxu0 0
  %647 = vmatpush1.bf16.msra.mxu0 %v510
  %648 = vmatprep.subr.bf16.mxu0 0
  %649 = vmatpush1.bf16.msra.mxu0 %v511
  %650 = vmatprep.subr.bf16.mxu0 0
  %651 = vmatpush1.bf16.msra.mxu0 %v512
  %652 = vmatprep.subr.bf16.mxu0 0
  %653 = vmatpush1.bf16.msra.mxu0 %v513
  %654 = vmatprep.subr.bf16.mxu0 0
  %655 = vmatpush1.bf16.msra.mxu0 %v514
  %656 = vmatprep.subr.bf16.mxu0 0
  %657 = vmatpush1.bf16.msra.mxu0 %v515
  %658 = vmatprep.subr.bf16.mxu0 0
  %659 = vmatpush1.bf16.msra.mxu0 %v516
  %660 = vmatprep.subr.bf16.mxu0 0
  %661 = vmatpush1.bf16.msra.mxu0 %v517
  %662 = vmatprep.mubr.bf16.mxu0 %v215
  %663 = vmatmul.mubr.bf16.gmra.mrb[0].mxu0 %v214
  %v664 = vpop.f32.mrb[0].mxu0
  %v665 = vadd.f32 %v164, %v664
  %v666 = vpop.f32.mrb[0].mxu0
  %v667 = vpop.f32.mrb[0].mxu0
  %v668 = vadd.f32 %v164, %v667
  %v669 = vpop.f32.mrb[0].mxu0
  %670 = vmatprep.mubr.bf16.mxu0 %v223
  %671 = vmatmul.mubr.bf16.gmra.mrb[0].mxu0 %v222
  %v672 = vpop.f32.mrb[0].mxu0
  %v673 = vadd.f32 %v164, %v672
  %v674 = vpop.f32.mrb[0].mxu0
  %v675 = vpop.f32.mrb[0].mxu0
  %v676 = vadd.f32 %v164, %v675
  %v677 = vpop.f32.mrb[0].mxu0
  %678 = vdwg.mxu0
  %679 = vmatprep.subr.bf16.mxu0 0
  %680 = vmatpush1.bf16.msra.mxu0 %v518
  %681 = vmatprep.subr.bf16.mxu0 0
  %682 = vmatpush1.bf16.msra.mxu0 %v519
  %683 = vmatprep.subr.bf16.mxu0 0
  %684 = vmatpush1.bf16.msra.mxu0 %v520
  %685 = vmatprep.subr.bf16.mxu0 0
  %686 = vmatpush1.bf16.msra.mxu0 %v521
  %687 = vmatprep.subr.bf16.mxu0 0
  %688 = vmatpush1.bf16.msra.mxu0 %v522
  %689 = vmatprep.subr.bf16.mxu0 0
  %690 = vmatpush1.bf16.msra.mxu0 %v523
  %691 = vmatprep.subr.bf16.mxu0 0
  %692 = vmatpush1.bf16.msra.mxu0 %v524
  %693 = vmatprep.subr.bf16.mxu0 0
  %694 = vmatpush1.bf16.msra.mxu0 %v525
  %695 = vmatprep.subr.bf16.mxu0 0
  %696 = vmatpush1.bf16.msra.mxu0 %v526
  %697 = vmatprep.subr.bf16.mxu0 0
  %698 = vmatpush1.bf16.msra.mxu0 %v527
  %699 = vmatprep.subr.bf16.mxu0 0
  %700 = vmatpush1.bf16.msra.mxu0 %v528
  %701 = vmatprep.subr.bf16.mxu0 0
  %702 = vmatpush1.bf16.msra.mxu0 %v529
  %703 = vmatprep.subr.bf16.mxu0 0
  %704 = vmatpush1.bf16.msra.mxu0 %v530
  %705 = vmatprep.subr.bf16.mxu0 0
  %706 = vmatpush1.bf16.msra.mxu0 %v531
  %707 = vmatprep.subr.bf16.mxu0 0
  %708 = vmatpush1.bf16.msra.mxu0 %v532
  %709 = vmatprep.subr.bf16.mxu0 0
  %710 = vmatpush1.bf16.msra.mxu0 %v533
  %711 = vmatprep.mubr.bf16.mxu0 %v217
  %712 = vmatmul.mubr.bf16.gmra.mrb[0].mxu0 %v216
  %v713 = vpop.f32.mrb[0].mxu0
  %v714 = vadd.f32 %v665, %v713
  %v715 = vpop.f32.mrb[0].mxu0
  %v716 = vpop.f32.mrb[0].mxu0
  %v717 = vadd.f32 %v668, %v716
  %v718 = vpop.f32.mrb[0].mxu0
  %719 = vmatprep.mubr.bf16.mxu0 %v225
  %720 = vmatmul.mubr.bf16.gmra.mrb[0].mxu0 %v224
  %v721 = vpop.f32.mrb[0].mxu0
  %v722 = vadd.f32 %v673, %v721
  %v723 = vpop.f32.mrb[0].mxu0
  %v724 = vpop.f32.mrb[0].mxu0
  %v725 = vadd.f32 %v676, %v724
  %v726 = vpop.f32.mrb[0].mxu0
  %727 = vdwg.mxu0
  %728 = vmatprep.subr.bf16.mxu0 0
  %729 = vmatpush1.bf16.msra.mxu0 %v534
  %730 = vmatprep.subr.bf16.mxu0 0
  %731 = vmatpush1.bf16.msra.mxu0 %v535
  %732 = vmatprep.subr.bf16.mxu0 0
  %733 = vmatpush1.bf16.msra.mxu0 %v536
  %734 = vmatprep.subr.bf16.mxu0 0
  %735 = vmatpush1.bf16.msra.mxu0 %v537
  %736 = vmatprep.subr.bf16.mxu0 0
  %737 = vmatpush1.bf16.msra.mxu0 %v538
  %738 = vmatprep.subr.bf16.mxu0 0
  %739 = vmatpush1.bf16.msra.mxu0 %v539
  %740 = vmatprep.subr.bf16.mxu0 0
  %741 = vmatpush1.bf16.msra.mxu0 %v540
  %742 = vmatprep.subr.bf16.mxu0 0
  %743 = vmatpush1.bf16.msra.mxu0 %v541
  %744 = vmatprep.subr.bf16.mxu0 0
  %745 = vmatpush1.bf16.msra.mxu0 %v542
  %746 = vmatprep.subr.bf16.mxu0 0
  %747 = vmatpush1.bf16.msra.mxu0 %v543
  %748 = vmatprep.subr.bf16.mxu0 0
  %749 = vmatpush1.bf16.msra.mxu0 %v544
  %750 = vmatprep.subr.bf16.mxu0 0
  %751 = vmatpush1.bf16.msra.mxu0 %v545
  %752 = vmatprep.subr.bf16.mxu0 0
  %753 = vmatpush1.bf16.msra.mxu0 %v546
  %754 = vmatprep.subr.bf16.mxu0 0
  %755 = vmatpush1.bf16.msra.mxu0 %v547
  %756 = vmatprep.subr.bf16.mxu0 0
  %757 = vmatpush1.bf16.msra.mxu0 %v548
  %758 = vmatprep.subr.bf16.mxu0 0
  %759 = vmatpush1.bf16.msra.mxu0 %v549
  %760 = vmatprep.mubr.bf16.mxu0 %v219
  %761 = vmatmul.mubr.bf16.gmra.mrb[0].mxu0 %v218
  %v762 = vpop.f32.mrb[0].mxu0
  %v763 = vadd.f32 %v714, %v762
  %v764 = vpop.f32.mrb[0].mxu0
  %v765 = vpop.f32.mrb[0].mxu0
  %v766 = vadd.f32 %v717, %v765
  %v767 = vpop.f32.mrb[0].mxu0
  %768 = vmatprep.mubr.bf16.mxu0 %v227
  %769 = vmatmul.mubr.bf16.gmra.mrb[0].mxu0 %v226
  %v770 = vpop.f32.mrb[0].mxu0
  %v771 = vadd.f32 %v722, %v770
  %v772 = vpop.f32.mrb[0].mxu0
  %v773 = vpop.f32.mrb[0].mxu0
  %v774 = vadd.f32 %v725, %v773
  %v775 = vpop.f32.mrb[0].mxu0
  %776 = vdwg.mxu0
  %777 = vmatprep.subr.bf16.mxu0 0
  %778 = vmatpush1.bf16.msra.mxu0 %v550
  %779 = vmatprep.subr.bf16.mxu0 0
  %780 = vmatpush1.bf16.msra.mxu0 %v551
  %781 = vmatprep.subr.bf16.mxu0 0
  %782 = vmatpush1.bf16.msra.mxu0 %v552
  %783 = vmatprep.subr.bf16.mxu0 0
  %784 = vmatpush1.bf16.msra.mxu0 %v553
  %785 = vmatprep.subr.bf16.mxu0 0
  %786 = vmatpush1.bf16.msra.mxu0 %v554
  %787 = vmatprep.subr.bf16.mxu0 0
  %788 = vmatpush1.bf16.msra.mxu0 %v555
  %789 = vmatprep.subr.bf16.mxu0 0
  %790 = vmatpush1.bf16.msra.mxu0 %v556
  %791 = vmatprep.subr.bf16.mxu0 0
  %792 = vmatpush1.bf16.msra.mxu0 %v557
  %793 = vmatprep.subr.bf16.mxu0 0
  %794 = vmatpush1.bf16.msra.mxu0 %v558
  %795 = vmatprep.subr.bf16.mxu0 0
  %796 = vmatpush1.bf16.msra.mxu0 %v559
  %797 = vmatprep.subr.bf16.mxu0 0
  %798 = vmatpush1.bf16.msra.mxu0 %v560
  %799 = vmatprep.subr.bf16.mxu0 0
  %800 = vmatpush1.bf16.msra.mxu0 %v561
  %801 = vmatprep.subr.bf16.mxu0 0
  %802 = vmatpush1.bf16.msra.mxu0 %v562
  %803 = vmatprep.subr.bf16.mxu0 0
  %804 = vmatpush1.bf16.msra.mxu0 %v563
  %805 = vmatprep.subr.bf16.mxu0 0
  %806 = vmatpush1.bf16.msra.mxu0 %v564
  %807 = vmatprep.subr.bf16.mxu0 0
  %808 = vmatpush1.bf16.msra.mxu0 %v565
  %809 = vmatprep.mubr.bf16.mxu0 %v221
  %810 = vmatmul.mubr.bf16.gmra.mrb[0].mxu0 %v220
  %v811 = vpop.f32.mrb[0].mxu0
  %v812 = vadd.f32 %v763, %v811
  %v813 = vpop.f32.mrb[0].mxu0
  %v814 = vpop.f32.mrb[0].mxu0
  %v815 = vadd.f32 %v766, %v814
  %v816 = vpop.f32.mrb[0].mxu0
  %817 = vmatprep.mubr.bf16.mxu0 %v229
  %818 = vmatmul.mubr.bf16.gmra.mrb[0].mxu0 %v228
  %v819 = vpop.f32.mrb[0].mxu0
  %v820 = vadd.f32 %v771, %v819
  %v821 = vpop.f32.mrb[0].mxu0
  %v822 = vpop.f32.mrb[0].mxu0
  %v823 = vadd.f32 %v774, %v822
  %v824 = vpop.f32.mrb[0].mxu0
  %825 = vdwg.mxu0
  %v826 = vadd.f32 %v812, %v815
  %v827 = vadd.f32 %v826, %v820
  %v828 = vadd.f32 %v827, %v823
  %v829 = vrot.slane %v828, 4
  %v830 = vadd.f32 %v828, %v829
  %v831 = vrot.slane %v830, 2
  %v832 = vadd.f32 %v830, %v831
  %v833 = vrot.slane %v832, 1
  %v834 = vadd.f32 %v832, %v833
  %v835 = vrcp.pop 32.0
  %v836 = vmul.f32 %v834, %v835
  %v837 = vsub.f32 %v812, %v836
  %v838 = vsub.f32 %v815, %v836
  %v839 = vsub.f32 %v820, %v836
  %v840 = vsub.f32 %v823, %v836
  %v841 = vmul.f32 %v837, %v837
  %v842 = vmul.f32 %v838, %v838
  %v843 = vmul.f32 %v839, %v839
  %v844 = vmul.f32 %v840, %v840
  %v845 = vadd.f32 %v841, %v842
  %v846 = vadd.f32 %v845, %v843
  %v847 = vadd.f32 %v846, %v844
  %v848 = vrot.slane %v847, 4
  %v849 = vadd.f32 %v847, %v848
  %v850 = vrot.slane %v849, 2
  %v851 = vadd.f32 %v849, %v850
  %v852 = vrot.slane %v851, 1
  %v853 = vadd.f32 %v851, %v852
  %v854 = vmul.f32 %v853, %v835
  %v855 = vadd.f32 %v854, 1e-05
  %v856 = vrsqrt.pop %v855
  %v857 = vmul.f32 %v837, %v856
  %v858 = vmul.f32 %v838, %v856
  %v859 = vmul.f32 %v839, %v856
  %v860 = vmul.f32 %v840, %v856
  %vm861 = vcmp.gt.f32.partialorder %v857, 0.0
  %vm862 = vcmp.gt.f32.partialorder %v858, 0.0
  %vm863 = vcmp.gt.f32.partialorder %v859, 0.0
  %vm864 = vcmp.gt.f32.partialorder %v860, 0.0
  %v865 = vmul.f32 %v857, 0.2
  %v866 = vmul.f32 %v858, 0.2
  %v867 = vmul.f32 %v859, 0.2
  %v868 = vmul.f32 %v860, 0.2
  %v869 = vsel %vm861, %v857, %v865
  %v870 = vsel %vm862, %v858, %v866
  %v871 = vsel %vm863, %v859, %v867
  %v872 = vsel %vm864, %v860, %v868
  %v873 = vpack.c.bf16 %v870, %v869
  %v874 = vpack.c.bf16 %v872, %v871
  %v877 = vunpack.c.l.b16 %v873
  %v878 = vunpack.c.h.b16 %v873
  %v879 = vunpack.c.l.b16 %v874
  %v880 = vunpack.c.h.b16 %v874
  %v881 = vpack.c.b16 %v877, %v877
  %v882 = vpack.c.b16 %v878, %v878
  %v883 = vpack.c.b16 %v879, %v879
  %v884 = vpack.c.b16 %v880, %v880
  %889 = vst [vmem:[%s3] sm:$0xf] %v881
  %890 = vst [vmem:[%s3 + $0x4] sm:$0xf] %v882
  %891 = vst [vmem:[%s3 + $0x8] sm:$0xf] %v883
  %892 = vst [vmem:[%s3 + $0xc] sm:$0xf] %v884
  // Predicated region
  $region14: #{discriminator_forward.9} parent=0 // pred_check
    _
  $region15: #{discriminator_forward.9} parent=0 // pred_check_branch
    %894 = sbr.rel (0) target = $region17
  $region16: #{discriminator_forward.9} parent=0 // pred_region
    _
  $region17: #{discriminator_forward.9} parent=0 // pred_fallthru
    _
  // Predicated region
  $region18: #{discriminator_forward.9} parent=0 // pred_check
    _
  $region19: #{discriminator_forward.9} parent=0 // pred_check_branch
    %896 = sbr.rel (0) target = $region21
  $region20: #{discriminator_forward.9} parent=0 // pred_region
    _
  $region21: #{discriminator_forward.9} parent=0 // pred_fallthru
    _

// kernel: discriminator_forward.10
$region0: #{discriminator_forward.10}
  #allocation0 [shape = 'u32[]', space=smem, size = 0x4, offset = 0x4, fixed_abs, tag = 'smem constant byte address 0x4 - core index']
  #allocation1 [shape = 'u32[144,128]{1,0:T(1,128)}', space=vmem, size = 0x12000, scoped, tag = 'internal scratch']
  %s0 = inlined_call_operand.vmem [shape: bf16[18,2048], index: 0, kind: input, shape index: {}]
  %s1 = inlined_call_operand.vmem [shape: bf16[2048,256], index: 1, kind: input, shape index: {}]
  %s2 = inlined_call_operand.vmem [shape: f32[1,256], index: 2, kind: input, shape index: {}]
  %s3 = inlined_call_operand.vmem [shape: bf16[18,256], index: 3, kind: output, shape index: {}]
  %s4 = sld [smem:[#allocation0]]
  $region22: #{discriminator_forward.10} parent=0
    _
  %s6 = ssub.s32 1, %s4
  %s7 = scalar_select 0, %s6, %s4
  // Predicated region
  $region2: #{discriminator_forward.10} parent=0 // pred_check
    _
  $region3: #{discriminator_forward.10} parent=0 // pred_check_branch
    %9 = sbr.rel (0) target = $region5
  $region4: #{discriminator_forward.10} parent=0 // pred_region
    _
  $region5: #{discriminator_forward.10} parent=0 // pred_fallthru
    _
  // Predicated region
  $region6: #{discriminator_forward.10} parent=0 // pred_check
    _
  $region7: #{discriminator_forward.10} parent=0 // pred_check_branch
    %11 = sbr.rel (0) target = $region9
  $region8: #{discriminator_forward.10} parent=0 // pred_region
    _
  $region9: #{discriminator_forward.10} parent=0 // pred_fallthru
    _
  // Predicated region
  $region10: #{discriminator_forward.10} parent=0 // pred_check
    _
  $region11: #{discriminator_forward.10} parent=0 // pred_check_branch
    %13 = sbr.rel (0) target = $region13
  $region12: #{discriminator_forward.10} parent=0 // pred_region
    _
  $region13: #{discriminator_forward.10} parent=0 // pred_fallthru
    _
  %v14 = vld [vmem:[%s0] sm:$0xff]
  %v15 = vld [vmem:[%s0 + $0x8] sm:$0xff]
  %v16 = vld [vmem:[%s0 + $0x10] sm:$0xff]
  %v17 = vld [vmem:[%s0 + $0x18] sm:$0xff]
  %v18 = vld [vmem:[%s0 + $0x20] sm:$0xff]
  %v19 = vld [vmem:[%s0 + $0x28] sm:$0xff]
  %v20 = vld [vmem:[%s0 + $0x30] sm:$0xff]
  %v21 = vld [vmem:[%s0 + $0x38] sm:$0xff]
  %v22 = vld [vmem:[%s0 + $0x40] sm:$0xff]
  %v23 = vld [vmem:[%s0 + $0x48] sm:$0xff]
  %v24 = vld [vmem:[%s0 + $0x50] sm:$0xff]
  %v25 = vld [vmem:[%s0 + $0x58] sm:$0xff]
  %v26 = vld [vmem:[%s0 + $0x60] sm:$0xff]
  %v27 = vld [vmem:[%s0 + $0x68] sm:$0xff]
  %v28 = vld [vmem:[%s0 + $0x70] sm:$0xff]
  %v29 = vld [vmem:[%s0 + $0x78] sm:$0xff]
  %v30 = vld [vmem:[%s0 + $0x80] sm:$0x11]
  %v31 = vld [vmem:[%s0 + $0x88] sm:$0x11]
  %v32 = vld [vmem:[%s0 + $0x90] sm:$0x11]
  %v33 = vld [vmem:[%s0 + $0x98] sm:$0x11]
  %v34 = vld [vmem:[%s0 + $0xa0] sm:$0x11]
  %v35 = vld [vmem:[%s0 + $0xa8] sm:$0x11]
  %v36 = vld [vmem:[%s0 + $0xb0] sm:$0x11]
  %v37 = vld [vmem:[%s0 + $0xb8] sm:$0x11]
  %v38 = vld [vmem:[%s1] sm:$0xff]
  %v39 = vld [vmem:[%s1 + $0x8] sm:$0xff]
  %v40 = vld [vmem:[%s1 + $0x10] sm:$0xff]
  %v41 = vld [vmem:[%s1 + $0x18] sm:$0xff]
  %v42 = vld [vmem:[%s1 + $0x20] sm:$0xff]
  %v43 = vld [vmem:[%s1 + $0x28] sm:$0xff]
  %v44 = vld [vmem:[%s1 + $0x30] sm:$0xff]
  %v45 = vld [vmem:[%s1 + $0x38] sm:$0xff]
  %v46 = vld [vmem:[%s1 + $0x40] sm:$0xff]
  %v47 = vld [vmem:[%s1 + $0x48] sm:$0xff]
  %v48 = vld [vmem:[%s1 + $0x50] sm:$0xff]
  %v49 = vld [vmem:[%s1 + $0x58] sm:$0xff]
  %v50 = vld [vmem:[%s1 + $0x60] sm:$0xff]
  %v51 = vld [vmem:[%s1 + $0x68] sm:$0xff]
  %v52 = vld [vmem:[%s1 + $0x70] sm:$0xff]
  %v53 = vld [vmem:[%s1 + $0x78] sm:$0xff]
  %v54 = vld [vmem:[%s1 + $0x80] sm:$0xff]
  %v55 = vld [vmem:[%s1 + $0x88] sm:$0xff]
  %v56 = vld [vmem:[%s1 + $0x90] sm:$0xff]
  %v57 = vld [vmem:[%s1 + $0x98] sm:$0xff]
  %v58 = vld [vmem:[%s1 + $0xa0] sm:$0xff]
  %v59 = vld [vmem:[%s1 + $0xa8] sm:$0xff]
  %v60 = vld [vmem:[%s1 + $0xb0] sm:$0xff]
  %v61 = vld [vmem:[%s1 + $0xb8] sm:$0xff]
  %v62 = vld [vmem:[%s1 + $0xc0] sm:$0xff]
  %v63 = vld [vmem:[%s1 + $0xc8] sm:$0xff]
  %v64 = vld [vmem:[%s1 + $0xd0] sm:$0xff]
  %v65 = vld [vmem:[%s1 + $0xd8] sm:$0xff]
  %v66 = vld [vmem:[%s1 + $0xe0] sm:$0xff]
  %v67 = vld [vmem:[%s1 + $0xe8] sm:$0xff]
  %v68 = vld [vmem:[%s1 + $0xf0] sm:$0xff]
  %v69 = vld [vmem:[%s1 + $0xf8] sm:$0xff]
  %v70 = vld [vmem:[%s1 + $0x100] sm:$0xff]
  %v71 = vld [vmem:[%s1 + $0x108] sm:$0xff]
  %v72 = vld [vmem:[%s1 + $0x110] sm:$0xff]
  %v73 = vld [vmem:[%s1 + $0x118] sm:$0xff]
  %v74 = vld [vmem:[%s1 + $0x120] sm:$0xff]
  %v75 = vld [vmem:[%s1 + $0x128] sm:$0xff]
  %v76 = vld [vmem:[%s1 + $0x130] sm:$0xff]
  %v77 = vld [vmem:[%s1 + $0x138] sm:$0xff]
  %v78 = vld [vmem:[%s1 + $0x140] sm:$0xff]
  %v79 = vld [vmem:[%s1 + $0x148] sm:$0xff]
  %v80 = vld [vmem:[%s1 + $0x150] sm:$0xff]
  %v81 = vld [vmem:[%s1 + $0x158] sm:$0xff]
  %v82 = vld [vmem:[%s1 + $0x160] sm:$0xff]
  %v83 = vld [vmem:[%s1 + $0x168] sm:$0xff]
  %v84 = vld [vmem:[%s1 + $0x170] sm:$0xff]
  %v85 = vld [vmem:[%s1 + $0x178] sm:$0xff]
  %v86 = vld [vmem:[%s1 + $0x180] sm:$0xff]
  %v87 = vld [vmem:[%s1 + $0x188] sm:$0xff]
  %v88 = vld [vmem:[%s1 + $0x190] sm:$0xff]
  %v89 = vld [vmem:[%s1 + $0x198] sm:$0xff]
  %v90 = vld [vmem:[%s1 + $0x1a0] sm:$0xff]
  %v91 = vld [vmem:[%s1 + $0x1a8] sm:$0xff]
  %v92 = vld [vmem:[%s1 + $0x1b0] sm:$0xff]
  %v93 = vld [vmem:[%s1 + $0x1b8] sm:$0xff]
  %v94 = vld [vmem:[%s1 + $0x1c0] sm:$0xff]
  %v95 = vld [vmem:[%s1 + $0x1c8] sm:$0xff]
  %v96 = vld [vmem:[%s1 + $0x1d0] sm:$0xff]
  %v97 = vld [vmem:[%s1 + $0x1d8] sm:$0xff]
  %v98 = vld [vmem:[%s1 + $0x1e0] sm:$0xff]
  %v99 = vld [vmem:[%s1 + $0x1e8] sm:$0xff]
  %v100 = vld [vmem:[%s1 + $0x1f0] sm:$0xff]
  %v101 = vld [vmem:[%s1 + $0x1f8] sm:$0xff]
  %v102 = vld [vmem:[%s1 + $0x200] sm:$0xff]
  %v103 = vld [vmem:[%s1 + $0x208] sm:$0xff]
  %v104 = vld [vmem:[%s1 + $0x210] sm:$0xff]
  %v105 = vld [vmem:[%s1 + $0x218] sm:$0xff]
  %v106 = vld [vmem:[%s1 + $0x220] sm:$0xff]
  %v107 = vld [vmem:[%s1 + $0x228] sm:$0xff]
  %v108 = vld [vmem:[%s1 + $0x230] sm:$0xff]
  %v109 = vld [vmem:[%s1 + $0x238] sm:$0xff]
  %v110 = vld [vmem:[%s1 + $0x240] sm:$0xff]
  %v111 = vld [vmem:[%s1 + $0x248] sm:$0xff]
  %v112 = vld [vmem:[%s1 + $0x250] sm:$0xff]
  %v113 = vld [vmem:[%s1 + $0x258] sm:$0xff]
  %v114 = vld [vmem:[%s1 + $0x260] sm:$0xff]
  %v115 = vld [vmem:[%s1 + $0x268] sm:$0xff]
  %v116 = vld [vmem:[%s1 + $0x270] sm:$0xff]
  %v117 = vld [vmem:[%s1 + $0x278] sm:$0xff]
  %v118 = vld [vmem:[%s1 + $0x280] sm:$0xff]
  %v119 = vld [vmem:[%s1 + $0x288] sm:$0xff]
  %v120 = vld [vmem:[%s1 + $0x290] sm:$0xff]
  %v121 = vld [vmem:[%s1 + $0x298] sm:$0xff]
  %v122 = vld [vmem:[%s1 + $0x2a0] sm:$0xff]
  %v123 = vld [vmem:[%s1 + $0x2a8] sm:$0xff]
  %v124 = vld [vmem:[%s1 + $0x2b0] sm:$0xff]
  %v125 = vld [vmem:[%s1 + $0x2b8] sm:$0xff]
  %v126 = vld [vmem:[%s1 + $0x2c0] sm:$0xff]
  %v127 = vld [vmem:[%s1 + $0x2c8] sm:$0xff]
  %v128 = vld [vmem:[%s1 + $0x2d0] sm:$0xff]
  %v129 = vld [vmem:[%s1 + $0x2d8] sm:$0xff]
  %v130 = vld [vmem:[%s1 + $0x2e0] sm:$0xff]
  %v131 = vld [vmem:[%s1 + $0x2e8] sm:$0xff]
  %v132 = vld [vmem:[%s1 + $0x2f0] sm:$0xff]
  %v133 = vld [vmem:[%s1 + $0x2f8] sm:$0xff]
  %v134 = vld [vmem:[%s1 + $0x300] sm:$0xff]
  %v135 = vld [vmem:[%s1 + $0x308] sm:$0xff]
  %v136 = vld [vmem:[%s1 + $0x310] sm:$0xff]
  %v137 = vld [vmem:[%s1 + $0x318] sm:$0xff]
  %v138 = vld [vmem:[%s1 + $0x320] sm:$0xff]
  %v139 = vld [vmem:[%s1 + $0x328] sm:$0xff]
  %v140 = vld [vmem:[%s1 + $0x330] sm:$0xff]
  %v141 = vld [vmem:[%s1 + $0x338] sm:$0xff]
  %v142 = vld [vmem:[%s1 + $0x340] sm:$0xff]
  %v143 = vld [vmem:[%s1 + $0x348] sm:$0xff]
  %v144 = vld [vmem:[%s1 + $0x350] sm:$0xff]
  %v145 = vld [vmem:[%s1 + $0x358] sm:$0xff]
  %v146 = vld [vmem:[%s1 + $0x360] sm:$0xff]
  %v147 = vld [vmem:[%s1 + $0x368] sm:$0xff]
  %v148 = vld [vmem:[%s1 + $0x370] sm:$0xff]
  %v149 = vld [vmem:[%s1 + $0x378] sm:$0xff]
  %v150 = vld [vmem:[%s1 + $0x380] sm:$0xff]
  %v151 = vld [vmem:[%s1 + $0x388] sm:$0xff]
  %v152 = vld [vmem:[%s1 + $0x390] sm:$0xff]
  %v153 = vld [vmem:[%s1 + $0x398] sm:$0xff]
  %v154 = vld [vmem:[%s1 + $0x3a0] sm:$0xff]
  %v155 = vld [vmem:[%s1 + $0x3a8] sm:$0xff]
  %v156 = vld [vmem:[%s1 + $0x3b0] sm:$0xff]
  %v157 = vld [vmem:[%s1 + $0x3b8] sm:$0xff]
  %v158 = vld [vmem:[%s1 + $0x3c0] sm:$0xff]
  %v159 = vld [vmem:[%s1 + $0x3c8] sm:$0xff]
  %v160 = vld [vmem:[%s1 + $0x3d0] sm:$0xff]
  %v161 = vld [vmem:[%s1 + $0x3d8] sm:$0xff]
  %v162 = vld [vmem:[%s1 + $0x3e0] sm:$0xff]
  %v163 = vld [vmem:[%s1 + $0x3e8] sm:$0xff]
  %v164 = vld [vmem:[%s1 + $0x3f0] sm:$0xff]
  %v165 = vld [vmem:[%s1 + $0x3f8] sm:$0xff]
  %v166 = vld [vmem:[%s1 + $0x400] sm:$0xff]
  %v167 = vld [vmem:[%s1 + $0x408] sm:$0xff]
  %v168 = vld [vmem:[%s1 + $0x410] sm:$0xff]
  %v169 = vld [vmem:[%s1 + $0x418] sm:$0xff]
  %v170 = vld [vmem:[%s1 + $0x420] sm:$0xff]
  %v171 = vld [vmem:[%s1 + $0x428] sm:$0xff]
  %v172 = vld [vmem:[%s1 + $0x430] sm:$0xff]
  %v173 = vld [vmem:[%s1 + $0x438] sm:$0xff]
  %v174 = vld [vmem:[%s1 + $0x440] sm:$0xff]
  %v175 = vld [vmem:[%s1 + $0x448] sm:$0xff]
  %v176 = vld [vmem:[%s1 + $0x450] sm:$0xff]
  %v177 = vld [vmem:[%s1 + $0x458] sm:$0xff]
  %v178 = vld [vmem:[%s1 + $0x460] sm:$0xff]
  %v179 = vld [vmem:[%s1 + $0x468] sm:$0xff]
  %v180 = vld [vmem:[%s1 + $0x470] sm:$0xff]
  %v181 = vld [vmem:[%s1 + $0x478] sm:$0xff]
  %v182 = vld [vmem:[%s1 + $0x480] sm:$0xff]
  %v183 = vld [vmem:[%s1 + $0x488] sm:$0xff]
  %v184 = vld [vmem:[%s1 + $0x490] sm:$0xff]
  %v185 = vld [vmem:[%s1 + $0x498] sm:$0xff]
  %v186 = vld [vmem:[%s1 + $0x4a0] sm:$0xff]
  %v187 = vld [vmem:[%s1 + $0x4a8] sm:$0xff]
  %v188 = vld [vmem:[%s1 + $0x4b0] sm:$0xff]
  %v189 = vld [vmem:[%s1 + $0x4b8] sm:$0xff]
  %v190 = vld [vmem:[%s1 + $0x4c0] sm:$0xff]
  %v191 = vld [vmem:[%s1 + $0x4c8] sm:$0xff]
  %v192 = vld [vmem:[%s1 + $0x4d0] sm:$0xff]
  %v193 = vld [vmem:[%s1 + $0x4d8] sm:$0xff]
  %v194 = vld [vmem:[%s1 + $0x4e0] sm:$0xff]
  %v195 = vld [vmem:[%s1 + $0x4e8] sm:$0xff]
  %v196 = vld [vmem:[%s1 + $0x4f0] sm:$0xff]
  %v197 = vld [vmem:[%s1 + $0x4f8] sm:$0xff]
  %v198 = vld [vmem:[%s1 + $0x500] sm:$0xff]
  %v199 = vld [vmem:[%s1 + $0x508] sm:$0xff]
  %v200 = vld [vmem:[%s1 + $0x510] sm:$0xff]
  %v201 = vld [vmem:[%s1 + $0x518] sm:$0xff]
  %v202 = vld [vmem:[%s1 + $0x520] sm:$0xff]
  %v203 = vld [vmem:[%s1 + $0x528] sm:$0xff]
  %v204 = vld [vmem:[%s1 + $0x530] sm:$0xff]
  %v205 = vld [vmem:[%s1 + $0x538] sm:$0xff]
  %v206 = vld [vmem:[%s1 + $0x540] sm:$0xff]
  %v207 = vld [vmem:[%s1 + $0x548] sm:$0xff]
  %v208 = vld [vmem:[%s1 + $0x550] sm:$0xff]
  %v209 = vld [vmem:[%s1 + $0x558] sm:$0xff]
  %v210 = vld [vmem:[%s1 + $0x560] sm:$0xff]
  %v211 = vld [vmem:[%s1 + $0x568] sm:$0xff]
  %v212 = vld [vmem:[%s1 + $0x570] sm:$0xff]
  %v213 = vld [vmem:[%s1 + $0x578] sm:$0xff]
  %v214 = vld [vmem:[%s1 + $0x580] sm:$0xff]
  %v215 = vld [vmem:[%s1 + $0x588] sm:$0xff]
  %v216 = vld [vmem:[%s1 + $0x590] sm:$0xff]
  %v217 = vld [vmem:[%s1 + $0x598] sm:$0xff]
  %v218 = vld [vmem:[%s1 + $0x5a0] sm:$0xff]
  %v219 = vld [vmem:[%s1 + $0x5a8] sm:$0xff]
  %v220 = vld [vmem:[%s1 + $0x5b0] sm:$0xff]
  %v221 = vld [vmem:[%s1 + $0x5b8] sm:$0xff]
  %v222 = vld [vmem:[%s1 + $0x5c0] sm:$0xff]
  %v223 = vld [vmem:[%s1 + $0x5c8] sm:$0xff]
  %v224 = vld [vmem:[%s1 + $0x5d0] sm:$0xff]
  %v225 = vld [vmem:[%s1 + $0x5d8] sm:$0xff]
  %v226 = vld [vmem:[%s1 + $0x5e0] sm:$0xff]
  %v227 = vld [vmem:[%s1 + $0x5e8] sm:$0xff]
  %v228 = vld [vmem:[%s1 + $0x5f0] sm:$0xff]
  %v229 = vld [vmem:[%s1 + $0x5f8] sm:$0xff]
  %v230 = vld [vmem:[%s1 + $0x600] sm:$0xff]
  %v231 = vld [vmem:[%s1 + $0x608] sm:$0xff]
  %v232 = vld [vmem:[%s1 + $0x610] sm:$0xff]
  %v233 = vld [vmem:[%s1 + $0x618] sm:$0xff]
  %v234 = vld [vmem:[%s1 + $0x620] sm:$0xff]
  %v235 = vld [vmem:[%s1 + $0x628] sm:$0xff]
  %v236 = vld [vmem:[%s1 + $0x630] sm:$0xff]
  %v237 = vld [vmem:[%s1 + $0x638] sm:$0xff]
  %v238 = vld [vmem:[%s1 + $0x640] sm:$0xff]
  %v239 = vld [vmem:[%s1 + $0x648] sm:$0xff]
  %v240 = vld [vmem:[%s1 + $0x650] sm:$0xff]
  %v241 = vld [vmem:[%s1 + $0x658] sm:$0xff]
  %v242 = vld [vmem:[%s1 + $0x660] sm:$0xff]
  %v243 = vld [vmem:[%s1 + $0x668] sm:$0xff]
  %v244 = vld [vmem:[%s1 + $0x670] sm:$0xff]
  %v245 = vld [vmem:[%s1 + $0x678] sm:$0xff]
  %v246 = vld [vmem:[%s1 + $0x680] sm:$0xff]
  %v247 = vld [vmem:[%s1 + $0x688] sm:$0xff]
  %v248 = vld [vmem:[%s1 + $0x690] sm:$0xff]
  %v249 = vld [vmem:[%s1 + $0x698] sm:$0xff]
  %v250 = vld [vmem:[%s1 + $0x6a0] sm:$0xff]
  %v251 = vld [vmem:[%s1 + $0x6a8] sm:$0xff]
  %v252 = vld [vmem:[%s1 + $0x6b0] sm:$0xff]
  %v253 = vld [vmem:[%s1 + $0x6b8] sm:$0xff]
  %v254 = vld [vmem:[%s1 + $0x6c0] sm:$0xff]
  %v255 = vld [vmem:[%s1 + $0x6c8] sm:$0xff]
  %v256 = vld [vmem:[%s1 + $0x6d0] sm:$0xff]
  %v257 = vld [vmem:[%s1 + $0x6d8] sm:$0xff]
  %v258 = vld [vmem:[%s1 + $0x6e0] sm:$0xff]
  %v259 = vld [vmem:[%s1 + $0x6e8] sm:$0xff]
  %v260 = vld [vmem:[%s1 + $0x6f0] sm:$0xff]
  %v261 = vld [vmem:[%s1 + $0x6f8] sm:$0xff]
  %v262 = vld [vmem:[%s1 + $0x700] sm:$0xff]
  %v263 = vld [vmem:[%s1 + $0x708] sm:$0xff]
  %v264 = vld [vmem:[%s1 + $0x710] sm:$0xff]
  %v265 = vld [vmem:[%s1 + $0x718] sm:$0xff]
  %v266 = vld [vmem:[%s1 + $0x720] sm:$0xff]
  %v267 = vld [vmem:[%s1 + $0x728] sm:$0xff]
  %v268 = vld [vmem:[%s1 + $0x730] sm:$0xff]
  %v269 = vld [vmem:[%s1 + $0x738] sm:$0xff]
  %v270 = vld [vmem:[%s1 + $0x740] sm:$0xff]
  %v271 = vld [vmem:[%s1 + $0x748] sm:$0xff]
  %v272 = vld [vmem:[%s1 + $0x750] sm:$0xff]
  %v273 = vld [vmem:[%s1 + $0x758] sm:$0xff]
  %v274 = vld [vmem:[%s1 + $0x760] sm:$0xff]
  %v275 = vld [vmem:[%s1 + $0x768] sm:$0xff]
  %v276 = vld [vmem:[%s1 + $0x770] sm:$0xff]
  %v277 = vld [vmem:[%s1 + $0x778] sm:$0xff]
  %v278 = vld [vmem:[%s1 + $0x780] sm:$0xff]
  %v279 = vld [vmem:[%s1 + $0x788] sm:$0xff]
  %v280 = vld [vmem:[%s1 + $0x790] sm:$0xff]
  %v281 = vld [vmem:[%s1 + $0x798] sm:$0xff]
  %v282 = vld [vmem:[%s1 + $0x7a0] sm:$0xff]
  %v283 = vld [vmem:[%s1 + $0x7a8] sm:$0xff]
  %v284 = vld [vmem:[%s1 + $0x7b0] sm:$0xff]
  %v285 = vld [vmem:[%s1 + $0x7b8] sm:$0xff]
  %v286 = vld [vmem:[%s1 + $0x7c0] sm:$0xff]
  %v287 = vld [vmem:[%s1 + $0x7c8] sm:$0xff]
  %v288 = vld [vmem:[%s1 + $0x7d0] sm:$0xff]
  %v289 = vld [vmem:[%s1 + $0x7d8] sm:$0xff]
  %v290 = vld [vmem:[%s1 + $0x7e0] sm:$0xff]
  %v291 = vld [vmem:[%s1 + $0x7e8] sm:$0xff]
  %v292 = vld [vmem:[%s1 + $0x7f0] sm:$0xff]
  %v293 = vld [vmem:[%s1 + $0x7f8] sm:$0xff]
  %v294 = vld [vmem:[%s2] sm:$0x3]
  %v296 = vlaneseq
  %v297 = vshrl.u32 %v296, 7
  %v298 = vsub.s32 0, %v297
  %v299 = vrot.slane %v294, %v298
  %v300 = vlaneseq
  %v301 = vshrl.u32 %v300, 7
  %v302 = vsub.s32 1, %v301
  %v303 = vrot.slane %v294, %v302
  %v330 = vunpack.c.l.b16 %v14
  %v331 = vunpack.c.h.b16 %v14
  %v332 = vunpack.c.l.b16 %v15
  %v333 = vunpack.c.h.b16 %v15
  %v334 = vunpack.c.l.b16 %v16
  %v335 = vunpack.c.h.b16 %v16
  %v336 = vunpack.c.l.b16 %v17
  %v337 = vunpack.c.h.b16 %v17
  %v338 = vunpack.c.l.b16 %v18
  %v339 = vunpack.c.h.b16 %v18
  %v340 = vunpack.c.l.b16 %v19
  %v341 = vunpack.c.h.b16 %v19
  %v342 = vunpack.c.l.b16 %v20
  %v343 = vunpack.c.h.b16 %v20
  %v344 = vunpack.c.l.b16 %v21
  %v345 = vunpack.c.h.b16 %v21
  %v346 = vunpack.c.l.b16 %v22
  %v347 = vunpack.c.h.b16 %v22
  %v348 = vunpack.c.l.b16 %v23
  %v349 = vunpack.c.h.b16 %v23
  %v350 = vunpack.c.l.b16 %v24
  %v351 = vunpack.c.h.b16 %v24
  %v352 = vunpack.c.l.b16 %v25
  %v353 = vunpack.c.h.b16 %v25
  %v354 = vunpack.c.l.b16 %v26
  %v355 = vunpack.c.h.b16 %v26
  %v356 = vunpack.c.l.b16 %v27
  %v357 = vunpack.c.h.b16 %v27
  %v358 = vunpack.c.l.b16 %v28
  %v359 = vunpack.c.h.b16 %v28
  %v360 = vunpack.c.l.b16 %v29
  %v361 = vunpack.c.h.b16 %v29
  %v362 = vunpack.c.l.b16 %v30
  %v363 = vunpack.c.h.b16 %v30
  %v364 = vunpack.c.l.b16 %v31
  %v365 = vunpack.c.h.b16 %v31
  %v366 = vunpack.c.l.b16 %v32
  %v367 = vunpack.c.h.b16 %v32
  %v368 = vunpack.c.l.b16 %v33
  %v369 = vunpack.c.h.b16 %v33
  %v370 = vunpack.c.l.b16 %v34
  %v371 = vunpack.c.h.b16 %v34
  %v372 = vunpack.c.l.b16 %v35
  %v373 = vunpack.c.h.b16 %v35
  %v374 = vunpack.c.l.b16 %v36
  %v375 = vunpack.c.h.b16 %v36
  %v376 = vunpack.c.l.b16 %v37
  %v377 = vunpack.c.h.b16 %v37
  %v378 = vpack.c.b16 %v346, %v330
  %v379 = vpack.c.b16 %v347, %v331
  %v380 = vpack.c.b16 %v348, %v332
  %v381 = vpack.c.b16 %v349, %v333
  %v382 = vpack.c.b16 %v350, %v334
  %v383 = vpack.c.b16 %v351, %v335
  %v384 = vpack.c.b16 %v352, %v336
  %v385 = vpack.c.b16 %v353, %v337
  %v386 = vpack.c.b16 %v354, %v338
  %v387 = vpack.c.b16 %v355, %v339
  %v388 = vpack.c.b16 %v356, %v340
  %v389 = vpack.c.b16 %v357, %v341
  %v390 = vpack.c.b16 %v358, %v342
  %v391 = vpack.c.b16 %v359, %v343
  %v392 = vpack.c.b16 %v360, %v344
  %v393 = vpack.c.b16 %v361, %v345
  %v394 = vpack.c.b16 %v362, %v362
  %v395 = vpack.c.b16 %v363, %v363
  %v396 = vpack.c.b16 %v364, %v364
  %v397 = vpack.c.b16 %v365, %v365
  %v398 = vpack.c.b16 %v366, %v366
  %v399 = vpack.c.b16 %v367, %v367
  %v400 = vpack.c.b16 %v368, %v368
  %v401 = vpack.c.b16 %v369, %v369
  %v402 = vpack.c.b16 %v370, %v370
  %v403 = vpack.c.b16 %v371, %v371
  %v404 = vpack.c.b16 %v372, %v372
  %v405 = vpack.c.b16 %v373, %v373
  %v406 = vpack.c.b16 %v374, %v374
  %v407 = vpack.c.b16 %v375, %v375
  %v408 = vpack.c.b16 %v376, %v376
  %v409 = vpack.c.b16 %v377, %v377
  %v698 = vunpack.c.l.b16 %v38
  %v699 = vunpack.c.h.b16 %v38
  %v700 = vunpack.c.l.b16 %v39
  %v701 = vunpack.c.h.b16 %v39
  %v702 = vunpack.c.l.b16 %v40
  %v703 = vunpack.c.h.b16 %v40
  %v704 = vunpack.c.l.b16 %v41
  %v705 = vunpack.c.h.b16 %v41
  %v706 = vunpack.c.l.b16 %v42
  %v707 = vunpack.c.h.b16 %v42
  %v708 = vunpack.c.l.b16 %v43
  %v709 = vunpack.c.h.b16 %v43
  %v710 = vunpack.c.l.b16 %v44
  %v711 = vunpack.c.h.b16 %v44
  %v712 = vunpack.c.l.b16 %v45
  %v713 = vunpack.c.h.b16 %v45
  %v714 = vunpack.c.l.b16 %v46
  %v715 = vunpack.c.h.b16 %v46
  %v716 = vunpack.c.l.b16 %v47
  %v717 = vunpack.c.h.b16 %v47
  %v718 = vunpack.c.l.b16 %v48
  %v719 = vunpack.c.h.b16 %v48
  %v720 = vunpack.c.l.b16 %v49
  %v721 = vunpack.c.h.b16 %v49
  %v722 = vunpack.c.l.b16 %v50
  %v723 = vunpack.c.h.b16 %v50
  %v724 = vunpack.c.l.b16 %v51
  %v725 = vunpack.c.h.b16 %v51
  %v726 = vunpack.c.l.b16 %v52
  %v727 = vunpack.c.h.b16 %v52
  %v728 = vunpack.c.l.b16 %v53
  %v729 = vunpack.c.h.b16 %v53
  %v730 = vunpack.c.l.b16 %v54
  %v731 = vunpack.c.h.b16 %v54
  %v732 = vunpack.c.l.b16 %v55
  %v733 = vunpack.c.h.b16 %v55
  %v734 = vunpack.c.l.b16 %v56
  %v735 = vunpack.c.h.b16 %v56
  %v736 = vunpack.c.l.b16 %v57
  %v737 = vunpack.c.h.b16 %v57
  %v738 = vunpack.c.l.b16 %v58
  %v739 = vunpack.c.h.b16 %v58
  %v740 = vunpack.c.l.b16 %v59
  %v741 = vunpack.c.h.b16 %v59
  %v742 = vunpack.c.l.b16 %v60
  %v743 = vunpack.c.h.b16 %v60
  %v744 = vunpack.c.l.b16 %v61
  %v745 = vunpack.c.h.b16 %v61
  %v746 = vunpack.c.l.b16 %v62
  %v747 = vunpack.c.h.b16 %v62
  %v748 = vunpack.c.l.b16 %v63
  %v749 = vunpack.c.h.b16 %v63
  %v750 = vunpack.c.l.b16 %v64
  %v751 = vunpack.c.h.b16 %v64
  %v752 = vunpack.c.l.b16 %v65
  %v753 = vunpack.c.h.b16 %v65
  %v754 = vunpack.c.l.b16 %v66
  %v755 = vunpack.c.h.b16 %v66
  %v756 = vunpack.c.l.b16 %v67
  %v757 = vunpack.c.h.b16 %v67
  %v758 = vunpack.c.l.b16 %v68
  %v759 = vunpack.c.h.b16 %v68
  %v760 = vunpack.c.l.b16 %v69
  %v761 = vunpack.c.h.b16 %v69
  %v762 = vunpack.c.l.b16 %v70
  %v763 = vunpack.c.h.b16 %v70
  %v764 = vunpack.c.l.b16 %v71
  %v765 = vunpack.c.h.b16 %v71
  %v766 = vunpack.c.l.b16 %v72
  %v767 = vunpack.c.h.b16 %v72
  %v768 = vunpack.c.l.b16 %v73
  %v769 = vunpack.c.h.b16 %v73
  %v770 = vunpack.c.l.b16 %v74
  %v771 = vunpack.c.h.b16 %v74
  %v772 = vunpack.c.l.b16 %v75
  %v773 = vunpack.c.h.b16 %v75
  %v774 = vunpack.c.l.b16 %v76
  %v775 = vunpack.c.h.b16 %v76
  %v776 = vunpack.c.l.b16 %v77
  %v777 = vunpack.c.h.b16 %v77
  %v778 = vunpack.c.l.b16 %v78
  %v779 = vunpack.c.h.b16 %v78
  %v780 = vunpack.c.l.b16 %v79
  %v781 = vunpack.c.h.b16 %v79
  %v782 = vunpack.c.l.b16 %v80
  %v783 = vunpack.c.h.b16 %v80
  %v784 = vunpack.c.l.b16 %v81
  %v785 = vunpack.c.h.b16 %v81
  %v786 = vunpack.c.l.b16 %v82
  %v787 = vunpack.c.h.b16 %v82
  %v788 = vunpack.c.l.b16 %v83
  %v789 = vunpack.c.h.b16 %v83
  %v790 = vunpack.c.l.b16 %v84
  %v791 = vunpack.c.h.b16 %v84
  %v792 = vunpack.c.l.b16 %v85
  %v793 = vunpack.c.h.b16 %v85
  %v794 = vunpack.c.l.b16 %v86
  %v795 = vunpack.c.h.b16 %v86
  %v796 = vunpack.c.l.b16 %v87
  %v797 = vunpack.c.h.b16 %v87
  %v798 = vunpack.c.l.b16 %v88
  %v799 = vunpack.c.h.b16 %v88
  %v800 = vunpack.c.l.b16 %v89
  %v801 = vunpack.c.h.b16 %v89
  %v802 = vunpack.c.l.b16 %v90
  %v803 = vunpack.c.h.b16 %v90
  %v804 = vunpack.c.l.b16 %v91
  %v805 = vunpack.c.h.b16 %v91
  %v806 = vunpack.c.l.b16 %v92
  %v807 = vunpack.c.h.b16 %v92
  %v808 = vunpack.c.l.b16 %v93
  %v809 = vunpack.c.h.b16 %v93
  %v810 = vunpack.c.l.b16 %v94
  %v811 = vunpack.c.h.b16 %v94
  %v812 = vunpack.c.l.b16 %v95
  %v813 = vunpack.c.h.b16 %v95
  %v814 = vunpack.c.l.b16 %v96
  %v815 = vunpack.c.h.b16 %v96
  %v816 = vunpack.c.l.b16 %v97
  %v817 = vunpack.c.h.b16 %v97
  %v818 = vunpack.c.l.b16 %v98
  %v819 = vunpack.c.h.b16 %v98
  %v820 = vunpack.c.l.b16 %v99
  %v821 = vunpack.c.h.b16 %v99
  %v822 = vunpack.c.l.b16 %v100
  %v823 = vunpack.c.h.b16 %v100
  %v824 = vunpack.c.l.b16 %v101
  %v825 = vunpack.c.h.b16 %v101
  %v826 = vunpack.c.l.b16 %v102
  %v827 = vunpack.c.h.b16 %v102
  %v828 = vunpack.c.l.b16 %v103
  %v829 = vunpack.c.h.b16 %v103
  %v830 = vunpack.c.l.b16 %v104
  %v831 = vunpack.c.h.b16 %v104
  %v832 = vunpack.c.l.b16 %v105
  %v833 = vunpack.c.h.b16 %v105
  %v834 = vunpack.c.l.b16 %v106
  %v835 = vunpack.c.h.b16 %v106
  %v836 = vunpack.c.l.b16 %v107
  %v837 = vunpack.c.h.b16 %v107
  %v838 = vunpack.c.l.b16 %v108
  %v839 = vunpack.c.h.b16 %v108
  %v840 = vunpack.c.l.b16 %v109
  %v841 = vunpack.c.h.b16 %v109
  %v842 = vunpack.c.l.b16 %v110
  %v843 = vunpack.c.h.b16 %v110
  %v844 = vunpack.c.l.b16 %v111
  %v845 = vunpack.c.h.b16 %v111
  %v846 = vunpack.c.l.b16 %v112
  %v847 = vunpack.c.h.b16 %v112
  %v848 = vunpack.c.l.b16 %v113
  %v849 = vunpack.c.h.b16 %v113
  %v850 = vunpack.c.l.b16 %v114
  %v851 = vunpack.c.h.b16 %v114
  %v852 = vunpack.c.l.b16 %v115
  %v853 = vunpack.c.h.b16 %v115
  %v854 = vunpack.c.l.b16 %v116
  %v855 = vunpack.c.h.b16 %v116
  %v856 = vunpack.c.l.b16 %v117
  %v857 = vunpack.c.h.b16 %v117
  %v858 = vunpack.c.l.b16 %v118
  %v859 = vunpack.c.h.b16 %v118
  %v860 = vunpack.c.l.b16 %v119
  %v861 = vunpack.c.h.b16 %v119
  %v862 = vunpack.c.l.b16 %v120
  %v863 = vunpack.c.h.b16 %v120
  %v864 = vunpack.c.l.b16 %v121
  %v865 = vunpack.c.h.b16 %v121
  %v866 = vunpack.c.l.b16 %v122
  %v867 = vunpack.c.h.b16 %v122
  %v868 = vunpack.c.l.b16 %v123
  %v869 = vunpack.c.h.b16 %v123
  %v870 = vunpack.c.l.b16 %v124
  %v871 = vunpack.c.h.b16 %v124
  %v872 = vunpack.c.l.b16 %v125
  %v873 = vunpack.c.h.b16 %v125
  %v874 = vunpack.c.l.b16 %v126
  %v875 = vunpack.c.h.b16 %v126
  %v876 = vunpack.c.l.b16 %v127
  %v877 = vunpack.c.h.b16 %v127
  %v878 = vunpack.c.l.b16 %v128
  %v879 = vunpack.c.h.b16 %v128
  %v880 = vunpack.c.l.b16 %v129
  %v881 = vunpack.c.h.b16 %v129
  %v882 = vunpack.c.l.b16 %v130
  %v883 = vunpack.c.h.b16 %v130
  %v884 = vunpack.c.l.b16 %v131
  %v885 = vunpack.c.h.b16 %v131
  %v886 = vunpack.c.l.b16 %v132
  %v887 = vunpack.c.h.b16 %v132
  %v888 = vunpack.c.l.b16 %v133
  %v889 = vunpack.c.h.b16 %v133
  %v890 = vunpack.c.l.b16 %v134
  %v891 = vunpack.c.h.b16 %v134
  %v892 = vunpack.c.l.b16 %v135
  %v893 = vunpack.c.h.b16 %v135
  %v894 = vunpack.c.l.b16 %v136
  %v895 = vunpack.c.h.b16 %v136
  %v896 = vunpack.c.l.b16 %v137
  %v897 = vunpack.c.h.b16 %v137
  %v898 = vunpack.c.l.b16 %v138
  %v899 = vunpack.c.h.b16 %v138
  %v900 = vunpack.c.l.b16 %v139
  %v901 = vunpack.c.h.b16 %v139
  %v902 = vunpack.c.l.b16 %v140
  %v903 = vunpack.c.h.b16 %v140
  %v904 = vunpack.c.l.b16 %v141
  %v905 = vunpack.c.h.b16 %v141
  %v906 = vunpack.c.l.b16 %v142
  %v907 = vunpack.c.h.b16 %v142
  %v908 = vunpack.c.l.b16 %v143
  %v909 = vunpack.c.h.b16 %v143
  %v910 = vunpack.c.l.b16 %v144
  %v911 = vunpack.c.h.b16 %v144
  %v912 = vunpack.c.l.b16 %v145
  %v913 = vunpack.c.h.b16 %v145
  %v914 = vunpack.c.l.b16 %v146
  %v915 = vunpack.c.h.b16 %v146
  %v916 = vunpack.c.l.b16 %v147
  %v917 = vunpack.c.h.b16 %v147
  %v918 = vunpack.c.l.b16 %v148
  %v919 = vunpack.c.h.b16 %v148
  %v920 = vunpack.c.l.b16 %v149
  %v921 = vunpack.c.h.b16 %v149
  %v922 = vunpack.c.l.b16 %v150
  %v923 = vunpack.c.h.b16 %v150
  %v924 = vunpack.c.l.b16 %v151
  %v925 = vunpack.c.h.b16 %v151
  %v926 = vunpack.c.l.b16 %v152
  %v927 = vunpack.c.h.b16 %v152
  %v928 = vunpack.c.l.b16 %v153
  %v929 = vunpack.c.h.b16 %v153
  %v930 = vunpack.c.l.b16 %v154
  %v931 = vunpack.c.h.b16 %v154
  %v932 = vunpack.c.l.b16 %v155
  %v933 = vunpack.c.h.b16 %v155
  %v934 = vunpack.c.l.b16 %v156
  %v935 = vunpack.c.h.b16 %v156
  %v936 = vunpack.c.l.b16 %v157
  %v937 = vunpack.c.h.b16 %v157
  %v938 = vunpack.c.l.b16 %v158
  %v939 = vunpack.c.h.b16 %v158
  %v940 = vunpack.c.l.b16 %v159
  %v941 = vunpack.c.h.b16 %v159
  %v942 = vunpack.c.l.b16 %v160
  %v943 = vunpack.c.h.b16 %v160
  %v944 = vunpack.c.l.b16 %v161
  %v945 = vunpack.c.h.b16 %v161
  %v946 = vunpack.c.l.b16 %v162
  %v947 = vunpack.c.h.b16 %v162
  %v948 = vunpack.c.l.b16 %v163
  %v949 = vunpack.c.h.b16 %v163
  %v950 = vunpack.c.l.b16 %v164
  %v951 = vunpack.c.h.b16 %v164
  %v952 = vunpack.c.l.b16 %v165
  %v953 = vunpack.c.h.b16 %v165
  %v954 = vunpack.c.l.b16 %v166
  %v955 = vunpack.c.h.b16 %v166
  %v956 = vunpack.c.l.b16 %v167
  %v957 = vunpack.c.h.b16 %v167
  %v958 = vunpack.c.l.b16 %v168
  %v959 = vunpack.c.h.b16 %v168
  %v960 = vunpack.c.l.b16 %v169
  %v961 = vunpack.c.h.b16 %v169
  %v962 = vunpack.c.l.b16 %v170
  %v963 = vunpack.c.h.b16 %v170
  %v964 = vunpack.c.l.b16 %v171
  %v965 = vunpack.c.h.b16 %v171
  %v966 = vunpack.c.l.b16 %v172
  %v967 = vunpack.c.h.b16 %v172
  %v968 = vunpack.c.l.b16 %v173
  %v969 = vunpack.c.h.b16 %v173
  %v970 = vunpack.c.l.b16 %v174
  %v971 = vunpack.c.h.b16 %v174
  %v972 = vunpack.c.l.b16 %v175
  %v973 = vunpack.c.h.b16 %v175
  %v974 = vunpack.c.l.b16 %v176
  %v975 = vunpack.c.h.b16 %v176
  %v976 = vunpack.c.l.b16 %v177
  %v977 = vunpack.c.h.b16 %v177
  %v978 = vunpack.c.l.b16 %v178
  %v979 = vunpack.c.h.b16 %v178
  %v980 = vunpack.c.l.b16 %v179
  %v981 = vunpack.c.h.b16 %v179
  %v982 = vunpack.c.l.b16 %v180
  %v983 = vunpack.c.h.b16 %v180
  %v984 = vunpack.c.l.b16 %v181
  %v985 = vunpack.c.h.b16 %v181
  %v986 = vunpack.c.l.b16 %v182
  %v987 = vunpack.c.h.b16 %v182
  %v988 = vunpack.c.l.b16 %v183
  %v989 = vunpack.c.h.b16 %v183
  %v990 = vunpack.c.l.b16 %v184
  %v991 = vunpack.c.h.b16 %v184
  %v992 = vunpack.c.l.b16 %v185
  %v993 = vunpack.c.h.b16 %v185
  %v994 = vunpack.c.l.b16 %v186
  %v995 = vunpack.c.h.b16 %v186
  %v996 = vunpack.c.l.b16 %v187
  %v997 = vunpack.c.h.b16 %v187
  %v998 = vunpack.c.l.b16 %v188
  %v999 = vunpack.c.h.b16 %v188
  %v1000 = vunpack.c.l.b16 %v189
  %v1001 = vunpack.c.h.b16 %v189
  %v1002 = vunpack.c.l.b16 %v190
  %v1003 = vunpack.c.h.b16 %v190
  %v1004 = vunpack.c.l.b16 %v191
  %v1005 = vunpack.c.h.b16 %v191
  %v1006 = vunpack.c.l.b16 %v192
  %v1007 = vunpack.c.h.b16 %v192
  %v1008 = vunpack.c.l.b16 %v193
  %v1009 = vunpack.c.h.b16 %v193
  %v1010 = vunpack.c.l.b16 %v194
  %v1011 = vunpack.c.h.b16 %v194
  %v1012 = vunpack.c.l.b16 %v195
  %v1013 = vunpack.c.h.b16 %v195
  %v1014 = vunpack.c.l.b16 %v196
  %v1015 = vunpack.c.h.b16 %v196
  %v1016 = vunpack.c.l.b16 %v197
  %v1017 = vunpack.c.h.b16 %v197
  %v1018 = vunpack.c.l.b16 %v198
  %v1019 = vunpack.c.h.b16 %v198
  %v1020 = vunpack.c.l.b16 %v199
  %v1021 = vunpack.c.h.b16 %v199
  %v1022 = vunpack.c.l.b16 %v200
  %v1023 = vunpack.c.h.b16 %v200
  %v1024 = vunpack.c.l.b16 %v201
  %v1025 = vunpack.c.h.b16 %v201
  %v1026 = vunpack.c.l.b16 %v202
  %v1027 = vunpack.c.h.b16 %v202
  %v1028 = vunpack.c.l.b16 %v203
  %v1029 = vunpack.c.h.b16 %v203
  %v1030 = vunpack.c.l.b16 %v204
  %v1031 = vunpack.c.h.b16 %v204
  %v1032 = vunpack.c.l.b16 %v205
  %v1033 = vunpack.c.h.b16 %v205
  %v1034 = vunpack.c.l.b16 %v206
  %v1035 = vunpack.c.h.b16 %v206
  %v1036 = vunpack.c.l.b16 %v207
  %v1037 = vunpack.c.h.b16 %v207
  %v1038 = vunpack.c.l.b16 %v208
  %v1039 = vunpack.c.h.b16 %v208
  %v1040 = vunpack.c.l.b16 %v209
  %v1041 = vunpack.c.h.b16 %v209
  %v1042 = vunpack.c.l.b16 %v210
  %v1043 = vunpack.c.h.b16 %v210
  %v1044 = vunpack.c.l.b16 %v211
  %v1045 = vunpack.c.h.b16 %v211
  %v1046 = vunpack.c.l.b16 %v212
  %v1047 = vunpack.c.h.b16 %v212
  %v1048 = vunpack.c.l.b16 %v213
  %v1049 = vunpack.c.h.b16 %v213
  %v1050 = vunpack.c.l.b16 %v214
  %v1051 = vunpack.c.h.b16 %v214
  %v1052 = vunpack.c.l.b16 %v215
  %v1053 = vunpack.c.h.b16 %v215
  %v1054 = vunpack.c.l.b16 %v216
  %v1055 = vunpack.c.h.b16 %v216
  %v1056 = vunpack.c.l.b16 %v217
  %v1057 = vunpack.c.h.b16 %v217
  %v1058 = vunpack.c.l.b16 %v218
  %v1059 = vunpack.c.h.b16 %v218
  %v1060 = vunpack.c.l.b16 %v219
  %v1061 = vunpack.c.h.b16 %v219
  %v1062 = vunpack.c.l.b16 %v220
  %v1063 = vunpack.c.h.b16 %v220
  %v1064 = vunpack.c.l.b16 %v221
  %v1065 = vunpack.c.h.b16 %v221
  %v1066 = vunpack.c.l.b16 %v222
  %v1067 = vunpack.c.h.b16 %v222
  %v1068 = vunpack.c.l.b16 %v223
  %v1069 = vunpack.c.h.b16 %v223
  %v1070 = vunpack.c.l.b16 %v224
  %v1071 = vunpack.c.h.b16 %v224
  %v1072 = vunpack.c.l.b16 %v225
  %v1073 = vunpack.c.h.b16 %v225
  %v1074 = vunpack.c.l.b16 %v226
  %v1075 = vunpack.c.h.b16 %v226
  %v1076 = vunpack.c.l.b16 %v227
  %v1077 = vunpack.c.h.b16 %v227
  %v1078 = vunpack.c.l.b16 %v228
  %v1079 = vunpack.c.h.b16 %v228
  %v1080 = vunpack.c.l.b16 %v229
  %v1081 = vunpack.c.h.b16 %v229
  %v1082 = vunpack.c.l.b16 %v230
  %v1083 = vunpack.c.h.b16 %v230
  %v1084 = vunpack.c.l.b16 %v231
  %v1085 = vunpack.c.h.b16 %v231
  %v1086 = vunpack.c.l.b16 %v232
  %v1087 = vunpack.c.h.b16 %v232
  %v1088 = vunpack.c.l.b16 %v233
  %v1089 = vunpack.c.h.b16 %v233
  %v1090 = vunpack.c.l.b16 %v234
  %v1091 = vunpack.c.h.b16 %v234
  %v1092 = vunpack.c.l.b16 %v235
  %v1093 = vunpack.c.h.b16 %v235
  %v1094 = vunpack.c.l.b16 %v236
  %v1095 = vunpack.c.h.b16 %v236
  %v1096 = vunpack.c.l.b16 %v237
  %v1097 = vunpack.c.h.b16 %v237
  %v1098 = vunpack.c.l.b16 %v238
  %v1099 = vunpack.c.h.b16 %v238
  %v1100 = vunpack.c.l.b16 %v239
  %v1101 = vunpack.c.h.b16 %v239
  %v1102 = vunpack.c.l.b16 %v240
  %v1103 = vunpack.c.h.b16 %v240
  %v1104 = vunpack.c.l.b16 %v241
  %v1105 = vunpack.c.h.b16 %v241
  %v1106 = vunpack.c.l.b16 %v242
  %v1107 = vunpack.c.h.b16 %v242
  %v1108 = vunpack.c.l.b16 %v243
  %v1109 = vunpack.c.h.b16 %v243
  %v1110 = vunpack.c.l.b16 %v244
  %v1111 = vunpack.c.h.b16 %v244
  %v1112 = vunpack.c.l.b16 %v245
  %v1113 = vunpack.c.h.b16 %v245
  %v1114 = vunpack.c.l.b16 %v246
  %v1115 = vunpack.c.h.b16 %v246
  %v1116 = vunpack.c.l.b16 %v247
  %v1117 = vunpack.c.h.b16 %v247
  %v1118 = vunpack.c.l.b16 %v248
  %v1119 = vunpack.c.h.b16 %v248
  %v1120 = vunpack.c.l.b16 %v249
  %v1121 = vunpack.c.h.b16 %v249
  %v1122 = vunpack.c.l.b16 %v250
  %v1123 = vunpack.c.h.b16 %v250
  %v1124 = vunpack.c.l.b16 %v251
  %v1125 = vunpack.c.h.b16 %v251
  %v1126 = vunpack.c.l.b16 %v252
  %v1127 = vunpack.c.h.b16 %v252
  %v1128 = vunpack.c.l.b16 %v253
  %v1129 = vunpack.c.h.b16 %v253
  %v1130 = vunpack.c.l.b16 %v254
  %v1131 = vunpack.c.h.b16 %v254
  %v1132 = vunpack.c.l.b16 %v255
  %v1133 = vunpack.c.h.b16 %v255
  %v1134 = vunpack.c.l.b16 %v256
  %v1135 = vunpack.c.h.b16 %v256
  %v1136 = vunpack.c.l.b16 %v257
  %v1137 = vunpack.c.h.b16 %v257
  %v1138 = vunpack.c.l.b16 %v258
  %v1139 = vunpack.c.h.b16 %v258
  %v1140 = vunpack.c.l.b16 %v259
  %v1141 = vunpack.c.h.b16 %v259
  %v1142 = vunpack.c.l.b16 %v260
  %v1143 = vunpack.c.h.b16 %v260
  %v1144 = vunpack.c.l.b16 %v261
  %v1145 = vunpack.c.h.b16 %v261
  %v1146 = vunpack.c.l.b16 %v262
  %v1147 = vunpack.c.h.b16 %v262
  %v1148 = vunpack.c.l.b16 %v263
  %v1149 = vunpack.c.h.b16 %v263
  %v1150 = vunpack.c.l.b16 %v264
  %v1151 = vunpack.c.h.b16 %v264
  %v1152 = vunpack.c.l.b16 %v265
  %v1153 = vunpack.c.h.b16 %v265
  %v1154 = vunpack.c.l.b16 %v266
  %v1155 = vunpack.c.h.b16 %v266
  %v1156 = vunpack.c.l.b16 %v267
  %v1157 = vunpack.c.h.b16 %v267
  %v1158 = vunpack.c.l.b16 %v268
  %v1159 = vunpack.c.h.b16 %v268
  %v1160 = vunpack.c.l.b16 %v269
  %v1161 = vunpack.c.h.b16 %v269
  %v1162 = vunpack.c.l.b16 %v270
  %v1163 = vunpack.c.h.b16 %v270
  %v1164 = vunpack.c.l.b16 %v271
  %v1165 = vunpack.c.h.b16 %v271
  %v1166 = vunpack.c.l.b16 %v272
  %v1167 = vunpack.c.h.b16 %v272
  %v1168 = vunpack.c.l.b16 %v273
  %v1169 = vunpack.c.h.b16 %v273
  %v1170 = vunpack.c.l.b16 %v274
  %v1171 = vunpack.c.h.b16 %v274
  %v1172 = vunpack.c.l.b16 %v275
  %v1173 = vunpack.c.h.b16 %v275
  %v1174 = vunpack.c.l.b16 %v276
  %v1175 = vunpack.c.h.b16 %v276
  %v1176 = vunpack.c.l.b16 %v277
  %v1177 = vunpack.c.h.b16 %v277
  %v1178 = vunpack.c.l.b16 %v278
  %v1179 = vunpack.c.h.b16 %v278
  %v1180 = vunpack.c.l.b16 %v279
  %v1181 = vunpack.c.h.b16 %v279
  %v1182 = vunpack.c.l.b16 %v280
  %v1183 = vunpack.c.h.b16 %v280
  %v1184 = vunpack.c.l.b16 %v281
  %v1185 = vunpack.c.h.b16 %v281
  %v1186 = vunpack.c.l.b16 %v282
  %v1187 = vunpack.c.h.b16 %v282
  %v1188 = vunpack.c.l.b16 %v283
  %v1189 = vunpack.c.h.b16 %v283
  %v1190 = vunpack.c.l.b16 %v284
  %v1191 = vunpack.c.h.b16 %v284
  %v1192 = vunpack.c.l.b16 %v285
  %v1193 = vunpack.c.h.b16 %v285
  %v1194 = vunpack.c.l.b16 %v286
  %v1195 = vunpack.c.h.b16 %v286
  %v1196 = vunpack.c.l.b16 %v287
  %v1197 = vunpack.c.h.b16 %v287
  %v1198 = vunpack.c.l.b16 %v288
  %v1199 = vunpack.c.h.b16 %v288
  %v1200 = vunpack.c.l.b16 %v289
  %v1201 = vunpack.c.h.b16 %v289
  %v1202 = vunpack.c.l.b16 %v290
  %v1203 = vunpack.c.h.b16 %v290
  %v1204 = vunpack.c.l.b16 %v291
  %v1205 = vunpack.c.h.b16 %v291
  %v1206 = vunpack.c.l.b16 %v292
  %v1207 = vunpack.c.h.b16 %v292
  %v1208 = vunpack.c.l.b16 %v293
  %v1209 = vunpack.c.h.b16 %v293
  %v1210 = vpack.c.b16 %v700, %v698
  %v1211 = vpack.c.b16 %v701, %v699
  %v1212 = vpack.c.b16 %v704, %v702
  %v1213 = vpack.c.b16 %v705, %v703
  %v1214 = vpack.c.b16 %v708, %v706
  %v1215 = vpack.c.b16 %v709, %v707
  %v1216 = vpack.c.b16 %v712, %v710
  %v1217 = vpack.c.b16 %v713, %v711
  %v1218 = vpack.c.b16 %v716, %v714
  %v1219 = vpack.c.b16 %v717, %v715
  %v1220 = vpack.c.b16 %v720, %v718
  %v1221 = vpack.c.b16 %v721, %v719
  %v1222 = vpack.c.b16 %v724, %v722
  %v1223 = vpack.c.b16 %v725, %v723
  %v1224 = vpack.c.b16 %v728, %v726
  %v1225 = vpack.c.b16 %v729, %v727
  %v1226 = vpack.c.b16 %v732, %v730
  %v1227 = vpack.c.b16 %v733, %v731
  %v1228 = vpack.c.b16 %v736, %v734
  %v1229 = vpack.c.b16 %v737, %v735
  %v1230 = vpack.c.b16 %v740, %v738
  %v1231 = vpack.c.b16 %v741, %v739
  %v1232 = vpack.c.b16 %v744, %v742
  %v1233 = vpack.c.b16 %v745, %v743
  %v1234 = vpack.c.b16 %v748, %v746
  %v1235 = vpack.c.b16 %v749, %v747
  %v1236 = vpack.c.b16 %v752, %v750
  %v1237 = vpack.c.b16 %v753, %v751
  %v1238 = vpack.c.b16 %v756, %v754
  %v1239 = vpack.c.b16 %v757, %v755
  %v1240 = vpack.c.b16 %v760, %v758
  %v1241 = vpack.c.b16 %v761, %v759
  %v1242 = vpack.c.b16 %v764, %v762
  %v1243 = vpack.c.b16 %v765, %v763
  %v1244 = vpack.c.b16 %v768, %v766
  %v1245 = vpack.c.b16 %v769, %v767
  %v1246 = vpack.c.b16 %v772, %v770
  %v1247 = vpack.c.b16 %v773, %v771
  %v1248 = vpack.c.b16 %v776, %v774
  %v1249 = vpack.c.b16 %v777, %v775
  %v1250 = vpack.c.b16 %v780, %v778
  %v1251 = vpack.c.b16 %v781, %v779
  %v1252 = vpack.c.b16 %v784, %v782
  %v1253 = vpack.c.b16 %v785, %v783
  %v1254 = vpack.c.b16 %v788, %v786
  %v1255 = vpack.c.b16 %v789, %v787
  %v1256 = vpack.c.b16 %v792, %v790
  %v1257 = vpack.c.b16 %v793, %v791
  %v1258 = vpack.c.b16 %v796, %v794
  %v1259 = vpack.c.b16 %v797, %v795
  %v1260 = vpack.c.b16 %v800, %v798
  %v1261 = vpack.c.b16 %v801, %v799
  %v1262 = vpack.c.b16 %v804, %v802
  %v1263 = vpack.c.b16 %v805, %v803
  %v1264 = vpack.c.b16 %v808, %v806
  %v1265 = vpack.c.b16 %v809, %v807
  %v1266 = vpack.c.b16 %v812, %v810
  %v1267 = vpack.c.b16 %v813, %v811
  %v1268 = vpack.c.b16 %v816, %v814
  %v1269 = vpack.c.b16 %v817, %v815
  %v1270 = vpack.c.b16 %v820, %v818
  %v1271 = vpack.c.b16 %v821, %v819
  %v1272 = vpack.c.b16 %v824, %v822
  %v1273 = vpack.c.b16 %v825, %v823
  %v1274 = vpack.c.b16 %v828, %v826
  %v1275 = vpack.c.b16 %v829, %v827
  %v1276 = vpack.c.b16 %v832, %v830
  %v1277 = vpack.c.b16 %v833, %v831
  %v1278 = vpack.c.b16 %v836, %v834
  %v1279 = vpack.c.b16 %v837, %v835
  %v1280 = vpack.c.b16 %v840, %v838
  %v1281 = vpack.c.b16 %v841, %v839
  %v1282 = vpack.c.b16 %v844, %v842
  %v1283 = vpack.c.b16 %v845, %v843
  %v1284 = vpack.c.b16 %v848, %v846
  %v1285 = vpack.c.b16 %v849, %v847
  %v1286 = vpack.c.b16 %v852, %v850
  %v1287 = vpack.c.b16 %v853, %v851
  %v1288 = vpack.c.b16 %v856, %v854
  %v1289 = vpack.c.b16 %v857, %v855
  %v1290 = vpack.c.b16 %v860, %v858
  %v1291 = vpack.c.b16 %v861, %v859
  %v1292 = vpack.c.b16 %v864, %v862
  %v1293 = vpack.c.b16 %v865, %v863
  %v1294 = vpack.c.b16 %v868, %v866
  %v1295 = vpack.c.b16 %v869, %v867
  %v1296 = vpack.c.b16 %v872, %v870
  %v1297 = vpack.c.b16 %v873, %v871
  %v1298 = vpack.c.b16 %v876, %v874
  %v1299 = vpack.c.b16 %v877, %v875
  %v1300 = vpack.c.b16 %v880, %v878
  %v1301 = vpack.c.b16 %v881, %v879
  %v1302 = vpack.c.b16 %v884, %v882
  %v1303 = vpack.c.b16 %v885, %v883
  %v1304 = vpack.c.b16 %v888, %v886
  %v1305 = vpack.c.b16 %v889, %v887
  %v1306 = vpack.c.b16 %v892, %v890
  %v1307 = vpack.c.b16 %v893, %v891
  %v1308 = vpack.c.b16 %v896, %v894
  %v1309 = vpack.c.b16 %v897, %v895
  %v1310 = vpack.c.b16 %v900, %v898
  %v1311 = vpack.c.b16 %v901, %v899
  %v1312 = vpack.c.b16 %v904, %v902
  %v1313 = vpack.c.b16 %v905, %v903
  %v1314 = vpack.c.b16 %v908, %v906
  %v1315 = vpack.c.b16 %v909, %v907
  %v1316 = vpack.c.b16 %v912, %v910
  %v1317 = vpack.c.b16 %v913, %v911
  %v1318 = vpack.c.b16 %v916, %v914
  %v1319 = vpack.c.b16 %v917, %v915
  %v1320 = vpack.c.b16 %v920, %v918
  %v1321 = vpack.c.b16 %v921, %v919
  %v1322 = vpack.c.b16 %v924, %v922
  %v1323 = vpack.c.b16 %v925, %v923
  %v1324 = vpack.c.b16 %v928, %v926
  %v1325 = vpack.c.b16 %v929, %v927
  %v1326 = vpack.c.b16 %v932, %v930
  %v1327 = vpack.c.b16 %v933, %v931
  %v1328 = vpack.c.b16 %v936, %v934
  %v1329 = vpack.c.b16 %v937, %v935
  %v1330 = vpack.c.b16 %v940, %v938
  %v1331 = vpack.c.b16 %v941, %v939
  %v1332 = vpack.c.b16 %v944, %v942
  %v1333 = vpack.c.b16 %v945, %v943
  %v1334 = vpack.c.b16 %v948, %v946
  %v1335 = vpack.c.b16 %v949, %v947
  %v1336 = vpack.c.b16 %v952, %v950
  %v1337 = vpack.c.b16 %v953, %v951
  %v1338 = vpack.c.b16 %v956, %v954
  %v1339 = vpack.c.b16 %v957, %v955
  %v1340 = vpack.c.b16 %v960, %v958
  %v1341 = vpack.c.b16 %v961, %v959
  %v1342 = vpack.c.b16 %v964, %v962
  %v1343 = vpack.c.b16 %v965, %v963
  %v1344 = vpack.c.b16 %v968, %v966
  %v1345 = vpack.c.b16 %v969, %v967
  %v1346 = vpack.c.b16 %v972, %v970
  %v1347 = vpack.c.b16 %v973, %v971
  %v1348 = vpack.c.b16 %v976, %v974
  %v1349 = vpack.c.b16 %v977, %v975
  %v1350 = vpack.c.b16 %v980, %v978
  %v1351 = vpack.c.b16 %v981, %v979
  %v1352 = vpack.c.b16 %v984, %v982
  %v1353 = vpack.c.b16 %v985, %v983
  %v1354 = vpack.c.b16 %v988, %v986
  %v1355 = vpack.c.b16 %v989, %v987
  %v1356 = vpack.c.b16 %v992, %v990
  %v1357 = vpack.c.b16 %v993, %v991
  %v1358 = vpack.c.b16 %v996, %v994
  %v1359 = vpack.c.b16 %v997, %v995
  %v1360 = vpack.c.b16 %v1000, %v998
  %v1361 = vpack.c.b16 %v1001, %v999
  %v1362 = vpack.c.b16 %v1004, %v1002
  %v1363 = vpack.c.b16 %v1005, %v1003
  %v1364 = vpack.c.b16 %v1008, %v1006
  %v1365 = vpack.c.b16 %v1009, %v1007
  %v1366 = vpack.c.b16 %v1012, %v1010
  %v1367 = vpack.c.b16 %v1013, %v1011
  %v1368 = vpack.c.b16 %v1016, %v1014
  %v1369 = vpack.c.b16 %v1017, %v1015
  %v1370 = vpack.c.b16 %v1020, %v1018
  %v1371 = vpack.c.b16 %v1021, %v1019
  %v1372 = vpack.c.b16 %v1024, %v1022
  %v1373 = vpack.c.b16 %v1025, %v1023
  %v1374 = vpack.c.b16 %v1028, %v1026
  %v1375 = vpack.c.b16 %v1029, %v1027
  %v1376 = vpack.c.b16 %v1032, %v1030
  %v1377 = vpack.c.b16 %v1033, %v1031
  %v1378 = vpack.c.b16 %v1036, %v1034
  %v1379 = vpack.c.b16 %v1037, %v1035
  %v1380 = vpack.c.b16 %v1040, %v1038
  %v1381 = vpack.c.b16 %v1041, %v1039
  %v1382 = vpack.c.b16 %v1044, %v1042
  %v1383 = vpack.c.b16 %v1045, %v1043
  %v1384 = vpack.c.b16 %v1048, %v1046
  %v1385 = vpack.c.b16 %v1049, %v1047
  %v1386 = vpack.c.b16 %v1052, %v1050
  %v1387 = vpack.c.b16 %v1053, %v1051
  %v1388 = vpack.c.b16 %v1056, %v1054
  %v1389 = vpack.c.b16 %v1057, %v1055
  %v1390 = vpack.c.b16 %v1060, %v1058
  %v1391 = vpack.c.b16 %v1061, %v1059
  %v1392 = vpack.c.b16 %v1064, %v1062
  %v1393 = vpack.c.b16 %v1065, %v1063
  %v1394 = vpack.c.b16 %v1068, %v1066
  %v1395 = vpack.c.b16 %v1069, %v1067
  %v1396 = vpack.c.b16 %v1072, %v1070
  %v1397 = vpack.c.b16 %v1073, %v1071
  %v1398 = vpack.c.b16 %v1076, %v1074
  %v1399 = vpack.c.b16 %v1077, %v1075
  %v1400 = vpack.c.b16 %v1080, %v1078
  %v1401 = vpack.c.b16 %v1081, %v1079
  %v1402 = vpack.c.b16 %v1084, %v1082
  %v1403 = vpack.c.b16 %v1085, %v1083
  %v1404 = vpack.c.b16 %v1088, %v1086
  %v1405 = vpack.c.b16 %v1089, %v1087
  %v1406 = vpack.c.b16 %v1092, %v1090
  %v1407 = vpack.c.b16 %v1093, %v1091
  %v1408 = vpack.c.b16 %v1096, %v1094
  %v1409 = vpack.c.b16 %v1097, %v1095
  %v1410 = vpack.c.b16 %v1100, %v1098
  %v1411 = vpack.c.b16 %v1101, %v1099
  %v1412 = vpack.c.b16 %v1104, %v1102
  %v1413 = vpack.c.b16 %v1105, %v1103
  %v1414 = vpack.c.b16 %v1108, %v1106
  %v1415 = vpack.c.b16 %v1109, %v1107
  %v1416 = vpack.c.b16 %v1112, %v1110
  %v1417 = vpack.c.b16 %v1113, %v1111
  %v1418 = vpack.c.b16 %v1116, %v1114
  %v1419 = vpack.c.b16 %v1117, %v1115
  %v1420 = vpack.c.b16 %v1120, %v1118
  %v1421 = vpack.c.b16 %v1121, %v1119
  %v1422 = vpack.c.b16 %v1124, %v1122
  %v1423 = vpack.c.b16 %v1125, %v1123
  %v1424 = vpack.c.b16 %v1128, %v1126
  %v1425 = vpack.c.b16 %v1129, %v1127
  %v1426 = vpack.c.b16 %v1132, %v1130
  %v1427 = vpack.c.b16 %v1133, %v1131
  %v1428 = vpack.c.b16 %v1136, %v1134
  %v1429 = vpack.c.b16 %v1137, %v1135
  %v1430 = vpack.c.b16 %v1140, %v1138
  %v1431 = vpack.c.b16 %v1141, %v1139
  %v1432 = vpack.c.b16 %v1144, %v1142
  %v1433 = vpack.c.b16 %v1145, %v1143
  %v1434 = vpack.c.b16 %v1148, %v1146
  %v1435 = vpack.c.b16 %v1149, %v1147
  %v1436 = vpack.c.b16 %v1152, %v1150
  %v1437 = vpack.c.b16 %v1153, %v1151
  %v1438 = vpack.c.b16 %v1156, %v1154
  %v1439 = vpack.c.b16 %v1157, %v1155
  %v1440 = vpack.c.b16 %v1160, %v1158
  %v1441 = vpack.c.b16 %v1161, %v1159
  %v1442 = vpack.c.b16 %v1164, %v1162
  %v1443 = vpack.c.b16 %v1165, %v1163
  %v1444 = vpack.c.b16 %v1168, %v1166
  %v1445 = vpack.c.b16 %v1169, %v1167
  %v1446 = vpack.c.b16 %v1172, %v1170
  %v1447 = vpack.c.b16 %v1173, %v1171
  %v1448 = vpack.c.b16 %v1176, %v1174
  %v1449 = vpack.c.b16 %v1177, %v1175
  %v1450 = vpack.c.b16 %v1180, %v1178
  %v1451 = vpack.c.b16 %v1181, %v1179
  %v1452 = vpack.c.b16 %v1184, %v1182
  %v1453 = vpack.c.b16 %v1185, %v1183
  %v1454 = vpack.c.b16 %v1188, %v1186
  %v1455 = vpack.c.b16 %v1189, %v1187
  %v1456 = vpack.c.b16 %v1192, %v1190
  %v1457 = vpack.c.b16 %v1193, %v1191
  %v1458 = vpack.c.b16 %v1196, %v1194
  %v1459 = vpack.c.b16 %v1197, %v1195
  %v1460 = vpack.c.b16 %v1200, %v1198
  %v1461 = vpack.c.b16 %v1201, %v1199
  %v1462 = vpack.c.b16 %v1204, %v1202
  %v1463 = vpack.c.b16 %v1205, %v1203
  %v1464 = vpack.c.b16 %v1208, %v1206
  %v1465 = vpack.c.b16 %v1209, %v1207
  %1722 = vmatprep.subr.bf16.mxu0 %v1211
  %1723 = vmatpush1.bf16.msra.mxu0 %v1210
  %1724 = vmatprep.subr.bf16.mxu0 %v1213
  %1725 = vmatpush1.bf16.msra.mxu0 %v1212
  %1726 = vmatprep.subr.bf16.mxu0 %v1215
  %1727 = vmatpush1.bf16.msra.mxu0 %v1214
  %1728 = vmatprep.subr.bf16.mxu0 %v1217
  %1729 = vmatpush1.bf16.msra.mxu0 %v1216
  %1730 = vmatprep.subr.bf16.mxu0 %v1219
  %1731 = vmatpush1.bf16.msra.mxu0 %v1218
  %1732 = vmatprep.subr.bf16.mxu0 %v1221
  %1733 = vmatpush1.bf16.msra.mxu0 %v1220
  %1734 = vmatprep.subr.bf16.mxu0 %v1223
  %1735 = vmatpush1.bf16.msra.mxu0 %v1222
  %1736 = vmatprep.subr.bf16.mxu0 %v1225
  %1737 = vmatpush1.bf16.msra.mxu0 %v1224
  %1738 = vmatprep.subr.bf16.mxu0 %v1227
  %1739 = vmatpush1.bf16.msra.mxu0 %v1226
  %1740 = vmatprep.subr.bf16.mxu0 %v1229
  %1741 = vmatpush1.bf16.msra.mxu0 %v1228
  %1742 = vmatprep.subr.bf16.mxu0 %v1231
  %1743 = vmatpush1.bf16.msra.mxu0 %v1230
  %1744 = vmatprep.subr.bf16.mxu0 %v1233
  %1745 = vmatpush1.bf16.msra.mxu0 %v1232
  %1746 = vmatprep.subr.bf16.mxu0 %v1235
  %1747 = vmatpush1.bf16.msra.mxu0 %v1234
  %1748 = vmatprep.subr.bf16.mxu0 %v1237
  %1749 = vmatpush1.bf16.msra.mxu0 %v1236
  %1750 = vmatprep.subr.bf16.mxu0 %v1239
  %1751 = vmatpush1.bf16.msra.mxu0 %v1238
  %1752 = vmatprep.subr.bf16.mxu0 %v1241
  %1753 = vmatpush1.bf16.msra.mxu0 %v1240
  %1754 = vmatprep.mubr.bf16.mxu0 %v379
  %1755 = vmatmul.mubr.bf16.gmra.mrb[0].mxu0 %v378
  %v1756 = vpop.f32.mrb[0].mxu0
  %v1757 = vadd.f32 %v299, %v1756
  %v1758 = vpop.f32.mrb[0].mxu0
  %v1759 = vadd.f32 %v303, %v1758
  %v1760 = vpop.f32.mrb[0].mxu0
  %v1761 = vadd.f32 %v299, %v1760
  %v1762 = vpop.f32.mrb[0].mxu0
  %v1763 = vadd.f32 %v303, %v1762
  %1764 = vmatprep.mubr.bf16.mxu0 %v395
  %1765 = vmatmul.mubr.bf16.gmra.mrb[0].mxu0 %v394
  %v1766 = vpop.f32.mrb[0].mxu0
  %v1767 = vadd.f32 %v299, %v1766
  %v1768 = vpop.f32.mrb[0].mxu0
  %v1769 = vadd.f32 %v303, %v1768
  %v1770 = vpop.f32.mrb[0].mxu0
  %v1771 = vpop.f32.mrb[0].mxu0
  %1772 = vdwg.mxu0
  %1773 = vmatprep.subr.bf16.mxu0 %v1243
  %1774 = vmatpush1.bf16.msra.mxu0 %v1242
  %1775 = vmatprep.subr.bf16.mxu0 %v1245
  %1776 = vmatpush1.bf16.msra.mxu0 %v1244
  %1777 = vmatprep.subr.bf16.mxu0 %v1247
  %1778 = vmatpush1.bf16.msra.mxu0 %v1246
  %1779 = vmatprep.subr.bf16.mxu0 %v1249
  %1780 = vmatpush1.bf16.msra.mxu0 %v1248
  %1781 = vmatprep.subr.bf16.mxu0 %v1251
  %1782 = vmatpush1.bf16.msra.mxu0 %v1250
  %1783 = vmatprep.subr.bf16.mxu0 %v1253
  %1784 = vmatpush1.bf16.msra.mxu0 %v1252
  %1785 = vmatprep.subr.bf16.mxu0 %v1255
  %1786 = vmatpush1.bf16.msra.mxu0 %v1254
  %1787 = vmatprep.subr.bf16.mxu0 %v1257
  %1788 = vmatpush1.bf16.msra.mxu0 %v1256
  %1789 = vmatprep.subr.bf16.mxu0 %v1259
  %1790 = vmatpush1.bf16.msra.mxu0 %v1258
  %1791 = vmatprep.subr.bf16.mxu0 %v1261
  %1792 = vmatpush1.bf16.msra.mxu0 %v1260
  %1793 = vmatprep.subr.bf16.mxu0 %v1263
  %1794 = vmatpush1.bf16.msra.mxu0 %v1262
  %1795 = vmatprep.subr.bf16.mxu0 %v1265
  %1796 = vmatpush1.bf16.msra.mxu0 %v1264
  %1797 = vmatprep.subr.bf16.mxu0 %v1267
  %1798 = vmatpush1.bf16.msra.mxu0 %v1266
  %1799 = vmatprep.subr.bf16.mxu0 %v1269
  %1800 = vmatpush1.bf16.msra.mxu0 %v1268
  %1801 = vmatprep.subr.bf16.mxu0 %v1271
  %1802 = vmatpush1.bf16.msra.mxu0 %v1270
  %1803 = vmatprep.subr.bf16.mxu0 %v1273
  %1804 = vmatpush1.bf16.msra.mxu0 %v1272
  %1805 = vmatprep.mubr.bf16.mxu0 %v381
  %1806 = vmatmul.mubr.bf16.gmra.mrb[0].mxu0 %v380
  %v1807 = vpop.f32.mrb[0].mxu0
  %v1808 = vadd.f32 %v1757, %v1807
  %v1809 = vpop.f32.mrb[0].mxu0
  %v1810 = vadd.f32 %v1759, %v1809
  %v1811 = vpop.f32.mrb[0].mxu0
  %v1812 = vadd.f32 %v1761, %v1811
  %v1813 = vpop.f32.mrb[0].mxu0
  %v1814 = vadd.f32 %v1763, %v1813
  %1815 = vmatprep.mubr.bf16.mxu0 %v397
  %1816 = vmatmul.mubr.bf16.gmra.mrb[0].mxu0 %v396
  %v1817 = vpop.f32.mrb[0].mxu0
  %v1818 = vadd.f32 %v1767, %v1817
  %v1819 = vpop.f32.mrb[0].mxu0
  %v1820 = vadd.f32 %v1769, %v1819
  %v1821 = vpop.f32.mrb[0].mxu0
  %v1822 = vpop.f32.mrb[0].mxu0
  %1823 = vdwg.mxu0
  %1824 = vmatprep.subr.bf16.mxu0 %v1275
  %1825 = vmatpush1.bf16.msra.mxu0 %v1274
  %1826 = vmatprep.subr.bf16.mxu0 %v1277
  %1827 = vmatpush1.bf16.msra.mxu0 %v1276
  %1828 = vmatprep.subr.bf16.mxu0 %v1279
  %1829 = vmatpush1.bf16.msra.mxu0 %v1278
  %1830 = vmatprep.subr.bf16.mxu0 %v1281
  %1831 = vmatpush1.bf16.msra.mxu0 %v1280
  %1832 = vmatprep.subr.bf16.mxu0 %v1283
  %1833 = vmatpush1.bf16.msra.mxu0 %v1282
  %1834 = vmatprep.subr.bf16.mxu0 %v1285
  %1835 = vmatpush1.bf16.msra.mxu0 %v1284
  %1836 = vmatprep.subr.bf16.mxu0 %v1287
  %1837 = vmatpush1.bf16.msra.mxu0 %v1286
  %1838 = vmatprep.subr.bf16.mxu0 %v1289
  %1839 = vmatpush1.bf16.msra.mxu0 %v1288
  %1840 = vmatprep.subr.bf16.mxu0 %v1291
  %1841 = vmatpush1.bf16.msra.mxu0 %v1290
  %1842 = vmatprep.subr.bf16.mxu0 %v1293
  %1843 = vmatpush1.bf16.msra.mxu0 %v1292
  %1844 = vmatprep.subr.bf16.mxu0 %v1295
  %1845 = vmatpush1.bf16.msra.mxu0 %v1294
  %1846 = vmatprep.subr.bf16.mxu0 %v1297
  %1847 = vmatpush1.bf16.msra.mxu0 %v1296
  %1848 = vmatprep.subr.bf16.mxu0 %v1299
  %1849 = vmatpush1.bf16.msra.mxu0 %v1298
  %1850 = vmatprep.subr.bf16.mxu0 %v1301
  %1851 = vmatpush1.bf16.msra.mxu0 %v1300
  %1852 = vmatprep.subr.bf16.mxu0 %v1303
  %1853 = vmatpush1.bf16.msra.mxu0 %v1302
  %1854 = vmatprep.subr.bf16.mxu0 %v1305
  %1855 = vmatpush1.bf16.msra.mxu0 %v1304
  %1856 = vmatprep.mubr.bf16.mxu0 %v383
  %1857 = vmatmul.mubr.bf16.gmra.mrb[0].mxu0 %v382
  %v1858 = vpop.f32.mrb[0].mxu0
  %v1859 = vadd.f32 %v1808, %v1858
  %v1860 = vpop.f32.mrb[0].mxu0
  %v1861 = vadd.f32 %v1810, %v1860
  %v1862 = vpop.f32.mrb[0].mxu0
  %v1863 = vadd.f32 %v1812, %v1862
  %v1864 = vpop.f32.mrb[0].mxu0
  %v1865 = vadd.f32 %v1814, %v1864
  %1866 = vmatprep.mubr.bf16.mxu0 %v399
  %1867 = vmatmul.mubr.bf16.gmra.mrb[0].mxu0 %v398
  %v1868 = vpop.f32.mrb[0].mxu0
  %v1869 = vadd.f32 %v1818, %v1868
  %v1870 = vpop.f32.mrb[0].mxu0
  %v1871 = vadd.f32 %v1820, %v1870
  %v1872 = vpop.f32.mrb[0].mxu0
  %v1873 = vpop.f32.mrb[0].mxu0
  %1874 = vdwg.mxu0
  %1875 = vmatprep.subr.bf16.mxu0 %v1307
  %1876 = vmatpush1.bf16.msra.mxu0 %v1306
  %1877 = vmatprep.subr.bf16.mxu0 %v1309
  %1878 = vmatpush1.bf16.msra.mxu0 %v1308
  %1879 = vmatprep.subr.bf16.mxu0 %v1311
  %1880 = vmatpush1.bf16.msra.mxu0 %v1310
  %1881 = vmatprep.subr.bf16.mxu0 %v1313
  %1882 = vmatpush1.bf16.msra.mxu0 %v1312
  %1883 = vmatprep.subr.bf16.mxu0 %v1315
  %1884 = vmatpush1.bf16.msra.mxu0 %v1314
  %1885 = vmatprep.subr.bf16.mxu0 %v1317
  %1886 = vmatpush1.bf16.msra.mxu0 %v1316
  %1887 = vmatprep.subr.bf16.mxu0 %v1319
  %1888 = vmatpush1.bf16.msra.mxu0 %v1318
  %1889 = vmatprep.subr.bf16.mxu0 %v1321
  %1890 = vmatpush1.bf16.msra.mxu0 %v1320
  %1891 = vmatprep.subr.bf16.mxu0 %v1323
  %1892 = vmatpush1.bf16.msra.mxu0 %v1322
  %1893 = vmatprep.subr.bf16.mxu0 %v1325
  %1894 = vmatpush1.bf16.msra.mxu0 %v1324
  %1895 = vmatprep.subr.bf16.mxu0 %v1327
  %1896 = vmatpush1.bf16.msra.mxu0 %v1326
  %1897 = vmatprep.subr.bf16.mxu0 %v1329
  %1898 = vmatpush1.bf16.msra.mxu0 %v1328
  %1899 = vmatprep.subr.bf16.mxu0 %v1331
  %1900 = vmatpush1.bf16.msra.mxu0 %v1330
  %1901 = vmatprep.subr.bf16.mxu0 %v1333
  %1902 = vmatpush1.bf16.msra.mxu0 %v1332
  %1903 = vmatprep.subr.bf16.mxu0 %v1335
  %1904 = vmatpush1.bf16.msra.mxu0 %v1334
  %1905 = vmatprep.subr.bf16.mxu0 %v1337
  %1906 = vmatpush1.bf16.msra.mxu0 %v1336
  %1907 = vmatprep.mubr.bf16.mxu0 %v385
  %1908 = vmatmul.mubr.bf16.gmra.mrb[0].mxu0 %v384
  %v1909 = vpop.f32.mrb[0].mxu0
  %v1910 = vadd.f32 %v1859, %v1909
  %v1911 = vpop.f32.mrb[0].mxu0
  %v1912 = vadd.f32 %v1861, %v1911
  %v1913 = vpop.f32.mrb[0].mxu0
  %v1914 = vadd.f32 %v1863, %v1913
  %v1915 = vpop.f32.mrb[0].mxu0
  %v1916 = vadd.f32 %v1865, %v1915
  %1917 = vmatprep.mubr.bf16.mxu0 %v401
  %1918 = vmatmul.mubr.bf16.gmra.mrb[0].mxu0 %v400
  %v1919 = vpop.f32.mrb[0].mxu0
  %v1920 = vadd.f32 %v1869, %v1919
  %v1921 = vpop.f32.mrb[0].mxu0
  %v1922 = vadd.f32 %v1871, %v1921
  %v1923 = vpop.f32.mrb[0].mxu0
  %v1924 = vpop.f32.mrb[0].mxu0
  %1925 = vdwg.mxu0
  %1926 = vmatprep.subr.bf16.mxu0 %v1339
  %1927 = vmatpush1.bf16.msra.mxu0 %v1338
  %1928 = vmatprep.subr.bf16.mxu0 %v1341
  %1929 = vmatpush1.bf16.msra.mxu0 %v1340
  %1930 = vmatprep.subr.bf16.mxu0 %v1343
  %1931 = vmatpush1.bf16.msra.mxu0 %v1342
  %1932 = vmatprep.subr.bf16.mxu0 %v1345
  %1933 = vmatpush1.bf16.msra.mxu0 %v1344
  %1934 = vmatprep.subr.bf16.mxu0 %v1347
  %1935 = vmatpush1.bf16.msra.mxu0 %v1346
  %1936 = vmatprep.subr.bf16.mxu0 %v1349
  %1937 = vmatpush1.bf16.msra.mxu0 %v1348
  %1938 = vmatprep.subr.bf16.mxu0 %v1351
  %1939 = vmatpush1.bf16.msra.mxu0 %v1350
  %1940 = vmatprep.subr.bf16.mxu0 %v1353
  %1941 = vmatpush1.bf16.msra.mxu0 %v1352
  %1942 = vmatprep.subr.bf16.mxu0 %v1355
  %1943 = vmatpush1.bf16.msra.mxu0 %v1354
  %1944 = vmatprep.subr.bf16.mxu0 %v1357
  %1945 = vmatpush1.bf16.msra.mxu0 %v1356
  %1946 = vmatprep.subr.bf16.mxu0 %v1359
  %1947 = vmatpush1.bf16.msra.mxu0 %v1358
  %1948 = vmatprep.subr.bf16.mxu0 %v1361
  %1949 = vmatpush1.bf16.msra.mxu0 %v1360
  %1950 = vmatprep.subr.bf16.mxu0 %v1363
  %1951 = vmatpush1.bf16.msra.mxu0 %v1362
  %1952 = vmatprep.subr.bf16.mxu0 %v1365
  %1953 = vmatpush1.bf16.msra.mxu0 %v1364
  %1954 = vmatprep.subr.bf16.mxu0 %v1367
  %1955 = vmatpush1.bf16.msra.mxu0 %v1366
  %1956 = vmatprep.subr.bf16.mxu0 %v1369
  %1957 = vmatpush1.bf16.msra.mxu0 %v1368
  %1958 = vmatprep.mubr.bf16.mxu0 %v387
  %1959 = vmatmul.mubr.bf16.gmra.mrb[0].mxu0 %v386
  %v1960 = vpop.f32.mrb[0].mxu0
  %v1961 = vadd.f32 %v1910, %v1960
  %v1962 = vpop.f32.mrb[0].mxu0
  %v1963 = vadd.f32 %v1912, %v1962
  %v1964 = vpop.f32.mrb[0].mxu0
  %v1965 = vadd.f32 %v1914, %v1964
  %v1966 = vpop.f32.mrb[0].mxu0
  %v1967 = vadd.f32 %v1916, %v1966
  %1968 = vmatprep.mubr.bf16.mxu0 %v403
  %1969 = vmatmul.mubr.bf16.gmra.mrb[0].mxu0 %v402
  %v1970 = vpop.f32.mrb[0].mxu0
  %v1971 = vadd.f32 %v1920, %v1970
  %v1972 = vpop.f32.mrb[0].mxu0
  %v1973 = vadd.f32 %v1922, %v1972
  %v1974 = vpop.f32.mrb[0].mxu0
  %v1975 = vpop.f32.mrb[0].mxu0
  %1976 = vdwg.mxu0
  %1977 = vmatprep.subr.bf16.mxu0 %v1371
  %1978 = vmatpush1.bf16.msra.mxu0 %v1370
  %1979 = vmatprep.subr.bf16.mxu0 %v1373
  %1980 = vmatpush1.bf16.msra.mxu0 %v1372
  %1981 = vmatprep.subr.bf16.mxu0 %v1375
  %1982 = vmatpush1.bf16.msra.mxu0 %v1374
  %1983 = vmatprep.subr.bf16.mxu0 %v1377
  %1984 = vmatpush1.bf16.msra.mxu0 %v1376
  %1985 = vmatprep.subr.bf16.mxu0 %v1379
  %1986 = vmatpush1.bf16.msra.mxu0 %v1378
  %1987 = vmatprep.subr.bf16.mxu0 %v1381
  %1988 = vmatpush1.bf16.msra.mxu0 %v1380
  %1989 = vmatprep.subr.bf16.mxu0 %v1383
  %1990 = vmatpush1.bf16.msra.mxu0 %v1382
  %1991 = vmatprep.subr.bf16.mxu0 %v1385
  %1992 = vmatpush1.bf16.msra.mxu0 %v1384
  %1993 = vmatprep.subr.bf16.mxu0 %v1387
  %1994 = vmatpush1.bf16.msra.mxu0 %v1386
  %1995 = vmatprep.subr.bf16.mxu0 %v1389
  %1996 = vmatpush1.bf16.msra.mxu0 %v1388
  %1997 = vmatprep.subr.bf16.mxu0 %v1391
  %1998 = vmatpush1.bf16.msra.mxu0 %v1390
  %1999 = vmatprep.subr.bf16.mxu0 %v1393
  %2000 = vmatpush1.bf16.msra.mxu0 %v1392
  %2001 = vmatprep.subr.bf16.mxu0 %v1395
  %2002 = vmatpush1.bf16.msra.mxu0 %v1394
  %2003 = vmatprep.subr.bf16.mxu0 %v1397
  %2004 = vmatpush1.bf16.msra.mxu0 %v1396
  %2005 = vmatprep.subr.bf16.mxu0 %v1399
  %2006 = vmatpush1.bf16.msra.mxu0 %v1398
  %2007 = vmatprep.subr.bf16.mxu0 %v1401
  %2008 = vmatpush1.bf16.msra.mxu0 %v1400
  %2009 = vmatprep.mubr.bf16.mxu0 %v389
  %2010 = vmatmul.mubr.bf16.gmra.mrb[0].mxu0 %v388
  %v2011 = vpop.f32.mrb[0].mxu0
  %v2012 = vadd.f32 %v1961, %v2011
  %v2013 = vpop.f32.mrb[0].mxu0
  %v2014 = vadd.f32 %v1963, %v2013
  %v2015 = vpop.f32.mrb[0].mxu0
  %v2016 = vadd.f32 %v1965, %v2015
  %v2017 = vpop.f32.mrb[0].mxu0
  %v2018 = vadd.f32 %v1967, %v2017
  %2019 = vmatprep.mubr.bf16.mxu0 %v405
  %2020 = vmatmul.mubr.bf16.gmra.mrb[0].mxu0 %v404
  %v2021 = vpop.f32.mrb[0].mxu0
  %v2022 = vadd.f32 %v1971, %v2021
  %v2023 = vpop.f32.mrb[0].mxu0
  %v2024 = vadd.f32 %v1973, %v2023
  %v2025 = vpop.f32.mrb[0].mxu0
  %v2026 = vpop.f32.mrb[0].mxu0
  %2027 = vdwg.mxu0
  %2028 = vmatprep.subr.bf16.mxu0 %v1403
  %2029 = vmatpush1.bf16.msra.mxu0 %v1402
  %2030 = vmatprep.subr.bf16.mxu0 %v1405
  %2031 = vmatpush1.bf16.msra.mxu0 %v1404
  %2032 = vmatprep.subr.bf16.mxu0 %v1407
  %2033 = vmatpush1.bf16.msra.mxu0 %v1406
  %2034 = vmatprep.subr.bf16.mxu0 %v1409
  %2035 = vmatpush1.bf16.msra.mxu0 %v1408
  %2036 = vmatprep.subr.bf16.mxu0 %v1411
  %2037 = vmatpush1.bf16.msra.mxu0 %v1410
  %2038 = vmatprep.subr.bf16.mxu0 %v1413
  %2039 = vmatpush1.bf16.msra.mxu0 %v1412
  %2040 = vmatprep.subr.bf16.mxu0 %v1415
  %2041 = vmatpush1.bf16.msra.mxu0 %v1414
  %2042 = vmatprep.subr.bf16.mxu0 %v1417
  %2043 = vmatpush1.bf16.msra.mxu0 %v1416
  %2044 = vmatprep.subr.bf16.mxu0 %v1419
  %2045 = vmatpush1.bf16.msra.mxu0 %v1418
  %2046 = vmatprep.subr.bf16.mxu0 %v1421
  %2047 = vmatpush1.bf16.msra.mxu0 %v1420
  %2048 = vmatprep.subr.bf16.mxu0 %v1423
  %2049 = vmatpush1.bf16.msra.mxu0 %v1422
  %2050 = vmatprep.subr.bf16.mxu0 %v1425
  %2051 = vmatpush1.bf16.msra.mxu0 %v1424
  %2052 = vmatprep.subr.bf16.mxu0 %v1427
  %2053 = vmatpush1.bf16.msra.mxu0 %v1426
  %2054 = vmatprep.subr.bf16.mxu0 %v1429
  %2055 = vmatpush1.bf16.msra.mxu0 %v1428
  %2056 = vmatprep.subr.bf16.mxu0 %v1431
  %2057 = vmatpush1.bf16.msra.mxu0 %v1430
  %2058 = vmatprep.subr.bf16.mxu0 %v1433
  %2059 = vmatpush1.bf16.msra.mxu0 %v1432
  %2060 = vmatprep.mubr.bf16.mxu0 %v391
  %2061 = vmatmul.mubr.bf16.gmra.mrb[0].mxu0 %v390
  %v2062 = vpop.f32.mrb[0].mxu0
  %v2063 = vadd.f32 %v2012, %v2062
  %v2064 = vpop.f32.mrb[0].mxu0
  %v2065 = vadd.f32 %v2014, %v2064
  %v2066 = vpop.f32.mrb[0].mxu0
  %v2067 = vadd.f32 %v2016, %v2066
  %v2068 = vpop.f32.mrb[0].mxu0
  %v2069 = vadd.f32 %v2018, %v2068
  %2070 = vmatprep.mubr.bf16.mxu0 %v407
  %2071 = vmatmul.mubr.bf16.gmra.mrb[0].mxu0 %v406
  %v2072 = vpop.f32.mrb[0].mxu0
  %v2073 = vadd.f32 %v2022, %v2072
  %v2074 = vpop.f32.mrb[0].mxu0
  %v2075 = vadd.f32 %v2024, %v2074
  %v2076 = vpop.f32.mrb[0].mxu0
  %v2077 = vpop.f32.mrb[0].mxu0
  %2078 = vdwg.mxu0
  %2079 = vmatprep.subr.bf16.mxu0 %v1435
  %2080 = vmatpush1.bf16.msra.mxu0 %v1434
  %2081 = vmatprep.subr.bf16.mxu0 %v1437
  %2082 = vmatpush1.bf16.msra.mxu0 %v1436
  %2083 = vmatprep.subr.bf16.mxu0 %v1439
  %2084 = vmatpush1.bf16.msra.mxu0 %v1438
  %2085 = vmatprep.subr.bf16.mxu0 %v1441
  %2086 = vmatpush1.bf16.msra.mxu0 %v1440
  %2087 = vmatprep.subr.bf16.mxu0 %v1443
  %2088 = vmatpush1.bf16.msra.mxu0 %v1442
  %2089 = vmatprep.subr.bf16.mxu0 %v1445
  %2090 = vmatpush1.bf16.msra.mxu0 %v1444
  %2091 = vmatprep.subr.bf16.mxu0 %v1447
  %2092 = vmatpush1.bf16.msra.mxu0 %v1446
  %2093 = vmatprep.subr.bf16.mxu0 %v1449
  %2094 = vmatpush1.bf16.msra.mxu0 %v1448
  %2095 = vmatprep.subr.bf16.mxu0 %v1451
  %2096 = vmatpush1.bf16.msra.mxu0 %v1450
  %2097 = vmatprep.subr.bf16.mxu0 %v1453
  %2098 = vmatpush1.bf16.msra.mxu0 %v1452
  %2099 = vmatprep.subr.bf16.mxu0 %v1455
  %2100 = vmatpush1.bf16.msra.mxu0 %v1454
  %2101 = vmatprep.subr.bf16.mxu0 %v1457
  %2102 = vmatpush1.bf16.msra.mxu0 %v1456
  %2103 = vmatprep.subr.bf16.mxu0 %v1459
  %2104 = vmatpush1.bf16.msra.mxu0 %v1458
  %2105 = vmatprep.subr.bf16.mxu0 %v1461
  %2106 = vmatpush1.bf16.msra.mxu0 %v1460
  %2107 = vmatprep.subr.bf16.mxu0 %v1463
  %2108 = vmatpush1.bf16.msra.mxu0 %v1462
  %2109 = vmatprep.subr.bf16.mxu0 %v1465
  %2110 = vmatpush1.bf16.msra.mxu0 %v1464
  %2111 = vmatprep.mubr.bf16.mxu0 %v393
  %2112 = vmatmul.mubr.bf16.gmra.mrb[0].mxu0 %v392
  %v2113 = vpop.f32.mrb[0].mxu0
  %v2114 = vadd.f32 %v2063, %v2113
  %v2115 = vpop.f32.mrb[0].mxu0
  %v2116 = vadd.f32 %v2065, %v2115
  %v2117 = vpop.f32.mrb[0].mxu0
  %v2118 = vadd.f32 %v2067, %v2117
  %v2119 = vpop.f32.mrb[0].mxu0
  %v2120 = vadd.f32 %v2069, %v2119
  %2121 = vmatprep.mubr.bf16.mxu0 %v409
  %2122 = vmatmul.mubr.bf16.gmra.mrb[0].mxu0 %v408
  %v2123 = vpop.f32.mrb[0].mxu0
  %v2124 = vadd.f32 %v2073, %v2123
  %v2125 = vpop.f32.mrb[0].mxu0
  %v2126 = vadd.f32 %v2075, %v2125
  %v2127 = vpop.f32.mrb[0].mxu0
  %v2128 = vpop.f32.mrb[0].mxu0
  %2129 = vdwg.mxu0
  %v2130 = vadd.f32 %v2114, %v2118
  %vm2131 = vcmask 1041408
  %v2132 = vsel %vm2131, %v2124, 0.0
  %v2133 = vadd.f32 %v2130, %v2132
  %v2134 = vrot.slane %v2133, 4
  %v2135 = vadd.f32 %v2133, %v2134
  %v2136 = vrot.slane %v2135, 2
  %v2137 = vadd.f32 %v2135, %v2136
  %v2138 = vrot.slane %v2137, 1
  %v2139 = vadd.f32 %v2137, %v2138
  %v2140 = vadd.f32 %v2116, %v2120
  %v2141 = vsel %vm2131, %v2126, 0.0
  %v2142 = vadd.f32 %v2140, %v2141
  %v2143 = vrot.slane %v2142, 4
  %v2144 = vadd.f32 %v2142, %v2143
  %v2145 = vrot.slane %v2144, 2
  %v2146 = vadd.f32 %v2144, %v2145
  %v2147 = vrot.slane %v2146, 1
  %v2148 = vadd.f32 %v2146, %v2147
  %v2149 = vrcp.pop 18.0
  %v2150 = vmul.f32 %v2139, %v2149
  %v2151 = vmul.f32 %v2148, %v2149
  %v2152 = vsub.f32 %v2114, %v2150
  %v2153 = vsub.f32 %v2116, %v2151
  %v2154 = vsub.f32 %v2118, %v2150
  %v2155 = vsub.f32 %v2120, %v2151
  %v2156 = vsub.f32 %v2124, %v2150
  %v2157 = vsub.f32 %v2126, %v2151
  %v2158 = vmul.f32 %v2152, %v2152
  %v2159 = vmul.f32 %v2153, %v2153
  %v2160 = vmul.f32 %v2154, %v2154
  %v2161 = vmul.f32 %v2155, %v2155
  %v2162 = vmul.f32 %v2156, %v2156
  %v2163 = vmul.f32 %v2157, %v2157
  %v2164 = vadd.f32 %v2158, %v2160
  %v2165 = vsel %vm2131, %v2162, 0.0
  %v2166 = vadd.f32 %v2164, %v2165
  %v2167 = vrot.slane %v2166, 4
  %v2168 = vadd.f32 %v2166, %v2167
  %v2169 = vrot.slane %v2168, 2
  %v2170 = vadd.f32 %v2168, %v2169
  %v2171 = vrot.slane %v2170, 1
  %v2172 = vadd.f32 %v2170, %v2171
  %v2173 = vadd.f32 %v2159, %v2161
  %v2174 = vsel %vm2131, %v2163, 0.0
  %v2175 = vadd.f32 %v2173, %v2174
  %v2176 = vrot.slane %v2175, 4
  %v2177 = vadd.f32 %v2175, %v2176
  %v2178 = vrot.slane %v2177, 2
  %v2179 = vadd.f32 %v2177, %v2178
  %v2180 = vrot.slane %v2179, 1
  %v2181 = vadd.f32 %v2179, %v2180
  %v2182 = vmul.f32 %v2172, %v2149
  %v2183 = vmul.f32 %v2181, %v2149
  %v2184 = vadd.f32 %v2182, 1e-05
  %v2185 = vadd.f32 %v2183, 1e-05
  %v2186 = vrsqrt.pop %v2184
  %v2187 = vrsqrt.pop %v2185
  %v2188 = vmul.f32 %v2152, %v2186
  %v2189 = vmul.f32 %v2153, %v2187
  %v2190 = vmul.f32 %v2154, %v2186
  %v2191 = vmul.f32 %v2155, %v2187
  %v2192 = vmul.f32 %v2156, %v2186
  %v2193 = vmul.f32 %v2157, %v2187
  %vm2194 = vcmp.gt.f32.partialorder %v2188, 0.0
  %vm2195 = vcmp.gt.f32.partialorder %v2189, 0.0
  %vm2196 = vcmp.gt.f32.partialorder %v2190, 0.0
  %vm2197 = vcmp.gt.f32.partialorder %v2191, 0.0
  %vm2198 = vcmp.gt.f32.partialorder %v2192, 0.0
  %vm2199 = vcmp.gt.f32.partialorder %v2193, 0.0
  %v2200 = vmul.f32 %v2188, 0.2
  %v2201 = vmul.f32 %v2189, 0.2
  %v2202 = vmul.f32 %v2190, 0.2
  %v2203 = vmul.f32 %v2191, 0.2
  %v2204 = vmul.f32 %v2192, 0.2
  %v2205 = vmul.f32 %v2193, 0.2
  %v2206 = vsel %vm2194, %v2188, %v2200
  %v2207 = vsel %vm2195, %v2189, %v2201
  %v2208 = vsel %vm2196, %v2190, %v2202
  %v2209 = vsel %vm2197, %v2191, %v2203
  %v2210 = vsel %vm2198, %v2192, %v2204
  %v2211 = vsel %vm2199, %v2193, %v2205
  %v2212 = vpack.c.bf16 %v2208, %v2206
  %v2213 = vpack.c.bf16 %v2209, %v2207
  %v2214 = vpack.c.bf16 %v2210, %v2210
  %v2215 = vpack.c.bf16 %v2211, %v2211
  %v2220 = vunpack.c.l.b16 %v2212
  %v2221 = vunpack.c.l.b16 %v2213
  %v2222 = vunpack.c.h.b16 %v2212
  %v2223 = vunpack.c.h.b16 %v2213
  %v2224 = vunpack.c.l.b16 %v2214
  %v2225 = vunpack.c.l.b16 %v2215
  %v2226 = vpack.c.b16 %v2221, %v2220
  %v2227 = vpack.c.b16 %v2223, %v2222
  %v2228 = vpack.c.b16 %v2225, %v2224
  %2232 = vst [vmem:[%s3] sm:$0xff] %v2226
  %2233 = vst [vmem:[%s3 + $0x8] sm:$0xff] %v2227
  %2234 = vst [vmem:[%s3 + $0x10] sm:$0x11] %v2228
  // Predicated region
  $region14: #{discriminator_forward.10} parent=0 // pred_check
    _
  $region15: #{discriminator_forward.10} parent=0 // pred_check_branch
    %2236 = sbr.rel (0) target = $region17
  $region16: #{discriminator_forward.10} parent=0 // pred_region
    _
  $region17: #{discriminator_forward.10} parent=0 // pred_fallthru
    _
  // Predicated region
  $region18: #{discriminator_forward.10} parent=0 // pred_check
    _
  $region19: #{discriminator_forward.10} parent=0 // pred_check_branch
    %2238 = sbr.rel (0) target = $region21
  $region20: #{discriminator_forward.10} parent=0 // pred_region
    _
  $region21: #{discriminator_forward.10} parent=0 // pred_fallthru
    _

// kernel: discriminator_forward.11
$region0: #{discriminator_forward.11}
  #allocation0 [shape = 'u32[]', space=smem, size = 0x4, offset = 0x4, fixed_abs, tag = 'smem constant byte address 0x4 - core index']
  #allocation1 [shape = 'u32[144,128]{1,0:T(1,128)}', space=vmem, size = 0x12000, scoped, tag = 'internal scratch']
  %s0 = inlined_call_operand.vmem [shape: bf16[8,4096], index: 0, kind: input, shape index: {}]
  %s1 = inlined_call_operand.vmem [shape: bf16[4096,128], index: 1, kind: input, shape index: {}]
  %s2 = inlined_call_operand.vmem [shape: f32[1,128], index: 2, kind: input, shape index: {}]
  %s3 = inlined_call_operand.vmem [shape: f32[8,128], index: 3, kind: output, shape index: {}]
  %s4 = sld [smem:[#allocation0]]
  $region22: #{discriminator_forward.11} parent=0
    _
  %s6 = ssub.s32 1, %s4
  %s7 = scalar_select 0, %s6, %s4
  // Predicated region
  $region2: #{discriminator_forward.11} parent=0 // pred_check
    _
  $region3: #{discriminator_forward.11} parent=0 // pred_check_branch
    %9 = sbr.rel (0) target = $region5
  $region4: #{discriminator_forward.11} parent=0 // pred_region
    _
  $region5: #{discriminator_forward.11} parent=0 // pred_fallthru
    _
  // Predicated region
  $region6: #{discriminator_forward.11} parent=0 // pred_check
    _
  $region7: #{discriminator_forward.11} parent=0 // pred_check_branch
    %11 = sbr.rel (0) target = $region9
  $region8: #{discriminator_forward.11} parent=0 // pred_region
    _
  $region9: #{discriminator_forward.11} parent=0 // pred_fallthru
    _
  // Predicated region
  $region10: #{discriminator_forward.11} parent=0 // pred_check
    _
  $region11: #{discriminator_forward.11} parent=0 // pred_check_branch
    %13 = sbr.rel (0) target = $region13
  $region12: #{discriminator_forward.11} parent=0 // pred_region
    _
  $region13: #{discriminator_forward.11} parent=0 // pred_fallthru
    _
  %v15 = vld [vmem:[%s0] sm:$0xff]
  %v16 = vld [vmem:[%s0 + $0x8] sm:$0xff]
  %v17 = vld [vmem:[%s0 + $0x10] sm:$0xff]
  %v18 = vld [vmem:[%s0 + $0x18] sm:$0xff]
  %v19 = vld [vmem:[%s0 + $0x20] sm:$0xff]
  %v20 = vld [vmem:[%s0 + $0x28] sm:$0xff]
  %v21 = vld [vmem:[%s0 + $0x30] sm:$0xff]
  %v22 = vld [vmem:[%s0 + $0x38] sm:$0xff]
  %v23 = vld [vmem:[%s0 + $0x40] sm:$0xff]
  %v24 = vld [vmem:[%s0 + $0x48] sm:$0xff]
  %v25 = vld [vmem:[%s0 + $0x50] sm:$0xff]
  %v26 = vld [vmem:[%s0 + $0x58] sm:$0xff]
  %v27 = vld [vmem:[%s0 + $0x60] sm:$0xff]
  %v28 = vld [vmem:[%s0 + $0x68] sm:$0xff]
  %v29 = vld [vmem:[%s0 + $0x70] sm:$0xff]
  %v30 = vld [vmem:[%s0 + $0x78] sm:$0xff]
  %v31 = vld [vmem:[%s1] sm:$0xf]
  %v32 = vld [vmem:[%s1 + $0x4] sm:$0xf]
  %v33 = vld [vmem:[%s1 + $0x8] sm:$0xf]
  %v34 = vld [vmem:[%s1 + $0xc] sm:$0xf]
  %v35 = vld [vmem:[%s1 + $0x10] sm:$0xf]
  %v36 = vld [vmem:[%s1 + $0x14] sm:$0xf]
  %v37 = vld [vmem:[%s1 + $0x18] sm:$0xf]
  %v38 = vld [vmem:[%s1 + $0x1c] sm:$0xf]
  %v39 = vld [vmem:[%s1 + $0x20] sm:$0xf]
  %v40 = vld [vmem:[%s1 + $0x24] sm:$0xf]
  %v41 = vld [vmem:[%s1 + $0x28] sm:$0xf]
  %v42 = vld [vmem:[%s1 + $0x2c] sm:$0xf]
  %v43 = vld [vmem:[%s1 + $0x30] sm:$0xf]
  %v44 = vld [vmem:[%s1 + $0x34] sm:$0xf]
  %v45 = vld [vmem:[%s1 + $0x38] sm:$0xf]
  %v46 = vld [vmem:[%s1 + $0x3c] sm:$0xf]
  %v47 = vld [vmem:[%s1 + $0x40] sm:$0xf]
  %v48 = vld [vmem:[%s1 + $0x44] sm:$0xf]
  %v49 = vld [vmem:[%s1 + $0x48] sm:$0xf]
  %v50 = vld [vmem:[%s1 + $0x4c] sm:$0xf]
  %v51 = vld [vmem:[%s1 + $0x50] sm:$0xf]
  %v52 = vld [vmem:[%s1 + $0x54] sm:$0xf]
  %v53 = vld [vmem:[%s1 + $0x58] sm:$0xf]
  %v54 = vld [vmem:[%s1 + $0x5c] sm:$0xf]
  %v55 = vld [vmem:[%s1 + $0x60] sm:$0xf]
  %v56 = vld [vmem:[%s1 + $0x64] sm:$0xf]
  %v57 = vld [vmem:[%s1 + $0x68] sm:$0xf]
  %v58 = vld [vmem:[%s1 + $0x6c] sm:$0xf]
  %v59 = vld [vmem:[%s1 + $0x70] sm:$0xf]
  %v60 = vld [vmem:[%s1 + $0x74] sm:$0xf]
  %v61 = vld [vmem:[%s1 + $0x78] sm:$0xf]
  %v62 = vld [vmem:[%s1 + $0x7c] sm:$0xf]
  %v63 = vld [vmem:[%s1 + $0x80] sm:$0xf]
  %v64 = vld [vmem:[%s1 + $0x84] sm:$0xf]
  %v65 = vld [vmem:[%s1 + $0x88] sm:$0xf]
  %v66 = vld [vmem:[%s1 + $0x8c] sm:$0xf]
  %v67 = vld [vmem:[%s1 + $0x90] sm:$0xf]
  %v68 = vld [vmem:[%s1 + $0x94] sm:$0xf]
  %v69 = vld [vmem:[%s1 + $0x98] sm:$0xf]
  %v70 = vld [vmem:[%s1 + $0x9c] sm:$0xf]
  %v71 = vld [vmem:[%s1 + $0xa0] sm:$0xf]
  %v72 = vld [vmem:[%s1 + $0xa4] sm:$0xf]
  %v73 = vld [vmem:[%s1 + $0xa8] sm:$0xf]
  %v74 = vld [vmem:[%s1 + $0xac] sm:$0xf]
  %v75 = vld [vmem:[%s1 + $0xb0] sm:$0xf]
  %v76 = vld [vmem:[%s1 + $0xb4] sm:$0xf]
  %v77 = vld [vmem:[%s1 + $0xb8] sm:$0xf]
  %v78 = vld [vmem:[%s1 + $0xbc] sm:$0xf]
  %v79 = vld [vmem:[%s1 + $0xc0] sm:$0xf]
  %v80 = vld [vmem:[%s1 + $0xc4] sm:$0xf]
  %v81 = vld [vmem:[%s1 + $0xc8] sm:$0xf]
  %v82 = vld [vmem:[%s1 + $0xcc] sm:$0xf]
  %v83 = vld [vmem:[%s1 + $0xd0] sm:$0xf]
  %v84 = vld [vmem:[%s1 + $0xd4] sm:$0xf]
  %v85 = vld [vmem:[%s1 + $0xd8] sm:$0xf]
  %v86 = vld [vmem:[%s1 + $0xdc] sm:$0xf]
  %v87 = vld [vmem:[%s1 + $0xe0] sm:$0xf]
  %v88 = vld [vmem:[%s1 + $0xe4] sm:$0xf]
  %v89 = vld [vmem:[%s1 + $0xe8] sm:$0xf]
  %v90 = vld [vmem:[%s1 + $0xec] sm:$0xf]
  %v91 = vld [vmem:[%s1 + $0xf0] sm:$0xf]
  %v92 = vld [vmem:[%s1 + $0xf4] sm:$0xf]
  %v93 = vld [vmem:[%s1 + $0xf8] sm:$0xf]
  %v94 = vld [vmem:[%s1 + $0xfc] sm:$0xf]
  %v95 = vld [vmem:[%s1 + $0x100] sm:$0xf]
  %v96 = vld [vmem:[%s1 + $0x104] sm:$0xf]
  %v97 = vld [vmem:[%s1 + $0x108] sm:$0xf]
  %v98 = vld [vmem:[%s1 + $0x10c] sm:$0xf]
  %v99 = vld [vmem:[%s1 + $0x110] sm:$0xf]
  %v100 = vld [vmem:[%s1 + $0x114] sm:$0xf]
  %v101 = vld [vmem:[%s1 + $0x118] sm:$0xf]
  %v102 = vld [vmem:[%s1 + $0x11c] sm:$0xf]
  %v103 = vld [vmem:[%s1 + $0x120] sm:$0xf]
  %v104 = vld [vmem:[%s1 + $0x124] sm:$0xf]
  %v105 = vld [vmem:[%s1 + $0x128] sm:$0xf]
  %v106 = vld [vmem:[%s1 + $0x12c] sm:$0xf]
  %v107 = vld [vmem:[%s1 + $0x130] sm:$0xf]
  %v108 = vld [vmem:[%s1 + $0x134] sm:$0xf]
  %v109 = vld [vmem:[%s1 + $0x138] sm:$0xf]
  %v110 = vld [vmem:[%s1 + $0x13c] sm:$0xf]
  %v111 = vld [vmem:[%s1 + $0x140] sm:$0xf]
  %v112 = vld [vmem:[%s1 + $0x144] sm:$0xf]
  %v113 = vld [vmem:[%s1 + $0x148] sm:$0xf]
  %v114 = vld [vmem:[%s1 + $0x14c] sm:$0xf]
  %v115 = vld [vmem:[%s1 + $0x150] sm:$0xf]
  %v116 = vld [vmem:[%s1 + $0x154] sm:$0xf]
  %v117 = vld [vmem:[%s1 + $0x158] sm:$0xf]
  %v118 = vld [vmem:[%s1 + $0x15c] sm:$0xf]
  %v119 = vld [vmem:[%s1 + $0x160] sm:$0xf]
  %v120 = vld [vmem:[%s1 + $0x164] sm:$0xf]
  %v121 = vld [vmem:[%s1 + $0x168] sm:$0xf]
  %v122 = vld [vmem:[%s1 + $0x16c] sm:$0xf]
  %v123 = vld [vmem:[%s1 + $0x170] sm:$0xf]
  %v124 = vld [vmem:[%s1 + $0x174] sm:$0xf]
  %v125 = vld [vmem:[%s1 + $0x178] sm:$0xf]
  %v126 = vld [vmem:[%s1 + $0x17c] sm:$0xf]
  %v127 = vld [vmem:[%s1 + $0x180] sm:$0xf]
  %v128 = vld [vmem:[%s1 + $0x184] sm:$0xf]
  %v129 = vld [vmem:[%s1 + $0x188] sm:$0xf]
  %v130 = vld [vmem:[%s1 + $0x18c] sm:$0xf]
  %v131 = vld [vmem:[%s1 + $0x190] sm:$0xf]
  %v132 = vld [vmem:[%s1 + $0x194] sm:$0xf]
  %v133 = vld [vmem:[%s1 + $0x198] sm:$0xf]
  %v134 = vld [vmem:[%s1 + $0x19c] sm:$0xf]
  %v135 = vld [vmem:[%s1 + $0x1a0] sm:$0xf]
  %v136 = vld [vmem:[%s1 + $0x1a4] sm:$0xf]
  %v137 = vld [vmem:[%s1 + $0x1a8] sm:$0xf]
  %v138 = vld [vmem:[%s1 + $0x1ac] sm:$0xf]
  %v139 = vld [vmem:[%s1 + $0x1b0] sm:$0xf]
  %v140 = vld [vmem:[%s1 + $0x1b4] sm:$0xf]
  %v141 = vld [vmem:[%s1 + $0x1b8] sm:$0xf]
  %v142 = vld [vmem:[%s1 + $0x1bc] sm:$0xf]
  %v143 = vld [vmem:[%s1 + $0x1c0] sm:$0xf]
  %v144 = vld [vmem:[%s1 + $0x1c4] sm:$0xf]
  %v145 = vld [vmem:[%s1 + $0x1c8] sm:$0xf]
  %v146 = vld [vmem:[%s1 + $0x1cc] sm:$0xf]
  %v147 = vld [vmem:[%s1 + $0x1d0] sm:$0xf]
  %v148 = vld [vmem:[%s1 + $0x1d4] sm:$0xf]
  %v149 = vld [vmem:[%s1 + $0x1d8] sm:$0xf]
  %v150 = vld [vmem:[%s1 + $0x1dc] sm:$0xf]
  %v151 = vld [vmem:[%s1 + $0x1e0] sm:$0xf]
  %v152 = vld [vmem:[%s1 + $0x1e4] sm:$0xf]
  %v153 = vld [vmem:[%s1 + $0x1e8] sm:$0xf]
  %v154 = vld [vmem:[%s1 + $0x1ec] sm:$0xf]
  %v155 = vld [vmem:[%s1 + $0x1f0] sm:$0xf]
  %v156 = vld [vmem:[%s1 + $0x1f4] sm:$0xf]
  %v157 = vld [vmem:[%s1 + $0x1f8] sm:$0xf]
  %v158 = vld [vmem:[%s1 + $0x1fc] sm:$0xf]
  %v159 = vld [vmem:[%s1 + $0x200] sm:$0xf]
  %v160 = vld [vmem:[%s1 + $0x204] sm:$0xf]
  %v161 = vld [vmem:[%s1 + $0x208] sm:$0xf]
  %v162 = vld [vmem:[%s1 + $0x20c] sm:$0xf]
  %v163 = vld [vmem:[%s1 + $0x210] sm:$0xf]
  %v164 = vld [vmem:[%s1 + $0x214] sm:$0xf]
  %v165 = vld [vmem:[%s1 + $0x218] sm:$0xf]
  %v166 = vld [vmem:[%s1 + $0x21c] sm:$0xf]
  %v167 = vld [vmem:[%s1 + $0x220] sm:$0xf]
  %v168 = vld [vmem:[%s1 + $0x224] sm:$0xf]
  %v169 = vld [vmem:[%s1 + $0x228] sm:$0xf]
  %v170 = vld [vmem:[%s1 + $0x22c] sm:$0xf]
  %v171 = vld [vmem:[%s1 + $0x230] sm:$0xf]
  %v172 = vld [vmem:[%s1 + $0x234] sm:$0xf]
  %v173 = vld [vmem:[%s1 + $0x238] sm:$0xf]
  %v174 = vld [vmem:[%s1 + $0x23c] sm:$0xf]
  %v175 = vld [vmem:[%s1 + $0x240] sm:$0xf]
  %v176 = vld [vmem:[%s1 + $0x244] sm:$0xf]
  %v177 = vld [vmem:[%s1 + $0x248] sm:$0xf]
  %v178 = vld [vmem:[%s1 + $0x24c] sm:$0xf]
  %v179 = vld [vmem:[%s1 + $0x250] sm:$0xf]
  %v180 = vld [vmem:[%s1 + $0x254] sm:$0xf]
  %v181 = vld [vmem:[%s1 + $0x258] sm:$0xf]
  %v182 = vld [vmem:[%s1 + $0x25c] sm:$0xf]
  %v183 = vld [vmem:[%s1 + $0x260] sm:$0xf]
  %v184 = vld [vmem:[%s1 + $0x264] sm:$0xf]
  %v185 = vld [vmem:[%s1 + $0x268] sm:$0xf]
  %v186 = vld [vmem:[%s1 + $0x26c] sm:$0xf]
  %v187 = vld [vmem:[%s1 + $0x270] sm:$0xf]
  %v188 = vld [vmem:[%s1 + $0x274] sm:$0xf]
  %v189 = vld [vmem:[%s1 + $0x278] sm:$0xf]
  %v190 = vld [vmem:[%s1 + $0x27c] sm:$0xf]
  %v191 = vld [vmem:[%s1 + $0x280] sm:$0xf]
  %v192 = vld [vmem:[%s1 + $0x284] sm:$0xf]
  %v193 = vld [vmem:[%s1 + $0x288] sm:$0xf]
  %v194 = vld [vmem:[%s1 + $0x28c] sm:$0xf]
  %v195 = vld [vmem:[%s1 + $0x290] sm:$0xf]
  %v196 = vld [vmem:[%s1 + $0x294] sm:$0xf]
  %v197 = vld [vmem:[%s1 + $0x298] sm:$0xf]
  %v198 = vld [vmem:[%s1 + $0x29c] sm:$0xf]
  %v199 = vld [vmem:[%s1 + $0x2a0] sm:$0xf]
  %v200 = vld [vmem:[%s1 + $0x2a4] sm:$0xf]
  %v201 = vld [vmem:[%s1 + $0x2a8] sm:$0xf]
  %v202 = vld [vmem:[%s1 + $0x2ac] sm:$0xf]
  %v203 = vld [vmem:[%s1 + $0x2b0] sm:$0xf]
  %v204 = vld [vmem:[%s1 + $0x2b4] sm:$0xf]
  %v205 = vld [vmem:[%s1 + $0x2b8] sm:$0xf]
  %v206 = vld [vmem:[%s1 + $0x2bc] sm:$0xf]
  %v207 = vld [vmem:[%s1 + $0x2c0] sm:$0xf]
  %v208 = vld [vmem:[%s1 + $0x2c4] sm:$0xf]
  %v209 = vld [vmem:[%s1 + $0x2c8] sm:$0xf]
  %v210 = vld [vmem:[%s1 + $0x2cc] sm:$0xf]
  %v211 = vld [vmem:[%s1 + $0x2d0] sm:$0xf]
  %v212 = vld [vmem:[%s1 + $0x2d4] sm:$0xf]
  %v213 = vld [vmem:[%s1 + $0x2d8] sm:$0xf]
  %v214 = vld [vmem:[%s1 + $0x2dc] sm:$0xf]
  %v215 = vld [vmem:[%s1 + $0x2e0] sm:$0xf]
  %v216 = vld [vmem:[%s1 + $0x2e4] sm:$0xf]
  %v217 = vld [vmem:[%s1 + $0x2e8] sm:$0xf]
  %v218 = vld [vmem:[%s1 + $0x2ec] sm:$0xf]
  %v219 = vld [vmem:[%s1 + $0x2f0] sm:$0xf]
  %v220 = vld [vmem:[%s1 + $0x2f4] sm:$0xf]
  %v221 = vld [vmem:[%s1 + $0x2f8] sm:$0xf]
  %v222 = vld [vmem:[%s1 + $0x2fc] sm:$0xf]
  %v223 = vld [vmem:[%s1 + $0x300] sm:$0xf]
  %v224 = vld [vmem:[%s1 + $0x304] sm:$0xf]
  %v225 = vld [vmem:[%s1 + $0x308] sm:$0xf]
  %v226 = vld [vmem:[%s1 + $0x30c] sm:$0xf]
  %v227 = vld [vmem:[%s1 + $0x310] sm:$0xf]
  %v228 = vld [vmem:[%s1 + $0x314] sm:$0xf]
  %v229 = vld [vmem:[%s1 + $0x318] sm:$0xf]
  %v230 = vld [vmem:[%s1 + $0x31c] sm:$0xf]
  %v231 = vld [vmem:[%s1 + $0x320] sm:$0xf]
  %v232 = vld [vmem:[%s1 + $0x324] sm:$0xf]
  %v233 = vld [vmem:[%s1 + $0x328] sm:$0xf]
  %v234 = vld [vmem:[%s1 + $0x32c] sm:$0xf]
  %v235 = vld [vmem:[%s1 + $0x330] sm:$0xf]
  %v236 = vld [vmem:[%s1 + $0x334] sm:$0xf]
  %v237 = vld [vmem:[%s1 + $0x338] sm:$0xf]
  %v238 = vld [vmem:[%s1 + $0x33c] sm:$0xf]
  %v239 = vld [vmem:[%s1 + $0x340] sm:$0xf]
  %v240 = vld [vmem:[%s1 + $0x344] sm:$0xf]
  %v241 = vld [vmem:[%s1 + $0x348] sm:$0xf]
  %v242 = vld [vmem:[%s1 + $0x34c] sm:$0xf]
  %v243 = vld [vmem:[%s1 + $0x350] sm:$0xf]
  %v244 = vld [vmem:[%s1 + $0x354] sm:$0xf]
  %v245 = vld [vmem:[%s1 + $0x358] sm:$0xf]
  %v246 = vld [vmem:[%s1 + $0x35c] sm:$0xf]
  %v247 = vld [vmem:[%s1 + $0x360] sm:$0xf]
  %v248 = vld [vmem:[%s1 + $0x364] sm:$0xf]
  %v249 = vld [vmem:[%s1 + $0x368] sm:$0xf]
  %v250 = vld [vmem:[%s1 + $0x36c] sm:$0xf]
  %v251 = vld [vmem:[%s1 + $0x370] sm:$0xf]
  %v252 = vld [vmem:[%s1 + $0x374] sm:$0xf]
  %v253 = vld [vmem:[%s1 + $0x378] sm:$0xf]
  %v254 = vld [vmem:[%s1 + $0x37c] sm:$0xf]
  %v255 = vld [vmem:[%s1 + $0x380] sm:$0xf]
  %v256 = vld [vmem:[%s1 + $0x384] sm:$0xf]
  %v257 = vld [vmem:[%s1 + $0x388] sm:$0xf]
  %v258 = vld [vmem:[%s1 + $0x38c] sm:$0xf]
  %v259 = vld [vmem:[%s1 + $0x390] sm:$0xf]
  %v260 = vld [vmem:[%s1 + $0x394] sm:$0xf]
  %v261 = vld [vmem:[%s1 + $0x398] sm:$0xf]
  %v262 = vld [vmem:[%s1 + $0x39c] sm:$0xf]
  %v263 = vld [vmem:[%s1 + $0x3a0] sm:$0xf]
  %v264 = vld [vmem:[%s1 + $0x3a4] sm:$0xf]
  %v265 = vld [vmem:[%s1 + $0x3a8] sm:$0xf]
  %v266 = vld [vmem:[%s1 + $0x3ac] sm:$0xf]
  %v267 = vld [vmem:[%s1 + $0x3b0] sm:$0xf]
  %v268 = vld [vmem:[%s1 + $0x3b4] sm:$0xf]
  %v269 = vld [vmem:[%s1 + $0x3b8] sm:$0xf]
  %v270 = vld [vmem:[%s1 + $0x3bc] sm:$0xf]
  %v271 = vld [vmem:[%s1 + $0x3c0] sm:$0xf]
  %v272 = vld [vmem:[%s1 + $0x3c4] sm:$0xf]
  %v273 = vld [vmem:[%s1 + $0x3c8] sm:$0xf]
  %v274 = vld [vmem:[%s1 + $0x3cc] sm:$0xf]
  %v275 = vld [vmem:[%s1 + $0x3d0] sm:$0xf]
  %v276 = vld [vmem:[%s1 + $0x3d4] sm:$0xf]
  %v277 = vld [vmem:[%s1 + $0x3d8] sm:$0xf]
  %v278 = vld [vmem:[%s1 + $0x3dc] sm:$0xf]
  %v279 = vld [vmem:[%s1 + $0x3e0] sm:$0xf]
  %v280 = vld [vmem:[%s1 + $0x3e4] sm:$0xf]
  %v281 = vld [vmem:[%s1 + $0x3e8] sm:$0xf]
  %v282 = vld [vmem:[%s1 + $0x3ec] sm:$0xf]
  %v283 = vld [vmem:[%s1 + $0x3f0] sm:$0xf]
  %v284 = vld [vmem:[%s1 + $0x3f4] sm:$0xf]
  %v285 = vld [vmem:[%s1 + $0x3f8] sm:$0xf]
  %v286 = vld [vmem:[%s1 + $0x3fc] sm:$0xf]
  %v287 = vld [vmem:[%s1 + $0x400] sm:$0xf]
  %v288 = vld [vmem:[%s1 + $0x404] sm:$0xf]
  %v289 = vld [vmem:[%s1 + $0x408] sm:$0xf]
  %v290 = vld [vmem:[%s1 + $0x40c] sm:$0xf]
  %v291 = vld [vmem:[%s1 + $0x410] sm:$0xf]
  %v292 = vld [vmem:[%s1 + $0x414] sm:$0xf]
  %v293 = vld [vmem:[%s1 + $0x418] sm:$0xf]
  %v294 = vld [vmem:[%s1 + $0x41c] sm:$0xf]
  %v295 = vld [vmem:[%s1 + $0x420] sm:$0xf]
  %v296 = vld [vmem:[%s1 + $0x424] sm:$0xf]
  %v297 = vld [vmem:[%s1 + $0x428] sm:$0xf]
  %v298 = vld [vmem:[%s1 + $0x42c] sm:$0xf]
  %v299 = vld [vmem:[%s1 + $0x430] sm:$0xf]
  %v300 = vld [vmem:[%s1 + $0x434] sm:$0xf]
  %v301 = vld [vmem:[%s1 + $0x438] sm:$0xf]
  %v302 = vld [vmem:[%s1 + $0x43c] sm:$0xf]
  %v303 = vld [vmem:[%s1 + $0x440] sm:$0xf]
  %v304 = vld [vmem:[%s1 + $0x444] sm:$0xf]
  %v305 = vld [vmem:[%s1 + $0x448] sm:$0xf]
  %v306 = vld [vmem:[%s1 + $0x44c] sm:$0xf]
  %v307 = vld [vmem:[%s1 + $0x450] sm:$0xf]
  %v308 = vld [vmem:[%s1 + $0x454] sm:$0xf]
  %v309 = vld [vmem:[%s1 + $0x458] sm:$0xf]
  %v310 = vld [vmem:[%s1 + $0x45c] sm:$0xf]
  %v311 = vld [vmem:[%s1 + $0x460] sm:$0xf]
  %v312 = vld [vmem:[%s1 + $0x464] sm:$0xf]
  %v313 = vld [vmem:[%s1 + $0x468] sm:$0xf]
  %v314 = vld [vmem:[%s1 + $0x46c] sm:$0xf]
  %v315 = vld [vmem:[%s1 + $0x470] sm:$0xf]
  %v316 = vld [vmem:[%s1 + $0x474] sm:$0xf]
  %v317 = vld [vmem:[%s1 + $0x478] sm:$0xf]
  %v318 = vld [vmem:[%s1 + $0x47c] sm:$0xf]
  %v319 = vld [vmem:[%s1 + $0x480] sm:$0xf]
  %v320 = vld [vmem:[%s1 + $0x484] sm:$0xf]
  %v321 = vld [vmem:[%s1 + $0x488] sm:$0xf]
  %v322 = vld [vmem:[%s1 + $0x48c] sm:$0xf]
  %v323 = vld [vmem:[%s1 + $0x490] sm:$0xf]
  %v324 = vld [vmem:[%s1 + $0x494] sm:$0xf]
  %v325 = vld [vmem:[%s1 + $0x498] sm:$0xf]
  %v326 = vld [vmem:[%s1 + $0x49c] sm:$0xf]
  %v327 = vld [vmem:[%s1 + $0x4a0] sm:$0xf]
  %v328 = vld [vmem:[%s1 + $0x4a4] sm:$0xf]
  %v329 = vld [vmem:[%s1 + $0x4a8] sm:$0xf]
  %v330 = vld [vmem:[%s1 + $0x4ac] sm:$0xf]
  %v331 = vld [vmem:[%s1 + $0x4b0] sm:$0xf]
  %v332 = vld [vmem:[%s1 + $0x4b4] sm:$0xf]
  %v333 = vld [vmem:[%s1 + $0x4b8] sm:$0xf]
  %v334 = vld [vmem:[%s1 + $0x4bc] sm:$0xf]
  %v335 = vld [vmem:[%s1 + $0x4c0] sm:$0xf]
  %v336 = vld [vmem:[%s1 + $0x4c4] sm:$0xf]
  %v337 = vld [vmem:[%s1 + $0x4c8] sm:$0xf]
  %v338 = vld [vmem:[%s1 + $0x4cc] sm:$0xf]
  %v339 = vld [vmem:[%s1 + $0x4d0] sm:$0xf]
  %v340 = vld [vmem:[%s1 + $0x4d4] sm:$0xf]
  %v341 = vld [vmem:[%s1 + $0x4d8] sm:$0xf]
  %v342 = vld [vmem:[%s1 + $0x4dc] sm:$0xf]
  %v343 = vld [vmem:[%s1 + $0x4e0] sm:$0xf]
  %v344 = vld [vmem:[%s1 + $0x4e4] sm:$0xf]
  %v345 = vld [vmem:[%s1 + $0x4e8] sm:$0xf]
  %v346 = vld [vmem:[%s1 + $0x4ec] sm:$0xf]
  %v347 = vld [vmem:[%s1 + $0x4f0] sm:$0xf]
  %v348 = vld [vmem:[%s1 + $0x4f4] sm:$0xf]
  %v349 = vld [vmem:[%s1 + $0x4f8] sm:$0xf]
  %v350 = vld [vmem:[%s1 + $0x4fc] sm:$0xf]
  %v351 = vld [vmem:[%s1 + $0x500] sm:$0xf]
  %v352 = vld [vmem:[%s1 + $0x504] sm:$0xf]
  %v353 = vld [vmem:[%s1 + $0x508] sm:$0xf]
  %v354 = vld [vmem:[%s1 + $0x50c] sm:$0xf]
  %v355 = vld [vmem:[%s1 + $0x510] sm:$0xf]
  %v356 = vld [vmem:[%s1 + $0x514] sm:$0xf]
  %v357 = vld [vmem:[%s1 + $0x518] sm:$0xf]
  %v358 = vld [vmem:[%s1 + $0x51c] sm:$0xf]
  %v359 = vld [vmem:[%s1 + $0x520] sm:$0xf]
  %v360 = vld [vmem:[%s1 + $0x524] sm:$0xf]
  %v361 = vld [vmem:[%s1 + $0x528] sm:$0xf]
  %v362 = vld [vmem:[%s1 + $0x52c] sm:$0xf]
  %v363 = vld [vmem:[%s1 + $0x530] sm:$0xf]
  %v364 = vld [vmem:[%s1 + $0x534] sm:$0xf]
  %v365 = vld [vmem:[%s1 + $0x538] sm:$0xf]
  %v366 = vld [vmem:[%s1 + $0x53c] sm:$0xf]
  %v367 = vld [vmem:[%s1 + $0x540] sm:$0xf]
  %v368 = vld [vmem:[%s1 + $0x544] sm:$0xf]
  %v369 = vld [vmem:[%s1 + $0x548] sm:$0xf]
  %v370 = vld [vmem:[%s1 + $0x54c] sm:$0xf]
  %v371 = vld [vmem:[%s1 + $0x550] sm:$0xf]
  %v372 = vld [vmem:[%s1 + $0x554] sm:$0xf]
  %v373 = vld [vmem:[%s1 + $0x558] sm:$0xf]
  %v374 = vld [vmem:[%s1 + $0x55c] sm:$0xf]
  %v375 = vld [vmem:[%s1 + $0x560] sm:$0xf]
  %v376 = vld [vmem:[%s1 + $0x564] sm:$0xf]
  %v377 = vld [vmem:[%s1 + $0x568] sm:$0xf]
  %v378 = vld [vmem:[%s1 + $0x56c] sm:$0xf]
  %v379 = vld [vmem:[%s1 + $0x570] sm:$0xf]
  %v380 = vld [vmem:[%s1 + $0x574] sm:$0xf]
  %v381 = vld [vmem:[%s1 + $0x578] sm:$0xf]
  %v382 = vld [vmem:[%s1 + $0x57c] sm:$0xf]
  %v383 = vld [vmem:[%s1 + $0x580] sm:$0xf]
  %v384 = vld [vmem:[%s1 + $0x584] sm:$0xf]
  %v385 = vld [vmem:[%s1 + $0x588] sm:$0xf]
  %v386 = vld [vmem:[%s1 + $0x58c] sm:$0xf]
  %v387 = vld [vmem:[%s1 + $0x590] sm:$0xf]
  %v388 = vld [vmem:[%s1 + $0x594] sm:$0xf]
  %v389 = vld [vmem:[%s1 + $0x598] sm:$0xf]
  %v390 = vld [vmem:[%s1 + $0x59c] sm:$0xf]
  %v391 = vld [vmem:[%s1 + $0x5a0] sm:$0xf]
  %v392 = vld [vmem:[%s1 + $0x5a4] sm:$0xf]
  %v393 = vld [vmem:[%s1 + $0x5a8] sm:$0xf]
  %v394 = vld [vmem:[%s1 + $0x5ac] sm:$0xf]
  %v395 = vld [vmem:[%s1 + $0x5b0] sm:$0xf]
  %v396 = vld [vmem:[%s1 + $0x5b4] sm:$0xf]
  %v397 = vld [vmem:[%s1 + $0x5b8] sm:$0xf]
  %v398 = vld [vmem:[%s1 + $0x5bc] sm:$0xf]
  %v399 = vld [vmem:[%s1 + $0x5c0] sm:$0xf]
  %v400 = vld [vmem:[%s1 + $0x5c4] sm:$0xf]
  %v401 = vld [vmem:[%s1 + $0x5c8] sm:$0xf]
  %v402 = vld [vmem:[%s1 + $0x5cc] sm:$0xf]
  %v403 = vld [vmem:[%s1 + $0x5d0] sm:$0xf]
  %v404 = vld [vmem:[%s1 + $0x5d4] sm:$0xf]
  %v405 = vld [vmem:[%s1 + $0x5d8] sm:$0xf]
  %v406 = vld [vmem:[%s1 + $0x5dc] sm:$0xf]
  %v407 = vld [vmem:[%s1 + $0x5e0] sm:$0xf]
  %v408 = vld [vmem:[%s1 + $0x5e4] sm:$0xf]
  %v409 = vld [vmem:[%s1 + $0x5e8] sm:$0xf]
  %v410 = vld [vmem:[%s1 + $0x5ec] sm:$0xf]
  %v411 = vld [vmem:[%s1 + $0x5f0] sm:$0xf]
  %v412 = vld [vmem:[%s1 + $0x5f4] sm:$0xf]
  %v413 = vld [vmem:[%s1 + $0x5f8] sm:$0xf]
  %v414 = vld [vmem:[%s1 + $0x5fc] sm:$0xf]
  %v415 = vld [vmem:[%s1 + $0x600] sm:$0xf]
  %v416 = vld [vmem:[%s1 + $0x604] sm:$0xf]
  %v417 = vld [vmem:[%s1 + $0x608] sm:$0xf]
  %v418 = vld [vmem:[%s1 + $0x60c] sm:$0xf]
  %v419 = vld [vmem:[%s1 + $0x610] sm:$0xf]
  %v420 = vld [vmem:[%s1 + $0x614] sm:$0xf]
  %v421 = vld [vmem:[%s1 + $0x618] sm:$0xf]
  %v422 = vld [vmem:[%s1 + $0x61c] sm:$0xf]
  %v423 = vld [vmem:[%s1 + $0x620] sm:$0xf]
  %v424 = vld [vmem:[%s1 + $0x624] sm:$0xf]
  %v425 = vld [vmem:[%s1 + $0x628] sm:$0xf]
  %v426 = vld [vmem:[%s1 + $0x62c] sm:$0xf]
  %v427 = vld [vmem:[%s1 + $0x630] sm:$0xf]
  %v428 = vld [vmem:[%s1 + $0x634] sm:$0xf]
  %v429 = vld [vmem:[%s1 + $0x638] sm:$0xf]
  %v430 = vld [vmem:[%s1 + $0x63c] sm:$0xf]
  %v431 = vld [vmem:[%s1 + $0x640] sm:$0xf]
  %v432 = vld [vmem:[%s1 + $0x644] sm:$0xf]
  %v433 = vld [vmem:[%s1 + $0x648] sm:$0xf]
  %v434 = vld [vmem:[%s1 + $0x64c] sm:$0xf]
  %v435 = vld [vmem:[%s1 + $0x650] sm:$0xf]
  %v436 = vld [vmem:[%s1 + $0x654] sm:$0xf]
  %v437 = vld [vmem:[%s1 + $0x658] sm:$0xf]
  %v438 = vld [vmem:[%s1 + $0x65c] sm:$0xf]
  %v439 = vld [vmem:[%s1 + $0x660] sm:$0xf]
  %v440 = vld [vmem:[%s1 + $0x664] sm:$0xf]
  %v441 = vld [vmem:[%s1 + $0x668] sm:$0xf]
  %v442 = vld [vmem:[%s1 + $0x66c] sm:$0xf]
  %v443 = vld [vmem:[%s1 + $0x670] sm:$0xf]
  %v444 = vld [vmem:[%s1 + $0x674] sm:$0xf]
  %v445 = vld [vmem:[%s1 + $0x678] sm:$0xf]
  %v446 = vld [vmem:[%s1 + $0x67c] sm:$0xf]
  %v447 = vld [vmem:[%s1 + $0x680] sm:$0xf]
  %v448 = vld [vmem:[%s1 + $0x684] sm:$0xf]
  %v449 = vld [vmem:[%s1 + $0x688] sm:$0xf]
  %v450 = vld [vmem:[%s1 + $0x68c] sm:$0xf]
  %v451 = vld [vmem:[%s1 + $0x690] sm:$0xf]
  %v452 = vld [vmem:[%s1 + $0x694] sm:$0xf]
  %v453 = vld [vmem:[%s1 + $0x698] sm:$0xf]
  %v454 = vld [vmem:[%s1 + $0x69c] sm:$0xf]
  %v455 = vld [vmem:[%s1 + $0x6a0] sm:$0xf]
  %v456 = vld [vmem:[%s1 + $0x6a4] sm:$0xf]
  %v457 = vld [vmem:[%s1 + $0x6a8] sm:$0xf]
  %v458 = vld [vmem:[%s1 + $0x6ac] sm:$0xf]
  %v459 = vld [vmem:[%s1 + $0x6b0] sm:$0xf]
  %v460 = vld [vmem:[%s1 + $0x6b4] sm:$0xf]
  %v461 = vld [vmem:[%s1 + $0x6b8] sm:$0xf]
  %v462 = vld [vmem:[%s1 + $0x6bc] sm:$0xf]
  %v463 = vld [vmem:[%s1 + $0x6c0] sm:$0xf]
  %v464 = vld [vmem:[%s1 + $0x6c4] sm:$0xf]
  %v465 = vld [vmem:[%s1 + $0x6c8] sm:$0xf]
  %v466 = vld [vmem:[%s1 + $0x6cc] sm:$0xf]
  %v467 = vld [vmem:[%s1 + $0x6d0] sm:$0xf]
  %v468 = vld [vmem:[%s1 + $0x6d4] sm:$0xf]
  %v469 = vld [vmem:[%s1 + $0x6d8] sm:$0xf]
  %v470 = vld [vmem:[%s1 + $0x6dc] sm:$0xf]
  %v471 = vld [vmem:[%s1 + $0x6e0] sm:$0xf]
  %v472 = vld [vmem:[%s1 + $0x6e4] sm:$0xf]
  %v473 = vld [vmem:[%s1 + $0x6e8] sm:$0xf]
  %v474 = vld [vmem:[%s1 + $0x6ec] sm:$0xf]
  %v475 = vld [vmem:[%s1 + $0x6f0] sm:$0xf]
  %v476 = vld [vmem:[%s1 + $0x6f4] sm:$0xf]
  %v477 = vld [vmem:[%s1 + $0x6f8] sm:$0xf]
  %v478 = vld [vmem:[%s1 + $0x6fc] sm:$0xf]
  %v479 = vld [vmem:[%s1 + $0x700] sm:$0xf]
  %v480 = vld [vmem:[%s1 + $0x704] sm:$0xf]
  %v481 = vld [vmem:[%s1 + $0x708] sm:$0xf]
  %v482 = vld [vmem:[%s1 + $0x70c] sm:$0xf]
  %v483 = vld [vmem:[%s1 + $0x710] sm:$0xf]
  %v484 = vld [vmem:[%s1 + $0x714] sm:$0xf]
  %v485 = vld [vmem:[%s1 + $0x718] sm:$0xf]
  %v486 = vld [vmem:[%s1 + $0x71c] sm:$0xf]
  %v487 = vld [vmem:[%s1 + $0x720] sm:$0xf]
  %v488 = vld [vmem:[%s1 + $0x724] sm:$0xf]
  %v489 = vld [vmem:[%s1 + $0x728] sm:$0xf]
  %v490 = vld [vmem:[%s1 + $0x72c] sm:$0xf]
  %v491 = vld [vmem:[%s1 + $0x730] sm:$0xf]
  %v492 = vld [vmem:[%s1 + $0x734] sm:$0xf]
  %v493 = vld [vmem:[%s1 + $0x738] sm:$0xf]
  %v494 = vld [vmem:[%s1 + $0x73c] sm:$0xf]
  %v495 = vld [vmem:[%s1 + $0x740] sm:$0xf]
  %v496 = vld [vmem:[%s1 + $0x744] sm:$0xf]
  %v497 = vld [vmem:[%s1 + $0x748] sm:$0xf]
  %v498 = vld [vmem:[%s1 + $0x74c] sm:$0xf]
  %v499 = vld [vmem:[%s1 + $0x750] sm:$0xf]
  %v500 = vld [vmem:[%s1 + $0x754] sm:$0xf]
  %v501 = vld [vmem:[%s1 + $0x758] sm:$0xf]
  %v502 = vld [vmem:[%s1 + $0x75c] sm:$0xf]
  %v503 = vld [vmem:[%s1 + $0x760] sm:$0xf]
  %v504 = vld [vmem:[%s1 + $0x764] sm:$0xf]
  %v505 = vld [vmem:[%s1 + $0x768] sm:$0xf]
  %v506 = vld [vmem:[%s1 + $0x76c] sm:$0xf]
  %v507 = vld [vmem:[%s1 + $0x770] sm:$0xf]
  %v508 = vld [vmem:[%s1 + $0x774] sm:$0xf]
  %v509 = vld [vmem:[%s1 + $0x778] sm:$0xf]
  %v510 = vld [vmem:[%s1 + $0x77c] sm:$0xf]
  %v511 = vld [vmem:[%s1 + $0x780] sm:$0xf]
  %v512 = vld [vmem:[%s1 + $0x784] sm:$0xf]
  %v513 = vld [vmem:[%s1 + $0x788] sm:$0xf]
  %v514 = vld [vmem:[%s1 + $0x78c] sm:$0xf]
  %v515 = vld [vmem:[%s1 + $0x790] sm:$0xf]
  %v516 = vld [vmem:[%s1 + $0x794] sm:$0xf]
  %v517 = vld [vmem:[%s1 + $0x798] sm:$0xf]
  %v518 = vld [vmem:[%s1 + $0x79c] sm:$0xf]
  %v519 = vld [vmem:[%s1 + $0x7a0] sm:$0xf]
  %v520 = vld [vmem:[%s1 + $0x7a4] sm:$0xf]
  %v521 = vld [vmem:[%s1 + $0x7a8] sm:$0xf]
  %v522 = vld [vmem:[%s1 + $0x7ac] sm:$0xf]
  %v523 = vld [vmem:[%s1 + $0x7b0] sm:$0xf]
  %v524 = vld [vmem:[%s1 + $0x7b4] sm:$0xf]
  %v525 = vld [vmem:[%s1 + $0x7b8] sm:$0xf]
  %v526 = vld [vmem:[%s1 + $0x7bc] sm:$0xf]
  %v527 = vld [vmem:[%s1 + $0x7c0] sm:$0xf]
  %v528 = vld [vmem:[%s1 + $0x7c4] sm:$0xf]
  %v529 = vld [vmem:[%s1 + $0x7c8] sm:$0xf]
  %v530 = vld [vmem:[%s1 + $0x7cc] sm:$0xf]
  %v531 = vld [vmem:[%s1 + $0x7d0] sm:$0xf]
  %v532 = vld [vmem:[%s1 + $0x7d4] sm:$0xf]
  %v533 = vld [vmem:[%s1 + $0x7d8] sm:$0xf]
  %v534 = vld [vmem:[%s1 + $0x7dc] sm:$0xf]
  %v535 = vld [vmem:[%s1 + $0x7e0] sm:$0xf]
  %v536 = vld [vmem:[%s1 + $0x7e4] sm:$0xf]
  %v537 = vld [vmem:[%s1 + $0x7e8] sm:$0xf]
  %v538 = vld [vmem:[%s1 + $0x7ec] sm:$0xf]
  %v539 = vld [vmem:[%s1 + $0x7f0] sm:$0xf]
  %v540 = vld [vmem:[%s1 + $0x7f4] sm:$0xf]
  %v541 = vld [vmem:[%s1 + $0x7f8] sm:$0xf]
  %v542 = vld [vmem:[%s1 + $0x7fc] sm:$0xf]
  %v543 = vld [vmem:[%s2] sm:$0x1]
  %v545 = vlaneseq
  %v546 = vshrl.u32 %v545, 7
  %v547 = vsub.s32 0, %v546
  %v548 = vrot.slane %v543, %v547
  %v566 = vunpack.c.l.b16 %v15
  %v567 = vunpack.c.h.b16 %v15
  %v568 = vunpack.c.l.b16 %v16
  %v569 = vunpack.c.h.b16 %v16
  %v570 = vunpack.c.l.b16 %v17
  %v571 = vunpack.c.h.b16 %v17
  %v572 = vunpack.c.l.b16 %v18
  %v573 = vunpack.c.h.b16 %v18
  %v574 = vunpack.c.l.b16 %v19
  %v575 = vunpack.c.h.b16 %v19
  %v576 = vunpack.c.l.b16 %v20
  %v577 = vunpack.c.h.b16 %v20
  %v578 = vunpack.c.l.b16 %v21
  %v579 = vunpack.c.h.b16 %v21
  %v580 = vunpack.c.l.b16 %v22
  %v581 = vunpack.c.h.b16 %v22
  %v582 = vunpack.c.l.b16 %v23
  %v583 = vunpack.c.h.b16 %v23
  %v584 = vunpack.c.l.b16 %v24
  %v585 = vunpack.c.h.b16 %v24
  %v586 = vunpack.c.l.b16 %v25
  %v587 = vunpack.c.h.b16 %v25
  %v588 = vunpack.c.l.b16 %v26
  %v589 = vunpack.c.h.b16 %v26
  %v590 = vunpack.c.l.b16 %v27
  %v591 = vunpack.c.h.b16 %v27
  %v592 = vunpack.c.l.b16 %v28
  %v593 = vunpack.c.h.b16 %v28
  %v594 = vunpack.c.l.b16 %v29
  %v595 = vunpack.c.h.b16 %v29
  %v596 = vunpack.c.l.b16 %v30
  %v597 = vunpack.c.h.b16 %v30
  %v598 = vpack.c.b16 %v566, %v566
  %v599 = vpack.c.b16 %v567, %v567
  %v600 = vpack.c.b16 %v568, %v568
  %v601 = vpack.c.b16 %v569, %v569
  %v602 = vpack.c.b16 %v570, %v570
  %v603 = vpack.c.b16 %v571, %v571
  %v604 = vpack.c.b16 %v572, %v572
  %v605 = vpack.c.b16 %v573, %v573
  %v606 = vpack.c.b16 %v574, %v574
  %v607 = vpack.c.b16 %v575, %v575
  %v608 = vpack.c.b16 %v576, %v576
  %v609 = vpack.c.b16 %v577, %v577
  %v610 = vpack.c.b16 %v578, %v578
  %v611 = vpack.c.b16 %v579, %v579
  %v612 = vpack.c.b16 %v580, %v580
  %v613 = vpack.c.b16 %v581, %v581
  %v614 = vpack.c.b16 %v582, %v582
  %v615 = vpack.c.b16 %v583, %v583
  %v616 = vpack.c.b16 %v584, %v584
  %v617 = vpack.c.b16 %v585, %v585
  %v618 = vpack.c.b16 %v586, %v586
  %v619 = vpack.c.b16 %v587, %v587
  %v620 = vpack.c.b16 %v588, %v588
  %v621 = vpack.c.b16 %v589, %v589
  %v622 = vpack.c.b16 %v590, %v590
  %v623 = vpack.c.b16 %v591, %v591
  %v624 = vpack.c.b16 %v592, %v592
  %v625 = vpack.c.b16 %v593, %v593
  %v626 = vpack.c.b16 %v594, %v594
  %v627 = vpack.c.b16 %v595, %v595
  %v628 = vpack.c.b16 %v596, %v596
  %v629 = vpack.c.b16 %v597, %v597
  %v1174 = vunpack.c.l.b16 %v31
  %v1175 = vunpack.c.l.b16 %v32
  %v1176 = vunpack.c.l.b16 %v33
  %v1177 = vunpack.c.l.b16 %v34
  %v1178 = vunpack.c.l.b16 %v35
  %v1179 = vunpack.c.l.b16 %v36
  %v1180 = vunpack.c.l.b16 %v37
  %v1181 = vunpack.c.l.b16 %v38
  %v1182 = vunpack.c.l.b16 %v39
  %v1183 = vunpack.c.l.b16 %v40
  %v1184 = vunpack.c.l.b16 %v41
  %v1185 = vunpack.c.l.b16 %v42
  %v1186 = vunpack.c.l.b16 %v43
  %v1187 = vunpack.c.l.b16 %v44
  %v1188 = vunpack.c.l.b16 %v45
  %v1189 = vunpack.c.l.b16 %v46
  %v1190 = vunpack.c.l.b16 %v47
  %v1191 = vunpack.c.l.b16 %v48
  %v1192 = vunpack.c.l.b16 %v49
  %v1193 = vunpack.c.l.b16 %v50
  %v1194 = vunpack.c.l.b16 %v51
  %v1195 = vunpack.c.l.b16 %v52
  %v1196 = vunpack.c.l.b16 %v53
  %v1197 = vunpack.c.l.b16 %v54
  %v1198 = vunpack.c.l.b16 %v55
  %v1199 = vunpack.c.l.b16 %v56
  %v1200 = vunpack.c.l.b16 %v57
  %v1201 = vunpack.c.l.b16 %v58
  %v1202 = vunpack.c.l.b16 %v59
  %v1203 = vunpack.c.l.b16 %v60
  %v1204 = vunpack.c.l.b16 %v61
  %v1205 = vunpack.c.l.b16 %v62
  %v1206 = vunpack.c.l.b16 %v63
  %v1207 = vunpack.c.l.b16 %v64
  %v1208 = vunpack.c.l.b16 %v65
  %v1209 = vunpack.c.l.b16 %v66
  %v1210 = vunpack.c.l.b16 %v67
  %v1211 = vunpack.c.l.b16 %v68
  %v1212 = vunpack.c.l.b16 %v69
  %v1213 = vunpack.c.l.b16 %v70
  %v1214 = vunpack.c.l.b16 %v71
  %v1215 = vunpack.c.l.b16 %v72
  %v1216 = vunpack.c.l.b16 %v73
  %v1217 = vunpack.c.l.b16 %v74
  %v1218 = vunpack.c.l.b16 %v75
  %v1219 = vunpack.c.l.b16 %v76
  %v1220 = vunpack.c.l.b16 %v77
  %v1221 = vunpack.c.l.b16 %v78
  %v1222 = vunpack.c.l.b16 %v79
  %v1223 = vunpack.c.l.b16 %v80
  %v1224 = vunpack.c.l.b16 %v81
  %v1225 = vunpack.c.l.b16 %v82
  %v1226 = vunpack.c.l.b16 %v83
  %v1227 = vunpack.c.l.b16 %v84
  %v1228 = vunpack.c.l.b16 %v85
  %v1229 = vunpack.c.l.b16 %v86
  %v1230 = vunpack.c.l.b16 %v87
  %v1231 = vunpack.c.l.b16 %v88
  %v1232 = vunpack.c.l.b16 %v89
  %v1233 = vunpack.c.l.b16 %v90
  %v1234 = vunpack.c.l.b16 %v91
  %v1235 = vunpack.c.l.b16 %v92
  %v1236 = vunpack.c.l.b16 %v93
  %v1237 = vunpack.c.l.b16 %v94
  %v1238 = vunpack.c.l.b16 %v95
  %v1239 = vunpack.c.l.b16 %v96
  %v1240 = vunpack.c.l.b16 %v97
  %v1241 = vunpack.c.l.b16 %v98
  %v1242 = vunpack.c.l.b16 %v99
  %v1243 = vunpack.c.l.b16 %v100
  %v1244 = vunpack.c.l.b16 %v101
  %v1245 = vunpack.c.l.b16 %v102
  %v1246 = vunpack.c.l.b16 %v103
  %v1247 = vunpack.c.l.b16 %v104
  %v1248 = vunpack.c.l.b16 %v105
  %v1249 = vunpack.c.l.b16 %v106
  %v1250 = vunpack.c.l.b16 %v107
  %v1251 = vunpack.c.l.b16 %v108
  %v1252 = vunpack.c.l.b16 %v109
  %v1253 = vunpack.c.l.b16 %v110
  %v1254 = vunpack.c.l.b16 %v111
  %v1255 = vunpack.c.l.b16 %v112
  %v1256 = vunpack.c.l.b16 %v113
  %v1257 = vunpack.c.l.b16 %v114
  %v1258 = vunpack.c.l.b16 %v115
  %v1259 = vunpack.c.l.b16 %v116
  %v1260 = vunpack.c.l.b16 %v117
  %v1261 = vunpack.c.l.b16 %v118
  %v1262 = vunpack.c.l.b16 %v119
  %v1263 = vunpack.c.l.b16 %v120
  %v1264 = vunpack.c.l.b16 %v121
  %v1265 = vunpack.c.l.b16 %v122
  %v1266 = vunpack.c.l.b16 %v123
  %v1267 = vunpack.c.l.b16 %v124
  %v1268 = vunpack.c.l.b16 %v125
  %v1269 = vunpack.c.l.b16 %v126
  %v1270 = vunpack.c.l.b16 %v127
  %v1271 = vunpack.c.l.b16 %v128
  %v1272 = vunpack.c.l.b16 %v129
  %v1273 = vunpack.c.l.b16 %v130
  %v1274 = vunpack.c.l.b16 %v131
  %v1275 = vunpack.c.l.b16 %v132
  %v1276 = vunpack.c.l.b16 %v133
  %v1277 = vunpack.c.l.b16 %v134
  %v1278 = vunpack.c.l.b16 %v135
  %v1279 = vunpack.c.l.b16 %v136
  %v1280 = vunpack.c.l.b16 %v137
  %v1281 = vunpack.c.l.b16 %v138
  %v1282 = vunpack.c.l.b16 %v139
  %v1283 = vunpack.c.l.b16 %v140
  %v1284 = vunpack.c.l.b16 %v141
  %v1285 = vunpack.c.l.b16 %v142
  %v1286 = vunpack.c.l.b16 %v143
  %v1287 = vunpack.c.l.b16 %v144
  %v1288 = vunpack.c.l.b16 %v145
  %v1289 = vunpack.c.l.b16 %v146
  %v1290 = vunpack.c.l.b16 %v147
  %v1291 = vunpack.c.l.b16 %v148
  %v1292 = vunpack.c.l.b16 %v149
  %v1293 = vunpack.c.l.b16 %v150
  %v1294 = vunpack.c.l.b16 %v151
  %v1295 = vunpack.c.l.b16 %v152
  %v1296 = vunpack.c.l.b16 %v153
  %v1297 = vunpack.c.l.b16 %v154
  %v1298 = vunpack.c.l.b16 %v155
  %v1299 = vunpack.c.l.b16 %v156
  %v1300 = vunpack.c.l.b16 %v157
  %v1301 = vunpack.c.l.b16 %v158
  %v1302 = vunpack.c.l.b16 %v159
  %v1303 = vunpack.c.l.b16 %v160
  %v1304 = vunpack.c.l.b16 %v161
  %v1305 = vunpack.c.l.b16 %v162
  %v1306 = vunpack.c.l.b16 %v163
  %v1307 = vunpack.c.l.b16 %v164
  %v1308 = vunpack.c.l.b16 %v165
  %v1309 = vunpack.c.l.b16 %v166
  %v1310 = vunpack.c.l.b16 %v167
  %v1311 = vunpack.c.l.b16 %v168
  %v1312 = vunpack.c.l.b16 %v169
  %v1313 = vunpack.c.l.b16 %v170
  %v1314 = vunpack.c.l.b16 %v171
  %v1315 = vunpack.c.l.b16 %v172
  %v1316 = vunpack.c.l.b16 %v173
  %v1317 = vunpack.c.l.b16 %v174
  %v1318 = vunpack.c.l.b16 %v175
  %v1319 = vunpack.c.l.b16 %v176
  %v1320 = vunpack.c.l.b16 %v177
  %v1321 = vunpack.c.l.b16 %v178
  %v1322 = vunpack.c.l.b16 %v179
  %v1323 = vunpack.c.l.b16 %v180
  %v1324 = vunpack.c.l.b16 %v181
  %v1325 = vunpack.c.l.b16 %v182
  %v1326 = vunpack.c.l.b16 %v183
  %v1327 = vunpack.c.l.b16 %v184
  %v1328 = vunpack.c.l.b16 %v185
  %v1329 = vunpack.c.l.b16 %v186
  %v1330 = vunpack.c.l.b16 %v187
  %v1331 = vunpack.c.l.b16 %v188
  %v1332 = vunpack.c.l.b16 %v189
  %v1333 = vunpack.c.l.b16 %v190
  %v1334 = vunpack.c.l.b16 %v191
  %v1335 = vunpack.c.l.b16 %v192
  %v1336 = vunpack.c.l.b16 %v193
  %v1337 = vunpack.c.l.b16 %v194
  %v1338 = vunpack.c.l.b16 %v195
  %v1339 = vunpack.c.l.b16 %v196
  %v1340 = vunpack.c.l.b16 %v197
  %v1341 = vunpack.c.l.b16 %v198
  %v1342 = vunpack.c.l.b16 %v199
  %v1343 = vunpack.c.l.b16 %v200
  %v1344 = vunpack.c.l.b16 %v201
  %v1345 = vunpack.c.l.b16 %v202
  %v1346 = vunpack.c.l.b16 %v203
  %v1347 = vunpack.c.l.b16 %v204
  %v1348 = vunpack.c.l.b16 %v205
  %v1349 = vunpack.c.l.b16 %v206
  %v1350 = vunpack.c.l.b16 %v207
  %v1351 = vunpack.c.l.b16 %v208
  %v1352 = vunpack.c.l.b16 %v209
  %v1353 = vunpack.c.l.b16 %v210
  %v1354 = vunpack.c.l.b16 %v211
  %v1355 = vunpack.c.l.b16 %v212
  %v1356 = vunpack.c.l.b16 %v213
  %v1357 = vunpack.c.l.b16 %v214
  %v1358 = vunpack.c.l.b16 %v215
  %v1359 = vunpack.c.l.b16 %v216
  %v1360 = vunpack.c.l.b16 %v217
  %v1361 = vunpack.c.l.b16 %v218
  %v1362 = vunpack.c.l.b16 %v219
  %v1363 = vunpack.c.l.b16 %v220
  %v1364 = vunpack.c.l.b16 %v221
  %v1365 = vunpack.c.l.b16 %v222
  %v1366 = vunpack.c.l.b16 %v223
  %v1367 = vunpack.c.l.b16 %v224
  %v1368 = vunpack.c.l.b16 %v225
  %v1369 = vunpack.c.l.b16 %v226
  %v1370 = vunpack.c.l.b16 %v227
  %v1371 = vunpack.c.l.b16 %v228
  %v1372 = vunpack.c.l.b16 %v229
  %v1373 = vunpack.c.l.b16 %v230
  %v1374 = vunpack.c.l.b16 %v231
  %v1375 = vunpack.c.l.b16 %v232
  %v1376 = vunpack.c.l.b16 %v233
  %v1377 = vunpack.c.l.b16 %v234
  %v1378 = vunpack.c.l.b16 %v235
  %v1379 = vunpack.c.l.b16 %v236
  %v1380 = vunpack.c.l.b16 %v237
  %v1381 = vunpack.c.l.b16 %v238
  %v1382 = vunpack.c.l.b16 %v239
  %v1383 = vunpack.c.l.b16 %v240
  %v1384 = vunpack.c.l.b16 %v241
  %v1385 = vunpack.c.l.b16 %v242
  %v1386 = vunpack.c.l.b16 %v243
  %v1387 = vunpack.c.l.b16 %v244
  %v1388 = vunpack.c.l.b16 %v245
  %v1389 = vunpack.c.l.b16 %v246
  %v1390 = vunpack.c.l.b16 %v247
  %v1391 = vunpack.c.l.b16 %v248
  %v1392 = vunpack.c.l.b16 %v249
  %v1393 = vunpack.c.l.b16 %v250
  %v1394 = vunpack.c.l.b16 %v251
  %v1395 = vunpack.c.l.b16 %v252
  %v1396 = vunpack.c.l.b16 %v253
  %v1397 = vunpack.c.l.b16 %v254
  %v1398 = vunpack.c.l.b16 %v255
  %v1399 = vunpack.c.l.b16 %v256
  %v1400 = vunpack.c.l.b16 %v257
  %v1401 = vunpack.c.l.b16 %v258
  %v1402 = vunpack.c.l.b16 %v259
  %v1403 = vunpack.c.l.b16 %v260
  %v1404 = vunpack.c.l.b16 %v261
  %v1405 = vunpack.c.l.b16 %v262
  %v1406 = vunpack.c.l.b16 %v263
  %v1407 = vunpack.c.l.b16 %v264
  %v1408 = vunpack.c.l.b16 %v265
  %v1409 = vunpack.c.l.b16 %v266
  %v1410 = vunpack.c.l.b16 %v267
  %v1411 = vunpack.c.l.b16 %v268
  %v1412 = vunpack.c.l.b16 %v269
  %v1413 = vunpack.c.l.b16 %v270
  %v1414 = vunpack.c.l.b16 %v271
  %v1415 = vunpack.c.l.b16 %v272
  %v1416 = vunpack.c.l.b16 %v273
  %v1417 = vunpack.c.l.b16 %v274
  %v1418 = vunpack.c.l.b16 %v275
  %v1419 = vunpack.c.l.b16 %v276
  %v1420 = vunpack.c.l.b16 %v277
  %v1421 = vunpack.c.l.b16 %v278
  %v1422 = vunpack.c.l.b16 %v279
  %v1423 = vunpack.c.l.b16 %v280
  %v1424 = vunpack.c.l.b16 %v281
  %v1425 = vunpack.c.l.b16 %v282
  %v1426 = vunpack.c.l.b16 %v283
  %v1427 = vunpack.c.l.b16 %v284
  %v1428 = vunpack.c.l.b16 %v285
  %v1429 = vunpack.c.l.b16 %v286
  %v1430 = vunpack.c.l.b16 %v287
  %v1431 = vunpack.c.l.b16 %v288
  %v1432 = vunpack.c.l.b16 %v289
  %v1433 = vunpack.c.l.b16 %v290
  %v1434 = vunpack.c.l.b16 %v291
  %v1435 = vunpack.c.l.b16 %v292
  %v1436 = vunpack.c.l.b16 %v293
  %v1437 = vunpack.c.l.b16 %v294
  %v1438 = vunpack.c.l.b16 %v295
  %v1439 = vunpack.c.l.b16 %v296
  %v1440 = vunpack.c.l.b16 %v297
  %v1441 = vunpack.c.l.b16 %v298
  %v1442 = vunpack.c.l.b16 %v299
  %v1443 = vunpack.c.l.b16 %v300
  %v1444 = vunpack.c.l.b16 %v301
  %v1445 = vunpack.c.l.b16 %v302
  %v1446 = vunpack.c.l.b16 %v303
  %v1447 = vunpack.c.l.b16 %v304
  %v1448 = vunpack.c.l.b16 %v305
  %v1449 = vunpack.c.l.b16 %v306
  %v1450 = vunpack.c.l.b16 %v307
  %v1451 = vunpack.c.l.b16 %v308
  %v1452 = vunpack.c.l.b16 %v309
  %v1453 = vunpack.c.l.b16 %v310
  %v1454 = vunpack.c.l.b16 %v311
  %v1455 = vunpack.c.l.b16 %v312
  %v1456 = vunpack.c.l.b16 %v313
  %v1457 = vunpack.c.l.b16 %v314
  %v1458 = vunpack.c.l.b16 %v315
  %v1459 = vunpack.c.l.b16 %v316
  %v1460 = vunpack.c.l.b16 %v317
  %v1461 = vunpack.c.l.b16 %v318
  %v1462 = vunpack.c.l.b16 %v319
  %v1463 = vunpack.c.l.b16 %v320
  %v1464 = vunpack.c.l.b16 %v321
  %v1465 = vunpack.c.l.b16 %v322
  %v1466 = vunpack.c.l.b16 %v323
  %v1467 = vunpack.c.l.b16 %v324
  %v1468 = vunpack.c.l.b16 %v325
  %v1469 = vunpack.c.l.b16 %v326
  %v1470 = vunpack.c.l.b16 %v327
  %v1471 = vunpack.c.l.b16 %v328
  %v1472 = vunpack.c.l.b16 %v329
  %v1473 = vunpack.c.l.b16 %v330
  %v1474 = vunpack.c.l.b16 %v331
  %v1475 = vunpack.c.l.b16 %v332
  %v1476 = vunpack.c.l.b16 %v333
  %v1477 = vunpack.c.l.b16 %v334
  %v1478 = vunpack.c.l.b16 %v335
  %v1479 = vunpack.c.l.b16 %v336
  %v1480 = vunpack.c.l.b16 %v337
  %v1481 = vunpack.c.l.b16 %v338
  %v1482 = vunpack.c.l.b16 %v339
  %v1483 = vunpack.c.l.b16 %v340
  %v1484 = vunpack.c.l.b16 %v341
  %v1485 = vunpack.c.l.b16 %v342
  %v1486 = vunpack.c.l.b16 %v343
  %v1487 = vunpack.c.l.b16 %v344
  %v1488 = vunpack.c.l.b16 %v345
  %v1489 = vunpack.c.l.b16 %v346
  %v1490 = vunpack.c.l.b16 %v347
  %v1491 = vunpack.c.l.b16 %v348
  %v1492 = vunpack.c.l.b16 %v349
  %v1493 = vunpack.c.l.b16 %v350
  %v1494 = vunpack.c.l.b16 %v351
  %v1495 = vunpack.c.l.b16 %v352
  %v1496 = vunpack.c.l.b16 %v353
  %v1497 = vunpack.c.l.b16 %v354
  %v1498 = vunpack.c.l.b16 %v355
  %v1499 = vunpack.c.l.b16 %v356
  %v1500 = vunpack.c.l.b16 %v357
  %v1501 = vunpack.c.l.b16 %v358
  %v1502 = vunpack.c.l.b16 %v359
  %v1503 = vunpack.c.l.b16 %v360
  %v1504 = vunpack.c.l.b16 %v361
  %v1505 = vunpack.c.l.b16 %v362
  %v1506 = vunpack.c.l.b16 %v363
  %v1507 = vunpack.c.l.b16 %v364
  %v1508 = vunpack.c.l.b16 %v365
  %v1509 = vunpack.c.l.b16 %v366
  %v1510 = vunpack.c.l.b16 %v367
  %v1511 = vunpack.c.l.b16 %v368
  %v1512 = vunpack.c.l.b16 %v369
  %v1513 = vunpack.c.l.b16 %v370
  %v1514 = vunpack.c.l.b16 %v371
  %v1515 = vunpack.c.l.b16 %v372
  %v1516 = vunpack.c.l.b16 %v373
  %v1517 = vunpack.c.l.b16 %v374
  %v1518 = vunpack.c.l.b16 %v375
  %v1519 = vunpack.c.l.b16 %v376
  %v1520 = vunpack.c.l.b16 %v377
  %v1521 = vunpack.c.l.b16 %v378
  %v1522 = vunpack.c.l.b16 %v379
  %v1523 = vunpack.c.l.b16 %v380
  %v1524 = vunpack.c.l.b16 %v381
  %v1525 = vunpack.c.l.b16 %v382
  %v1526 = vunpack.c.l.b16 %v383
  %v1527 = vunpack.c.l.b16 %v384
  %v1528 = vunpack.c.l.b16 %v385
  %v1529 = vunpack.c.l.b16 %v386
  %v1530 = vunpack.c.l.b16 %v387
  %v1531 = vunpack.c.l.b16 %v388
  %v1532 = vunpack.c.l.b16 %v389
  %v1533 = vunpack.c.l.b16 %v390
  %v1534 = vunpack.c.l.b16 %v391
  %v1535 = vunpack.c.l.b16 %v392
  %v1536 = vunpack.c.l.b16 %v393
  %v1537 = vunpack.c.l.b16 %v394
  %v1538 = vunpack.c.l.b16 %v395
  %v1539 = vunpack.c.l.b16 %v396
  %v1540 = vunpack.c.l.b16 %v397
  %v1541 = vunpack.c.l.b16 %v398
  %v1542 = vunpack.c.l.b16 %v399
  %v1543 = vunpack.c.l.b16 %v400
  %v1544 = vunpack.c.l.b16 %v401
  %v1545 = vunpack.c.l.b16 %v402
  %v1546 = vunpack.c.l.b16 %v403
  %v1547 = vunpack.c.l.b16 %v404
  %v1548 = vunpack.c.l.b16 %v405
  %v1549 = vunpack.c.l.b16 %v406
  %v1550 = vunpack.c.l.b16 %v407
  %v1551 = vunpack.c.l.b16 %v408
  %v1552 = vunpack.c.l.b16 %v409
  %v1553 = vunpack.c.l.b16 %v410
  %v1554 = vunpack.c.l.b16 %v411
  %v1555 = vunpack.c.l.b16 %v412
  %v1556 = vunpack.c.l.b16 %v413
  %v1557 = vunpack.c.l.b16 %v414
  %v1558 = vunpack.c.l.b16 %v415
  %v1559 = vunpack.c.l.b16 %v416
  %v1560 = vunpack.c.l.b16 %v417
  %v1561 = vunpack.c.l.b16 %v418
  %v1562 = vunpack.c.l.b16 %v419
  %v1563 = vunpack.c.l.b16 %v420
  %v1564 = vunpack.c.l.b16 %v421
  %v1565 = vunpack.c.l.b16 %v422
  %v1566 = vunpack.c.l.b16 %v423
  %v1567 = vunpack.c.l.b16 %v424
  %v1568 = vunpack.c.l.b16 %v425
  %v1569 = vunpack.c.l.b16 %v426
  %v1570 = vunpack.c.l.b16 %v427
  %v1571 = vunpack.c.l.b16 %v428
  %v1572 = vunpack.c.l.b16 %v429
  %v1573 = vunpack.c.l.b16 %v430
  %v1574 = vunpack.c.l.b16 %v431
  %v1575 = vunpack.c.l.b16 %v432
  %v1576 = vunpack.c.l.b16 %v433
  %v1577 = vunpack.c.l.b16 %v434
  %v1578 = vunpack.c.l.b16 %v435
  %v1579 = vunpack.c.l.b16 %v436
  %v1580 = vunpack.c.l.b16 %v437
  %v1581 = vunpack.c.l.b16 %v438
  %v1582 = vunpack.c.l.b16 %v439
  %v1583 = vunpack.c.l.b16 %v440
  %v1584 = vunpack.c.l.b16 %v441
  %v1585 = vunpack.c.l.b16 %v442
  %v1586 = vunpack.c.l.b16 %v443
  %v1587 = vunpack.c.l.b16 %v444
  %v1588 = vunpack.c.l.b16 %v445
  %v1589 = vunpack.c.l.b16 %v446
  %v1590 = vunpack.c.l.b16 %v447
  %v1591 = vunpack.c.l.b16 %v448
  %v1592 = vunpack.c.l.b16 %v449
  %v1593 = vunpack.c.l.b16 %v450
  %v1594 = vunpack.c.l.b16 %v451
  %v1595 = vunpack.c.l.b16 %v452
  %v1596 = vunpack.c.l.b16 %v453
  %v1597 = vunpack.c.l.b16 %v454
  %v1598 = vunpack.c.l.b16 %v455
  %v1599 = vunpack.c.l.b16 %v456
  %v1600 = vunpack.c.l.b16 %v457
  %v1601 = vunpack.c.l.b16 %v458
  %v1602 = vunpack.c.l.b16 %v459
  %v1603 = vunpack.c.l.b16 %v460
  %v1604 = vunpack.c.l.b16 %v461
  %v1605 = vunpack.c.l.b16 %v462
  %v1606 = vunpack.c.l.b16 %v463
  %v1607 = vunpack.c.l.b16 %v464
  %v1608 = vunpack.c.l.b16 %v465
  %v1609 = vunpack.c.l.b16 %v466
  %v1610 = vunpack.c.l.b16 %v467
  %v1611 = vunpack.c.l.b16 %v468
  %v1612 = vunpack.c.l.b16 %v469
  %v1613 = vunpack.c.l.b16 %v470
  %v1614 = vunpack.c.l.b16 %v471
  %v1615 = vunpack.c.l.b16 %v472
  %v1616 = vunpack.c.l.b16 %v473
  %v1617 = vunpack.c.l.b16 %v474
  %v1618 = vunpack.c.l.b16 %v475
  %v1619 = vunpack.c.l.b16 %v476
  %v1620 = vunpack.c.l.b16 %v477
  %v1621 = vunpack.c.l.b16 %v478
  %v1622 = vunpack.c.l.b16 %v479
  %v1623 = vunpack.c.l.b16 %v480
  %v1624 = vunpack.c.l.b16 %v481
  %v1625 = vunpack.c.l.b16 %v482
  %v1626 = vunpack.c.l.b16 %v483
  %v1627 = vunpack.c.l.b16 %v484
  %v1628 = vunpack.c.l.b16 %v485
  %v1629 = vunpack.c.l.b16 %v486
  %v1630 = vunpack.c.l.b16 %v487
  %v1631 = vunpack.c.l.b16 %v488
  %v1632 = vunpack.c.l.b16 %v489
  %v1633 = vunpack.c.l.b16 %v490
  %v1634 = vunpack.c.l.b16 %v491
  %v1635 = vunpack.c.l.b16 %v492
  %v1636 = vunpack.c.l.b16 %v493
  %v1637 = vunpack.c.l.b16 %v494
  %v1638 = vunpack.c.l.b16 %v495
  %v1639 = vunpack.c.l.b16 %v496
  %v1640 = vunpack.c.l.b16 %v497
  %v1641 = vunpack.c.l.b16 %v498
  %v1642 = vunpack.c.l.b16 %v499
  %v1643 = vunpack.c.l.b16 %v500
  %v1644 = vunpack.c.l.b16 %v501
  %v1645 = vunpack.c.l.b16 %v502
  %v1646 = vunpack.c.l.b16 %v503
  %v1647 = vunpack.c.l.b16 %v504
  %v1648 = vunpack.c.l.b16 %v505
  %v1649 = vunpack.c.l.b16 %v506
  %v1650 = vunpack.c.l.b16 %v507
  %v1651 = vunpack.c.l.b16 %v508
  %v1652 = vunpack.c.l.b16 %v509
  %v1653 = vunpack.c.l.b16 %v510
  %v1654 = vunpack.c.l.b16 %v511
  %v1655 = vunpack.c.l.b16 %v512
  %v1656 = vunpack.c.l.b16 %v513
  %v1657 = vunpack.c.l.b16 %v514
  %v1658 = vunpack.c.l.b16 %v515
  %v1659 = vunpack.c.l.b16 %v516
  %v1660 = vunpack.c.l.b16 %v517
  %v1661 = vunpack.c.l.b16 %v518
  %v1662 = vunpack.c.l.b16 %v519
  %v1663 = vunpack.c.l.b16 %v520
  %v1664 = vunpack.c.l.b16 %v521
  %v1665 = vunpack.c.l.b16 %v522
  %v1666 = vunpack.c.l.b16 %v523
  %v1667 = vunpack.c.l.b16 %v524
  %v1668 = vunpack.c.l.b16 %v525
  %v1669 = vunpack.c.l.b16 %v526
  %v1670 = vunpack.c.l.b16 %v527
  %v1671 = vunpack.c.l.b16 %v528
  %v1672 = vunpack.c.l.b16 %v529
  %v1673 = vunpack.c.l.b16 %v530
  %v1674 = vunpack.c.l.b16 %v531
  %v1675 = vunpack.c.l.b16 %v532
  %v1676 = vunpack.c.l.b16 %v533
  %v1677 = vunpack.c.l.b16 %v534
  %v1678 = vunpack.c.l.b16 %v535
  %v1679 = vunpack.c.l.b16 %v536
  %v1680 = vunpack.c.l.b16 %v537
  %v1681 = vunpack.c.l.b16 %v538
  %v1682 = vunpack.c.l.b16 %v539
  %v1683 = vunpack.c.l.b16 %v540
  %v1684 = vunpack.c.l.b16 %v541
  %v1685 = vunpack.c.l.b16 %v542
  %v1686 = vpack.c.b16 %v1175, %v1174
  %v1687 = vpack.c.b16 %v1177, %v1176
  %v1688 = vpack.c.b16 %v1179, %v1178
  %v1689 = vpack.c.b16 %v1181, %v1180
  %v1690 = vpack.c.b16 %v1183, %v1182
  %v1691 = vpack.c.b16 %v1185, %v1184
  %v1692 = vpack.c.b16 %v1187, %v1186
  %v1693 = vpack.c.b16 %v1189, %v1188
  %v1694 = vpack.c.b16 %v1191, %v1190
  %v1695 = vpack.c.b16 %v1193, %v1192
  %v1696 = vpack.c.b16 %v1195, %v1194
  %v1697 = vpack.c.b16 %v1197, %v1196
  %v1698 = vpack.c.b16 %v1199, %v1198
  %v1699 = vpack.c.b16 %v1201, %v1200
  %v1700 = vpack.c.b16 %v1203, %v1202
  %v1701 = vpack.c.b16 %v1205, %v1204
  %v1702 = vpack.c.b16 %v1207, %v1206
  %v1703 = vpack.c.b16 %v1209, %v1208
  %v1704 = vpack.c.b16 %v1211, %v1210
  %v1705 = vpack.c.b16 %v1213, %v1212
  %v1706 = vpack.c.b16 %v1215, %v1214
  %v1707 = vpack.c.b16 %v1217, %v1216
  %v1708 = vpack.c.b16 %v1219, %v1218
  %v1709 = vpack.c.b16 %v1221, %v1220
  %v1710 = vpack.c.b16 %v1223, %v1222
  %v1711 = vpack.c.b16 %v1225, %v1224
  %v1712 = vpack.c.b16 %v1227, %v1226
  %v1713 = vpack.c.b16 %v1229, %v1228
  %v1714 = vpack.c.b16 %v1231, %v1230
  %v1715 = vpack.c.b16 %v1233, %v1232
  %v1716 = vpack.c.b16 %v1235, %v1234
  %v1717 = vpack.c.b16 %v1237, %v1236
  %v1718 = vpack.c.b16 %v1239, %v1238
  %v1719 = vpack.c.b16 %v1241, %v1240
  %v1720 = vpack.c.b16 %v1243, %v1242
  %v1721 = vpack.c.b16 %v1245, %v1244
  %v1722 = vpack.c.b16 %v1247, %v1246
  %v1723 = vpack.c.b16 %v1249, %v1248
  %v1724 = vpack.c.b16 %v1251, %v1250
  %v1725 = vpack.c.b16 %v1253, %v1252
  %v1726 = vpack.c.b16 %v1255, %v1254
  %v1727 = vpack.c.b16 %v1257, %v1256
  %v1728 = vpack.c.b16 %v1259, %v1258
  %v1729 = vpack.c.b16 %v1261, %v1260
  %v1730 = vpack.c.b16 %v1263, %v1262
  %v1731 = vpack.c.b16 %v1265, %v1264
  %v1732 = vpack.c.b16 %v1267, %v1266
  %v1733 = vpack.c.b16 %v1269, %v1268
  %v1734 = vpack.c.b16 %v1271, %v1270
  %v1735 = vpack.c.b16 %v1273, %v1272
  %v1736 = vpack.c.b16 %v1275, %v1274
  %v1737 = vpack.c.b16 %v1277, %v1276
  %v1738 = vpack.c.b16 %v1279, %v1278
  %v1739 = vpack.c.b16 %v1281, %v1280
  %v1740 = vpack.c.b16 %v1283, %v1282
  %v1741 = vpack.c.b16 %v1285, %v1284
  %v1742 = vpack.c.b16 %v1287, %v1286
  %v1743 = vpack.c.b16 %v1289, %v1288
  %v1744 = vpack.c.b16 %v1291, %v1290
  %v1745 = vpack.c.b16 %v1293, %v1292
  %v1746 = vpack.c.b16 %v1295, %v1294
  %v1747 = vpack.c.b16 %v1297, %v1296
  %v1748 = vpack.c.b16 %v1299, %v1298
  %v1749 = vpack.c.b16 %v1301, %v1300
  %v1750 = vpack.c.b16 %v1303, %v1302
  %v1751 = vpack.c.b16 %v1305, %v1304
  %v1752 = vpack.c.b16 %v1307, %v1306
  %v1753 = vpack.c.b16 %v1309, %v1308
  %v1754 = vpack.c.b16 %v1311, %v1310
  %v1755 = vpack.c.b16 %v1313, %v1312
  %v1756 = vpack.c.b16 %v1315, %v1314
  %v1757 = vpack.c.b16 %v1317, %v1316
  %v1758 = vpack.c.b16 %v1319, %v1318
  %v1759 = vpack.c.b16 %v1321, %v1320
  %v1760 = vpack.c.b16 %v1323, %v1322
  %v1761 = vpack.c.b16 %v1325, %v1324
  %v1762 = vpack.c.b16 %v1327, %v1326
  %v1763 = vpack.c.b16 %v1329, %v1328
  %v1764 = vpack.c.b16 %v1331, %v1330
  %v1765 = vpack.c.b16 %v1333, %v1332
  %v1766 = vpack.c.b16 %v1335, %v1334
  %v1767 = vpack.c.b16 %v1337, %v1336
  %v1768 = vpack.c.b16 %v1339, %v1338
  %v1769 = vpack.c.b16 %v1341, %v1340
  %v1770 = vpack.c.b16 %v1343, %v1342
  %v1771 = vpack.c.b16 %v1345, %v1344
  %v1772 = vpack.c.b16 %v1347, %v1346
  %v1773 = vpack.c.b16 %v1349, %v1348
  %v1774 = vpack.c.b16 %v1351, %v1350
  %v1775 = vpack.c.b16 %v1353, %v1352
  %v1776 = vpack.c.b16 %v1355, %v1354
  %v1777 = vpack.c.b16 %v1357, %v1356
  %v1778 = vpack.c.b16 %v1359, %v1358
  %v1779 = vpack.c.b16 %v1361, %v1360
  %v1780 = vpack.c.b16 %v1363, %v1362
  %v1781 = vpack.c.b16 %v1365, %v1364
  %v1782 = vpack.c.b16 %v1367, %v1366
  %v1783 = vpack.c.b16 %v1369, %v1368
  %v1784 = vpack.c.b16 %v1371, %v1370
  %v1785 = vpack.c.b16 %v1373, %v1372
  %v1786 = vpack.c.b16 %v1375, %v1374
  %v1787 = vpack.c.b16 %v1377, %v1376
  %v1788 = vpack.c.b16 %v1379, %v1378
  %v1789 = vpack.c.b16 %v1381, %v1380
  %v1790 = vpack.c.b16 %v1383, %v1382
  %v1791 = vpack.c.b16 %v1385, %v1384
  %v1792 = vpack.c.b16 %v1387, %v1386
  %v1793 = vpack.c.b16 %v1389, %v1388
  %v1794 = vpack.c.b16 %v1391, %v1390
  %v1795 = vpack.c.b16 %v1393, %v1392
  %v1796 = vpack.c.b16 %v1395, %v1394
  %v1797 = vpack.c.b16 %v1397, %v1396
  %v1798 = vpack.c.b16 %v1399, %v1398
  %v1799 = vpack.c.b16 %v1401, %v1400
  %v1800 = vpack.c.b16 %v1403, %v1402
  %v1801 = vpack.c.b16 %v1405, %v1404
  %v1802 = vpack.c.b16 %v1407, %v1406
  %v1803 = vpack.c.b16 %v1409, %v1408
  %v1804 = vpack.c.b16 %v1411, %v1410
  %v1805 = vpack.c.b16 %v1413, %v1412
  %v1806 = vpack.c.b16 %v1415, %v1414
  %v1807 = vpack.c.b16 %v1417, %v1416
  %v1808 = vpack.c.b16 %v1419, %v1418
  %v1809 = vpack.c.b16 %v1421, %v1420
  %v1810 = vpack.c.b16 %v1423, %v1422
  %v1811 = vpack.c.b16 %v1425, %v1424
  %v1812 = vpack.c.b16 %v1427, %v1426
  %v1813 = vpack.c.b16 %v1429, %v1428
  %v1814 = vpack.c.b16 %v1431, %v1430
  %v1815 = vpack.c.b16 %v1433, %v1432
  %v1816 = vpack.c.b16 %v1435, %v1434
  %v1817 = vpack.c.b16 %v1437, %v1436
  %v1818 = vpack.c.b16 %v1439, %v1438
  %v1819 = vpack.c.b16 %v1441, %v1440
  %v1820 = vpack.c.b16 %v1443, %v1442
  %v1821 = vpack.c.b16 %v1445, %v1444
  %v1822 = vpack.c.b16 %v1447, %v1446
  %v1823 = vpack.c.b16 %v1449, %v1448
  %v1824 = vpack.c.b16 %v1451, %v1450
  %v1825 = vpack.c.b16 %v1453, %v1452
  %v1826 = vpack.c.b16 %v1455, %v1454
  %v1827 = vpack.c.b16 %v1457, %v1456
  %v1828 = vpack.c.b16 %v1459, %v1458
  %v1829 = vpack.c.b16 %v1461, %v1460
  %v1830 = vpack.c.b16 %v1463, %v1462
  %v1831 = vpack.c.b16 %v1465, %v1464
  %v1832 = vpack.c.b16 %v1467, %v1466
  %v1833 = vpack.c.b16 %v1469, %v1468
  %v1834 = vpack.c.b16 %v1471, %v1470
  %v1835 = vpack.c.b16 %v1473, %v1472
  %v1836 = vpack.c.b16 %v1475, %v1474
  %v1837 = vpack.c.b16 %v1477, %v1476
  %v1838 = vpack.c.b16 %v1479, %v1478
  %v1839 = vpack.c.b16 %v1481, %v1480
  %v1840 = vpack.c.b16 %v1483, %v1482
  %v1841 = vpack.c.b16 %v1485, %v1484
  %v1842 = vpack.c.b16 %v1487, %v1486
  %v1843 = vpack.c.b16 %v1489, %v1488
  %v1844 = vpack.c.b16 %v1491, %v1490
  %v1845 = vpack.c.b16 %v1493, %v1492
  %v1846 = vpack.c.b16 %v1495, %v1494
  %v1847 = vpack.c.b16 %v1497, %v1496
  %v1848 = vpack.c.b16 %v1499, %v1498
  %v1849 = vpack.c.b16 %v1501, %v1500
  %v1850 = vpack.c.b16 %v1503, %v1502
  %v1851 = vpack.c.b16 %v1505, %v1504
  %v1852 = vpack.c.b16 %v1507, %v1506
  %v1853 = vpack.c.b16 %v1509, %v1508
  %v1854 = vpack.c.b16 %v1511, %v1510
  %v1855 = vpack.c.b16 %v1513, %v1512
  %v1856 = vpack.c.b16 %v1515, %v1514
  %v1857 = vpack.c.b16 %v1517, %v1516
  %v1858 = vpack.c.b16 %v1519, %v1518
  %v1859 = vpack.c.b16 %v1521, %v1520
  %v1860 = vpack.c.b16 %v1523, %v1522
  %v1861 = vpack.c.b16 %v1525, %v1524
  %v1862 = vpack.c.b16 %v1527, %v1526
  %v1863 = vpack.c.b16 %v1529, %v1528
  %v1864 = vpack.c.b16 %v1531, %v1530
  %v1865 = vpack.c.b16 %v1533, %v1532
  %v1866 = vpack.c.b16 %v1535, %v1534
  %v1867 = vpack.c.b16 %v1537, %v1536
  %v1868 = vpack.c.b16 %v1539, %v1538
  %v1869 = vpack.c.b16 %v1541, %v1540
  %v1870 = vpack.c.b16 %v1543, %v1542
  %v1871 = vpack.c.b16 %v1545, %v1544
  %v1872 = vpack.c.b16 %v1547, %v1546
  %v1873 = vpack.c.b16 %v1549, %v1548
  %v1874 = vpack.c.b16 %v1551, %v1550
  %v1875 = vpack.c.b16 %v1553, %v1552
  %v1876 = vpack.c.b16 %v1555, %v1554
  %v1877 = vpack.c.b16 %v1557, %v1556
  %v1878 = vpack.c.b16 %v1559, %v1558
  %v1879 = vpack.c.b16 %v1561, %v1560
  %v1880 = vpack.c.b16 %v1563, %v1562
  %v1881 = vpack.c.b16 %v1565, %v1564
  %v1882 = vpack.c.b16 %v1567, %v1566
  %v1883 = vpack.c.b16 %v1569, %v1568
  %v1884 = vpack.c.b16 %v1571, %v1570
  %v1885 = vpack.c.b16 %v1573, %v1572
  %v1886 = vpack.c.b16 %v1575, %v1574
  %v1887 = vpack.c.b16 %v1577, %v1576
  %v1888 = vpack.c.b16 %v1579, %v1578
  %v1889 = vpack.c.b16 %v1581, %v1580
  %v1890 = vpack.c.b16 %v1583, %v1582
  %v1891 = vpack.c.b16 %v1585, %v1584
  %v1892 = vpack.c.b16 %v1587, %v1586
  %v1893 = vpack.c.b16 %v1589, %v1588
  %v1894 = vpack.c.b16 %v1591, %v1590
  %v1895 = vpack.c.b16 %v1593, %v1592
  %v1896 = vpack.c.b16 %v1595, %v1594
  %v1897 = vpack.c.b16 %v1597, %v1596
  %v1898 = vpack.c.b16 %v1599, %v1598
  %v1899 = vpack.c.b16 %v1601, %v1600
  %v1900 = vpack.c.b16 %v1603, %v1602
  %v1901 = vpack.c.b16 %v1605, %v1604
  %v1902 = vpack.c.b16 %v1607, %v1606
  %v1903 = vpack.c.b16 %v1609, %v1608
  %v1904 = vpack.c.b16 %v1611, %v1610
  %v1905 = vpack.c.b16 %v1613, %v1612
  %v1906 = vpack.c.b16 %v1615, %v1614
  %v1907 = vpack.c.b16 %v1617, %v1616
  %v1908 = vpack.c.b16 %v1619, %v1618
  %v1909 = vpack.c.b16 %v1621, %v1620
  %v1910 = vpack.c.b16 %v1623, %v1622
  %v1911 = vpack.c.b16 %v1625, %v1624
  %v1912 = vpack.c.b16 %v1627, %v1626
  %v1913 = vpack.c.b16 %v1629, %v1628
  %v1914 = vpack.c.b16 %v1631, %v1630
  %v1915 = vpack.c.b16 %v1633, %v1632
  %v1916 = vpack.c.b16 %v1635, %v1634
  %v1917 = vpack.c.b16 %v1637, %v1636
  %v1918 = vpack.c.b16 %v1639, %v1638
  %v1919 = vpack.c.b16 %v1641, %v1640
  %v1920 = vpack.c.b16 %v1643, %v1642
  %v1921 = vpack.c.b16 %v1645, %v1644
  %v1922 = vpack.c.b16 %v1647, %v1646
  %v1923 = vpack.c.b16 %v1649, %v1648
  %v1924 = vpack.c.b16 %v1651, %v1650
  %v1925 = vpack.c.b16 %v1653, %v1652
  %v1926 = vpack.c.b16 %v1655, %v1654
  %v1927 = vpack.c.b16 %v1657, %v1656
  %v1928 = vpack.c.b16 %v1659, %v1658
  %v1929 = vpack.c.b16 %v1661, %v1660
  %v1930 = vpack.c.b16 %v1663, %v1662
  %v1931 = vpack.c.b16 %v1665, %v1664
  %v1932 = vpack.c.b16 %v1667, %v1666
  %v1933 = vpack.c.b16 %v1669, %v1668
  %v1934 = vpack.c.b16 %v1671, %v1670
  %v1935 = vpack.c.b16 %v1673, %v1672
  %v1936 = vpack.c.b16 %v1675, %v1674
  %v1937 = vpack.c.b16 %v1677, %v1676
  %v1938 = vpack.c.b16 %v1679, %v1678
  %v1939 = vpack.c.b16 %v1681, %v1680
  %v1940 = vpack.c.b16 %v1683, %v1682
  %v1941 = vpack.c.b16 %v1685, %v1684
  %2198 = vmatprep.subr.bf16.mxu0 0
  %2199 = vmatpush1.bf16.msra.mxu0 %v1686
  %2200 = vmatprep.subr.bf16.mxu0 0
  %2201 = vmatpush1.bf16.msra.mxu0 %v1687
  %2202 = vmatprep.subr.bf16.mxu0 0
  %2203 = vmatpush1.bf16.msra.mxu0 %v1688
  %2204 = vmatprep.subr.bf16.mxu0 0
  %2205 = vmatpush1.bf16.msra.mxu0 %v1689
  %2206 = vmatprep.subr.bf16.mxu0 0
  %2207 = vmatpush1.bf16.msra.mxu0 %v1690
  %2208 = vmatprep.subr.bf16.mxu0 0
  %2209 = vmatpush1.bf16.msra.mxu0 %v1691
  %2210 = vmatprep.subr.bf16.mxu0 0
  %2211 = vmatpush1.bf16.msra.mxu0 %v1692
  %2212 = vmatprep.subr.bf16.mxu0 0
  %2213 = vmatpush1.bf16.msra.mxu0 %v1693
  %2214 = vmatprep.subr.bf16.mxu0 0
  %2215 = vmatpush1.bf16.msra.mxu0 %v1694
  %2216 = vmatprep.subr.bf16.mxu0 0
  %2217 = vmatpush1.bf16.msra.mxu0 %v1695
  %2218 = vmatprep.subr.bf16.mxu0 0
  %2219 = vmatpush1.bf16.msra.mxu0 %v1696
  %2220 = vmatprep.subr.bf16.mxu0 0
  %2221 = vmatpush1.bf16.msra.mxu0 %v1697
  %2222 = vmatprep.subr.bf16.mxu0 0
  %2223 = vmatpush1.bf16.msra.mxu0 %v1698
  %2224 = vmatprep.subr.bf16.mxu0 0
  %2225 = vmatpush1.bf16.msra.mxu0 %v1699
  %2226 = vmatprep.subr.bf16.mxu0 0
  %2227 = vmatpush1.bf16.msra.mxu0 %v1700
  %2228 = vmatprep.subr.bf16.mxu0 0
  %2229 = vmatpush1.bf16.msra.mxu0 %v1701
  %2230 = vmatprep.mubr.bf16.mxu0 %v599
  %2231 = vmatmul.mubr.bf16.gmra.mrb[0].mxu0 %v598
  %v2232 = vpop.f32.mrb[0].mxu0
  %v2233 = vadd.f32 %v548, %v2232
  %v2234 = vpop.f32.mrb[0].mxu0
  %v2235 = vpop.f32.mrb[0].mxu0
  %v2236 = vpop.f32.mrb[0].mxu0
  %2237 = vdwg.mxu0
  %2238 = vmatprep.subr.bf16.mxu0 0
  %2239 = vmatpush1.bf16.msra.mxu0 %v1702
  %2240 = vmatprep.subr.bf16.mxu0 0
  %2241 = vmatpush1.bf16.msra.mxu0 %v1703
  %2242 = vmatprep.subr.bf16.mxu0 0
  %2243 = vmatpush1.bf16.msra.mxu0 %v1704
  %2244 = vmatprep.subr.bf16.mxu0 0
  %2245 = vmatpush1.bf16.msra.mxu0 %v1705
  %2246 = vmatprep.subr.bf16.mxu0 0
  %2247 = vmatpush1.bf16.msra.mxu0 %v1706
  %2248 = vmatprep.subr.bf16.mxu0 0
  %2249 = vmatpush1.bf16.msra.mxu0 %v1707
  %2250 = vmatprep.subr.bf16.mxu0 0
  %2251 = vmatpush1.bf16.msra.mxu0 %v1708
  %2252 = vmatprep.subr.bf16.mxu0 0
  %2253 = vmatpush1.bf16.msra.mxu0 %v1709
  %2254 = vmatprep.subr.bf16.mxu0 0
  %2255 = vmatpush1.bf16.msra.mxu0 %v1710
  %2256 = vmatprep.subr.bf16.mxu0 0
  %2257 = vmatpush1.bf16.msra.mxu0 %v1711
  %2258 = vmatprep.subr.bf16.mxu0 0
  %2259 = vmatpush1.bf16.msra.mxu0 %v1712
  %2260 = vmatprep.subr.bf16.mxu0 0
  %2261 = vmatpush1.bf16.msra.mxu0 %v1713
  %2262 = vmatprep.subr.bf16.mxu0 0
  %2263 = vmatpush1.bf16.msra.mxu0 %v1714
  %2264 = vmatprep.subr.bf16.mxu0 0
  %2265 = vmatpush1.bf16.msra.mxu0 %v1715
  %2266 = vmatprep.subr.bf16.mxu0 0
  %2267 = vmatpush1.bf16.msra.mxu0 %v1716
  %2268 = vmatprep.subr.bf16.mxu0 0
  %2269 = vmatpush1.bf16.msra.mxu0 %v1717
  %2270 = vmatprep.mubr.bf16.mxu0 %v601
  %2271 = vmatmul.mubr.bf16.gmra.mrb[0].mxu0 %v600
  %v2272 = vpop.f32.mrb[0].mxu0
  %v2273 = vadd.f32 %v2233, %v2272
  %v2274 = vpop.f32.mrb[0].mxu0
  %v2275 = vpop.f32.mrb[0].mxu0
  %v2276 = vpop.f32.mrb[0].mxu0
  %2277 = vdwg.mxu0
  %2278 = vmatprep.subr.bf16.mxu0 0
  %2279 = vmatpush1.bf16.msra.mxu0 %v1718
  %2280 = vmatprep.subr.bf16.mxu0 0
  %2281 = vmatpush1.bf16.msra.mxu0 %v1719
  %2282 = vmatprep.subr.bf16.mxu0 0
  %2283 = vmatpush1.bf16.msra.mxu0 %v1720
  %2284 = vmatprep.subr.bf16.mxu0 0
  %2285 = vmatpush1.bf16.msra.mxu0 %v1721
  %2286 = vmatprep.subr.bf16.mxu0 0
  %2287 = vmatpush1.bf16.msra.mxu0 %v1722
  %2288 = vmatprep.subr.bf16.mxu0 0
  %2289 = vmatpush1.bf16.msra.mxu0 %v1723
  %2290 = vmatprep.subr.bf16.mxu0 0
  %2291 = vmatpush1.bf16.msra.mxu0 %v1724
  %2292 = vmatprep.subr.bf16.mxu0 0
  %2293 = vmatpush1.bf16.msra.mxu0 %v1725
  %2294 = vmatprep.subr.bf16.mxu0 0
  %2295 = vmatpush1.bf16.msra.mxu0 %v1726
  %2296 = vmatprep.subr.bf16.mxu0 0
  %2297 = vmatpush1.bf16.msra.mxu0 %v1727
  %2298 = vmatprep.subr.bf16.mxu0 0
  %2299 = vmatpush1.bf16.msra.mxu0 %v1728
  %2300 = vmatprep.subr.bf16.mxu0 0
  %2301 = vmatpush1.bf16.msra.mxu0 %v1729
  %2302 = vmatprep.subr.bf16.mxu0 0
  %2303 = vmatpush1.bf16.msra.mxu0 %v1730
  %2304 = vmatprep.subr.bf16.mxu0 0
  %2305 = vmatpush1.bf16.msra.mxu0 %v1731
  %2306 = vmatprep.subr.bf16.mxu0 0
  %2307 = vmatpush1.bf16.msra.mxu0 %v1732
  %2308 = vmatprep.subr.bf16.mxu0 0
  %2309 = vmatpush1.bf16.msra.mxu0 %v1733
  %2310 = vmatprep.mubr.bf16.mxu0 %v603
  %2311 = vmatmul.mubr.bf16.gmra.mrb[0].mxu0 %v602
  %v2312 = vpop.f32.mrb[0].mxu0
  %v2313 = vadd.f32 %v2273, %v2312
  %v2314 = vpop.f32.mrb[0].mxu0
  %v2315 = vpop.f32.mrb[0].mxu0
  %v2316 = vpop.f32.mrb[0].mxu0
  %2317 = vdwg.mxu0
  %2318 = vmatprep.subr.bf16.mxu0 0
  %2319 = vmatpush1.bf16.msra.mxu0 %v1734
  %2320 = vmatprep.subr.bf16.mxu0 0
  %2321 = vmatpush1.bf16.msra.mxu0 %v1735
  %2322 = vmatprep.subr.bf16.mxu0 0
  %2323 = vmatpush1.bf16.msra.mxu0 %v1736
  %2324 = vmatprep.subr.bf16.mxu0 0
  %2325 = vmatpush1.bf16.msra.mxu0 %v1737
  %2326 = vmatprep.subr.bf16.mxu0 0
  %2327 = vmatpush1.bf16.msra.mxu0 %v1738
  %2328 = vmatprep.subr.bf16.mxu0 0
  %2329 = vmatpush1.bf16.msra.mxu0 %v1739
  %2330 = vmatprep.subr.bf16.mxu0 0
  %2331 = vmatpush1.bf16.msra.mxu0 %v1740
  %2332 = vmatprep.subr.bf16.mxu0 0
  %2333 = vmatpush1.bf16.msra.mxu0 %v1741
  %2334 = vmatprep.subr.bf16.mxu0 0
  %2335 = vmatpush1.bf16.msra.mxu0 %v1742
  %2336 = vmatprep.subr.bf16.mxu0 0
  %2337 = vmatpush1.bf16.msra.mxu0 %v1743
  %2338 = vmatprep.subr.bf16.mxu0 0
  %2339 = vmatpush1.bf16.msra.mxu0 %v1744
  %2340 = vmatprep.subr.bf16.mxu0 0
  %2341 = vmatpush1.bf16.msra.mxu0 %v1745
  %2342 = vmatprep.subr.bf16.mxu0 0
  %2343 = vmatpush1.bf16.msra.mxu0 %v1746
  %2344 = vmatprep.subr.bf16.mxu0 0
  %2345 = vmatpush1.bf16.msra.mxu0 %v1747
  %2346 = vmatprep.subr.bf16.mxu0 0
  %2347 = vmatpush1.bf16.msra.mxu0 %v1748
  %2348 = vmatprep.subr.bf16.mxu0 0
  %2349 = vmatpush1.bf16.msra.mxu0 %v1749
  %2350 = vmatprep.mubr.bf16.mxu0 %v605
  %2351 = vmatmul.mubr.bf16.gmra.mrb[0].mxu0 %v604
  %v2352 = vpop.f32.mrb[0].mxu0
  %v2353 = vadd.f32 %v2313, %v2352
  %v2354 = vpop.f32.mrb[0].mxu0
  %v2355 = vpop.f32.mrb[0].mxu0
  %v2356 = vpop.f32.mrb[0].mxu0
  %2357 = vdwg.mxu0
  %2358 = vmatprep.subr.bf16.mxu0 0
  %2359 = vmatpush1.bf16.msra.mxu0 %v1750
  %2360 = vmatprep.subr.bf16.mxu0 0
  %2361 = vmatpush1.bf16.msra.mxu0 %v1751
  %2362 = vmatprep.subr.bf16.mxu0 0
  %2363 = vmatpush1.bf16.msra.mxu0 %v1752
  %2364 = vmatprep.subr.bf16.mxu0 0
  %2365 = vmatpush1.bf16.msra.mxu0 %v1753
  %2366 = vmatprep.subr.bf16.mxu0 0
  %2367 = vmatpush1.bf16.msra.mxu0 %v1754
  %2368 = vmatprep.subr.bf16.mxu0 0
  %2369 = vmatpush1.bf16.msra.mxu0 %v1755
  %2370 = vmatprep.subr.bf16.mxu0 0
  %2371 = vmatpush1.bf16.msra.mxu0 %v1756
  %2372 = vmatprep.subr.bf16.mxu0 0
  %2373 = vmatpush1.bf16.msra.mxu0 %v1757
  %2374 = vmatprep.subr.bf16.mxu0 0
  %2375 = vmatpush1.bf16.msra.mxu0 %v1758
  %2376 = vmatprep.subr.bf16.mxu0 0
  %2377 = vmatpush1.bf16.msra.mxu0 %v1759
  %2378 = vmatprep.subr.bf16.mxu0 0
  %2379 = vmatpush1.bf16.msra.mxu0 %v1760
  %2380 = vmatprep.subr.bf16.mxu0 0
  %2381 = vmatpush1.bf16.msra.mxu0 %v1761
  %2382 = vmatprep.subr.bf16.mxu0 0
  %2383 = vmatpush1.bf16.msra.mxu0 %v1762
  %2384 = vmatprep.subr.bf16.mxu0 0
  %2385 = vmatpush1.bf16.msra.mxu0 %v1763
  %2386 = vmatprep.subr.bf16.mxu0 0
  %2387 = vmatpush1.bf16.msra.mxu0 %v1764
  %2388 = vmatprep.subr.bf16.mxu0 0
  %2389 = vmatpush1.bf16.msra.mxu0 %v1765
  %2390 = vmatprep.mubr.bf16.mxu0 %v607
  %2391 = vmatmul.mubr.bf16.gmra.mrb[0].mxu0 %v606
  %v2392 = vpop.f32.mrb[0].mxu0
  %v2393 = vadd.f32 %v2353, %v2392
  %v2394 = vpop.f32.mrb[0].mxu0
  %v2395 = vpop.f32.mrb[0].mxu0
  %v2396 = vpop.f32.mrb[0].mxu0
  %2397 = vdwg.mxu0
  %2398 = vmatprep.subr.bf16.mxu0 0
  %2399 = vmatpush1.bf16.msra.mxu0 %v1766
  %2400 = vmatprep.subr.bf16.mxu0 0
  %2401 = vmatpush1.bf16.msra.mxu0 %v1767
  %2402 = vmatprep.subr.bf16.mxu0 0
  %2403 = vmatpush1.bf16.msra.mxu0 %v1768
  %2404 = vmatprep.subr.bf16.mxu0 0
  %2405 = vmatpush1.bf16.msra.mxu0 %v1769
  %2406 = vmatprep.subr.bf16.mxu0 0
  %2407 = vmatpush1.bf16.msra.mxu0 %v1770
  %2408 = vmatprep.subr.bf16.mxu0 0
  %2409 = vmatpush1.bf16.msra.mxu0 %v1771
  %2410 = vmatprep.subr.bf16.mxu0 0
  %2411 = vmatpush1.bf16.msra.mxu0 %v1772
  %2412 = vmatprep.subr.bf16.mxu0 0
  %2413 = vmatpush1.bf16.msra.mxu0 %v1773
  %2414 = vmatprep.subr.bf16.mxu0 0
  %2415 = vmatpush1.bf16.msra.mxu0 %v1774
  %2416 = vmatprep.subr.bf16.mxu0 0
  %2417 = vmatpush1.bf16.msra.mxu0 %v1775
  %2418 = vmatprep.subr.bf16.mxu0 0
  %2419 = vmatpush1.bf16.msra.mxu0 %v1776
  %2420 = vmatprep.subr.bf16.mxu0 0
  %2421 = vmatpush1.bf16.msra.mxu0 %v1777
  %2422 = vmatprep.subr.bf16.mxu0 0
  %2423 = vmatpush1.bf16.msra.mxu0 %v1778
  %2424 = vmatprep.subr.bf16.mxu0 0
  %2425 = vmatpush1.bf16.msra.mxu0 %v1779
  %2426 = vmatprep.subr.bf16.mxu0 0
  %2427 = vmatpush1.bf16.msra.mxu0 %v1780
  %2428 = vmatprep.subr.bf16.mxu0 0
  %2429 = vmatpush1.bf16.msra.mxu0 %v1781
  %2430 = vmatprep.mubr.bf16.mxu0 %v609
  %2431 = vmatmul.mubr.bf16.gmra.mrb[0].mxu0 %v608
  %v2432 = vpop.f32.mrb[0].mxu0
  %v2433 = vadd.f32 %v2393, %v2432
  %v2434 = vpop.f32.mrb[0].mxu0
  %v2435 = vpop.f32.mrb[0].mxu0
  %v2436 = vpop.f32.mrb[0].mxu0
  %2437 = vdwg.mxu0
  %2438 = vmatprep.subr.bf16.mxu0 0
  %2439 = vmatpush1.bf16.msra.mxu0 %v1782
  %2440 = vmatprep.subr.bf16.mxu0 0
  %2441 = vmatpush1.bf16.msra.mxu0 %v1783
  %2442 = vmatprep.subr.bf16.mxu0 0
  %2443 = vmatpush1.bf16.msra.mxu0 %v1784
  %2444 = vmatprep.subr.bf16.mxu0 0
  %2445 = vmatpush1.bf16.msra.mxu0 %v1785
  %2446 = vmatprep.subr.bf16.mxu0 0
  %2447 = vmatpush1.bf16.msra.mxu0 %v1786
  %2448 = vmatprep.subr.bf16.mxu0 0
  %2449 = vmatpush1.bf16.msra.mxu0 %v1787
  %2450 = vmatprep.subr.bf16.mxu0 0
  %2451 = vmatpush1.bf16.msra.mxu0 %v1788
  %2452 = vmatprep.subr.bf16.mxu0 0
  %2453 = vmatpush1.bf16.msra.mxu0 %v1789
  %2454 = vmatprep.subr.bf16.mxu0 0
  %2455 = vmatpush1.bf16.msra.mxu0 %v1790
  %2456 = vmatprep.subr.bf16.mxu0 0
  %2457 = vmatpush1.bf16.msra.mxu0 %v1791
  %2458 = vmatprep.subr.bf16.mxu0 0
  %2459 = vmatpush1.bf16.msra.mxu0 %v1792
  %2460 = vmatprep.subr.bf16.mxu0 0
  %2461 = vmatpush1.bf16.msra.mxu0 %v1793
  %2462 = vmatprep.subr.bf16.mxu0 0
  %2463 = vmatpush1.bf16.msra.mxu0 %v1794
  %2464 = vmatprep.subr.bf16.mxu0 0
  %2465 = vmatpush1.bf16.msra.mxu0 %v1795
  %2466 = vmatprep.subr.bf16.mxu0 0
  %2467 = vmatpush1.bf16.msra.mxu0 %v1796
  %2468 = vmatprep.subr.bf16.mxu0 0
  %2469 = vmatpush1.bf16.msra.mxu0 %v1797
  %2470 = vmatprep.mubr.bf16.mxu0 %v611
  %2471 = vmatmul.mubr.bf16.gmra.mrb[0].mxu0 %v610
  %v2472 = vpop.f32.mrb[0].mxu0
  %v2473 = vadd.f32 %v2433, %v2472
  %v2474 = vpop.f32.mrb[0].mxu0
  %v2475 = vpop.f32.mrb[0].mxu0
  %v2476 = vpop.f32.mrb[0].mxu0
  %2477 = vdwg.mxu0
  %2478 = vmatprep.subr.bf16.mxu0 0
  %2479 = vmatpush1.bf16.msra.mxu0 %v1798
  %2480 = vmatprep.subr.bf16.mxu0 0
  %2481 = vmatpush1.bf16.msra.mxu0 %v1799
  %2482 = vmatprep.subr.bf16.mxu0 0
  %2483 = vmatpush1.bf16.msra.mxu0 %v1800
  %2484 = vmatprep.subr.bf16.mxu0 0
  %2485 = vmatpush1.bf16.msra.mxu0 %v1801
  %2486 = vmatprep.subr.bf16.mxu0 0
  %2487 = vmatpush1.bf16.msra.mxu0 %v1802
  %2488 = vmatprep.subr.bf16.mxu0 0
  %2489 = vmatpush1.bf16.msra.mxu0 %v1803
  %2490 = vmatprep.subr.bf16.mxu0 0
  %2491 = vmatpush1.bf16.msra.mxu0 %v1804
  %2492 = vmatprep.subr.bf16.mxu0 0
  %2493 = vmatpush1.bf16.msra.mxu0 %v1805
  %2494 = vmatprep.subr.bf16.mxu0 0
  %2495 = vmatpush1.bf16.msra.mxu0 %v1806
  %2496 = vmatprep.subr.bf16.mxu0 0
  %2497 = vmatpush1.bf16.msra.mxu0 %v1807
  %2498 = vmatprep.subr.bf16.mxu0 0
  %2499 = vmatpush1.bf16.msra.mxu0 %v1808
  %2500 = vmatprep.subr.bf16.mxu0 0
  %2501 = vmatpush1.bf16.msra.mxu0 %v1809
  %2502 = vmatprep.subr.bf16.mxu0 0
  %2503 = vmatpush1.bf16.msra.mxu0 %v1810
  %2504 = vmatprep.subr.bf16.mxu0 0
  %2505 = vmatpush1.bf16.msra.mxu0 %v1811
  %2506 = vmatprep.subr.bf16.mxu0 0
  %2507 = vmatpush1.bf16.msra.mxu0 %v1812
  %2508 = vmatprep.subr.bf16.mxu0 0
  %2509 = vmatpush1.bf16.msra.mxu0 %v1813
  %2510 = vmatprep.mubr.bf16.mxu0 %v613
  %2511 = vmatmul.mubr.bf16.gmra.mrb[0].mxu0 %v612
  %v2512 = vpop.f32.mrb[0].mxu0
  %v2513 = vadd.f32 %v2473, %v2512
  %v2514 = vpop.f32.mrb[0].mxu0
  %v2515 = vpop.f32.mrb[0].mxu0
  %v2516 = vpop.f32.mrb[0].mxu0
  %2517 = vdwg.mxu0
  %2518 = vmatprep.subr.bf16.mxu0 0
  %2519 = vmatpush1.bf16.msra.mxu0 %v1814
  %2520 = vmatprep.subr.bf16.mxu0 0
  %2521 = vmatpush1.bf16.msra.mxu0 %v1815
  %2522 = vmatprep.subr.bf16.mxu0 0
  %2523 = vmatpush1.bf16.msra.mxu0 %v1816
  %2524 = vmatprep.subr.bf16.mxu0 0
  %2525 = vmatpush1.bf16.msra.mxu0 %v1817
  %2526 = vmatprep.subr.bf16.mxu0 0
  %2527 = vmatpush1.bf16.msra.mxu0 %v1818
  %2528 = vmatprep.subr.bf16.mxu0 0
  %2529 = vmatpush1.bf16.msra.mxu0 %v1819
  %2530 = vmatprep.subr.bf16.mxu0 0
  %2531 = vmatpush1.bf16.msra.mxu0 %v1820
  %2532 = vmatprep.subr.bf16.mxu0 0
  %2533 = vmatpush1.bf16.msra.mxu0 %v1821
  %2534 = vmatprep.subr.bf16.mxu0 0
  %2535 = vmatpush1.bf16.msra.mxu0 %v1822
  %2536 = vmatprep.subr.bf16.mxu0 0
  %2537 = vmatpush1.bf16.msra.mxu0 %v1823
  %2538 = vmatprep.subr.bf16.mxu0 0
  %2539 = vmatpush1.bf16.msra.mxu0 %v1824
  %2540 = vmatprep.subr.bf16.mxu0 0
  %2541 = vmatpush1.bf16.msra.mxu0 %v1825
  %2542 = vmatprep.subr.bf16.mxu0 0
  %2543 = vmatpush1.bf16.msra.mxu0 %v1826
  %2544 = vmatprep.subr.bf16.mxu0 0
  %2545 = vmatpush1.bf16.msra.mxu0 %v1827
  %2546 = vmatprep.subr.bf16.mxu0 0
  %2547 = vmatpush1.bf16.msra.mxu0 %v1828
  %2548 = vmatprep.subr.bf16.mxu0 0
  %2549 = vmatpush1.bf16.msra.mxu0 %v1829
  %2550 = vmatprep.mubr.bf16.mxu0 %v615
  %2551 = vmatmul.mubr.bf16.gmra.mrb[0].mxu0 %v614
  %v2552 = vpop.f32.mrb[0].mxu0
  %v2553 = vadd.f32 %v2513, %v2552
  %v2554 = vpop.f32.mrb[0].mxu0
  %v2555 = vpop.f32.mrb[0].mxu0
  %v2556 = vpop.f32.mrb[0].mxu0
  %2557 = vdwg.mxu0
  %2558 = vmatprep.subr.bf16.mxu0 0
  %2559 = vmatpush1.bf16.msra.mxu0 %v1830
  %2560 = vmatprep.subr.bf16.mxu0 0
  %2561 = vmatpush1.bf16.msra.mxu0 %v1831
  %2562 = vmatprep.subr.bf16.mxu0 0
  %2563 = vmatpush1.bf16.msra.mxu0 %v1832
  %2564 = vmatprep.subr.bf16.mxu0 0
  %2565 = vmatpush1.bf16.msra.mxu0 %v1833
  %2566 = vmatprep.subr.bf16.mxu0 0
  %2567 = vmatpush1.bf16.msra.mxu0 %v1834
  %2568 = vmatprep.subr.bf16.mxu0 0
  %2569 = vmatpush1.bf16.msra.mxu0 %v1835
  %2570 = vmatprep.subr.bf16.mxu0 0
  %2571 = vmatpush1.bf16.msra.mxu0 %v1836
  %2572 = vmatprep.subr.bf16.mxu0 0
  %2573 = vmatpush1.bf16.msra.mxu0 %v1837
  %2574 = vmatprep.subr.bf16.mxu0 0
  %2575 = vmatpush1.bf16.msra.mxu0 %v1838
  %2576 = vmatprep.subr.bf16.mxu0 0
  %2577 = vmatpush1.bf16.msra.mxu0 %v1839
  %2578 = vmatprep.subr.bf16.mxu0 0
  %2579 = vmatpush1.bf16.msra.mxu0 %v1840
  %2580 = vmatprep.subr.bf16.mxu0 0
  %2581 = vmatpush1.bf16.msra.mxu0 %v1841
  %2582 = vmatprep.subr.bf16.mxu0 0
  %2583 = vmatpush1.bf16.msra.mxu0 %v1842
  %2584 = vmatprep.subr.bf16.mxu0 0
  %2585 = vmatpush1.bf16.msra.mxu0 %v1843
  %2586 = vmatprep.subr.bf16.mxu0 0
  %2587 = vmatpush1.bf16.msra.mxu0 %v1844
  %2588 = vmatprep.subr.bf16.mxu0 0
  %2589 = vmatpush1.bf16.msra.mxu0 %v1845
  %2590 = vmatprep.mubr.bf16.mxu0 %v617
  %2591 = vmatmul.mubr.bf16.gmra.mrb[0].mxu0 %v616
  %v2592 = vpop.f32.mrb[0].mxu0
  %v2593 = vadd.f32 %v2553, %v2592
  %v2594 = vpop.f32.mrb[0].mxu0
  %v2595 = vpop.f32.mrb[0].mxu0
  %v2596 = vpop.f32.mrb[0].mxu0
  %2597 = vdwg.mxu0
  %2598 = vmatprep.subr.bf16.mxu0 0
  %2599 = vmatpush1.bf16.msra.mxu0 %v1846
  %2600 = vmatprep.subr.bf16.mxu0 0
  %2601 = vmatpush1.bf16.msra.mxu0 %v1847
  %2602 = vmatprep.subr.bf16.mxu0 0
  %2603 = vmatpush1.bf16.msra.mxu0 %v1848
  %2604 = vmatprep.subr.bf16.mxu0 0
  %2605 = vmatpush1.bf16.msra.mxu0 %v1849
  %2606 = vmatprep.subr.bf16.mxu0 0
  %2607 = vmatpush1.bf16.msra.mxu0 %v1850
  %2608 = vmatprep.subr.bf16.mxu0 0
  %2609 = vmatpush1.bf16.msra.mxu0 %v1851
  %2610 = vmatprep.subr.bf16.mxu0 0
  %2611 = vmatpush1.bf16.msra.mxu0 %v1852
  %2612 = vmatprep.subr.bf16.mxu0 0
  %2613 = vmatpush1.bf16.msra.mxu0 %v1853
  %2614 = vmatprep.subr.bf16.mxu0 0
  %2615 = vmatpush1.bf16.msra.mxu0 %v1854
  %2616 = vmatprep.subr.bf16.mxu0 0
  %2617 = vmatpush1.bf16.msra.mxu0 %v1855
  %2618 = vmatprep.subr.bf16.mxu0 0
  %2619 = vmatpush1.bf16.msra.mxu0 %v1856
  %2620 = vmatprep.subr.bf16.mxu0 0
  %2621 = vmatpush1.bf16.msra.mxu0 %v1857
  %2622 = vmatprep.subr.bf16.mxu0 0
  %2623 = vmatpush1.bf16.msra.mxu0 %v1858
  %2624 = vmatprep.subr.bf16.mxu0 0
  %2625 = vmatpush1.bf16.msra.mxu0 %v1859
  %2626 = vmatprep.subr.bf16.mxu0 0
  %2627 = vmatpush1.bf16.msra.mxu0 %v1860
  %2628 = vmatprep.subr.bf16.mxu0 0
  %2629 = vmatpush1.bf16.msra.mxu0 %v1861
  %2630 = vmatprep.mubr.bf16.mxu0 %v619
  %2631 = vmatmul.mubr.bf16.gmra.mrb[0].mxu0 %v618
  %v2632 = vpop.f32.mrb[0].mxu0
  %v2633 = vadd.f32 %v2593, %v2632
  %v2634 = vpop.f32.mrb[0].mxu0
  %v2635 = vpop.f32.mrb[0].mxu0
  %v2636 = vpop.f32.mrb[0].mxu0
  %2637 = vdwg.mxu0
  %2638 = vmatprep.subr.bf16.mxu0 0
  %2639 = vmatpush1.bf16.msra.mxu0 %v1862
  %2640 = vmatprep.subr.bf16.mxu0 0
  %2641 = vmatpush1.bf16.msra.mxu0 %v1863
  %2642 = vmatprep.subr.bf16.mxu0 0
  %2643 = vmatpush1.bf16.msra.mxu0 %v1864
  %2644 = vmatprep.subr.bf16.mxu0 0
  %2645 = vmatpush1.bf16.msra.mxu0 %v1865
  %2646 = vmatprep.subr.bf16.mxu0 0
  %2647 = vmatpush1.bf16.msra.mxu0 %v1866
  %2648 = vmatprep.subr.bf16.mxu0 0
  %2649 = vmatpush1.bf16.msra.mxu0 %v1867
  %2650 = vmatprep.subr.bf16.mxu0 0
  %2651 = vmatpush1.bf16.msra.mxu0 %v1868
  %2652 = vmatprep.subr.bf16.mxu0 0
  %2653 = vmatpush1.bf16.msra.mxu0 %v1869
  %2654 = vmatprep.subr.bf16.mxu0 0
  %2655 = vmatpush1.bf16.msra.mxu0 %v1870
  %2656 = vmatprep.subr.bf16.mxu0 0
  %2657 = vmatpush1.bf16.msra.mxu0 %v1871
  %2658 = vmatprep.subr.bf16.mxu0 0
  %2659 = vmatpush1.bf16.msra.mxu0 %v1872
  %2660 = vmatprep.subr.bf16.mxu0 0
  %2661 = vmatpush1.bf16.msra.mxu0 %v1873
  %2662 = vmatprep.subr.bf16.mxu0 0
  %2663 = vmatpush1.bf16.msra.mxu0 %v1874
  %2664 = vmatprep.subr.bf16.mxu0 0
  %2665 = vmatpush1.bf16.msra.mxu0 %v1875
  %2666 = vmatprep.subr.bf16.mxu0 0
  %2667 = vmatpush1.bf16.msra.mxu0 %v1876
  %2668 = vmatprep.subr.bf16.mxu0 0
  %2669 = vmatpush1.bf16.msra.mxu0 %v1877
  %2670 = vmatprep.mubr.bf16.mxu0 %v621
  %2671 = vmatmul.mubr.bf16.gmra.mrb[0].mxu0 %v620
  %v2672 = vpop.f32.mrb[0].mxu0
  %v2673 = vadd.f32 %v2633, %v2672
  %v2674 = vpop.f32.mrb[0].mxu0
  %v2675 = vpop.f32.mrb[0].mxu0
  %v2676 = vpop.f32.mrb[0].mxu0
  %2677 = vdwg.mxu0
  %2678 = vmatprep.subr.bf16.mxu0 0
  %2679 = vmatpush1.bf16.msra.mxu0 %v1878
  %2680 = vmatprep.subr.bf16.mxu0 0
  %2681 = vmatpush1.bf16.msra.mxu0 %v1879
  %2682 = vmatprep.subr.bf16.mxu0 0
  %2683 = vmatpush1.bf16.msra.mxu0 %v1880
  %2684 = vmatprep.subr.bf16.mxu0 0
  %2685 = vmatpush1.bf16.msra.mxu0 %v1881
  %2686 = vmatprep.subr.bf16.mxu0 0
  %2687 = vmatpush1.bf16.msra.mxu0 %v1882
  %2688 = vmatprep.subr.bf16.mxu0 0
  %2689 = vmatpush1.bf16.msra.mxu0 %v1883
  %2690 = vmatprep.subr.bf16.mxu0 0
  %2691 = vmatpush1.bf16.msra.mxu0 %v1884
  %2692 = vmatprep.subr.bf16.mxu0 0
  %2693 = vmatpush1.bf16.msra.mxu0 %v1885
  %2694 = vmatprep.subr.bf16.mxu0 0
  %2695 = vmatpush1.bf16.msra.mxu0 %v1886
  %2696 = vmatprep.subr.bf16.mxu0 0
  %2697 = vmatpush1.bf16.msra.mxu0 %v1887
  %2698 = vmatprep.subr.bf16.mxu0 0
  %2699 = vmatpush1.bf16.msra.mxu0 %v1888
  %2700 = vmatprep.subr.bf16.mxu0 0
  %2701 = vmatpush1.bf16.msra.mxu0 %v1889
  %2702 = vmatprep.subr.bf16.mxu0 0
  %2703 = vmatpush1.bf16.msra.mxu0 %v1890
  %2704 = vmatprep.subr.bf16.mxu0 0
  %2705 = vmatpush1.bf16.msra.mxu0 %v1891
  %2706 = vmatprep.subr.bf16.mxu0 0
  %2707 = vmatpush1.bf16.msra.mxu0 %v1892
  %2708 = vmatprep.subr.bf16.mxu0 0
  %2709 = vmatpush1.bf16.msra.mxu0 %v1893
  %2710 = vmatprep.mubr.bf16.mxu0 %v623
  %2711 = vmatmul.mubr.bf16.gmra.mrb[0].mxu0 %v622
  %v2712 = vpop.f32.mrb[0].mxu0
  %v2713 = vadd.f32 %v2673, %v2712
  %v2714 = vpop.f32.mrb[0].mxu0
  %v2715 = vpop.f32.mrb[0].mxu0
  %v2716 = vpop.f32.mrb[0].mxu0
  %2717 = vdwg.mxu0
  %2718 = vmatprep.subr.bf16.mxu0 0
  %2719 = vmatpush1.bf16.msra.mxu0 %v1894
  %2720 = vmatprep.subr.bf16.mxu0 0
  %2721 = vmatpush1.bf16.msra.mxu0 %v1895
  %2722 = vmatprep.subr.bf16.mxu0 0
  %2723 = vmatpush1.bf16.msra.mxu0 %v1896
  %2724 = vmatprep.subr.bf16.mxu0 0
  %2725 = vmatpush1.bf16.msra.mxu0 %v1897
  %2726 = vmatprep.subr.bf16.mxu0 0
  %2727 = vmatpush1.bf16.msra.mxu0 %v1898
  %2728 = vmatprep.subr.bf16.mxu0 0
  %2729 = vmatpush1.bf16.msra.mxu0 %v1899
  %2730 = vmatprep.subr.bf16.mxu0 0
  %2731 = vmatpush1.bf16.msra.mxu0 %v1900
  %2732 = vmatprep.subr.bf16.mxu0 0
  %2733 = vmatpush1.bf16.msra.mxu0 %v1901
  %2734 = vmatprep.subr.bf16.mxu0 0
  %2735 = vmatpush1.bf16.msra.mxu0 %v1902
  %2736 = vmatprep.subr.bf16.mxu0 0
  %2737 = vmatpush1.bf16.msra.mxu0 %v1903
  %2738 = vmatprep.subr.bf16.mxu0 0
  %2739 = vmatpush1.bf16.msra.mxu0 %v1904
  %2740 = vmatprep.subr.bf16.mxu0 0
  %2741 = vmatpush1.bf16.msra.mxu0 %v1905
  %2742 = vmatprep.subr.bf16.mxu0 0
  %2743 = vmatpush1.bf16.msra.mxu0 %v1906
  %2744 = vmatprep.subr.bf16.mxu0 0
  %2745 = vmatpush1.bf16.msra.mxu0 %v1907
  %2746 = vmatprep.subr.bf16.mxu0 0
  %2747 = vmatpush1.bf16.msra.mxu0 %v1908
  %2748 = vmatprep.subr.bf16.mxu0 0
  %2749 = vmatpush1.bf16.msra.mxu0 %v1909
  %2750 = vmatprep.mubr.bf16.mxu0 %v625
  %2751 = vmatmul.mubr.bf16.gmra.mrb[0].mxu0 %v624
  %v2752 = vpop.f32.mrb[0].mxu0
  %v2753 = vadd.f32 %v2713, %v2752
  %v2754 = vpop.f32.mrb[0].mxu0
  %v2755 = vpop.f32.mrb[0].mxu0
  %v2756 = vpop.f32.mrb[0].mxu0
  %2757 = vdwg.mxu0
  %2758 = vmatprep.subr.bf16.mxu0 0
  %2759 = vmatpush1.bf16.msra.mxu0 %v1910
  %2760 = vmatprep.subr.bf16.mxu0 0
  %2761 = vmatpush1.bf16.msra.mxu0 %v1911
  %2762 = vmatprep.subr.bf16.mxu0 0
  %2763 = vmatpush1.bf16.msra.mxu0 %v1912
  %2764 = vmatprep.subr.bf16.mxu0 0
  %2765 = vmatpush1.bf16.msra.mxu0 %v1913
  %2766 = vmatprep.subr.bf16.mxu0 0
  %2767 = vmatpush1.bf16.msra.mxu0 %v1914
  %2768 = vmatprep.subr.bf16.mxu0 0
  %2769 = vmatpush1.bf16.msra.mxu0 %v1915
  %2770 = vmatprep.subr.bf16.mxu0 0
  %2771 = vmatpush1.bf16.msra.mxu0 %v1916
  %2772 = vmatprep.subr.bf16.mxu0 0
  %2773 = vmatpush1.bf16.msra.mxu0 %v1917
  %2774 = vmatprep.subr.bf16.mxu0 0
  %2775 = vmatpush1.bf16.msra.mxu0 %v1918
  %2776 = vmatprep.subr.bf16.mxu0 0
  %2777 = vmatpush1.bf16.msra.mxu0 %v1919
  %2778 = vmatprep.subr.bf16.mxu0 0
  %2779 = vmatpush1.bf16.msra.mxu0 %v1920
  %2780 = vmatprep.subr.bf16.mxu0 0
  %2781 = vmatpush1.bf16.msra.mxu0 %v1921
  %2782 = vmatprep.subr.bf16.mxu0 0
  %2783 = vmatpush1.bf16.msra.mxu0 %v1922
  %2784 = vmatprep.subr.bf16.mxu0 0
  %2785 = vmatpush1.bf16.msra.mxu0 %v1923
  %2786 = vmatprep.subr.bf16.mxu0 0
  %2787 = vmatpush1.bf16.msra.mxu0 %v1924
  %2788 = vmatprep.subr.bf16.mxu0 0
  %2789 = vmatpush1.bf16.msra.mxu0 %v1925
  %2790 = vmatprep.mubr.bf16.mxu0 %v627
  %2791 = vmatmul.mubr.bf16.gmra.mrb[0].mxu0 %v626
  %v2792 = vpop.f32.mrb[0].mxu0
  %v2793 = vadd.f32 %v2753, %v2792
  %v2794 = vpop.f32.mrb[0].mxu0
  %v2795 = vpop.f32.mrb[0].mxu0
  %v2796 = vpop.f32.mrb[0].mxu0
  %2797 = vdwg.mxu0
  %2798 = vmatprep.subr.bf16.mxu0 0
  %2799 = vmatpush1.bf16.msra.mxu0 %v1926
  %2800 = vmatprep.subr.bf16.mxu0 0
  %2801 = vmatpush1.bf16.msra.mxu0 %v1927
  %2802 = vmatprep.subr.bf16.mxu0 0
  %2803 = vmatpush1.bf16.msra.mxu0 %v1928
  %2804 = vmatprep.subr.bf16.mxu0 0
  %2805 = vmatpush1.bf16.msra.mxu0 %v1929
  %2806 = vmatprep.subr.bf16.mxu0 0
  %2807 = vmatpush1.bf16.msra.mxu0 %v1930
  %2808 = vmatprep.subr.bf16.mxu0 0
  %2809 = vmatpush1.bf16.msra.mxu0 %v1931
  %2810 = vmatprep.subr.bf16.mxu0 0
  %2811 = vmatpush1.bf16.msra.mxu0 %v1932
  %2812 = vmatprep.subr.bf16.mxu0 0
  %2813 = vmatpush1.bf16.msra.mxu0 %v1933
  %2814 = vmatprep.subr.bf16.mxu0 0
  %2815 = vmatpush1.bf16.msra.mxu0 %v1934
  %2816 = vmatprep.subr.bf16.mxu0 0
  %2817 = vmatpush1.bf16.msra.mxu0 %v1935
  %2818 = vmatprep.subr.bf16.mxu0 0
  %2819 = vmatpush1.bf16.msra.mxu0 %v1936
  %2820 = vmatprep.subr.bf16.mxu0 0
  %2821 = vmatpush1.bf16.msra.mxu0 %v1937
  %2822 = vmatprep.subr.bf16.mxu0 0
  %2823 = vmatpush1.bf16.msra.mxu0 %v1938
  %2824 = vmatprep.subr.bf16.mxu0 0
  %2825 = vmatpush1.bf16.msra.mxu0 %v1939
  %2826 = vmatprep.subr.bf16.mxu0 0
  %2827 = vmatpush1.bf16.msra.mxu0 %v1940
  %2828 = vmatprep.subr.bf16.mxu0 0
  %2829 = vmatpush1.bf16.msra.mxu0 %v1941
  %2830 = vmatprep.mubr.bf16.mxu0 %v629
  %2831 = vmatmul.mubr.bf16.gmra.mrb[0].mxu0 %v628
  %v2832 = vpop.f32.mrb[0].mxu0
  %v2833 = vadd.f32 %v2793, %v2832
  %v2834 = vpop.f32.mrb[0].mxu0
  %v2835 = vpop.f32.mrb[0].mxu0
  %v2836 = vpop.f32.mrb[0].mxu0
  %2837 = vdwg.mxu0
  %v2838 = vxor.u32 %v2833, 2147483648
  %v2839 = vmul.f32 %v2838, 1.442695
  %v2840 = vpow.pop %v2839
  %v2841 = vadd.f32 %v2840, 1.0
  %v2842 = vrcp.pop %v2841
  %v2843 = vmul.f32 1.0, %v2842
  %2844 = vst [vmem:[%s3] sm:$0xff] %v2843
  // Predicated region
  $region14: #{discriminator_forward.11} parent=0 // pred_check
    _
  $region15: #{discriminator_forward.11} parent=0 // pred_check_branch
    %2846 = sbr.rel (0) target = $region17
  $region16: #{discriminator_forward.11} parent=0 // pred_region
    _
  $region17: #{discriminator_forward.11} parent=0 // pred_fallthru
    _
  // Predicated region
  $region18: #{discriminator_forward.11} parent=0 // pred_check
    _
  $region19: #{discriminator_forward.11} parent=0 // pred_check_branch
    %2848 = sbr.rel (0) target = $region21
  $region20: #{discriminator_forward.11} parent=0 // pred_region
    _
  $region21: #{discriminator_forward.11} parent=0 // pred_fallthru
    _

</llo_original>
